<compile_context>
chip_gen: v7x
topology: tpu7x:2x2x1
jax: 0.10.0
libtpu: 0.0.40
codegen_flags: <defaults>
</compile_context>

<pallas_src>
import functools
import math

import jax
import jax.numpy as jnp
import numpy as np
from jax.experimental import pallas as pl
from jax.experimental.pallas import tpu as pltpu


# ---------------------------------------------------------------------------
# Fused Pallas kernel (one batch element per grid step)
# ---------------------------------------------------------------------------
def _fused_kernel(x_ref, w1_ref, v1_ref, w2_ref, v2_ref, w3_ref, v3_ref, gm_ref,
                  o_ref, ypad_ref, *, H, W, eps):
    HW = H * W
    f32 = jnp.float32
    bf16 = jnp.bfloat16

    # -- stage 1: ConvT(64->64,k2,s2) + ReLU + BN1 (parity-packed 256 cols) --
    x = x_ref[...].astype(bf16)                                   # (HW, 64)
    a1 = jnp.dot(x, w1_ref[...], preferred_element_type=f32)      # (HW, 256)
    y1 = jnp.maximum(a1 + v1_ref[0:1, :], 0.0) * v1_ref[1:2, :] + v1_ref[2:3, :]

    # 1-coarse-pixel zero ring + interior (scratch reused by stages 2 and 3)
    ypad_ref[...] = jnp.zeros(ypad_ref.shape, f32)
    ypad_ref[1:H + 1, 1:W + 1, :] = y1.reshape(H, W, 256)

    # -- stage 2: ConvT(64->64,k3,s1,p1) + ReLU + BN2 : 9 shifted matmuls ----
    acc2 = jnp.zeros((HW, 256), f32)
    for t in range(9):
        oi, oj = t // 3, t % 3                                    # coarse shift-1
        tap = ypad_ref[oi:oi + H, oj:oj + W, :].reshape(HW, 256).astype(bf16)
        acc2 = acc2 + jnp.dot(tap, w2_ref[t], preferred_element_type=f32)
    y2 = jnp.maximum(acc2 + v2_ref[0:1, :], 0.0) * v2_ref[1:2, :] + v2_ref[2:3, :]
    ypad_ref[1:H + 1, 1:W + 1, :] = y2.reshape(H, W, 256)

    # -- stage 3: ConvT(64->9,k7,s2,p3,op1) + LayerNorm(9) : 9 matmuls -------
    acc3 = jnp.zeros((HW, 144), f32)
    for t in range(9):
        oi, oj = t // 3, t % 3
        tap = ypad_ref[oi:oi + H, oj:oj + W, :].reshape(HW, 256).astype(bf16)
        acc3 = acc3 + jnp.dot(tap, w3_ref[t], preferred_element_type=f32)
    z = acc3 + v3_ref[0:1, :]
    gm = gm_ref[...]                                              # (144, 144)
    mu = jnp.dot(z, gm, preferred_element_type=f32)               # group means
    xc = z - mu
    var = jnp.dot(xc * xc, gm, preferred_element_type=f32)        # group vars
    y = xc * jax.lax.rsqrt(var + eps) * v3_ref[1:2, :] + v3_ref[2:3, :]
    o_ref[...] = y.astype(o_ref.dtype)


def final_patch_expand_x4(x, q, input_resolution):
    """x:(B, H*W, 64) -> (y:(B, 16*H*W, 9), 4H, 4W)."""
    H, W = input_resolution
    B, L, C = x.shape
    assert L == H * W and C == 64, "C=64 is forced by ConvTranspose2d(64, 64, ...)"
    HW = H * W

    out = pl.pallas_call(
        functools.partial(_fused_kernel, H=H, W=W, eps=1e-5),
        out_shape=jax.ShapeDtypeStruct((B, HW, 144), jnp.float32),
        grid=(B,),
        in_specs=[
            pl.BlockSpec((None, HW, 64), lambda b: (b, 0, 0)),     # x
            pl.BlockSpec((64, 256), lambda b: (0, 0)),             # w1
            pl.BlockSpec((3, 256), lambda b: (0, 0)),              # (b1, s1, t1)
            pl.BlockSpec((9, 256, 256), lambda b: (0, 0, 0)),      # w2 (9 shifts)
            pl.BlockSpec((3, 256), lambda b: (0, 0)),              # (b2, s2, t2)
            pl.BlockSpec((9, 256, 144), lambda b: (0, 0, 0)),      # w3 (9 shifts)
            pl.BlockSpec((3, 144), lambda b: (0, 0)),              # (b3, gamma, beta)
            pl.BlockSpec((144, 144), lambda b: (0, 0)),            # LN group averager
        ],
        out_specs=pl.BlockSpec((None, HW, 144), lambda b: (b, 0, 0)),
        scratch_shapes=[pltpu.VMEM((H + 2, W + 2, 256), jnp.float32)],
        compiler_params=pltpu.CompilerParams(
            dimension_semantics=("parallel",),
            vmem_limit_bytes=48 * 1024 * 1024),
    )(x, q['w1'], q['v1'], q['w2'], q['v2'], q['w3'], q['v3'], q['gmat'])

    # sub-pixel interleave of the 4x4 block per coarse pixel (small final glue)
    Ho, Wo = 4 * H, 4 * W
    y = (out.reshape(B, H, W, 4, 4, 9)
            .transpose(0, 1, 3, 2, 4, 5)
            .reshape(B, Ho * Wo, 9))
    return y, Ho, Wo


# ---------------------------------------------------------------------------
# Host-side weight packing (parity-packed conv-as-shifted-matmul form)
# ---------------------------------------------------------------------------
def _build_w1(w1):
    """ConvT(k2,s2): out[2i+pi,2j+pj,co] = sum_ci x[i,j,ci]*w1[ci,co,pi,pj].
    -> (64, 256) with columns ordered (pi, pj, co)."""
    return np.transpose(w1, (0, 2, 3, 1)).reshape(64, 256)


def _build_w2big(w2):
    """ConvT(k3,s1,p1) == 3x3 conv with flipped kernel.  For each coarse shift
    (oi-1, oj-1) in {-1,0,1}^2 build the (256,256) map from the parity-packed
    input pixel (ai,aj,ci) to the parity-packed output pixel (pi,pj,co)."""
    g = w2[:, :, ::-1, ::-1]                      # g[ci,co,dr,dc] = w2[ci,co,2-dr,2-dc]
    out = np.zeros((3, 3, 2, 2, 64, 2, 2, 64), np.float32)
    for oi in range(3):
        for oj in range(3):
            for pi in range(2):
                for ai in range(2):
                    dr = 2 * (oi - 1) + ai - pi + 1
                    if not 0 <= dr <= 2:
                        continue
                    for pj in range(2):
                        for aj in range(2):
                            dc = 2 * (oj - 1) + aj - pj + 1
                            if not 0 <= dc <= 2:
                                continue
                            out[oi, oj, ai, aj, :, pi, pj, :] = g[:, :, dr, dc]
    return out.reshape(9, 256, 256)


def _build_w3big(w3):
    """ConvT(k7,s2,p3,op1) from (2H,2W,64) to (4H,4W,9).  Output row class
    mi = 2*qi + pi (R = 4i + mi); kernel row khi = (3 if pi==0 else 4) - 2*di
    with di = 2*(oi-1) + ai - qi.  -> (9, 256, 144), columns (mi, mj, co)."""
    out = np.zeros((3, 3, 2, 2, 64, 4, 4, 9), np.float32)
    for oi in range(3):
        for oj in range(3):
            for mi in range(4):
                qi, pi = mi // 2, mi % 2
                for ai in range(2):
                    di = 2 * (oi - 1) + ai - qi
                    khi = (3 if pi == 0 else 4) - 2 * di
                    if not 0 <= khi <= 6:
                        continue
                    for mj in range(4):
                        qj, pj = mj // 2, mj % 2
                        for aj in range(2):
                            dj = 2 * (oj - 1) + aj - qj
                            khj = (3 if pj == 0 else 4) - 2 * dj
                            if not 0 <= khj <= 6:
                                continue
                            out[oi, oj, ai, aj, :, mi, mj, :] = w3[:, :, khi, khj]
    return out.reshape(9, 256, 144)


# ---------------------------------------------------------------------------
# Parameters (synthetic, module shapes) + BN folding / packing
# ---------------------------------------------------------------------------
def init_params(key):
    ks = jax.random.split(key, 16)

    def convT_w(k, cin, cout, kh, kw):
        fan_out = kh * kw * cout
        return jax.random.normal(k, (cin, cout, kh, kw), jnp.float32) * math.sqrt(2.0 / fan_out)

    def vec(k, n, scale):
        return scale * jax.random.normal(k, (n,), jnp.float32)

    p = {}
    p['expand_w'] = convT_w(ks[0], 64, 64, 2, 2)
    p['expand_b'] = vec(ks[1], 64, 0.1)
    p['conv2_w'] = convT_w(ks[2], 64, 64, 3, 3)
    p['conv2_b'] = vec(ks[3], 64, 0.1)
    p['conv3_w'] = convT_w(ks[4], 64, 9, 7, 7)
    p['conv3_b'] = vec(ks[5], 9, 0.1)
    p['bn1_g'] = 1.0 + vec(ks[6], 64, 0.1)
    p['bn1_b'] = vec(ks[7], 64, 0.1)
    p['bn1_rm'] = vec(ks[8], 64, 0.1)
    p['bn1_rv'] = 0.7 + 0.6 * jax.random.uniform(ks[9], (64,), jnp.float32)
    p['bn2_g'] = 1.0 + vec(ks[10], 64, 0.1)
    p['bn2_b'] = vec(ks[11], 64, 0.1)
    p['bn2_rm'] = vec(ks[12], 64, 0.1)
    p['bn2_rv'] = 0.7 + 0.6 * jax.random.uniform(ks[13], (64,), jnp.float32)
    p['ln_g'] = 1.0 + vec(ks[14], 9, 0.1)
    p['ln_b'] = vec(ks[15], 9, 0.1)
    return p


def prepare_params(p, eps=1e-5):
    """Fold BN (inference mode) and pack conv weights into shifted-matmul form."""
    f = lambda a: np.asarray(a, np.float32)
    w1, w2, w3 = f(p['expand_w']), f(p['conv2_w']), f(p['conv3_w'])
    b1, b2, b3 = f(p['expand_b']), f(p['conv2_b']), f(p['conv3_b'])
    s1 = f(p['bn1_g']) / np.sqrt(f(p['bn1_rv']) + eps)
    t1 = f(p['bn1_b']) - f(p['bn1_rm']) * s1
    s2 = f(p['bn2_g']) / np.sqrt(f(p['bn2_rv']) + eps)
    t2 = f(p['bn2_b']) - f(p['bn2_rm']) * s2
    ln_g, ln_b = f(p['ln_g']), f(p['ln_b'])

    grp = (np.arange(144)[:, None] // 9) == (np.arange(144)[None, :] // 9)
    gmat = grp.astype(np.float32) / 9.0

    return {
        'w1': jnp.asarray(_build_w1(w1), jnp.bfloat16),
        'w2': jnp.asarray(_build_w2big(w2), jnp.bfloat16),
        'w3': jnp.asarray(_build_w3big(w3), jnp.bfloat16),
        'v1': jnp.asarray(np.stack([np.tile(b1, 4), np.tile(s1, 4), np.tile(t1, 4)])),
        'v2': jnp.asarray(np.stack([np.tile(b2, 4), np.tile(s2, 4), np.tile(t2, 4)])),
        'v3': jnp.asarray(np.stack([np.tile(b3, 16), np.tile(ln_g, 16), np.tile(ln_b, 16)])),
        'gmat': jnp.asarray(gmat),
    }


# ---------------------------------------------------------------------------
# Pure-JAX reference (mirrors the kernel's bf16 operand rounding)
# ---------------------------------------------------------------------------
def _convT_ref(x, w, b, stride, pad, out_pad):
    """ConvTranspose2d, NHWC activations, torch weight layout (Cin,Cout,kh,kw)."""
    k = w.shape[2]
    rhs = jnp.transpose(w, (2, 3, 0, 1))[::-1, ::-1, :, :]      # HWIO, flipped
    y = jax.lax.conv_general_dilated(
        x, rhs,
        window_strides=(1, 1),
        padding=[(k - 1 - pad, k - 1 - pad + out_pad)] * 2,
        lhs_dilation=(stride, stride),
        dimension_numbers=("NHWC", "HWIO", "NHWC"),
        precision=jax.lax.Precision.HIGHEST)
    return y + b.reshape(1, 1, 1, -1)


def reference_forward(x, p, H, W, eps=1e-5):
    rnd = lambda a: a.astype(jnp.bfloat16).astype(jnp.float32)
    B = x.shape[0]
    y = rnd(x).reshape(B, H, W, 64)
    y = _convT_ref(y, p['expand_w'], p['expand_b'], 2, 0, 0)
    y = jnp.maximum(y, 0.0)
    y = (y - p['bn1_rm']) * (p['bn1_g'] / jnp.sqrt(p['bn1_rv'] + eps)) + p['bn1_b']
    y = _convT_ref(rnd(y), p['conv2_w'], p['conv2_b'], 1, 1, 0)
    y = jnp.maximum(y, 0.0)
    y = (y - p['bn2_rm']) * (p['bn2_g'] / jnp.sqrt(p['bn2_rv'] + eps)) + p['bn2_b']
    y = _convT_ref(rnd(y), p['conv3_w'], p['conv3_b'], 2, 3, 1)
    Ho, Wo = y.shape[1], y.shape[2]
    y = y.reshape(B, Ho * Wo, 9)
    mu = jnp.mean(y, axis=-1, keepdims=True)
    var = jnp.mean((y - mu) ** 2, axis=-1, keepdims=True)
    y = (y - mu) / jnp.sqrt(var + eps) * p['ln_g'] + p['ln_b']
    return y, Ho, Wo


# ---------------------------------------------------------------------------
if __name__ == "__main__":
    key = jax.random.PRNGKey(0)
    kp, kx = jax.random.split(key)

    B, H, W, C = 2, 8, 8, 64          # C=64 is forced by the module's convs
    params = init_params(kp)
    # Round conv weights to bf16 once so the kernel (bf16 MXU operands) and the
    # f32 reference see identical weights; remaining diff is ~1e-4.
    for kk in ('expand_w', 'conv2_w', 'conv3_w'):
        params[kk] = params[kk].astype(jnp.bfloat16).astype(jnp.float32)
    q = prepare_params(params)
    x = jax.random.normal(kx, (B, H * W, C), jnp.float32)

    fwd = jax.jit(functools.partial(final_patch_expand_x4,
                                    input_resolution=(H, W)))
    y, Ho, Wo = fwd(x, q)
    jax.block_until_ready(y)

    assert y.shape == (B, 16 * H * W, 9) and y.dtype == jnp.float32
    assert int(Ho) == 4 * H and int(Wo) == 4 * W

    y_ref, _, _ = reference_forward(x, params, H, W)
    err = float(jnp.max(jnp.abs(y - y_ref)))
    assert err < 3e-2, f"kernel/reference mismatch: max abs err = {err}"
    print("KERNEL_OK")
</pallas_src>

<mosaic_0001>
module attributes {stable_mosaic.version = 11 : i64} {
  func.func @_fused_kernel(%arg0: i32, %arg1: memref<1x64x64xf32, #tpu.memory_space<vmem>>, %arg2: memref<64x256xbf16, #tpu.memory_space<vmem>>, %arg3: memref<3x256xf32, #tpu.memory_space<vmem>>, %arg4: memref<9x256x256xbf16, #tpu.memory_space<vmem>>, %arg5: memref<3x256xf32, #tpu.memory_space<vmem>>, %arg6: memref<9x256x144xbf16, #tpu.memory_space<vmem>>, %arg7: memref<3x144xf32, #tpu.memory_space<vmem>>, %arg8: memref<144x144xf32, #tpu.memory_space<vmem>>, %arg9: memref<1x64x144xf32, #tpu.memory_space<vmem>>, %arg10: memref<10x10x256xf32, #tpu.memory_space<vmem>>) attributes {dimension_semantics = [#tpu.dimension_semantics<parallel>], iteration_bounds = array<i64: 2>, scalar_prefetch = 0 : i64, scratch_operands = 1 : i64, tpu.core_type = #tpu.core_type<tc>, window_params = [{transform_indices = @transform_0, window_bounds = array<i64: 1, 64, 64>}, {pipeline_mode = #tpu.pipeline_mode<synchronous>, transform_indices = @transform_1, window_bounds = array<i64: 64, 256>}, {pipeline_mode = #tpu.pipeline_mode<synchronous>, transform_indices = @transform_2, window_bounds = array<i64: 3, 256>}, {pipeline_mode = #tpu.pipeline_mode<synchronous>, transform_indices = @transform_3, window_bounds = array<i64: 9, 256, 256>}, {pipeline_mode = #tpu.pipeline_mode<synchronous>, transform_indices = @transform_4, window_bounds = array<i64: 3, 256>}, {pipeline_mode = #tpu.pipeline_mode<synchronous>, transform_indices = @transform_5, window_bounds = array<i64: 9, 256, 144>}, {pipeline_mode = #tpu.pipeline_mode<synchronous>, transform_indices = @transform_6, window_bounds = array<i64: 3, 144>}, {pipeline_mode = #tpu.pipeline_mode<synchronous>, transform_indices = @transform_7, window_bounds = array<i64: 144, 144>}, {transform_indices = @transform_8, window_bounds = array<i64: 1, 64, 144>}]} {
    %c0 = arith.constant 0 : index
    %c0_0 = arith.constant 0 : index
    %c0_1 = arith.constant 0 : index
    %0 = vector.load %arg1[%c0, %c0_0, %c0_1] : memref<1x64x64xf32, #tpu.memory_space<vmem>>, vector<1x64x64xf32>
    %1 = vector.shape_cast %0 : vector<1x64x64xf32> to vector<64x64xf32>
    %2 = arith.truncf %1 : vector<64x64xf32> to vector<64x64xbf16>
    %c0_2 = arith.constant 0 : index
    %c0_3 = arith.constant 0 : index
    %3 = vector.load %arg2[%c0_2, %c0_3] : memref<64x256xbf16, #tpu.memory_space<vmem>>, vector<64x256xbf16>
    %cst = arith.constant dense<0.000000e+00> : vector<64x256xf32>
    %4 = tpu.matmul %2, %3, %cst {dimension_numbers = #tpu.dot_dimension_numbers<[1], [0], [0], [1], [0, 0, 1, 1], [], []>} : vector<64x64xbf16>, vector<64x256xbf16>, vector<64x256xf32> -> vector<64x256xf32>
    %c0_4 = arith.constant 0 : index
    %c0_5 = arith.constant 0 : index
    %5 = vector.load %arg3[%c0_4, %c0_5] : memref<3x256xf32, #tpu.memory_space<vmem>>, vector<1x256xf32>
    %6 = vector.broadcast %5 : vector<1x256xf32> to vector<64x256xf32>
    %7 = arith.addf %4, %6 : vector<64x256xf32>
    %cst_6 = arith.constant 0.000000e+00 : f32
    %8 = vector.broadcast %cst_6 : f32 to vector<64x256xf32>
    %9 = arith.maximumf %7, %8 : vector<64x256xf32>
    %c1 = arith.constant 1 : index
    %c0_7 = arith.constant 0 : index
    %10 = vector.load %arg3[%c1, %c0_7] : memref<3x256xf32, #tpu.memory_space<vmem>>, vector<1x256xf32>
    %11 = vector.broadcast %10 : vector<1x256xf32> to vector<64x256xf32>
    %12 = arith.mulf %9, %11 : vector<64x256xf32>
    %c2 = arith.constant 2 : index
    %c0_8 = arith.constant 0 : index
    %13 = vector.load %arg3[%c2, %c0_8] : memref<3x256xf32, #tpu.memory_space<vmem>>, vector<1x256xf32>
    %14 = vector.broadcast %13 : vector<1x256xf32> to vector<64x256xf32>
    %15 = arith.addf %12, %14 : vector<64x256xf32>
    %cst_9 = arith.constant 0.000000e+00 : f32
    %16 = vector.broadcast %cst_9 : f32 to vector<10x10x256xf32>
    %c0_10 = arith.constant 0 : index
    %c0_11 = arith.constant 0 : index
    %c0_12 = arith.constant 0 : index
    %17 = vector.load %arg10[%c0_10, %c0_11, %c0_12] : memref<10x10x256xf32, #tpu.memory_space<vmem>>, vector<10x10x256xf32>
    tpu.vector_store %arg10[%c0_10, %c0_11, %c0_12], %16 {strides = array<i32>} : memref<10x10x256xf32, #tpu.memory_space<vmem>>, vector<10x10x256xf32>,
    %18 = vector.shape_cast %15 : vector<64x256xf32> to vector<8x8x256xf32>
    %c1_13 = arith.constant 1 : index
    %c1_14 = arith.constant 1 : index
    %c0_15 = arith.constant 0 : index
    %19 = vector.load %arg10[%c1_13, %c1_14, %c0_15] : memref<10x10x256xf32, #tpu.memory_space<vmem>>, vector<8x8x256xf32>
    tpu.vector_store %arg10[%c1_13, %c1_14, %c0_15], %18 {strides = array<i32>} : memref<10x10x256xf32, #tpu.memory_space<vmem>>, vector<8x8x256xf32>,
    %cst_16 = arith.constant 0.000000e+00 : f32
    %20 = vector.broadcast %cst_16 : f32 to vector<64x256xf32>
    %c0_17 = arith.constant 0 : index
    %c0_18 = arith.constant 0 : index
    %c0_19 = arith.constant 0 : index
    %21 = vector.load %arg10[%c0_17, %c0_18, %c0_19] : memref<10x10x256xf32, #tpu.memory_space<vmem>>, vector<8x8x256xf32>
    %22 = vector.shape_cast %21 : vector<8x8x256xf32> to vector<64x256xf32>
    %23 = arith.truncf %22 : vector<64x256xf32> to vector<64x256xbf16>
    %c0_20 = arith.constant 0 : index
    %c0_21 = arith.constant 0 : index
    %c0_22 = arith.constant 0 : index
    %24 = vector.load %arg4[%c0_20, %c0_21, %c0_22] : memref<9x256x256xbf16, #tpu.memory_space<vmem>>, vector<1x256x256xbf16>
    %25 = vector.shape_cast %24 : vector<1x256x256xbf16> to vector<256x256xbf16>
    %cst_23 = arith.constant dense<0.000000e+00> : vector<64x256xf32>
    %26 = tpu.matmul %23, %25, %cst_23 {dimension_numbers = #tpu.dot_dimension_numbers<[1], [0], [0], [1], [0, 0, 1, 1], [], []>} : vector<64x256xbf16>, vector<256x256xbf16>, vector<64x256xf32> -> vector<64x256xf32>
    %27 = arith.addf %20, %26 : vector<64x256xf32>
    %c0_24 = arith.constant 0 : index
    %c1_25 = arith.constant 1 : index
    %c0_26 = arith.constant 0 : index
    %28 = vector.load %arg10[%c0_24, %c1_25, %c0_26] : memref<10x10x256xf32, #tpu.memory_space<vmem>>, vector<8x8x256xf32>
    %29 = vector.shape_cast %28 : vector<8x8x256xf32> to vector<64x256xf32>
    %30 = arith.truncf %29 : vector<64x256xf32> to vector<64x256xbf16>
    %c1_27 = arith.constant 1 : index
    %c0_28 = arith.constant 0 : index
    %c0_29 = arith.constant 0 : index
    %31 = vector.load %arg4[%c1_27, %c0_28, %c0_29] : memref<9x256x256xbf16, #tpu.memory_space<vmem>>, vector<1x256x256xbf16>
    %32 = vector.shape_cast %31 : vector<1x256x256xbf16> to vector<256x256xbf16>
    %cst_30 = arith.constant dense<0.000000e+00> : vector<64x256xf32>
    %33 = tpu.matmul %30, %32, %cst_30 {dimension_numbers = #tpu.dot_dimension_numbers<[1], [0], [0], [1], [0, 0, 1, 1], [], []>} : vector<64x256xbf16>, vector<256x256xbf16>, vector<64x256xf32> -> vector<64x256xf32>
    %34 = arith.addf %27, %33 : vector<64x256xf32>
    %c0_31 = arith.constant 0 : index
    %c2_32 = arith.constant 2 : index
    %c0_33 = arith.constant 0 : index
    %35 = vector.load %arg10[%c0_31, %c2_32, %c0_33] : memref<10x10x256xf32, #tpu.memory_space<vmem>>, vector<8x8x256xf32>
    %36 = vector.shape_cast %35 : vector<8x8x256xf32> to vector<64x256xf32>
    %37 = arith.truncf %36 : vector<64x256xf32> to vector<64x256xbf16>
    %c2_34 = arith.constant 2 : index
    %c0_35 = arith.constant 0 : index
    %c0_36 = arith.constant 0 : index
    %38 = vector.load %arg4[%c2_34, %c0_35, %c0_36] : memref<9x256x256xbf16, #tpu.memory_space<vmem>>, vector<1x256x256xbf16>
    %39 = vector.shape_cast %38 : vector<1x256x256xbf16> to vector<256x256xbf16>
    %cst_37 = arith.constant dense<0.000000e+00> : vector<64x256xf32>
    %40 = tpu.matmul %37, %39, %cst_37 {dimension_numbers = #tpu.dot_dimension_numbers<[1], [0], [0], [1], [0, 0, 1, 1], [], []>} : vector<64x256xbf16>, vector<256x256xbf16>, vector<64x256xf32> -> vector<64x256xf32>
    %41 = arith.addf %34, %40 : vector<64x256xf32>
    %c1_38 = arith.constant 1 : index
    %c0_39 = arith.constant 0 : index
    %c0_40 = arith.constant 0 : index
    %42 = vector.load %arg10[%c1_38, %c0_39, %c0_40] : memref<10x10x256xf32, #tpu.memory_space<vmem>>, vector<8x8x256xf32>
    %43 = vector.shape_cast %42 : vector<8x8x256xf32> to vector<64x256xf32>
    %44 = arith.truncf %43 : vector<64x256xf32> to vector<64x256xbf16>
    %c3 = arith.constant 3 : index
    %c0_41 = arith.constant 0 : index
    %c0_42 = arith.constant 0 : index
    %45 = vector.load %arg4[%c3, %c0_41, %c0_42] : memref<9x256x256xbf16, #tpu.memory_space<vmem>>, vector<1x256x256xbf16>
    %46 = vector.shape_cast %45 : vector<1x256x256xbf16> to vector<256x256xbf16>
    %cst_43 = arith.constant dense<0.000000e+00> : vector<64x256xf32>
    %47 = tpu.matmul %44, %46, %cst_43 {dimension_numbers = #tpu.dot_dimension_numbers<[1], [0], [0], [1], [0, 0, 1, 1], [], []>} : vector<64x256xbf16>, vector<256x256xbf16>, vector<64x256xf32> -> vector<64x256xf32>
    %48 = arith.addf %41, %47 : vector<64x256xf32>
    %c1_44 = arith.constant 1 : index
    %c1_45 = arith.constant 1 : index
    %c0_46 = arith.constant 0 : index
    %49 = vector.load %arg10[%c1_44, %c1_45, %c0_46] : memref<10x10x256xf32, #tpu.memory_space<vmem>>, vector<8x8x256xf32>
    %50 = vector.shape_cast %49 : vector<8x8x256xf32> to vector<64x256xf32>
    %51 = arith.truncf %50 : vector<64x256xf32> to vector<64x256xbf16>
    %c4 = arith.constant 4 : index
    %c0_47 = arith.constant 0 : index
    %c0_48 = arith.constant 0 : index
    %52 = vector.load %arg4[%c4, %c0_47, %c0_48] : memref<9x256x256xbf16, #tpu.memory_space<vmem>>, vector<1x256x256xbf16>
    %53 = vector.shape_cast %52 : vector<1x256x256xbf16> to vector<256x256xbf16>
    %cst_49 = arith.constant dense<0.000000e+00> : vector<64x256xf32>
    %54 = tpu.matmul %51, %53, %cst_49 {dimension_numbers = #tpu.dot_dimension_numbers<[1], [0], [0], [1], [0, 0, 1, 1], [], []>} : vector<64x256xbf16>, vector<256x256xbf16>, vector<64x256xf32> -> vector<64x256xf32>
    %55 = arith.addf %48, %54 : vector<64x256xf32>
    %c1_50 = arith.constant 1 : index
    %c2_51 = arith.constant 2 : index
    %c0_52 = arith.constant 0 : index
    %56 = vector.load %arg10[%c1_50, %c2_51, %c0_52] : memref<10x10x256xf32, #tpu.memory_space<vmem>>, vector<8x8x256xf32>
    %57 = vector.shape_cast %56 : vector<8x8x256xf32> to vector<64x256xf32>
    %58 = arith.truncf %57 : vector<64x256xf32> to vector<64x256xbf16>
    %c5 = arith.constant 5 : index
    %c0_53 = arith.constant 0 : index
    %c0_54 = arith.constant 0 : index
    %59 = vector.load %arg4[%c5, %c0_53, %c0_54] : memref<9x256x256xbf16, #tpu.memory_space<vmem>>, vector<1x256x256xbf16>
    %60 = vector.shape_cast %59 : vector<1x256x256xbf16> to vector<256x256xbf16>
    %cst_55 = arith.constant dense<0.000000e+00> : vector<64x256xf32>
    %61 = tpu.matmul %58, %60, %cst_55 {dimension_numbers = #tpu.dot_dimension_numbers<[1], [0], [0], [1], [0, 0, 1, 1], [], []>} : vector<64x256xbf16>, vector<256x256xbf16>, vector<64x256xf32> -> vector<64x256xf32>
    %62 = arith.addf %55, %61 : vector<64x256xf32>
    %c2_56 = arith.constant 2 : index
    %c0_57 = arith.constant 0 : index
    %c0_58 = arith.constant 0 : index
    %63 = vector.load %arg10[%c2_56, %c0_57, %c0_58] : memref<10x10x256xf32, #tpu.memory_space<vmem>>, vector<8x8x256xf32>
    %64 = vector.shape_cast %63 : vector<8x8x256xf32> to vector<64x256xf32>
    %65 = arith.truncf %64 : vector<64x256xf32> to vector<64x256xbf16>
    %c6 = arith.constant 6 : index
    %c0_59 = arith.constant 0 : index
    %c0_60 = arith.constant 0 : index
    %66 = vector.load %arg4[%c6, %c0_59, %c0_60] : memref<9x256x256xbf16, #tpu.memory_space<vmem>>, vector<1x256x256xbf16>
    %67 = vector.shape_cast %66 : vector<1x256x256xbf16> to vector<256x256xbf16>
    %cst_61 = arith.constant dense<0.000000e+00> : vector<64x256xf32>
    %68 = tpu.matmul %65, %67, %cst_61 {dimension_numbers = #tpu.dot_dimension_numbers<[1], [0], [0], [1], [0, 0, 1, 1], [], []>} : vector<64x256xbf16>, vector<256x256xbf16>, vector<64x256xf32> -> vector<64x256xf32>
    %69 = arith.addf %62, %68 : vector<64x256xf32>
    %c2_62 = arith.constant 2 : index
    %c1_63 = arith.constant 1 : index
    %c0_64 = arith.constant 0 : index
    %70 = vector.load %arg10[%c2_62, %c1_63, %c0_64] : memref<10x10x256xf32, #tpu.memory_space<vmem>>, vector<8x8x256xf32>
    %71 = vector.shape_cast %70 : vector<8x8x256xf32> to vector<64x256xf32>
    %72 = arith.truncf %71 : vector<64x256xf32> to vector<64x256xbf16>
    %c7 = arith.constant 7 : index
    %c0_65 = arith.constant 0 : index
    %c0_66 = arith.constant 0 : index
    %73 = vector.load %arg4[%c7, %c0_65, %c0_66] : memref<9x256x256xbf16, #tpu.memory_space<vmem>>, vector<1x256x256xbf16>
    %74 = vector.shape_cast %73 : vector<1x256x256xbf16> to vector<256x256xbf16>
    %cst_67 = arith.constant dense<0.000000e+00> : vector<64x256xf32>
    %75 = tpu.matmul %72, %74, %cst_67 {dimension_numbers = #tpu.dot_dimension_numbers<[1], [0], [0], [1], [0, 0, 1, 1], [], []>} : vector<64x256xbf16>, vector<256x256xbf16>, vector<64x256xf32> -> vector<64x256xf32>
    %76 = arith.addf %69, %75 : vector<64x256xf32>
    %c2_68 = arith.constant 2 : index
    %c2_69 = arith.constant 2 : index
    %c0_70 = arith.constant 0 : index
    %77 = vector.load %arg10[%c2_68, %c2_69, %c0_70] : memref<10x10x256xf32, #tpu.memory_space<vmem>>, vector<8x8x256xf32>
    %78 = vector.shape_cast %77 : vector<8x8x256xf32> to vector<64x256xf32>
    %79 = arith.truncf %78 : vector<64x256xf32> to vector<64x256xbf16>
    %c8 = arith.constant 8 : index
    %c0_71 = arith.constant 0 : index
    %c0_72 = arith.constant 0 : index
    %80 = vector.load %arg4[%c8, %c0_71, %c0_72] : memref<9x256x256xbf16, #tpu.memory_space<vmem>>, vector<1x256x256xbf16>
    %81 = vector.shape_cast %80 : vector<1x256x256xbf16> to vector<256x256xbf16>
    %cst_73 = arith.constant dense<0.000000e+00> : vector<64x256xf32>
    %82 = tpu.matmul %79, %81, %cst_73 {dimension_numbers = #tpu.dot_dimension_numbers<[1], [0], [0], [1], [0, 0, 1, 1], [], []>} : vector<64x256xbf16>, vector<256x256xbf16>, vector<64x256xf32> -> vector<64x256xf32>
    %83 = arith.addf %76, %82 : vector<64x256xf32>
    %c0_74 = arith.constant 0 : index
    %c0_75 = arith.constant 0 : index
    %84 = vector.load %arg5[%c0_74, %c0_75] : memref<3x256xf32, #tpu.memory_space<vmem>>, vector<1x256xf32>
    %85 = vector.broadcast %84 : vector<1x256xf32> to vector<64x256xf32>
    %86 = arith.addf %83, %85 : vector<64x256xf32>
    %cst_76 = arith.constant 0.000000e+00 : f32
    %87 = vector.broadcast %cst_76 : f32 to vector<64x256xf32>
    %88 = arith.maximumf %86, %87 : vector<64x256xf32>
    %c1_77 = arith.constant 1 : index
    %c0_78 = arith.constant 0 : index
    %89 = vector.load %arg5[%c1_77, %c0_78] : memref<3x256xf32, #tpu.memory_space<vmem>>, vector<1x256xf32>
    %90 = vector.broadcast %89 : vector<1x256xf32> to vector<64x256xf32>
    %91 = arith.mulf %88, %90 : vector<64x256xf32>
    %c2_79 = arith.constant 2 : index
    %c0_80 = arith.constant 0 : index
    %92 = vector.load %arg5[%c2_79, %c0_80] : memref<3x256xf32, #tpu.memory_space<vmem>>, vector<1x256xf32>
    %93 = vector.broadcast %92 : vector<1x256xf32> to vector<64x256xf32>
    %94 = arith.addf %91, %93 : vector<64x256xf32>
    %95 = vector.shape_cast %94 : vector<64x256xf32> to vector<8x8x256xf32>
    %c1_81 = arith.constant 1 : index
    %c1_82 = arith.constant 1 : index
    %c0_83 = arith.constant 0 : index
    %96 = vector.load %arg10[%c1_81, %c1_82, %c0_83] : memref<10x10x256xf32, #tpu.memory_space<vmem>>, vector<8x8x256xf32>
    tpu.vector_store %arg10[%c1_81, %c1_82, %c0_83], %95 {strides = array<i32>} : memref<10x10x256xf32, #tpu.memory_space<vmem>>, vector<8x8x256xf32>,
    %cst_84 = arith.constant 0.000000e+00 : f32
    %97 = vector.broadcast %cst_84 : f32 to vector<64x144xf32>
    %c0_85 = arith.constant 0 : index
    %c0_86 = arith.constant 0 : index
    %c0_87 = arith.constant 0 : index
    %98 = vector.load %arg10[%c0_85, %c0_86, %c0_87] : memref<10x10x256xf32, #tpu.memory_space<vmem>>, vector<8x8x256xf32>
    %99 = vector.shape_cast %98 : vector<8x8x256xf32> to vector<64x256xf32>
    %100 = arith.truncf %99 : vector<64x256xf32> to vector<64x256xbf16>
    %c0_88 = arith.constant 0 : index
    %c0_89 = arith.constant 0 : index
    %c0_90 = arith.constant 0 : index
    %101 = vector.load %arg6[%c0_88, %c0_89, %c0_90] : memref<9x256x144xbf16, #tpu.memory_space<vmem>>, vector<1x256x144xbf16>
    %102 = vector.shape_cast %101 : vector<1x256x144xbf16> to vector<256x144xbf16>
    %cst_91 = arith.constant dense<0.000000e+00> : vector<64x144xf32>
    %103 = tpu.matmul %100, %102, %cst_91 {dimension_numbers = #tpu.dot_dimension_numbers<[1], [0], [0], [1], [0, 0, 1, 1], [], []>} : vector<64x256xbf16>, vector<256x144xbf16>, vector<64x144xf32> -> vector<64x144xf32>
    %104 = arith.addf %97, %103 : vector<64x144xf32>
    %c0_92 = arith.constant 0 : index
    %c1_93 = arith.constant 1 : index
    %c0_94 = arith.constant 0 : index
    %105 = vector.load %arg10[%c0_92, %c1_93, %c0_94] : memref<10x10x256xf32, #tpu.memory_space<vmem>>, vector<8x8x256xf32>
    %106 = vector.shape_cast %105 : vector<8x8x256xf32> to vector<64x256xf32>
    %107 = arith.truncf %106 : vector<64x256xf32> to vector<64x256xbf16>
    %c1_95 = arith.constant 1 : index
    %c0_96 = arith.constant 0 : index
    %c0_97 = arith.constant 0 : index
    %108 = vector.load %arg6[%c1_95, %c0_96, %c0_97] : memref<9x256x144xbf16, #tpu.memory_space<vmem>>, vector<1x256x144xbf16>
    %109 = vector.shape_cast %108 : vector<1x256x144xbf16> to vector<256x144xbf16>
    %cst_98 = arith.constant dense<0.000000e+00> : vector<64x144xf32>
    %110 = tpu.matmul %107, %109, %cst_98 {dimension_numbers = #tpu.dot_dimension_numbers<[1], [0], [0], [1], [0, 0, 1, 1], [], []>} : vector<64x256xbf16>, vector<256x144xbf16>, vector<64x144xf32> -> vector<64x144xf32>
    %111 = arith.addf %104, %110 : vector<64x144xf32>
    %c0_99 = arith.constant 0 : index
    %c2_100 = arith.constant 2 : index
    %c0_101 = arith.constant 0 : index
    %112 = vector.load %arg10[%c0_99, %c2_100, %c0_101] : memref<10x10x256xf32, #tpu.memory_space<vmem>>, vector<8x8x256xf32>
    %113 = vector.shape_cast %112 : vector<8x8x256xf32> to vector<64x256xf32>
    %114 = arith.truncf %113 : vector<64x256xf32> to vector<64x256xbf16>
    %c2_102 = arith.constant 2 : index
    %c0_103 = arith.constant 0 : index
    %c0_104 = arith.constant 0 : index
    %115 = vector.load %arg6[%c2_102, %c0_103, %c0_104] : memref<9x256x144xbf16, #tpu.memory_space<vmem>>, vector<1x256x144xbf16>
    %116 = vector.shape_cast %115 : vector<1x256x144xbf16> to vector<256x144xbf16>
    %cst_105 = arith.constant dense<0.000000e+00> : vector<64x144xf32>
    %117 = tpu.matmul %114, %116, %cst_105 {dimension_numbers = #tpu.dot_dimension_numbers<[1], [0], [0], [1], [0, 0, 1, 1], [], []>} : vector<64x256xbf16>, vector<256x144xbf16>, vector<64x144xf32> -> vector<64x144xf32>
    %118 = arith.addf %111, %117 : vector<64x144xf32>
    %c1_106 = arith.constant 1 : index
    %c0_107 = arith.constant 0 : index
    %c0_108 = arith.constant 0 : index
    %119 = vector.load %arg10[%c1_106, %c0_107, %c0_108] : memref<10x10x256xf32, #tpu.memory_space<vmem>>, vector<8x8x256xf32>
    %120 = vector.shape_cast %119 : vector<8x8x256xf32> to vector<64x256xf32>
    %121 = arith.truncf %120 : vector<64x256xf32> to vector<64x256xbf16>
    %c3_109 = arith.constant 3 : index
    %c0_110 = arith.constant 0 : index
    %c0_111 = arith.constant 0 : index
    %122 = vector.load %arg6[%c3_109, %c0_110, %c0_111] : memref<9x256x144xbf16, #tpu.memory_space<vmem>>, vector<1x256x144xbf16>
    %123 = vector.shape_cast %122 : vector<1x256x144xbf16> to vector<256x144xbf16>
    %cst_112 = arith.constant dense<0.000000e+00> : vector<64x144xf32>
    %124 = tpu.matmul %121, %123, %cst_112 {dimension_numbers = #tpu.dot_dimension_numbers<[1], [0], [0], [1], [0, 0, 1, 1], [], []>} : vector<64x256xbf16>, vector<256x144xbf16>, vector<64x144xf32> -> vector<64x144xf32>
    %125 = arith.addf %118, %124 : vector<64x144xf32>
    %c1_113 = arith.constant 1 : index
    %c1_114 = arith.constant 1 : index
    %c0_115 = arith.constant 0 : index
    %126 = vector.load %arg10[%c1_113, %c1_114, %c0_115] : memref<10x10x256xf32, #tpu.memory_space<vmem>>, vector<8x8x256xf32>
    %127 = vector.shape_cast %126 : vector<8x8x256xf32> to vector<64x256xf32>
    %128 = arith.truncf %127 : vector<64x256xf32> to vector<64x256xbf16>
    %c4_116 = arith.constant 4 : index
    %c0_117 = arith.constant 0 : index
    %c0_118 = arith.constant 0 : index
    %129 = vector.load %arg6[%c4_116, %c0_117, %c0_118] : memref<9x256x144xbf16, #tpu.memory_space<vmem>>, vector<1x256x144xbf16>
    %130 = vector.shape_cast %129 : vector<1x256x144xbf16> to vector<256x144xbf16>
    %cst_119 = arith.constant dense<0.000000e+00> : vector<64x144xf32>
    %131 = tpu.matmul %128, %130, %cst_119 {dimension_numbers = #tpu.dot_dimension_numbers<[1], [0], [0], [1], [0, 0, 1, 1], [], []>} : vector<64x256xbf16>, vector<256x144xbf16>, vector<64x144xf32> -> vector<64x144xf32>
    %132 = arith.addf %125, %131 : vector<64x144xf32>
    %c1_120 = arith.constant 1 : index
    %c2_121 = arith.constant 2 : index
    %c0_122 = arith.constant 0 : index
    %133 = vector.load %arg10[%c1_120, %c2_121, %c0_122] : memref<10x10x256xf32, #tpu.memory_space<vmem>>, vector<8x8x256xf32>
    %134 = vector.shape_cast %133 : vector<8x8x256xf32> to vector<64x256xf32>
    %135 = arith.truncf %134 : vector<64x256xf32> to vector<64x256xbf16>
    %c5_123 = arith.constant 5 : index
    %c0_124 = arith.constant 0 : index
    %c0_125 = arith.constant 0 : index
    %136 = vector.load %arg6[%c5_123, %c0_124, %c0_125] : memref<9x256x144xbf16, #tpu.memory_space<vmem>>, vector<1x256x144xbf16>
    %137 = vector.shape_cast %136 : vector<1x256x144xbf16> to vector<256x144xbf16>
    %cst_126 = arith.constant dense<0.000000e+00> : vector<64x144xf32>
    %138 = tpu.matmul %135, %137, %cst_126 {dimension_numbers = #tpu.dot_dimension_numbers<[1], [0], [0], [1], [0, 0, 1, 1], [], []>} : vector<64x256xbf16>, vector<256x144xbf16>, vector<64x144xf32> -> vector<64x144xf32>
    %139 = arith.addf %132, %138 : vector<64x144xf32>
    %c2_127 = arith.constant 2 : index
    %c0_128 = arith.constant 0 : index
    %c0_129 = arith.constant 0 : index
    %140 = vector.load %arg10[%c2_127, %c0_128, %c0_129] : memref<10x10x256xf32, #tpu.memory_space<vmem>>, vector<8x8x256xf32>
    %141 = vector.shape_cast %140 : vector<8x8x256xf32> to vector<64x256xf32>
    %142 = arith.truncf %141 : vector<64x256xf32> to vector<64x256xbf16>
    %c6_130 = arith.constant 6 : index
    %c0_131 = arith.constant 0 : index
    %c0_132 = arith.constant 0 : index
    %143 = vector.load %arg6[%c6_130, %c0_131, %c0_132] : memref<9x256x144xbf16, #tpu.memory_space<vmem>>, vector<1x256x144xbf16>
    %144 = vector.shape_cast %143 : vector<1x256x144xbf16> to vector<256x144xbf16>
    %cst_133 = arith.constant dense<0.000000e+00> : vector<64x144xf32>
    %145 = tpu.matmul %142, %144, %cst_133 {dimension_numbers = #tpu.dot_dimension_numbers<[1], [0], [0], [1], [0, 0, 1, 1], [], []>} : vector<64x256xbf16>, vector<256x144xbf16>, vector<64x144xf32> -> vector<64x144xf32>
    %146 = arith.addf %139, %145 : vector<64x144xf32>
    %c2_134 = arith.constant 2 : index
    %c1_135 = arith.constant 1 : index
    %c0_136 = arith.constant 0 : index
    %147 = vector.load %arg10[%c2_134, %c1_135, %c0_136] : memref<10x10x256xf32, #tpu.memory_space<vmem>>, vector<8x8x256xf32>
    %148 = vector.shape_cast %147 : vector<8x8x256xf32> to vector<64x256xf32>
    %149 = arith.truncf %148 : vector<64x256xf32> to vector<64x256xbf16>
    %c7_137 = arith.constant 7 : index
    %c0_138 = arith.constant 0 : index
    %c0_139 = arith.constant 0 : index
    %150 = vector.load %arg6[%c7_137, %c0_138, %c0_139] : memref<9x256x144xbf16, #tpu.memory_space<vmem>>, vector<1x256x144xbf16>
    %151 = vector.shape_cast %150 : vector<1x256x144xbf16> to vector<256x144xbf16>
    %cst_140 = arith.constant dense<0.000000e+00> : vector<64x144xf32>
    %152 = tpu.matmul %149, %151, %cst_140 {dimension_numbers = #tpu.dot_dimension_numbers<[1], [0], [0], [1], [0, 0, 1, 1], [], []>} : vector<64x256xbf16>, vector<256x144xbf16>, vector<64x144xf32> -> vector<64x144xf32>
    %153 = arith.addf %146, %152 : vector<64x144xf32>
    %c2_141 = arith.constant 2 : index
    %c2_142 = arith.constant 2 : index
    %c0_143 = arith.constant 0 : index
    %154 = vector.load %arg10[%c2_141, %c2_142, %c0_143] : memref<10x10x256xf32, #tpu.memory_space<vmem>>, vector<8x8x256xf32>
    %155 = vector.shape_cast %154 : vector<8x8x256xf32> to vector<64x256xf32>
    %156 = arith.truncf %155 : vector<64x256xf32> to vector<64x256xbf16>
    %c8_144 = arith.constant 8 : index
    %c0_145 = arith.constant 0 : index
    %c0_146 = arith.constant 0 : index
    %157 = vector.load %arg6[%c8_144, %c0_145, %c0_146] : memref<9x256x144xbf16, #tpu.memory_space<vmem>>, vector<1x256x144xbf16>
    %158 = vector.shape_cast %157 : vector<1x256x144xbf16> to vector<256x144xbf16>
    %cst_147 = arith.constant dense<0.000000e+00> : vector<64x144xf32>
    %159 = tpu.matmul %156, %158, %cst_147 {dimension_numbers = #tpu.dot_dimension_numbers<[1], [0], [0], [1], [0, 0, 1, 1], [], []>} : vector<64x256xbf16>, vector<256x144xbf16>, vector<64x144xf32> -> vector<64x144xf32>
    %160 = arith.addf %153, %159 : vector<64x144xf32>
    %c0_148 = arith.constant 0 : index
    %c0_149 = arith.constant 0 : index
    %161 = vector.load %arg7[%c0_148, %c0_149] : memref<3x144xf32, #tpu.memory_space<vmem>>, vector<1x144xf32>
    %162 = vector.broadcast %161 : vector<1x144xf32> to vector<64x144xf32>
    %163 = arith.addf %160, %162 : vector<64x144xf32>
    %c0_150 = arith.constant 0 : index
    %c0_151 = arith.constant 0 : index
    %164 = vector.load %arg8[%c0_150, %c0_151] : memref<144x144xf32, #tpu.memory_space<vmem>>, vector<144x144xf32>
    %cst_152 = arith.constant dense<0.000000e+00> : vector<64x144xf32>
    %165 = tpu.matmul %163, %164, %cst_152 {dimension_numbers = #tpu.dot_dimension_numbers<[1], [0], [0], [1], [0, 0, 1, 1], [], []>} : vector<64x144xf32>, vector<144x144xf32>, vector<64x144xf32> -> vector<64x144xf32>
    %166 = arith.subf %163, %165 : vector<64x144xf32>
    %167 = arith.mulf %166, %166 : vector<64x144xf32>
    %cst_153 = arith.constant dense<0.000000e+00> : vector<64x144xf32>
    %168 = tpu.matmul %167, %164, %cst_153 {dimension_numbers = #tpu.dot_dimension_numbers<[1], [0], [0], [1], [0, 0, 1, 1], [], []>} : vector<64x144xf32>, vector<144x144xf32>, vector<64x144xf32> -> vector<64x144xf32>
    %cst_154 = arith.constant 9.99999974E-6 : f32
    %169 = vector.broadcast %cst_154 : f32 to vector<64x144xf32>
    %170 = arith.addf %168, %169 : vector<64x144xf32>
    %171 = math.rsqrt %170 : vector<64x144xf32>
    %172 = arith.mulf %166, %171 : vector<64x144xf32>
    %c1_155 = arith.constant 1 : index
    %c0_156 = arith.constant 0 : index
    %173 = vector.load %arg7[%c1_155, %c0_156] : memref<3x144xf32, #tpu.memory_space<vmem>>, vector<1x144xf32>
    %174 = vector.broadcast %173 : vector<1x144xf32> to vector<64x144xf32>
    %175 = arith.mulf %172, %174 : vector<64x144xf32>
    %c2_157 = arith.constant 2 : index
    %c0_158 = arith.constant 0 : index
    %176 = vector.load %arg7[%c2_157, %c0_158] : memref<3x144xf32, #tpu.memory_space<vmem>>, vector<1x144xf32>
    %177 = vector.broadcast %176 : vector<1x144xf32> to vector<64x144xf32>
    %178 = arith.addf %175, %177 : vector<64x144xf32>
    %c0_159 = arith.constant 0 : index
    %c0_160 = arith.constant 0 : index
    %c0_161 = arith.constant 0 : index
    %179 = vector.load %arg9[%c0_159, %c0_160, %c0_161] : memref<1x64x144xf32, #tpu.memory_space<vmem>>, vector<1x64x144xf32>
    %180 = vector.shape_cast %179 : vector<1x64x144xf32> to vector<64x144xf32>
    %181 = vector.shape_cast %178 : vector<64x144xf32> to vector<1x64x144xf32>
    tpu.vector_store %arg9[%c0_159, %c0_160, %c0_161], %181 {strides = array<i32>} : memref<1x64x144xf32, #tpu.memory_space<vmem>>, vector<1x64x144xf32>,
    return
  }
  func.func @transform_0(%arg0: i32) -> (i32, i32, i32) {
    %c0_i32 = arith.constant 0 : i32
    %c0_i32_0 = arith.constant 0 : i32
    %c0_i32_1 = arith.constant 0 : i32
    return %arg0, %c0_i32, %c0_i32_0 : i32, i32, i32
  }
  func.func @transform_1(%arg0: i32) -> (i32, i32) {
    %c0_i32 = arith.constant 0 : i32
    %c0_i32_0 = arith.constant 0 : i32
    %c0_i32_1 = arith.constant 0 : i32
    return %c0_i32, %c0_i32_0 : i32, i32
  }
  func.func @transform_2(%arg0: i32) -> (i32, i32) {
    %c0_i32 = arith.constant 0 : i32
    %c0_i32_0 = arith.constant 0 : i32
    %c0_i32_1 = arith.constant 0 : i32
    return %c0_i32, %c0_i32_0 : i32, i32
  }
  func.func @transform_3(%arg0: i32) -> (i32, i32, i32) {
    %c0_i32 = arith.constant 0 : i32
    %c0_i32_0 = arith.constant 0 : i32
    %c0_i32_1 = arith.constant 0 : i32
    %c0_i32_2 = arith.constant 0 : i32
    return %c0_i32, %c0_i32_0, %c0_i32_1 : i32, i32, i32
  }
  func.func @transform_4(%arg0: i32) -> (i32, i32) {
    %c0_i32 = arith.constant 0 : i32
    %c0_i32_0 = arith.constant 0 : i32
    %c0_i32_1 = arith.constant 0 : i32
    return %c0_i32, %c0_i32_0 : i32, i32
  }
  func.func @transform_5(%arg0: i32) -> (i32, i32, i32) {
    %c0_i32 = arith.constant 0 : i32
    %c0_i32_0 = arith.constant 0 : i32
    %c0_i32_1 = arith.constant 0 : i32
    %c0_i32_2 = arith.constant 0 : i32
    return %c0_i32, %c0_i32_0, %c0_i32_1 : i32, i32, i32
  }
  func.func @transform_6(%arg0: i32) -> (i32, i32) {
    %c0_i32 = arith.constant 0 : i32
    %c0_i32_0 = arith.constant 0 : i32
    %c0_i32_1 = arith.constant 0 : i32
    return %c0_i32, %c0_i32_0 : i32, i32
  }
  func.func @transform_7(%arg0: i32) -> (i32, i32) {
    %c0_i32 = arith.constant 0 : i32
    %c0_i32_0 = arith.constant 0 : i32
    %c0_i32_1 = arith.constant 0 : i32
    return %c0_i32, %c0_i32_0 : i32, i32
  }
  func.func @transform_8(%arg0: i32) -> (i32, i32, i32) {
    %c0_i32 = arith.constant 0 : i32
    %c0_i32_0 = arith.constant 0 : i32
    %c0_i32_1 = arith.constant 0 : i32
    return %arg0, %c0_i32, %c0_i32_0 : i32, i32, i32
  }
}

</mosaic_0001>

<llo_original>
// kernel: final_patch_expand_x4.1
$region0: #{final_patch_expand_x4.1}
  #allocation0 [shape = 'u32[]', space=smem, size = 0x4, offset = 0x4, fixed_abs, tag = 'smem constant byte address 0x4 - core index']
  #allocation1 [shape = 'u32[144,128]{1,0:T(1,128)}', space=vmem, size = 0x12000, scoped, tag = 'internal scratch']
  #allocation2 [shape = 'f32[10,10,256]{2,1,0:T(8,128)}', space=vmem, size = 0x28000, scoped, tag = 'scratch operand']
  %s0 = inlined_call_operand.vmem [shape: f32[2,64,64], index: 0, kind: input, shape index: {}]
  %s1 = inlined_call_operand.vmem [shape: bf16[64,256], index: 1, kind: input, shape index: {}]
  %s2 = inlined_call_operand.vmem [shape: f32[3,256], index: 2, kind: input, shape index: {}]
  %s3 = inlined_call_operand.vmem [shape: bf16[9,256,256], index: 3, kind: input, shape index: {}]
  %s4 = inlined_call_operand.vmem [shape: f32[3,256], index: 4, kind: input, shape index: {}]
  %s5 = inlined_call_operand.vmem [shape: bf16[9,256,144], index: 5, kind: input, shape index: {}]
  %s6 = inlined_call_operand.vmem [shape: f32[3,144], index: 6, kind: input, shape index: {}]
  %s7 = inlined_call_operand.vmem [shape: f32[144,144], index: 7, kind: input, shape index: {}]
  %s8 = inlined_call_operand.vmem [shape: f32[2,64,144], index: 8, kind: output, shape index: {}]
  %s9 = sld [smem:[#allocation0]]
  $region65: #{final_patch_expand_x4.1} parent=0
    _
  %s11 = ssub.s32 1, %s9
  %s12 = scalar_select 0, %s11, %s9
  loop: start=0, step=1, limit=4
  $region2: #{final_patch_expand_x4.1} parent=0 // loop_pre_header
    _
  $region3: #{final_patch_expand_x4.1} parent=0 // loop_header
    %s14 = sphi 0, %s18
    %p15 = scmp.ge.s32.totalorder %s14, 4
    %s24 = sphi 0, %s26
    %s27 = sphi 0, %s24
    %s28 = sphi 0, %s27
    %s44 = sphi 0, %s28
    %s48 = sphi 0, %s48
    %s50 = sphi 0, %s48
    %s51 = sphi 0, %s50
    %s65 = sphi 0, %s51
    %s69 = sphi 0, %s69
    %s71 = sphi 0, %s69
    %s72 = sphi 0, %s71
    %s86 = sphi 0, %s72
    %s90 = sphi 0, %s90
    %s92 = sphi 0, %s90
    %s93 = sphi 0, %s92
    %s107 = sphi 0, %s93
    %s111 = sphi 0, %s111
    %s113 = sphi 0, %s111
    %s114 = sphi 0, %s113
    %s128 = sphi 0, %s114
    %s132 = sphi 0, %s132
    %s134 = sphi 0, %s132
    %s135 = sphi 0, %s134
    %s149 = sphi 0, %s135
    %s153 = sphi 0, %s153
    %s155 = sphi 0, %s153
    %s156 = sphi 0, %s155
    %s170 = sphi 0, %s156
    %s174 = sphi 0, %s174
    %s176 = sphi 0, %s174
    %s177 = sphi 0, %s176
    %s191 = sphi 0, %s177
    %s197 = sphi 0, %s199
    %s200 = sphi 0, %s197
    %s201 = sphi 0, %s200
    %s217 = sphi 0, %s201
  $region4: #{final_patch_expand_x4.1} parent=0 // loop_header_branch
    %17 = sbr.rel (%p15) target = $region8
  $region5: #{final_patch_expand_x4.1} parent=0 // loop_body
    %s19 = ssub.s32 %s14, 1
    %s20 = ssub.s32 %s14, 2
    %s21 = sadd.s32 %s14, 1
    %s22 = ssub.s32 %s14, %s21
    %p23 = scmp.eq.s32.totalorder %s22, 0
    %s25 = sadd.s32 %s24, 1
    %s26 = scalar_select %p23, %s24, %s25
    %p29 = pneg %p23
    %p30 = scmp.eq.s32.totalorder %s14, 1
    %p31 = por %p29, %p30
    %p32 = scmp.ne.s32.totalorder %s24, %s27
    %p33 = scmp.eq.s32.totalorder %s14, 0
    %p34 = por %p32, %p33
    %p35 = scmp.ne.s32.totalorder %s24, %s27
    %p36 = scmp.eq.s32.totalorder %s19, 1
    %p37 = por %p35, %p36
    %p38 = scmp.ne.s32.totalorder %s27, %s28
    %p39 = scmp.eq.s32.totalorder %s19, 0
    %p40 = por %p38, %p39
    %p41 = scmp.ne.s32.totalorder %s27, %s28
    %p42 = scmp.eq.s32.totalorder %s20, 1
    %p43 = por %p41, %p42
    %p45 = scmp.ne.s32.totalorder %s28, %s44
    %p46 = scmp.eq.s32.totalorder %s20, 0
    %p47 = por %p45, %p46
    %s49 = sadd.s32 %s48, 1
    %p52 = scmp.eq.s32.totalorder %s14, 1
    %p53 = scmp.ne.s32.totalorder %s48, %s50
    %p54 = scmp.eq.s32.totalorder %s14, 0
    %p55 = por %p53, %p54
    %p56 = scmp.ne.s32.totalorder %s48, %s50
    %p57 = scmp.eq.s32.totalorder %s19, 1
    %p58 = por %p56, %p57
    %p59 = scmp.ne.s32.totalorder %s50, %s51
    %p60 = scmp.eq.s32.totalorder %s19, 0
    %p61 = por %p59, %p60
    %p62 = scmp.ne.s32.totalorder %s50, %s51
    %p63 = scmp.eq.s32.totalorder %s20, 1
    %p64 = por %p62, %p63
    %p66 = scmp.ne.s32.totalorder %s51, %s65
    %p67 = scmp.eq.s32.totalorder %s20, 0
    %p68 = por %p66, %p67
    %s70 = sadd.s32 %s69, 1
    %p73 = scmp.eq.s32.totalorder %s14, 1
    %p74 = scmp.ne.s32.totalorder %s69, %s71
    %p75 = scmp.eq.s32.totalorder %s14, 0
    %p76 = por %p74, %p75
    %p77 = scmp.ne.s32.totalorder %s69, %s71
    %p78 = scmp.eq.s32.totalorder %s19, 1
    %p79 = por %p77, %p78
    %p80 = scmp.ne.s32.totalorder %s71, %s72
    %p81 = scmp.eq.s32.totalorder %s19, 0
    %p82 = por %p80, %p81
    %p83 = scmp.ne.s32.totalorder %s71, %s72
    %p84 = scmp.eq.s32.totalorder %s20, 1
    %p85 = por %p83, %p84
    %p87 = scmp.ne.s32.totalorder %s72, %s86
    %p88 = scmp.eq.s32.totalorder %s20, 0
    %p89 = por %p87, %p88
    %s91 = sadd.s32 %s90, 1
    %p94 = scmp.eq.s32.totalorder %s14, 1
    %p95 = scmp.ne.s32.totalorder %s90, %s92
    %p96 = scmp.eq.s32.totalorder %s14, 0
    %p97 = por %p95, %p96
    %p98 = scmp.ne.s32.totalorder %s90, %s92
    %p99 = scmp.eq.s32.totalorder %s19, 1
    %p100 = por %p98, %p99
    %p101 = scmp.ne.s32.totalorder %s92, %s93
    %p102 = scmp.eq.s32.totalorder %s19, 0
    %p103 = por %p101, %p102
    %p104 = scmp.ne.s32.totalorder %s92, %s93
    %p105 = scmp.eq.s32.totalorder %s20, 1
    %p106 = por %p104, %p105
    %p108 = scmp.ne.s32.totalorder %s93, %s107
    %p109 = scmp.eq.s32.totalorder %s20, 0
    %p110 = por %p108, %p109
    %s112 = sadd.s32 %s111, 1
    %p115 = scmp.eq.s32.totalorder %s14, 1
    %p116 = scmp.ne.s32.totalorder %s111, %s113
    %p117 = scmp.eq.s32.totalorder %s14, 0
    %p118 = por %p116, %p117
    %p119 = scmp.ne.s32.totalorder %s111, %s113
    %p120 = scmp.eq.s32.totalorder %s19, 1
    %p121 = por %p119, %p120
    %p122 = scmp.ne.s32.totalorder %s113, %s114
    %p123 = scmp.eq.s32.totalorder %s19, 0
    %p124 = por %p122, %p123
    %p125 = scmp.ne.s32.totalorder %s113, %s114
    %p126 = scmp.eq.s32.totalorder %s20, 1
    %p127 = por %p125, %p126
    %p129 = scmp.ne.s32.totalorder %s114, %s128
    %p130 = scmp.eq.s32.totalorder %s20, 0
    %p131 = por %p129, %p130
    %s133 = sadd.s32 %s132, 1
    %p136 = scmp.eq.s32.totalorder %s14, 1
    %p137 = scmp.ne.s32.totalorder %s132, %s134
    %p138 = scmp.eq.s32.totalorder %s14, 0
    %p139 = por %p137, %p138
    %p140 = scmp.ne.s32.totalorder %s132, %s134
    %p141 = scmp.eq.s32.totalorder %s19, 1
    %p142 = por %p140, %p141
    %p143 = scmp.ne.s32.totalorder %s134, %s135
    %p144 = scmp.eq.s32.totalorder %s19, 0
    %p145 = por %p143, %p144
    %p146 = scmp.ne.s32.totalorder %s134, %s135
    %p147 = scmp.eq.s32.totalorder %s20, 1
    %p148 = por %p146, %p147
    %p150 = scmp.ne.s32.totalorder %s135, %s149
    %p151 = scmp.eq.s32.totalorder %s20, 0
    %p152 = por %p150, %p151
    %s154 = sadd.s32 %s153, 1
    %p157 = scmp.eq.s32.totalorder %s14, 1
    %p158 = scmp.ne.s32.totalorder %s153, %s155
    %p159 = scmp.eq.s32.totalorder %s14, 0
    %p160 = por %p158, %p159
    %p161 = scmp.ne.s32.totalorder %s153, %s155
    %p162 = scmp.eq.s32.totalorder %s19, 1
    %p163 = por %p161, %p162
    %p164 = scmp.ne.s32.totalorder %s155, %s156
    %p165 = scmp.eq.s32.totalorder %s19, 0
    %p166 = por %p164, %p165
    %p167 = scmp.ne.s32.totalorder %s155, %s156
    %p168 = scmp.eq.s32.totalorder %s20, 1
    %p169 = por %p167, %p168
    %p171 = scmp.ne.s32.totalorder %s156, %s170
    %p172 = scmp.eq.s32.totalorder %s20, 0
    %p173 = por %p171, %p172
    %s175 = sadd.s32 %s174, 1
    %p178 = scmp.eq.s32.totalorder %s14, 1
    %p179 = scmp.ne.s32.totalorder %s174, %s176
    %p180 = scmp.eq.s32.totalorder %s14, 0
    %p181 = por %p179, %p180
    %p182 = scmp.ne.s32.totalorder %s174, %s176
    %p183 = scmp.eq.s32.totalorder %s19, 1
    %p184 = por %p182, %p183
    %p185 = scmp.ne.s32.totalorder %s176, %s177
    %p186 = scmp.eq.s32.totalorder %s19, 0
    %p187 = por %p185, %p186
    %p188 = scmp.ne.s32.totalorder %s176, %s177
    %p189 = scmp.eq.s32.totalorder %s20, 1
    %p190 = por %p188, %p189
    %p192 = scmp.ne.s32.totalorder %s177, %s191
    %p193 = scmp.eq.s32.totalorder %s20, 0
    %p194 = por %p192, %p193
    %s195 = ssub.s32 %s14, %s21
    %p196 = scmp.eq.s32.totalorder %s195, 0
    %s198 = sadd.s32 %s197, 1
    %s199 = scalar_select %p196, %s197, %s198
    %p202 = pneg %p196
    %p203 = scmp.eq.s32.totalorder %s14, 1
    %p204 = por %p202, %p203
    %p205 = scmp.ne.s32.totalorder %s197, %s200
    %p206 = scmp.eq.s32.totalorder %s14, 0
    %p207 = por %p205, %p206
    %p208 = scmp.ne.s32.totalorder %s197, %s200
    %p209 = scmp.eq.s32.totalorder %s19, 1
    %p210 = por %p208, %p209
    %p211 = scmp.ne.s32.totalorder %s200, %s201
    %p212 = scmp.eq.s32.totalorder %s19, 0
    %p213 = por %p211, %p212
    %p214 = scmp.ne.s32.totalorder %s200, %s201
    %p215 = scmp.eq.s32.totalorder %s20, 1
    %p216 = por %p214, %p215
    %p218 = scmp.ne.s32.totalorder %s201, %s217
    %p219 = scmp.eq.s32.totalorder %s20, 0
    %p220 = por %p218, %p219
    %p221 = scmp.le.s32.totalorder 1, %s14
    %p222 = scmp.lt.s32.totalorder %s14, 3
    %p223 = pnand %p221, %p222
    %p224 = pneg %p223
    // Predicated region
    $region9: #{final_patch_expand_x4.1} parent=5 // pred_check
      _
    $region10: #{final_patch_expand_x4.1} parent=5 // pred_check_branch
      %226 = sbr.rel (%p223) target = $region12
    $region11: #{final_patch_expand_x4.1} parent=5 // pred_region
      %s227 = ssub.s32 %s14, 1
      // Predicated region
      $region13: #{final_patch_expand_x4.1} parent=11 // pred_check
        %p228 = pneg %p61
      $region14: #{final_patch_expand_x4.1} parent=11 // pred_check_branch
        %230 = sbr.rel (%p228) target = $region16
      $region15: #{final_patch_expand_x4.1} parent=11 // pred_region
        _
      $region16: #{final_patch_expand_x4.1} parent=11 // pred_fallthru
        _
      // Predicated region
      $region17: #{final_patch_expand_x4.1} parent=11 // pred_check
        %p231 = pneg %p82
      $region18: #{final_patch_expand_x4.1} parent=11 // pred_check_branch
        %233 = sbr.rel (%p231) target = $region20
      $region19: #{final_patch_expand_x4.1} parent=11 // pred_region
        _
      $region20: #{final_patch_expand_x4.1} parent=11 // pred_fallthru
        _
      // Predicated region
      $region21: #{final_patch_expand_x4.1} parent=11 // pred_check
        %p234 = pneg %p103
      $region22: #{final_patch_expand_x4.1} parent=11 // pred_check_branch
        %236 = sbr.rel (%p234) target = $region24
      $region23: #{final_patch_expand_x4.1} parent=11 // pred_region
        _
      $region24: #{final_patch_expand_x4.1} parent=11 // pred_fallthru
        _
      // Predicated region
      $region25: #{final_patch_expand_x4.1} parent=11 // pred_check
        %p237 = pneg %p124
      $region26: #{final_patch_expand_x4.1} parent=11 // pred_check_branch
        %239 = sbr.rel (%p237) target = $region28
      $region27: #{final_patch_expand_x4.1} parent=11 // pred_region
        _
      $region28: #{final_patch_expand_x4.1} parent=11 // pred_fallthru
        _
      // Predicated region
      $region29: #{final_patch_expand_x4.1} parent=11 // pred_check
        %p240 = pneg %p145
      $region30: #{final_patch_expand_x4.1} parent=11 // pred_check_branch
        %242 = sbr.rel (%p240) target = $region32
      $region31: #{final_patch_expand_x4.1} parent=11 // pred_region
        _
      $region32: #{final_patch_expand_x4.1} parent=11 // pred_fallthru
        _
      // Predicated region
      $region33: #{final_patch_expand_x4.1} parent=11 // pred_check
        %p243 = pneg %p166
      $region34: #{final_patch_expand_x4.1} parent=11 // pred_check_branch
        %245 = sbr.rel (%p243) target = $region36
      $region35: #{final_patch_expand_x4.1} parent=11 // pred_region
        _
      $region36: #{final_patch_expand_x4.1} parent=11 // pred_fallthru
        _
      // Predicated region
      $region37: #{final_patch_expand_x4.1} parent=11 // pred_check
        %p246 = pneg %p187
      $region38: #{final_patch_expand_x4.1} parent=11 // pred_check_branch
        %248 = sbr.rel (%p246) target = $region40
      $region39: #{final_patch_expand_x4.1} parent=11 // pred_region
        _
      $region40: #{final_patch_expand_x4.1} parent=11 // pred_fallthru
        _
    $region12: #{final_patch_expand_x4.1} parent=5 // pred_fallthru
      _
    %p249 = scmp.lt.s32.totalorder %s14, 2
    // Predicated region
    $region41: #{final_patch_expand_x4.1} parent=5 // pred_check
      %p250 = pneg %p249
    $region42: #{final_patch_expand_x4.1} parent=5 // pred_check_branch
      %252 = sbr.rel (%p250) target = $region44
    $region43: #{final_patch_expand_x4.1} parent=5 // pred_region
      // Predicated region
      $region45: #{final_patch_expand_x4.1} parent=43 // pred_check
        %p253 = pneg %p34
      $region46: #{final_patch_expand_x4.1} parent=43 // pred_check_branch
        %255 = sbr.rel (%p253) target = $region48
      $region47: #{final_patch_expand_x4.1} parent=43 // pred_region
        %p256 = scmp.lt.s32.totalorder %s14, 1
        %s257 = scalar_select %p256, %s14, 1
        %s258 = smul.addr %s257, 8
        %s259 = smul.addr %s258, 8
        %s260 = scalar_lea.vmem %s0, %s259
      $region48: #{final_patch_expand_x4.1} parent=43 // pred_fallthru
        _
    $region44: #{final_patch_expand_x4.1} parent=5 // pred_fallthru
      _
    %p261 = scmp.le.s32.totalorder 1, %s14
    %p262 = scmp.lt.s32.totalorder %s14, 3
    %p263 = pnand %p261, %p262
    %p264 = pneg %p263
    // Predicated region
    $region49: #{final_patch_expand_x4.1} parent=5 // pred_check
      _
    $region50: #{final_patch_expand_x4.1} parent=5 // pred_check_branch
      %266 = sbr.rel (%p263) target = $region52
    $region51: #{final_patch_expand_x4.1} parent=5 // pred_region
      %s267 = ssub.s32 %s14, 1
      %p268 = scmp.lt.s32.totalorder %s19, 1
      %s269 = scalar_select %p268, %s19, 1
      %s270 = smul.addr %s269, 8
      %s271 = smul.addr %s270, 8
      %s272 = scalar_lea.vmem %s0, %s271
      %p273 = pneg %p40
      %p274 = pneg %p37
      %p275 = pneg %p61
      %p276 = pneg %p58
      %p277 = pneg %p82
      %p278 = pneg %p79
      %p279 = pneg %p103
      %p280 = pneg %p100
      %p281 = pneg %p124
      %p282 = pneg %p121
      %p283 = pneg %p145
      %p284 = pneg %p142
      %p285 = pneg %p166
      %p286 = pneg %p163
      %p287 = pneg %p187
      %p288 = pneg %p184
      %p289 = pneg %p213
      %p290 = pneg %p210
      %p291 = scmp.lt.s32.totalorder %s19, 1
      %s292 = scalar_select %p291, %s19, 1
      %s293 = smul.addr %s292, 16
      %s294 = smul.addr %s293, 8
      %s295 = scalar_lea.vmem %s8, %s294
      %p296 = scmp.lt.s32.totalorder %s19, 1
      %s297 = scalar_select %p296, %s19, 1
      %s298 = smul.addr %s297, 8
      %s299 = smul.addr %s298, 8
      %s300 = scalar_lea.vmem %s0, %s299
      %p301 = scmp.lt.s32.totalorder %s19, 1
      %s302 = scalar_select %p301, %s19, 1
      %s303 = smul.addr %s302, 16
      %s304 = smul.addr %s303, 8
      %s305 = scalar_lea.vmem %s8, %s304
      %v307 = vld [vmem:[%s300] sm:$0xff]
      %v308 = vld [vmem:[%s300 + $0x8] sm:$0xff]
      %v309 = vld [vmem:[%s300 + $0x10] sm:$0xff]
      %v310 = vld [vmem:[%s300 + $0x18] sm:$0xff]
      %v311 = vld [vmem:[%s300 + $0x20] sm:$0xff]
      %v312 = vld [vmem:[%s300 + $0x28] sm:$0xff]
      %v313 = vld [vmem:[%s300 + $0x30] sm:$0xff]
      %v314 = vld [vmem:[%s300 + $0x38] sm:$0xff]
      %v315 = vpack.c.bf16 %v308, %v307
      %v316 = vpack.c.bf16 %v310, %v309
      %v317 = vpack.c.bf16 %v312, %v311
      %v318 = vpack.c.bf16 %v314, %v313
      %v319 = vld [vmem:[%s1] sm:$0xff]
      %v320 = vld [vmem:[%s1 + $0x8] sm:$0xff]
      %v321 = vld [vmem:[%s1 + $0x10] sm:$0xff]
      %v322 = vld [vmem:[%s1 + $0x18] sm:$0xff]
      %v323 = vld [vmem:[%s1 + $0x20] sm:$0xff]
      %v324 = vld [vmem:[%s1 + $0x28] sm:$0xff]
      %v325 = vld [vmem:[%s1 + $0x30] sm:$0xff]
      %v326 = vld [vmem:[%s1 + $0x38] sm:$0xff]
      %v327 = vld [vmem:[%s2] ss:$4 sm:$0x3]
      %v329 = vlaneseq
      %v330 = vshrl.u32 %v329, 7
      %v331 = vsub.s32 0, %v330
      %v332 = vrot.slane %v327, %v331
      %v333 = vlaneseq
      %v334 = vshrl.u32 %v333, 7
      %v335 = vsub.s32 1, %v334
      %v336 = vrot.slane %v327, %v335
      %v347 = vunpack.c.l.b16 %v319
      %v348 = vunpack.c.h.b16 %v319
      %v349 = vunpack.c.l.b16 %v320
      %v350 = vunpack.c.h.b16 %v320
      %v351 = vunpack.c.l.b16 %v321
      %v352 = vunpack.c.h.b16 %v321
      %v353 = vunpack.c.l.b16 %v322
      %v354 = vunpack.c.h.b16 %v322
      %v355 = vunpack.c.l.b16 %v323
      %v356 = vunpack.c.h.b16 %v323
      %v357 = vunpack.c.l.b16 %v324
      %v358 = vunpack.c.h.b16 %v324
      %v359 = vunpack.c.l.b16 %v325
      %v360 = vunpack.c.h.b16 %v325
      %v361 = vunpack.c.l.b16 %v326
      %v362 = vunpack.c.h.b16 %v326
      %v363 = vpack.c.b16 %v349, %v347
      %v364 = vpack.c.b16 %v350, %v348
      %v365 = vpack.c.b16 %v353, %v351
      %v366 = vpack.c.b16 %v354, %v352
      %v367 = vpack.c.b16 %v357, %v355
      %v368 = vpack.c.b16 %v358, %v356
      %v369 = vpack.c.b16 %v361, %v359
      %v370 = vpack.c.b16 %v362, %v360
      %vm379 = vcmask 523264
      %v381 = vsel %vm379, %v315, 0
      %v384 = vsel %vm379, %v316, 0
      %v387 = vsel %vm379, %v317, 0
      %v390 = vsel %vm379, %v318, 0
      %392 = vmatprep.subr.bf16.mxu0 %v364
      %393 = vmatpush1.bf16.msra.mxu0 %v363
      %394 = vmatprep.subr.bf16.mxu0 %v366
      %395 = vmatpush1.bf16.msra.mxu0 %v365
      %396 = vmatprep.subr.bf16.mxu0 %v368
      %397 = vmatpush1.bf16.msra.mxu0 %v367
      %398 = vmatprep.subr.bf16.mxu0 %v370
      %399 = vmatpush1.bf16.msra.mxu0 %v369
      %400 = vmatprep.subr.bf16.mxu0 0
      %401 = vmatpush1.bf16.msra.mxu0 0
      %402 = vmatprep.subr.bf16.mxu0 0
      %403 = vmatpush1.bf16.msra.mxu0 0
      %404 = vmatprep.subr.bf16.mxu0 0
      %405 = vmatpush1.bf16.msra.mxu0 0
      %406 = vmatprep.subr.bf16.mxu0 0
      %407 = vmatpush1.bf16.msra.mxu0 0
      %408 = vmatprep.subr.bf16.mxu0 0
      %409 = vmatpush1.bf16.msra.mxu0 0
      %410 = vmatprep.subr.bf16.mxu0 0
      %411 = vmatpush1.bf16.msra.mxu0 0
      %412 = vmatprep.subr.bf16.mxu0 0
      %413 = vmatpush1.bf16.msra.mxu0 0
      %414 = vmatprep.subr.bf16.mxu0 0
      %415 = vmatpush1.bf16.msra.mxu0 0
      %416 = vmatprep.subr.bf16.mxu0 0
      %417 = vmatpush1.bf16.msra.mxu0 0
      %418 = vmatprep.subr.bf16.mxu0 0
      %419 = vmatpush1.bf16.msra.mxu0 0
      %420 = vmatprep.subr.bf16.mxu0 0
      %421 = vmatpush1.bf16.msra.mxu0 0
      %422 = vmatprep.subr.bf16.mxu0 0
      %423 = vmatpush1.bf16.msra.mxu0 0
      %424 = vmatprep.mubr.bf16.mxu0 0
      %425 = vmatmul.mubr.bf16.gmra.mrb[0].mxu0 %v381
      %v426 = vpop.f32.mrb[0].mxu0
      %v427 = vadd.f32 %v332, %v426
      %v428 = vpop.f32.mrb[0].mxu0
      %v429 = vadd.f32 %v336, %v428
      %v430 = vpop.f32.mrb[0].mxu0
      %v431 = vadd.f32 %v332, %v430
      %v432 = vpop.f32.mrb[0].mxu0
      %v433 = vadd.f32 %v336, %v432
      %434 = vmatprep.mubr.bf16.mxu0 0
      %435 = vmatmul.mubr.bf16.gmra.mrb[0].mxu0 %v384
      %v436 = vpop.f32.mrb[0].mxu0
      %v437 = vadd.f32 %v332, %v436
      %v438 = vpop.f32.mrb[0].mxu0
      %v439 = vadd.f32 %v336, %v438
      %v440 = vpop.f32.mrb[0].mxu0
      %v441 = vadd.f32 %v332, %v440
      %v442 = vpop.f32.mrb[0].mxu0
      %v443 = vadd.f32 %v336, %v442
      %444 = vmatprep.mubr.bf16.mxu0 0
      %445 = vmatmul.mubr.bf16.gmra.mrb[0].mxu0 %v387
      %v446 = vpop.f32.mrb[0].mxu0
      %v447 = vadd.f32 %v332, %v446
      %v448 = vpop.f32.mrb[0].mxu0
      %v449 = vadd.f32 %v336, %v448
      %v450 = vpop.f32.mrb[0].mxu0
      %v451 = vadd.f32 %v332, %v450
      %v452 = vpop.f32.mrb[0].mxu0
      %v453 = vadd.f32 %v336, %v452
      %454 = vmatprep.mubr.bf16.mxu0 0
      %455 = vmatmul.mubr.bf16.gmra.mrb[0].mxu0 %v390
      %v456 = vpop.f32.mrb[0].mxu0
      %v457 = vadd.f32 %v332, %v456
      %v458 = vpop.f32.mrb[0].mxu0
      %v459 = vadd.f32 %v336, %v458
      %v460 = vpop.f32.mrb[0].mxu0
      %v461 = vadd.f32 %v332, %v460
      %v462 = vpop.f32.mrb[0].mxu0
      %v463 = vadd.f32 %v336, %v462
      %464 = vdwg.mxu0
      %v465 = vmax.f32 %v427, 0.0
      %v466 = vmax.f32 %v429, 0.0
      %v467 = vmax.f32 %v431, 0.0
      %v468 = vmax.f32 %v433, 0.0
      %v469 = vmax.f32 %v437, 0.0
      %v470 = vmax.f32 %v439, 0.0
      %v471 = vmax.f32 %v441, 0.0
      %v472 = vmax.f32 %v443, 0.0
      %v473 = vmax.f32 %v447, 0.0
      %v474 = vmax.f32 %v449, 0.0
      %v475 = vmax.f32 %v451, 0.0
      %v476 = vmax.f32 %v453, 0.0
      %v477 = vmax.f32 %v457, 0.0
      %v478 = vmax.f32 %v459, 0.0
      %v479 = vmax.f32 %v461, 0.0
      %v480 = vmax.f32 %v463, 0.0
      %s481 = scalar_lea.vmem %s2, 1
      %v482 = vld [vmem:[%s481] ss:$4 sm:$0x3]
      %v484 = vlaneseq
      %v485 = vshrl.u32 %v484, 7
      %v486 = vsub.s32 0, %v485
      %v487 = vrot.slane %v482, %v486
      %v488 = vlaneseq
      %v489 = vshrl.u32 %v488, 7
      %v490 = vsub.s32 1, %v489
      %v491 = vrot.slane %v482, %v490
      %v494 = vmul.f32 %v465, %v487
      %v495 = vmul.f32 %v466, %v491
      %v496 = vmul.f32 %v467, %v487
      %v497 = vmul.f32 %v468, %v491
      %v498 = vmul.f32 %v469, %v487
      %v499 = vmul.f32 %v470, %v491
      %v500 = vmul.f32 %v471, %v487
      %v501 = vmul.f32 %v472, %v491
      %v502 = vmul.f32 %v473, %v487
      %v503 = vmul.f32 %v474, %v491
      %v504 = vmul.f32 %v475, %v487
      %v505 = vmul.f32 %v476, %v491
      %v506 = vmul.f32 %v477, %v487
      %v507 = vmul.f32 %v478, %v491
      %v508 = vmul.f32 %v479, %v487
      %v509 = vmul.f32 %v480, %v491
      %s510 = scalar_lea.vmem %s2, 2
      %v511 = vld [vmem:[%s510] ss:$4 sm:$0x3]
      %v513 = vlaneseq
      %v514 = vshrl.u32 %v513, 7
      %v515 = vsub.s32 0, %v514
      %v516 = vrot.slane %v511, %v515
      %v517 = vlaneseq
      %v518 = vshrl.u32 %v517, 7
      %v519 = vsub.s32 1, %v518
      %v520 = vrot.slane %v511, %v519
      %v523 = vadd.f32 %v494, %v516
      %v524 = vadd.f32 %v495, %v520
      %v525 = vadd.f32 %v496, %v516
      %v526 = vadd.f32 %v497, %v520
      %v527 = vadd.f32 %v498, %v516
      %v528 = vadd.f32 %v499, %v520
      %v529 = vadd.f32 %v500, %v516
      %v530 = vadd.f32 %v501, %v520
      %v531 = vadd.f32 %v502, %v516
      %v532 = vadd.f32 %v503, %v520
      %v533 = vadd.f32 %v504, %v516
      %v534 = vadd.f32 %v505, %v520
      %v535 = vadd.f32 %v506, %v516
      %v536 = vadd.f32 %v507, %v520
      %v537 = vadd.f32 %v508, %v516
      %v538 = vadd.f32 %v509, %v520
      %539 = vst [vmem:[#allocation2] sm:$0xff] 0.0
      %540 = vst [vmem:[#allocation2 + $0x8] sm:$0xff] 0.0
      %541 = vst [vmem:[#allocation2 + $0x10] sm:$0x3] 0.0
      %542 = vst [vmem:[#allocation2 + $0x18] sm:$0x3] 0.0
      %543 = vst [vmem:[#allocation2 + $0x20] sm:$0xff] 0.0
      %544 = vst [vmem:[#allocation2 + $0x28] sm:$0xff] 0.0
      %545 = vst [vmem:[#allocation2 + $0x30] sm:$0x3] 0.0
      %546 = vst [vmem:[#allocation2 + $0x38] sm:$0x3] 0.0
      %547 = vst [vmem:[#allocation2 + $0x40] sm:$0xff] 0.0
      %548 = vst [vmem:[#allocation2 + $0x48] sm:$0xff] 0.0
      %549 = vst [vmem:[#allocation2 + $0x50] sm:$0x3] 0.0
      %550 = vst [vmem:[#allocation2 + $0x58] sm:$0x3] 0.0
      %551 = vst [vmem:[#allocation2 + $0x60] sm:$0xff] 0.0
      %552 = vst [vmem:[#allocation2 + $0x68] sm:$0xff] 0.0
      %553 = vst [vmem:[#allocation2 + $0x70] sm:$0x3] 0.0
      %554 = vst [vmem:[#allocation2 + $0x78] sm:$0x3] 0.0
      %555 = vst [vmem:[#allocation2 + $0x80] sm:$0xff] 0.0
      %556 = vst [vmem:[#allocation2 + $0x88] sm:$0xff] 0.0
      %557 = vst [vmem:[#allocation2 + $0x90] sm:$0x3] 0.0
      %558 = vst [vmem:[#allocation2 + $0x98] sm:$0x3] 0.0
      %559 = vst [vmem:[#allocation2 + $0xa0] sm:$0xff] 0.0
      %560 = vst [vmem:[#allocation2 + $0xa8] sm:$0xff] 0.0
      %561 = vst [vmem:[#allocation2 + $0xb0] sm:$0x3] 0.0
      %562 = vst [vmem:[#allocation2 + $0xb8] sm:$0x3] 0.0
      %563 = vst [vmem:[#allocation2 + $0xc0] sm:$0xff] 0.0
      %564 = vst [vmem:[#allocation2 + $0xc8] sm:$0xff] 0.0
      %565 = vst [vmem:[#allocation2 + $0xd0] sm:$0x3] 0.0
      %566 = vst [vmem:[#allocation2 + $0xd8] sm:$0x3] 0.0
      %567 = vst [vmem:[#allocation2 + $0xe0] sm:$0xff] 0.0
      %568 = vst [vmem:[#allocation2 + $0xe8] sm:$0xff] 0.0
      %569 = vst [vmem:[#allocation2 + $0xf0] sm:$0x3] 0.0
      %570 = vst [vmem:[#allocation2 + $0xf8] sm:$0x3] 0.0
      %571 = vst [vmem:[#allocation2 + $0x100] sm:$0xff] 0.0
      %572 = vst [vmem:[#allocation2 + $0x108] sm:$0xff] 0.0
      %573 = vst [vmem:[#allocation2 + $0x110] sm:$0x3] 0.0
      %574 = vst [vmem:[#allocation2 + $0x118] sm:$0x3] 0.0
      %575 = vst [vmem:[#allocation2 + $0x120] sm:$0xff] 0.0
      %576 = vst [vmem:[#allocation2 + $0x128] sm:$0xff] 0.0
      %577 = vst [vmem:[#allocation2 + $0x130] sm:$0x3] 0.0
      %578 = vst [vmem:[#allocation2 + $0x138] sm:$0x3] 0.0
      %v595 = vrot.slane %v523, 7
      %v596 = vrot.slane %v524, 7
      %v597 = vrot.slane %v525, 7
      %v598 = vrot.slane %v526, 7
      %v599 = vrot.slane %v527, 7
      %v600 = vrot.slane %v528, 7
      %v601 = vrot.slane %v529, 7
      %v602 = vrot.slane %v530, 7
      %v603 = vrot.slane %v531, 7
      %v604 = vrot.slane %v532, 7
      %v605 = vrot.slane %v533, 7
      %v606 = vrot.slane %v534, 7
      %v607 = vrot.slane %v535, 7
      %v608 = vrot.slane %v536, 7
      %v609 = vrot.slane %v537, 7
      %v610 = vrot.slane %v538, 7
      %s627 = scalar_lea.vmem [#allocation2], 32
      %628 = vst [vmem:[%s627] sm:$0xfe] %v595
      %629 = vst [vmem:[%s627 + $0x8] sm:$0xfe] %v596
      %630 = vst [vmem:[%s627 + $0x10] sm:$0x1] %v595
      %631 = vst [vmem:[%s627 + $0x18] sm:$0x1] %v596
      %632 = vst [vmem:[%s627 + $0x20] sm:$0xfe] %v597
      %633 = vst [vmem:[%s627 + $0x28] sm:$0xfe] %v598
      %634 = vst [vmem:[%s627 + $0x30] sm:$0x1] %v597
      %635 = vst [vmem:[%s627 + $0x38] sm:$0x1] %v598
      %636 = vst [vmem:[%s627 + $0x40] sm:$0xfe] %v599
      %637 = vst [vmem:[%s627 + $0x48] sm:$0xfe] %v600
      %638 = vst [vmem:[%s627 + $0x50] sm:$0x1] %v599
      %639 = vst [vmem:[%s627 + $0x58] sm:$0x1] %v600
      %640 = vst [vmem:[%s627 + $0x60] sm:$0xfe] %v601
      %641 = vst [vmem:[%s627 + $0x68] sm:$0xfe] %v602
      %642 = vst [vmem:[%s627 + $0x70] sm:$0x1] %v601
      %643 = vst [vmem:[%s627 + $0x78] sm:$0x1] %v602
      %644 = vst [vmem:[%s627 + $0x80] sm:$0xfe] %v603
      %645 = vst [vmem:[%s627 + $0x88] sm:$0xfe] %v604
      %646 = vst [vmem:[%s627 + $0x90] sm:$0x1] %v603
      %647 = vst [vmem:[%s627 + $0x98] sm:$0x1] %v604
      %648 = vst [vmem:[%s627 + $0xa0] sm:$0xfe] %v605
      %649 = vst [vmem:[%s627 + $0xa8] sm:$0xfe] %v606
      %650 = vst [vmem:[%s627 + $0xb0] sm:$0x1] %v605
      %651 = vst [vmem:[%s627 + $0xb8] sm:$0x1] %v606
      %652 = vst [vmem:[%s627 + $0xc0] sm:$0xfe] %v607
      %653 = vst [vmem:[%s627 + $0xc8] sm:$0xfe] %v608
      %654 = vst [vmem:[%s627 + $0xd0] sm:$0x1] %v607
      %655 = vst [vmem:[%s627 + $0xd8] sm:$0x1] %v608
      %656 = vst [vmem:[%s627 + $0xe0] sm:$0xfe] %v609
      %657 = vst [vmem:[%s627 + $0xe8] sm:$0xfe] %v610
      %658 = vst [vmem:[%s627 + $0xf0] sm:$0x1] %v609
      %659 = vst [vmem:[%s627 + $0xf8] sm:$0x1] %v610
      %v660 = vld [vmem:[#allocation2] sm:$0xff]
      %v661 = vld [vmem:[#allocation2 + $0x8] sm:$0xff]
      %v662 = vld [vmem:[#allocation2 + $0x20] sm:$0xff]
      %v663 = vld [vmem:[#allocation2 + $0x28] sm:$0xff]
      %v664 = vld [vmem:[#allocation2 + $0x40] sm:$0xff]
      %v665 = vld [vmem:[#allocation2 + $0x48] sm:$0xff]
      %v666 = vld [vmem:[#allocation2 + $0x60] sm:$0xff]
      %v667 = vld [vmem:[#allocation2 + $0x68] sm:$0xff]
      %v668 = vld [vmem:[#allocation2 + $0x80] sm:$0xff]
      %v669 = vld [vmem:[#allocation2 + $0x88] sm:$0xff]
      %v670 = vld [vmem:[#allocation2 + $0xa0] sm:$0xff]
      %v671 = vld [vmem:[#allocation2 + $0xa8] sm:$0xff]
      %v672 = vld [vmem:[#allocation2 + $0xc0] sm:$0xff]
      %v673 = vld [vmem:[#allocation2 + $0xc8] sm:$0xff]
      %v674 = vld [vmem:[#allocation2 + $0xe0] sm:$0xff]
      %v675 = vld [vmem:[#allocation2 + $0xe8] sm:$0xff]
      %v676 = vpack.c.bf16 %v662, %v660
      %v677 = vpack.c.bf16 %v663, %v661
      %v678 = vpack.c.bf16 %v666, %v664
      %v679 = vpack.c.bf16 %v667, %v665
      %v680 = vpack.c.bf16 %v670, %v668
      %v681 = vpack.c.bf16 %v671, %v669
      %v682 = vpack.c.bf16 %v674, %v672
      %v683 = vpack.c.bf16 %v675, %v673
      %v684 = vld [vmem:[%s3] sm:$0xff]
      %v685 = vld [vmem:[%s3 + $0x8] sm:$0xff]
      %v686 = vld [vmem:[%s3 + $0x10] sm:$0xff]
      %v687 = vld [vmem:[%s3 + $0x18] sm:$0xff]
      %v688 = vld [vmem:[%s3 + $0x20] sm:$0xff]
      %v689 = vld [vmem:[%s3 + $0x28] sm:$0xff]
      %v690 = vld [vmem:[%s3 + $0x30] sm:$0xff]
      %v691 = vld [vmem:[%s3 + $0x38] sm:$0xff]
      %v692 = vld [vmem:[%s3 + $0x40] sm:$0xff]
      %v693 = vld [vmem:[%s3 + $0x48] sm:$0xff]
      %v694 = vld [vmem:[%s3 + $0x50] sm:$0xff]
      %v695 = vld [vmem:[%s3 + $0x58] sm:$0xff]
      %v696 = vld [vmem:[%s3 + $0x60] sm:$0xff]
      %v697 = vld [vmem:[%s3 + $0x68] sm:$0xff]
      %v698 = vld [vmem:[%s3 + $0x70] sm:$0xff]
      %v699 = vld [vmem:[%s3 + $0x78] sm:$0xff]
      %v700 = vld [vmem:[%s3 + $0x80] sm:$0xff]
      %v701 = vld [vmem:[%s3 + $0x88] sm:$0xff]
      %v702 = vld [vmem:[%s3 + $0x90] sm:$0xff]
      %v703 = vld [vmem:[%s3 + $0x98] sm:$0xff]
      %v704 = vld [vmem:[%s3 + $0xa0] sm:$0xff]
      %v705 = vld [vmem:[%s3 + $0xa8] sm:$0xff]
      %v706 = vld [vmem:[%s3 + $0xb0] sm:$0xff]
      %v707 = vld [vmem:[%s3 + $0xb8] sm:$0xff]
      %v708 = vld [vmem:[%s3 + $0xc0] sm:$0xff]
      %v709 = vld [vmem:[%s3 + $0xc8] sm:$0xff]
      %v710 = vld [vmem:[%s3 + $0xd0] sm:$0xff]
      %v711 = vld [vmem:[%s3 + $0xd8] sm:$0xff]
      %v712 = vld [vmem:[%s3 + $0xe0] sm:$0xff]
      %v713 = vld [vmem:[%s3 + $0xe8] sm:$0xff]
      %v714 = vld [vmem:[%s3 + $0xf0] sm:$0xff]
      %v715 = vld [vmem:[%s3 + $0xf8] sm:$0xff]
      %v716 = vld [vmem:[#allocation2] sm:$0xfe]
      %v717 = vld [vmem:[#allocation2 + $0x8] sm:$0xfe]
      %v718 = vld [vmem:[#allocation2 + $0x10] sm:$0x1]
      %v719 = vld [vmem:[#allocation2 + $0x18] sm:$0x1]
      %v720 = vld [vmem:[#allocation2 + $0x20] sm:$0xfe]
      %v721 = vld [vmem:[#allocation2 + $0x28] sm:$0xfe]
      %v722 = vld [vmem:[#allocation2 + $0x30] sm:$0x1]
      %v723 = vld [vmem:[#allocation2 + $0x38] sm:$0x1]
      %v724 = vld [vmem:[#allocation2 + $0x40] sm:$0xfe]
      %v725 = vld [vmem:[#allocation2 + $0x48] sm:$0xfe]
      %v726 = vld [vmem:[#allocation2 + $0x50] sm:$0x1]
      %v727 = vld [vmem:[#allocation2 + $0x58] sm:$0x1]
      %v728 = vld [vmem:[#allocation2 + $0x60] sm:$0xfe]
      %v729 = vld [vmem:[#allocation2 + $0x68] sm:$0xfe]
      %v730 = vld [vmem:[#allocation2 + $0x70] sm:$0x1]
      %v731 = vld [vmem:[#allocation2 + $0x78] sm:$0x1]
      %v732 = vld [vmem:[#allocation2 + $0x80] sm:$0xfe]
      %v733 = vld [vmem:[#allocation2 + $0x88] sm:$0xfe]
      %v734 = vld [vmem:[#allocation2 + $0x90] sm:$0x1]
      %v735 = vld [vmem:[#allocation2 + $0x98] sm:$0x1]
      %v736 = vld [vmem:[#allocation2 + $0xa0] sm:$0xfe]
      %v737 = vld [vmem:[#allocation2 + $0xa8] sm:$0xfe]
      %v738 = vld [vmem:[#allocation2 + $0xb0] sm:$0x1]
      %v739 = vld [vmem:[#allocation2 + $0xb8] sm:$0x1]
      %v740 = vld [vmem:[#allocation2 + $0xc0] sm:$0xfe]
      %v741 = vld [vmem:[#allocation2 + $0xc8] sm:$0xfe]
      %v742 = vld [vmem:[#allocation2 + $0xd0] sm:$0x1]
      %v743 = vld [vmem:[#allocation2 + $0xd8] sm:$0x1]
      %v744 = vld [vmem:[#allocation2 + $0xe0] sm:$0xfe]
      %v745 = vld [vmem:[#allocation2 + $0xe8] sm:$0xfe]
      %v746 = vld [vmem:[#allocation2 + $0xf0] sm:$0x1]
      %v747 = vld [vmem:[#allocation2 + $0xf8] sm:$0x1]
      %vm780 = vcmask 1046528
      %v781 = vrot.slane %v716, 1
      %v782 = vrot.slane %v718, 1
      %v783 = vsel %vm780, %v781, %v782
      %v784 = vrot.slane %v717, 1
      %v785 = vrot.slane %v719, 1
      %v786 = vsel %vm780, %v784, %v785
      %v787 = vrot.slane %v720, 1
      %v788 = vrot.slane %v722, 1
      %v789 = vsel %vm780, %v787, %v788
      %v790 = vrot.slane %v721, 1
      %v791 = vrot.slane %v723, 1
      %v792 = vsel %vm780, %v790, %v791
      %v793 = vrot.slane %v724, 1
      %v794 = vrot.slane %v726, 1
      %v795 = vsel %vm780, %v793, %v794
      %v796 = vrot.slane %v725, 1
      %v797 = vrot.slane %v727, 1
      %v798 = vsel %vm780, %v796, %v797
      %v799 = vrot.slane %v728, 1
      %v800 = vrot.slane %v730, 1
      %v801 = vsel %vm780, %v799, %v800
      %v802 = vrot.slane %v729, 1
      %v803 = vrot.slane %v731, 1
      %v804 = vsel %vm780, %v802, %v803
      %v805 = vrot.slane %v732, 1
      %v806 = vrot.slane %v734, 1
      %v807 = vsel %vm780, %v805, %v806
      %v808 = vrot.slane %v733, 1
      %v809 = vrot.slane %v735, 1
      %v810 = vsel %vm780, %v808, %v809
      %v811 = vrot.slane %v736, 1
      %v812 = vrot.slane %v738, 1
      %v813 = vsel %vm780, %v811, %v812
      %v814 = vrot.slane %v737, 1
      %v815 = vrot.slane %v739, 1
      %v816 = vsel %vm780, %v814, %v815
      %v817 = vrot.slane %v740, 1
      %v818 = vrot.slane %v742, 1
      %v819 = vsel %vm780, %v817, %v818
      %v820 = vrot.slane %v741, 1
      %v821 = vrot.slane %v743, 1
      %v822 = vsel %vm780, %v820, %v821
      %v823 = vrot.slane %v744, 1
      %v824 = vrot.slane %v746, 1
      %v825 = vsel %vm780, %v823, %v824
      %v826 = vrot.slane %v745, 1
      %v827 = vrot.slane %v747, 1
      %v828 = vsel %vm780, %v826, %v827
      %v845 = vpack.c.bf16 %v789, %v783
      %v846 = vpack.c.bf16 %v792, %v786
      %v847 = vpack.c.bf16 %v801, %v795
      %v848 = vpack.c.bf16 %v804, %v798
      %v849 = vpack.c.bf16 %v813, %v807
      %v850 = vpack.c.bf16 %v816, %v810
      %v851 = vpack.c.bf16 %v825, %v819
      %v852 = vpack.c.bf16 %v828, %v822
      %s853 = scalar_lea.vmem %s3, 256
      %v854 = vld [vmem:[%s853] sm:$0xff]
      %v855 = vld [vmem:[%s853 + $0x8] sm:$0xff]
      %v856 = vld [vmem:[%s853 + $0x10] sm:$0xff]
      %v857 = vld [vmem:[%s853 + $0x18] sm:$0xff]
      %v858 = vld [vmem:[%s853 + $0x20] sm:$0xff]
      %v859 = vld [vmem:[%s853 + $0x28] sm:$0xff]
      %v860 = vld [vmem:[%s853 + $0x30] sm:$0xff]
      %v861 = vld [vmem:[%s853 + $0x38] sm:$0xff]
      %v862 = vld [vmem:[%s853 + $0x40] sm:$0xff]
      %v863 = vld [vmem:[%s853 + $0x48] sm:$0xff]
      %v864 = vld [vmem:[%s853 + $0x50] sm:$0xff]
      %v865 = vld [vmem:[%s853 + $0x58] sm:$0xff]
      %v866 = vld [vmem:[%s853 + $0x60] sm:$0xff]
      %v867 = vld [vmem:[%s853 + $0x68] sm:$0xff]
      %v868 = vld [vmem:[%s853 + $0x70] sm:$0xff]
      %v869 = vld [vmem:[%s853 + $0x78] sm:$0xff]
      %v870 = vld [vmem:[%s853 + $0x80] sm:$0xff]
      %v871 = vld [vmem:[%s853 + $0x88] sm:$0xff]
      %v872 = vld [vmem:[%s853 + $0x90] sm:$0xff]
      %v873 = vld [vmem:[%s853 + $0x98] sm:$0xff]
      %v874 = vld [vmem:[%s853 + $0xa0] sm:$0xff]
      %v875 = vld [vmem:[%s853 + $0xa8] sm:$0xff]
      %v876 = vld [vmem:[%s853 + $0xb0] sm:$0xff]
      %v877 = vld [vmem:[%s853 + $0xb8] sm:$0xff]
      %v878 = vld [vmem:[%s853 + $0xc0] sm:$0xff]
      %v879 = vld [vmem:[%s853 + $0xc8] sm:$0xff]
      %v880 = vld [vmem:[%s853 + $0xd0] sm:$0xff]
      %v881 = vld [vmem:[%s853 + $0xd8] sm:$0xff]
      %v882 = vld [vmem:[%s853 + $0xe0] sm:$0xff]
      %v883 = vld [vmem:[%s853 + $0xe8] sm:$0xff]
      %v884 = vld [vmem:[%s853 + $0xf0] sm:$0xff]
      %v885 = vld [vmem:[%s853 + $0xf8] sm:$0xff]
      %v918 = vunpack.c.l.b16 %v854
      %v919 = vunpack.c.h.b16 %v854
      %v920 = vunpack.c.l.b16 %v855
      %v921 = vunpack.c.h.b16 %v855
      %v922 = vunpack.c.l.b16 %v856
      %v923 = vunpack.c.h.b16 %v856
      %v924 = vunpack.c.l.b16 %v857
      %v925 = vunpack.c.h.b16 %v857
      %v926 = vunpack.c.l.b16 %v858
      %v927 = vunpack.c.h.b16 %v858
      %v928 = vunpack.c.l.b16 %v859
      %v929 = vunpack.c.h.b16 %v859
      %v930 = vunpack.c.l.b16 %v860
      %v931 = vunpack.c.h.b16 %v860
      %v932 = vunpack.c.l.b16 %v861
      %v933 = vunpack.c.h.b16 %v861
      %v934 = vunpack.c.l.b16 %v862
      %v935 = vunpack.c.h.b16 %v862
      %v936 = vunpack.c.l.b16 %v863
      %v937 = vunpack.c.h.b16 %v863
      %v938 = vunpack.c.l.b16 %v864
      %v939 = vunpack.c.h.b16 %v864
      %v940 = vunpack.c.l.b16 %v865
      %v941 = vunpack.c.h.b16 %v865
      %v942 = vunpack.c.l.b16 %v866
      %v943 = vunpack.c.h.b16 %v866
      %v944 = vunpack.c.l.b16 %v867
      %v945 = vunpack.c.h.b16 %v867
      %v946 = vunpack.c.l.b16 %v868
      %v947 = vunpack.c.h.b16 %v868
      %v948 = vunpack.c.l.b16 %v869
      %v949 = vunpack.c.h.b16 %v869
      %v950 = vunpack.c.l.b16 %v870
      %v951 = vunpack.c.h.b16 %v870
      %v952 = vunpack.c.l.b16 %v871
      %v953 = vunpack.c.h.b16 %v871
      %v954 = vunpack.c.l.b16 %v872
      %v955 = vunpack.c.h.b16 %v872
      %v956 = vunpack.c.l.b16 %v873
      %v957 = vunpack.c.h.b16 %v873
      %v958 = vunpack.c.l.b16 %v874
      %v959 = vunpack.c.h.b16 %v874
      %v960 = vunpack.c.l.b16 %v875
      %v961 = vunpack.c.h.b16 %v875
      %v962 = vunpack.c.l.b16 %v876
      %v963 = vunpack.c.h.b16 %v876
      %v964 = vunpack.c.l.b16 %v877
      %v965 = vunpack.c.h.b16 %v877
      %v966 = vunpack.c.l.b16 %v878
      %v967 = vunpack.c.h.b16 %v878
      %v968 = vunpack.c.l.b16 %v879
      %v969 = vunpack.c.h.b16 %v879
      %v970 = vunpack.c.l.b16 %v880
      %v971 = vunpack.c.h.b16 %v880
      %v972 = vunpack.c.l.b16 %v881
      %v973 = vunpack.c.h.b16 %v881
      %v974 = vunpack.c.l.b16 %v882
      %v975 = vunpack.c.h.b16 %v882
      %v976 = vunpack.c.l.b16 %v883
      %v977 = vunpack.c.h.b16 %v883
      %v978 = vunpack.c.l.b16 %v884
      %v979 = vunpack.c.h.b16 %v884
      %v980 = vunpack.c.l.b16 %v885
      %v981 = vunpack.c.h.b16 %v885
      %v982 = vpack.c.b16 %v920, %v918
      %v983 = vpack.c.b16 %v921, %v919
      %v984 = vpack.c.b16 %v924, %v922
      %v985 = vpack.c.b16 %v925, %v923
      %v986 = vpack.c.b16 %v928, %v926
      %v987 = vpack.c.b16 %v929, %v927
      %v988 = vpack.c.b16 %v932, %v930
      %v989 = vpack.c.b16 %v933, %v931
      %v990 = vpack.c.b16 %v936, %v934
      %v991 = vpack.c.b16 %v937, %v935
      %v992 = vpack.c.b16 %v940, %v938
      %v993 = vpack.c.b16 %v941, %v939
      %v994 = vpack.c.b16 %v944, %v942
      %v995 = vpack.c.b16 %v945, %v943
      %v996 = vpack.c.b16 %v948, %v946
      %v997 = vpack.c.b16 %v949, %v947
      %v998 = vpack.c.b16 %v952, %v950
      %v999 = vpack.c.b16 %v953, %v951
      %v1000 = vpack.c.b16 %v956, %v954
      %v1001 = vpack.c.b16 %v957, %v955
      %v1002 = vpack.c.b16 %v960, %v958
      %v1003 = vpack.c.b16 %v961, %v959
      %v1004 = vpack.c.b16 %v964, %v962
      %v1005 = vpack.c.b16 %v965, %v963
      %v1006 = vpack.c.b16 %v968, %v966
      %v1007 = vpack.c.b16 %v969, %v967
      %v1008 = vpack.c.b16 %v972, %v970
      %v1009 = vpack.c.b16 %v973, %v971
      %v1010 = vpack.c.b16 %v976, %v974
      %v1011 = vpack.c.b16 %v977, %v975
      %v1012 = vpack.c.b16 %v980, %v978
      %v1013 = vpack.c.b16 %v981, %v979
      %1046 = vmatprep.subr.bf16.mxu0 %v983
      %1047 = vmatpush1.bf16.msra.mxu0 %v982
      %1048 = vmatprep.subr.bf16.mxu0 %v985
      %1049 = vmatpush1.bf16.msra.mxu0 %v984
      %1050 = vmatprep.subr.bf16.mxu0 %v987
      %1051 = vmatpush1.bf16.msra.mxu0 %v986
      %1052 = vmatprep.subr.bf16.mxu0 %v989
      %1053 = vmatpush1.bf16.msra.mxu0 %v988
      %1054 = vmatprep.subr.bf16.mxu0 %v991
      %1055 = vmatpush1.bf16.msra.mxu0 %v990
      %1056 = vmatprep.subr.bf16.mxu0 %v993
      %1057 = vmatpush1.bf16.msra.mxu0 %v992
      %1058 = vmatprep.subr.bf16.mxu0 %v995
      %1059 = vmatpush1.bf16.msra.mxu0 %v994
      %1060 = vmatprep.subr.bf16.mxu0 %v997
      %1061 = vmatpush1.bf16.msra.mxu0 %v996
      %1062 = vmatprep.subr.bf16.mxu0 %v999
      %1063 = vmatpush1.bf16.msra.mxu0 %v998
      %1064 = vmatprep.subr.bf16.mxu0 %v1001
      %1065 = vmatpush1.bf16.msra.mxu0 %v1000
      %1066 = vmatprep.subr.bf16.mxu0 %v1003
      %1067 = vmatpush1.bf16.msra.mxu0 %v1002
      %1068 = vmatprep.subr.bf16.mxu0 %v1005
      %1069 = vmatpush1.bf16.msra.mxu0 %v1004
      %1070 = vmatprep.subr.bf16.mxu0 %v1007
      %1071 = vmatpush1.bf16.msra.mxu0 %v1006
      %1072 = vmatprep.subr.bf16.mxu0 %v1009
      %1073 = vmatpush1.bf16.msra.mxu0 %v1008
      %1074 = vmatprep.subr.bf16.mxu0 %v1011
      %1075 = vmatpush1.bf16.msra.mxu0 %v1010
      %1076 = vmatprep.subr.bf16.mxu0 %v1013
      %1077 = vmatpush1.bf16.msra.mxu0 %v1012
      %1078 = vmatprep.mubr.bf16.mxu0 %v846
      %1079 = vmatmul.mubr.bf16.gmra.mrb[0].mxu0 %v845
      %v1080 = vpop.f32.mrb[0].mxu0
      %v1081 = vadd.f32 0.0, %v1080
      %v1082 = vpop.f32.mrb[0].mxu0
      %v1083 = vadd.f32 0.0, %v1082
      %v1084 = vpop.f32.mrb[0].mxu0
      %v1085 = vadd.f32 0.0, %v1084
      %v1086 = vpop.f32.mrb[0].mxu0
      %v1087 = vadd.f32 0.0, %v1086
      %1088 = vmatprep.mubr.bf16.mxu0 %v848
      %1089 = vmatmul.mubr.bf16.gmra.mrb[0].mxu0 %v847
      %v1090 = vpop.f32.mrb[0].mxu0
      %v1091 = vadd.f32 0.0, %v1090
      %v1092 = vpop.f32.mrb[0].mxu0
      %v1093 = vadd.f32 0.0, %v1092
      %v1094 = vpop.f32.mrb[0].mxu0
      %v1095 = vadd.f32 0.0, %v1094
      %v1096 = vpop.f32.mrb[0].mxu0
      %v1097 = vadd.f32 0.0, %v1096
      %1098 = vmatprep.mubr.bf16.mxu0 %v850
      %1099 = vmatmul.mubr.bf16.gmra.mrb[0].mxu0 %v849
      %v1100 = vpop.f32.mrb[0].mxu0
      %v1101 = vadd.f32 0.0, %v1100
      %v1102 = vpop.f32.mrb[0].mxu0
      %v1103 = vadd.f32 0.0, %v1102
      %v1104 = vpop.f32.mrb[0].mxu0
      %v1105 = vadd.f32 0.0, %v1104
      %v1106 = vpop.f32.mrb[0].mxu0
      %v1107 = vadd.f32 0.0, %v1106
      %1108 = vmatprep.mubr.bf16.mxu0 %v852
      %1109 = vmatmul.mubr.bf16.gmra.mrb[0].mxu0 %v851
      %v1110 = vpop.f32.mrb[0].mxu0
      %v1111 = vadd.f32 0.0, %v1110
      %v1112 = vpop.f32.mrb[0].mxu0
      %v1113 = vadd.f32 0.0, %v1112
      %v1114 = vpop.f32.mrb[0].mxu0
      %v1115 = vadd.f32 0.0, %v1114
      %v1116 = vpop.f32.mrb[0].mxu0
      %v1117 = vadd.f32 0.0, %v1116
      %1118 = vdwg.mxu0
      %v1151 = vunpack.c.l.b16 %v684
      %v1152 = vunpack.c.h.b16 %v684
      %v1153 = vunpack.c.l.b16 %v685
      %v1154 = vunpack.c.h.b16 %v685
      %v1155 = vunpack.c.l.b16 %v686
      %v1156 = vunpack.c.h.b16 %v686
      %v1157 = vunpack.c.l.b16 %v687
      %v1158 = vunpack.c.h.b16 %v687
      %v1159 = vunpack.c.l.b16 %v688
      %v1160 = vunpack.c.h.b16 %v688
      %v1161 = vunpack.c.l.b16 %v689
      %v1162 = vunpack.c.h.b16 %v689
      %v1163 = vunpack.c.l.b16 %v690
      %v1164 = vunpack.c.h.b16 %v690
      %v1165 = vunpack.c.l.b16 %v691
      %v1166 = vunpack.c.h.b16 %v691
      %v1167 = vunpack.c.l.b16 %v692
      %v1168 = vunpack.c.h.b16 %v692
      %v1169 = vunpack.c.l.b16 %v693
      %v1170 = vunpack.c.h.b16 %v693
      %v1171 = vunpack.c.l.b16 %v694
      %v1172 = vunpack.c.h.b16 %v694
      %v1173 = vunpack.c.l.b16 %v695
      %v1174 = vunpack.c.h.b16 %v695
      %v1175 = vunpack.c.l.b16 %v696
      %v1176 = vunpack.c.h.b16 %v696
      %v1177 = vunpack.c.l.b16 %v697
      %v1178 = vunpack.c.h.b16 %v697
      %v1179 = vunpack.c.l.b16 %v698
      %v1180 = vunpack.c.h.b16 %v698
      %v1181 = vunpack.c.l.b16 %v699
      %v1182 = vunpack.c.h.b16 %v699
      %v1183 = vunpack.c.l.b16 %v700
      %v1184 = vunpack.c.h.b16 %v700
      %v1185 = vunpack.c.l.b16 %v701
      %v1186 = vunpack.c.h.b16 %v701
      %v1187 = vunpack.c.l.b16 %v702
      %v1188 = vunpack.c.h.b16 %v702
      %v1189 = vunpack.c.l.b16 %v703
      %v1190 = vunpack.c.h.b16 %v703
      %v1191 = vunpack.c.l.b16 %v704
      %v1192 = vunpack.c.h.b16 %v704
      %v1193 = vunpack.c.l.b16 %v705
      %v1194 = vunpack.c.h.b16 %v705
      %v1195 = vunpack.c.l.b16 %v706
      %v1196 = vunpack.c.h.b16 %v706
      %v1197 = vunpack.c.l.b16 %v707
      %v1198 = vunpack.c.h.b16 %v707
      %v1199 = vunpack.c.l.b16 %v708
      %v1200 = vunpack.c.h.b16 %v708
      %v1201 = vunpack.c.l.b16 %v709
      %v1202 = vunpack.c.h.b16 %v709
      %v1203 = vunpack.c.l.b16 %v710
      %v1204 = vunpack.c.h.b16 %v710
      %v1205 = vunpack.c.l.b16 %v711
      %v1206 = vunpack.c.h.b16 %v711
      %v1207 = vunpack.c.l.b16 %v712
      %v1208 = vunpack.c.h.b16 %v712
      %v1209 = vunpack.c.l.b16 %v713
      %v1210 = vunpack.c.h.b16 %v713
      %v1211 = vunpack.c.l.b16 %v714
      %v1212 = vunpack.c.h.b16 %v714
      %v1213 = vunpack.c.l.b16 %v715
      %v1214 = vunpack.c.h.b16 %v715
      %v1215 = vpack.c.b16 %v1153, %v1151
      %v1216 = vpack.c.b16 %v1154, %v1152
      %v1217 = vpack.c.b16 %v1157, %v1155
      %v1218 = vpack.c.b16 %v1158, %v1156
      %v1219 = vpack.c.b16 %v1161, %v1159
      %v1220 = vpack.c.b16 %v1162, %v1160
      %v1221 = vpack.c.b16 %v1165, %v1163
      %v1222 = vpack.c.b16 %v1166, %v1164
      %v1223 = vpack.c.b16 %v1169, %v1167
      %v1224 = vpack.c.b16 %v1170, %v1168
      %v1225 = vpack.c.b16 %v1173, %v1171
      %v1226 = vpack.c.b16 %v1174, %v1172
      %v1227 = vpack.c.b16 %v1177, %v1175
      %v1228 = vpack.c.b16 %v1178, %v1176
      %v1229 = vpack.c.b16 %v1181, %v1179
      %v1230 = vpack.c.b16 %v1182, %v1180
      %v1231 = vpack.c.b16 %v1185, %v1183
      %v1232 = vpack.c.b16 %v1186, %v1184
      %v1233 = vpack.c.b16 %v1189, %v1187
      %v1234 = vpack.c.b16 %v1190, %v1188
      %v1235 = vpack.c.b16 %v1193, %v1191
      %v1236 = vpack.c.b16 %v1194, %v1192
      %v1237 = vpack.c.b16 %v1197, %v1195
      %v1238 = vpack.c.b16 %v1198, %v1196
      %v1239 = vpack.c.b16 %v1201, %v1199
      %v1240 = vpack.c.b16 %v1202, %v1200
      %v1241 = vpack.c.b16 %v1205, %v1203
      %v1242 = vpack.c.b16 %v1206, %v1204
      %v1243 = vpack.c.b16 %v1209, %v1207
      %v1244 = vpack.c.b16 %v1210, %v1208
      %v1245 = vpack.c.b16 %v1213, %v1211
      %v1246 = vpack.c.b16 %v1214, %v1212
      %1279 = vmatprep.subr.bf16.mxu0 %v1216
      %1280 = vmatpush1.bf16.msra.mxu0 %v1215
      %1281 = vmatprep.subr.bf16.mxu0 %v1218
      %1282 = vmatpush1.bf16.msra.mxu0 %v1217
      %1283 = vmatprep.subr.bf16.mxu0 %v1220
      %1284 = vmatpush1.bf16.msra.mxu0 %v1219
      %1285 = vmatprep.subr.bf16.mxu0 %v1222
      %1286 = vmatpush1.bf16.msra.mxu0 %v1221
      %1287 = vmatprep.subr.bf16.mxu0 %v1224
      %1288 = vmatpush1.bf16.msra.mxu0 %v1223
      %1289 = vmatprep.subr.bf16.mxu0 %v1226
      %1290 = vmatpush1.bf16.msra.mxu0 %v1225
      %1291 = vmatprep.subr.bf16.mxu0 %v1228
      %1292 = vmatpush1.bf16.msra.mxu0 %v1227
      %1293 = vmatprep.subr.bf16.mxu0 %v1230
      %1294 = vmatpush1.bf16.msra.mxu0 %v1229
      %1295 = vmatprep.subr.bf16.mxu0 %v1232
      %1296 = vmatpush1.bf16.msra.mxu0 %v1231
      %1297 = vmatprep.subr.bf16.mxu0 %v1234
      %1298 = vmatpush1.bf16.msra.mxu0 %v1233
      %1299 = vmatprep.subr.bf16.mxu0 %v1236
      %1300 = vmatpush1.bf16.msra.mxu0 %v1235
      %1301 = vmatprep.subr.bf16.mxu0 %v1238
      %1302 = vmatpush1.bf16.msra.mxu0 %v1237
      %1303 = vmatprep.subr.bf16.mxu0 %v1240
      %1304 = vmatpush1.bf16.msra.mxu0 %v1239
      %1305 = vmatprep.subr.bf16.mxu0 %v1242
      %1306 = vmatpush1.bf16.msra.mxu0 %v1241
      %1307 = vmatprep.subr.bf16.mxu0 %v1244
      %1308 = vmatpush1.bf16.msra.mxu0 %v1243
      %1309 = vmatprep.subr.bf16.mxu0 %v1246
      %1310 = vmatpush1.bf16.msra.mxu0 %v1245
      %1311 = vmatprep.mubr.bf16.mxu0 %v677
      %1312 = vmatmul.mubr.bf16.gmra.mrb[0].mxu0 %v676
      %v1313 = vpop.f32.mrb[0].mxu0
      %v1314 = vadd.f32 %v1081, %v1313
      %v1315 = vpop.f32.mrb[0].mxu0
      %v1316 = vadd.f32 %v1083, %v1315
      %v1317 = vpop.f32.mrb[0].mxu0
      %v1318 = vadd.f32 %v1085, %v1317
      %v1319 = vpop.f32.mrb[0].mxu0
      %v1320 = vadd.f32 %v1087, %v1319
      %1321 = vmatprep.mubr.bf16.mxu0 %v679
      %1322 = vmatmul.mubr.bf16.gmra.mrb[0].mxu0 %v678
      %v1323 = vpop.f32.mrb[0].mxu0
      %v1324 = vadd.f32 %v1091, %v1323
      %v1325 = vpop.f32.mrb[0].mxu0
      %v1326 = vadd.f32 %v1093, %v1325
      %v1327 = vpop.f32.mrb[0].mxu0
      %v1328 = vadd.f32 %v1095, %v1327
      %v1329 = vpop.f32.mrb[0].mxu0
      %v1330 = vadd.f32 %v1097, %v1329
      %1331 = vmatprep.mubr.bf16.mxu0 %v681
      %1332 = vmatmul.mubr.bf16.gmra.mrb[0].mxu0 %v680
      %v1333 = vpop.f32.mrb[0].mxu0
      %v1334 = vadd.f32 %v1101, %v1333
      %v1335 = vpop.f32.mrb[0].mxu0
      %v1336 = vadd.f32 %v1103, %v1335
      %v1337 = vpop.f32.mrb[0].mxu0
      %v1338 = vadd.f32 %v1105, %v1337
      %v1339 = vpop.f32.mrb[0].mxu0
      %v1340 = vadd.f32 %v1107, %v1339
      %1341 = vmatprep.mubr.bf16.mxu0 %v683
      %1342 = vmatmul.mubr.bf16.gmra.mrb[0].mxu0 %v682
      %v1343 = vpop.f32.mrb[0].mxu0
      %v1344 = vadd.f32 %v1111, %v1343
      %v1345 = vpop.f32.mrb[0].mxu0
      %v1346 = vadd.f32 %v1113, %v1345
      %v1347 = vpop.f32.mrb[0].mxu0
      %v1348 = vadd.f32 %v1115, %v1347
      %v1349 = vpop.f32.mrb[0].mxu0
      %v1350 = vadd.f32 %v1117, %v1349
      %1351 = vdwg.mxu0
      %v1352 = vld [vmem:[#allocation2] sm:$0xfc]
      %v1353 = vld [vmem:[#allocation2 + $0x8] sm:$0xfc]
      %v1354 = vld [vmem:[#allocation2 + $0x10] sm:$0x3]
      %v1355 = vld [vmem:[#allocation2 + $0x18] sm:$0x3]
      %v1356 = vld [vmem:[#allocation2 + $0x20] sm:$0xfc]
      %v1357 = vld [vmem:[#allocation2 + $0x28] sm:$0xfc]
      %v1358 = vld [vmem:[#allocation2 + $0x30] sm:$0x3]
      %v1359 = vld [vmem:[#allocation2 + $0x38] sm:$0x3]
      %v1360 = vld [vmem:[#allocation2 + $0x40] sm:$0xfc]
      %v1361 = vld [vmem:[#allocation2 + $0x48] sm:$0xfc]
      %v1362 = vld [vmem:[#allocation2 + $0x50] sm:$0x3]
      %v1363 = vld [vmem:[#allocation2 + $0x58] sm:$0x3]
      %v1364 = vld [vmem:[#allocation2 + $0x60] sm:$0xfc]
      %v1365 = vld [vmem:[#allocation2 + $0x68] sm:$0xfc]
      %v1366 = vld [vmem:[#allocation2 + $0x70] sm:$0x3]
      %v1367 = vld [vmem:[#allocation2 + $0x78] sm:$0x3]
      %v1368 = vld [vmem:[#allocation2 + $0x80] sm:$0xfc]
      %v1369 = vld [vmem:[#allocation2 + $0x88] sm:$0xfc]
      %v1370 = vld [vmem:[#allocation2 + $0x90] sm:$0x3]
      %v1371 = vld [vmem:[#allocation2 + $0x98] sm:$0x3]
      %v1372 = vld [vmem:[#allocation2 + $0xa0] sm:$0xfc]
      %v1373 = vld [vmem:[#allocation2 + $0xa8] sm:$0xfc]
      %v1374 = vld [vmem:[#allocation2 + $0xb0] sm:$0x3]
      %v1375 = vld [vmem:[#allocation2 + $0xb8] sm:$0x3]
      %v1376 = vld [vmem:[#allocation2 + $0xc0] sm:$0xfc]
      %v1377 = vld [vmem:[#allocation2 + $0xc8] sm:$0xfc]
      %v1378 = vld [vmem:[#allocation2 + $0xd0] sm:$0x3]
      %v1379 = vld [vmem:[#allocation2 + $0xd8] sm:$0x3]
      %v1380 = vld [vmem:[#allocation2 + $0xe0] sm:$0xfc]
      %v1381 = vld [vmem:[#allocation2 + $0xe8] sm:$0xfc]
      %v1382 = vld [vmem:[#allocation2 + $0xf0] sm:$0x3]
      %v1383 = vld [vmem:[#allocation2 + $0xf8] sm:$0x3]
      %vm1416 = vcmask 1045504
      %v1417 = vrot.slane %v1352, 2
      %v1418 = vrot.slane %v1354, 2
      %v1419 = vsel %vm1416, %v1417, %v1418
      %v1420 = vrot.slane %v1353, 2
      %v1421 = vrot.slane %v1355, 2
      %v1422 = vsel %vm1416, %v1420, %v1421
      %v1423 = vrot.slane %v1356, 2
      %v1424 = vrot.slane %v1358, 2
      %v1425 = vsel %vm1416, %v1423, %v1424
      %v1426 = vrot.slane %v1357, 2
      %v1427 = vrot.slane %v1359, 2
      %v1428 = vsel %vm1416, %v1426, %v1427
      %v1429 = vrot.slane %v1360, 2
      %v1430 = vrot.slane %v1362, 2
      %v1431 = vsel %vm1416, %v1429, %v1430
      %v1432 = vrot.slane %v1361, 2
      %v1433 = vrot.slane %v1363, 2
      %v1434 = vsel %vm1416, %v1432, %v1433
      %v1435 = vrot.slane %v1364, 2
      %v1436 = vrot.slane %v1366, 2
      %v1437 = vsel %vm1416, %v1435, %v1436
      %v1438 = vrot.slane %v1365, 2
      %v1439 = vrot.slane %v1367, 2
      %v1440 = vsel %vm1416, %v1438, %v1439
      %v1441 = vrot.slane %v1368, 2
      %v1442 = vrot.slane %v1370, 2
      %v1443 = vsel %vm1416, %v1441, %v1442
      %v1444 = vrot.slane %v1369, 2
      %v1445 = vrot.slane %v1371, 2
      %v1446 = vsel %vm1416, %v1444, %v1445
      %v1447 = vrot.slane %v1372, 2
      %v1448 = vrot.slane %v1374, 2
      %v1449 = vsel %vm1416, %v1447, %v1448
      %v1450 = vrot.slane %v1373, 2
      %v1451 = vrot.slane %v1375, 2
      %v1452 = vsel %vm1416, %v1450, %v1451
      %v1453 = vrot.slane %v1376, 2
      %v1454 = vrot.slane %v1378, 2
      %v1455 = vsel %vm1416, %v1453, %v1454
      %v1456 = vrot.slane %v1377, 2
      %v1457 = vrot.slane %v1379, 2
      %v1458 = vsel %vm1416, %v1456, %v1457
      %v1459 = vrot.slane %v1380, 2
      %v1460 = vrot.slane %v1382, 2
      %v1461 = vsel %vm1416, %v1459, %v1460
      %v1462 = vrot.slane %v1381, 2
      %v1463 = vrot.slane %v1383, 2
      %v1464 = vsel %vm1416, %v1462, %v1463
      %v1481 = vpack.c.bf16 %v1425, %v1419
      %v1482 = vpack.c.bf16 %v1428, %v1422
      %v1483 = vpack.c.bf16 %v1437, %v1431
      %v1484 = vpack.c.bf16 %v1440, %v1434
      %v1485 = vpack.c.bf16 %v1449, %v1443
      %v1486 = vpack.c.bf16 %v1452, %v1446
      %v1487 = vpack.c.bf16 %v1461, %v1455
      %v1488 = vpack.c.bf16 %v1464, %v1458
      %s1489 = scalar_lea.vmem %s3, 512
      %v1490 = vld [vmem:[%s1489] sm:$0xff]
      %v1491 = vld [vmem:[%s1489 + $0x8] sm:$0xff]
      %v1492 = vld [vmem:[%s1489 + $0x10] sm:$0xff]
      %v1493 = vld [vmem:[%s1489 + $0x18] sm:$0xff]
      %v1494 = vld [vmem:[%s1489 + $0x20] sm:$0xff]
      %v1495 = vld [vmem:[%s1489 + $0x28] sm:$0xff]
      %v1496 = vld [vmem:[%s1489 + $0x30] sm:$0xff]
      %v1497 = vld [vmem:[%s1489 + $0x38] sm:$0xff]
      %v1498 = vld [vmem:[%s1489 + $0x40] sm:$0xff]
      %v1499 = vld [vmem:[%s1489 + $0x48] sm:$0xff]
      %v1500 = vld [vmem:[%s1489 + $0x50] sm:$0xff]
      %v1501 = vld [vmem:[%s1489 + $0x58] sm:$0xff]
      %v1502 = vld [vmem:[%s1489 + $0x60] sm:$0xff]
      %v1503 = vld [vmem:[%s1489 + $0x68] sm:$0xff]
      %v1504 = vld [vmem:[%s1489 + $0x70] sm:$0xff]
      %v1505 = vld [vmem:[%s1489 + $0x78] sm:$0xff]
      %v1506 = vld [vmem:[%s1489 + $0x80] sm:$0xff]
      %v1507 = vld [vmem:[%s1489 + $0x88] sm:$0xff]
      %v1508 = vld [vmem:[%s1489 + $0x90] sm:$0xff]
      %v1509 = vld [vmem:[%s1489 + $0x98] sm:$0xff]
      %v1510 = vld [vmem:[%s1489 + $0xa0] sm:$0xff]
      %v1511 = vld [vmem:[%s1489 + $0xa8] sm:$0xff]
      %v1512 = vld [vmem:[%s1489 + $0xb0] sm:$0xff]
      %v1513 = vld [vmem:[%s1489 + $0xb8] sm:$0xff]
      %v1514 = vld [vmem:[%s1489 + $0xc0] sm:$0xff]
      %v1515 = vld [vmem:[%s1489 + $0xc8] sm:$0xff]
      %v1516 = vld [vmem:[%s1489 + $0xd0] sm:$0xff]
      %v1517 = vld [vmem:[%s1489 + $0xd8] sm:$0xff]
      %v1518 = vld [vmem:[%s1489 + $0xe0] sm:$0xff]
      %v1519 = vld [vmem:[%s1489 + $0xe8] sm:$0xff]
      %v1520 = vld [vmem:[%s1489 + $0xf0] sm:$0xff]
      %v1521 = vld [vmem:[%s1489 + $0xf8] sm:$0xff]
      %v1554 = vunpack.c.l.b16 %v1490
      %v1555 = vunpack.c.h.b16 %v1490
      %v1556 = vunpack.c.l.b16 %v1491
      %v1557 = vunpack.c.h.b16 %v1491
      %v1558 = vunpack.c.l.b16 %v1492
      %v1559 = vunpack.c.h.b16 %v1492
      %v1560 = vunpack.c.l.b16 %v1493
      %v1561 = vunpack.c.h.b16 %v1493
      %v1562 = vunpack.c.l.b16 %v1494
      %v1563 = vunpack.c.h.b16 %v1494
      %v1564 = vunpack.c.l.b16 %v1495
      %v1565 = vunpack.c.h.b16 %v1495
      %v1566 = vunpack.c.l.b16 %v1496
      %v1567 = vunpack.c.h.b16 %v1496
      %v1568 = vunpack.c.l.b16 %v1497
      %v1569 = vunpack.c.h.b16 %v1497
      %v1570 = vunpack.c.l.b16 %v1498
      %v1571 = vunpack.c.h.b16 %v1498
      %v1572 = vunpack.c.l.b16 %v1499
      %v1573 = vunpack.c.h.b16 %v1499
      %v1574 = vunpack.c.l.b16 %v1500
      %v1575 = vunpack.c.h.b16 %v1500
      %v1576 = vunpack.c.l.b16 %v1501
      %v1577 = vunpack.c.h.b16 %v1501
      %v1578 = vunpack.c.l.b16 %v1502
      %v1579 = vunpack.c.h.b16 %v1502
      %v1580 = vunpack.c.l.b16 %v1503
      %v1581 = vunpack.c.h.b16 %v1503
      %v1582 = vunpack.c.l.b16 %v1504
      %v1583 = vunpack.c.h.b16 %v1504
      %v1584 = vunpack.c.l.b16 %v1505
      %v1585 = vunpack.c.h.b16 %v1505
      %v1586 = vunpack.c.l.b16 %v1506
      %v1587 = vunpack.c.h.b16 %v1506
      %v1588 = vunpack.c.l.b16 %v1507
      %v1589 = vunpack.c.h.b16 %v1507
      %v1590 = vunpack.c.l.b16 %v1508
      %v1591 = vunpack.c.h.b16 %v1508
      %v1592 = vunpack.c.l.b16 %v1509
      %v1593 = vunpack.c.h.b16 %v1509
      %v1594 = vunpack.c.l.b16 %v1510
      %v1595 = vunpack.c.h.b16 %v1510
      %v1596 = vunpack.c.l.b16 %v1511
      %v1597 = vunpack.c.h.b16 %v1511
      %v1598 = vunpack.c.l.b16 %v1512
      %v1599 = vunpack.c.h.b16 %v1512
      %v1600 = vunpack.c.l.b16 %v1513
      %v1601 = vunpack.c.h.b16 %v1513
      %v1602 = vunpack.c.l.b16 %v1514
      %v1603 = vunpack.c.h.b16 %v1514
      %v1604 = vunpack.c.l.b16 %v1515
      %v1605 = vunpack.c.h.b16 %v1515
      %v1606 = vunpack.c.l.b16 %v1516
      %v1607 = vunpack.c.h.b16 %v1516
      %v1608 = vunpack.c.l.b16 %v1517
      %v1609 = vunpack.c.h.b16 %v1517
      %v1610 = vunpack.c.l.b16 %v1518
      %v1611 = vunpack.c.h.b16 %v1518
      %v1612 = vunpack.c.l.b16 %v1519
      %v1613 = vunpack.c.h.b16 %v1519
      %v1614 = vunpack.c.l.b16 %v1520
      %v1615 = vunpack.c.h.b16 %v1520
      %v1616 = vunpack.c.l.b16 %v1521
      %v1617 = vunpack.c.h.b16 %v1521
      %v1618 = vpack.c.b16 %v1556, %v1554
      %v1619 = vpack.c.b16 %v1557, %v1555
      %v1620 = vpack.c.b16 %v1560, %v1558
      %v1621 = vpack.c.b16 %v1561, %v1559
      %v1622 = vpack.c.b16 %v1564, %v1562
      %v1623 = vpack.c.b16 %v1565, %v1563
      %v1624 = vpack.c.b16 %v1568, %v1566
      %v1625 = vpack.c.b16 %v1569, %v1567
      %v1626 = vpack.c.b16 %v1572, %v1570
      %v1627 = vpack.c.b16 %v1573, %v1571
      %v1628 = vpack.c.b16 %v1576, %v1574
      %v1629 = vpack.c.b16 %v1577, %v1575
      %v1630 = vpack.c.b16 %v1580, %v1578
      %v1631 = vpack.c.b16 %v1581, %v1579
      %v1632 = vpack.c.b16 %v1584, %v1582
      %v1633 = vpack.c.b16 %v1585, %v1583
      %v1634 = vpack.c.b16 %v1588, %v1586
      %v1635 = vpack.c.b16 %v1589, %v1587
      %v1636 = vpack.c.b16 %v1592, %v1590
      %v1637 = vpack.c.b16 %v1593, %v1591
      %v1638 = vpack.c.b16 %v1596, %v1594
      %v1639 = vpack.c.b16 %v1597, %v1595
      %v1640 = vpack.c.b16 %v1600, %v1598
      %v1641 = vpack.c.b16 %v1601, %v1599
      %v1642 = vpack.c.b16 %v1604, %v1602
      %v1643 = vpack.c.b16 %v1605, %v1603
      %v1644 = vpack.c.b16 %v1608, %v1606
      %v1645 = vpack.c.b16 %v1609, %v1607
      %v1646 = vpack.c.b16 %v1612, %v1610
      %v1647 = vpack.c.b16 %v1613, %v1611
      %v1648 = vpack.c.b16 %v1616, %v1614
      %v1649 = vpack.c.b16 %v1617, %v1615
      %1682 = vmatprep.subr.bf16.mxu0 %v1619
      %1683 = vmatpush1.bf16.msra.mxu0 %v1618
      %1684 = vmatprep.subr.bf16.mxu0 %v1621
      %1685 = vmatpush1.bf16.msra.mxu0 %v1620
      %1686 = vmatprep.subr.bf16.mxu0 %v1623
      %1687 = vmatpush1.bf16.msra.mxu0 %v1622
      %1688 = vmatprep.subr.bf16.mxu0 %v1625
      %1689 = vmatpush1.bf16.msra.mxu0 %v1624
      %1690 = vmatprep.subr.bf16.mxu0 %v1627
      %1691 = vmatpush1.bf16.msra.mxu0 %v1626
      %1692 = vmatprep.subr.bf16.mxu0 %v1629
      %1693 = vmatpush1.bf16.msra.mxu0 %v1628
      %1694 = vmatprep.subr.bf16.mxu0 %v1631
      %1695 = vmatpush1.bf16.msra.mxu0 %v1630
      %1696 = vmatprep.subr.bf16.mxu0 %v1633
      %1697 = vmatpush1.bf16.msra.mxu0 %v1632
      %1698 = vmatprep.subr.bf16.mxu0 %v1635
      %1699 = vmatpush1.bf16.msra.mxu0 %v1634
      %1700 = vmatprep.subr.bf16.mxu0 %v1637
      %1701 = vmatpush1.bf16.msra.mxu0 %v1636
      %1702 = vmatprep.subr.bf16.mxu0 %v1639
      %1703 = vmatpush1.bf16.msra.mxu0 %v1638
      %1704 = vmatprep.subr.bf16.mxu0 %v1641
      %1705 = vmatpush1.bf16.msra.mxu0 %v1640
      %1706 = vmatprep.subr.bf16.mxu0 %v1643
      %1707 = vmatpush1.bf16.msra.mxu0 %v1642
      %1708 = vmatprep.subr.bf16.mxu0 %v1645
      %1709 = vmatpush1.bf16.msra.mxu0 %v1644
      %1710 = vmatprep.subr.bf16.mxu0 %v1647
      %1711 = vmatpush1.bf16.msra.mxu0 %v1646
      %1712 = vmatprep.subr.bf16.mxu0 %v1649
      %1713 = vmatpush1.bf16.msra.mxu0 %v1648
      %1714 = vmatprep.mubr.bf16.mxu0 %v1482
      %1715 = vmatmul.mubr.bf16.gmra.mrb[0].mxu0 %v1481
      %v1716 = vpop.f32.mrb[0].mxu0
      %v1717 = vadd.f32 0.0, %v1716
      %v1718 = vpop.f32.mrb[0].mxu0
      %v1719 = vadd.f32 0.0, %v1718
      %v1720 = vpop.f32.mrb[0].mxu0
      %v1721 = vadd.f32 0.0, %v1720
      %v1722 = vpop.f32.mrb[0].mxu0
      %v1723 = vadd.f32 0.0, %v1722
      %1724 = vmatprep.mubr.bf16.mxu0 %v1484
      %1725 = vmatmul.mubr.bf16.gmra.mrb[0].mxu0 %v1483
      %v1726 = vpop.f32.mrb[0].mxu0
      %v1727 = vadd.f32 0.0, %v1726
      %v1728 = vpop.f32.mrb[0].mxu0
      %v1729 = vadd.f32 0.0, %v1728
      %v1730 = vpop.f32.mrb[0].mxu0
      %v1731 = vadd.f32 0.0, %v1730
      %v1732 = vpop.f32.mrb[0].mxu0
      %v1733 = vadd.f32 0.0, %v1732
      %1734 = vmatprep.mubr.bf16.mxu0 %v1486
      %1735 = vmatmul.mubr.bf16.gmra.mrb[0].mxu0 %v1485
      %v1736 = vpop.f32.mrb[0].mxu0
      %v1737 = vadd.f32 0.0, %v1736
      %v1738 = vpop.f32.mrb[0].mxu0
      %v1739 = vadd.f32 0.0, %v1738
      %v1740 = vpop.f32.mrb[0].mxu0
      %v1741 = vadd.f32 0.0, %v1740
      %v1742 = vpop.f32.mrb[0].mxu0
      %v1743 = vadd.f32 0.0, %v1742
      %1744 = vmatprep.mubr.bf16.mxu0 %v1488
      %1745 = vmatmul.mubr.bf16.gmra.mrb[0].mxu0 %v1487
      %v1746 = vpop.f32.mrb[0].mxu0
      %v1747 = vadd.f32 0.0, %v1746
      %v1748 = vpop.f32.mrb[0].mxu0
      %v1749 = vadd.f32 0.0, %v1748
      %v1750 = vpop.f32.mrb[0].mxu0
      %v1751 = vadd.f32 0.0, %v1750
      %v1752 = vpop.f32.mrb[0].mxu0
      %v1753 = vadd.f32 0.0, %v1752
      %1754 = vdwg.mxu0
      %v1755 = vadd.f32 %v1314, %v1717
      %v1756 = vadd.f32 %v1316, %v1719
      %v1757 = vadd.f32 %v1318, %v1721
      %v1758 = vadd.f32 %v1320, %v1723
      %v1759 = vadd.f32 %v1324, %v1727
      %v1760 = vadd.f32 %v1326, %v1729
      %v1761 = vadd.f32 %v1328, %v1731
      %v1762 = vadd.f32 %v1330, %v1733
      %v1763 = vadd.f32 %v1334, %v1737
      %v1764 = vadd.f32 %v1336, %v1739
      %v1765 = vadd.f32 %v1338, %v1741
      %v1766 = vadd.f32 %v1340, %v1743
      %v1767 = vadd.f32 %v1344, %v1747
      %v1768 = vadd.f32 %v1346, %v1749
      %v1769 = vadd.f32 %v1348, %v1751
      %v1770 = vadd.f32 %v1350, %v1753
      %v1771 = vld [vmem:[%s627] sm:$0xff]
      %v1772 = vld [vmem:[%s627 + $0x8] sm:$0xff]
      %v1773 = vld [vmem:[%s627 + $0x20] sm:$0xff]
      %v1774 = vld [vmem:[%s627 + $0x28] sm:$0xff]
      %v1775 = vld [vmem:[%s627 + $0x40] sm:$0xff]
      %v1776 = vld [vmem:[%s627 + $0x48] sm:$0xff]
      %v1777 = vld [vmem:[%s627 + $0x60] sm:$0xff]
      %v1778 = vld [vmem:[%s627 + $0x68] sm:$0xff]
      %v1779 = vld [vmem:[%s627 + $0x80] sm:$0xff]
      %v1780 = vld [vmem:[%s627 + $0x88] sm:$0xff]
      %v1781 = vld [vmem:[%s627 + $0xa0] sm:$0xff]
      %v1782 = vld [vmem:[%s627 + $0xa8] sm:$0xff]
      %v1783 = vld [vmem:[%s627 + $0xc0] sm:$0xff]
      %v1784 = vld [vmem:[%s627 + $0xc8] sm:$0xff]
      %v1785 = vld [vmem:[%s627 + $0xe0] sm:$0xff]
      %v1786 = vld [vmem:[%s627 + $0xe8] sm:$0xff]
      %v1787 = vpack.c.bf16 %v1773, %v1771
      %v1788 = vpack.c.bf16 %v1774, %v1772
      %v1789 = vpack.c.bf16 %v1777, %v1775
      %v1790 = vpack.c.bf16 %v1778, %v1776
      %v1791 = vpack.c.bf16 %v1781, %v1779
      %v1792 = vpack.c.bf16 %v1782, %v1780
      %v1793 = vpack.c.bf16 %v1785, %v1783
      %v1794 = vpack.c.bf16 %v1786, %v1784
      %s1795 = scalar_lea.vmem %s3, 768
      %v1796 = vld [vmem:[%s1795] sm:$0xff]
      %v1797 = vld [vmem:[%s1795 + $0x8] sm:$0xff]
      %v1798 = vld [vmem:[%s1795 + $0x10] sm:$0xff]
      %v1799 = vld [vmem:[%s1795 + $0x18] sm:$0xff]
      %v1800 = vld [vmem:[%s1795 + $0x20] sm:$0xff]
      %v1801 = vld [vmem:[%s1795 + $0x28] sm:$0xff]
      %v1802 = vld [vmem:[%s1795 + $0x30] sm:$0xff]
      %v1803 = vld [vmem:[%s1795 + $0x38] sm:$0xff]
      %v1804 = vld [vmem:[%s1795 + $0x40] sm:$0xff]
      %v1805 = vld [vmem:[%s1795 + $0x48] sm:$0xff]
      %v1806 = vld [vmem:[%s1795 + $0x50] sm:$0xff]
      %v1807 = vld [vmem:[%s1795 + $0x58] sm:$0xff]
      %v1808 = vld [vmem:[%s1795 + $0x60] sm:$0xff]
      %v1809 = vld [vmem:[%s1795 + $0x68] sm:$0xff]
      %v1810 = vld [vmem:[%s1795 + $0x70] sm:$0xff]
      %v1811 = vld [vmem:[%s1795 + $0x78] sm:$0xff]
      %v1812 = vld [vmem:[%s1795 + $0x80] sm:$0xff]
      %v1813 = vld [vmem:[%s1795 + $0x88] sm:$0xff]
      %v1814 = vld [vmem:[%s1795 + $0x90] sm:$0xff]
      %v1815 = vld [vmem:[%s1795 + $0x98] sm:$0xff]
      %v1816 = vld [vmem:[%s1795 + $0xa0] sm:$0xff]
      %v1817 = vld [vmem:[%s1795 + $0xa8] sm:$0xff]
      %v1818 = vld [vmem:[%s1795 + $0xb0] sm:$0xff]
      %v1819 = vld [vmem:[%s1795 + $0xb8] sm:$0xff]
      %v1820 = vld [vmem:[%s1795 + $0xc0] sm:$0xff]
      %v1821 = vld [vmem:[%s1795 + $0xc8] sm:$0xff]
      %v1822 = vld [vmem:[%s1795 + $0xd0] sm:$0xff]
      %v1823 = vld [vmem:[%s1795 + $0xd8] sm:$0xff]
      %v1824 = vld [vmem:[%s1795 + $0xe0] sm:$0xff]
      %v1825 = vld [vmem:[%s1795 + $0xe8] sm:$0xff]
      %v1826 = vld [vmem:[%s1795 + $0xf0] sm:$0xff]
      %v1827 = vld [vmem:[%s1795 + $0xf8] sm:$0xff]
      %v1860 = vunpack.c.l.b16 %v1796
      %v1861 = vunpack.c.h.b16 %v1796
      %v1862 = vunpack.c.l.b16 %v1797
      %v1863 = vunpack.c.h.b16 %v1797
      %v1864 = vunpack.c.l.b16 %v1798
      %v1865 = vunpack.c.h.b16 %v1798
      %v1866 = vunpack.c.l.b16 %v1799
      %v1867 = vunpack.c.h.b16 %v1799
      %v1868 = vunpack.c.l.b16 %v1800
      %v1869 = vunpack.c.h.b16 %v1800
      %v1870 = vunpack.c.l.b16 %v1801
      %v1871 = vunpack.c.h.b16 %v1801
      %v1872 = vunpack.c.l.b16 %v1802
      %v1873 = vunpack.c.h.b16 %v1802
      %v1874 = vunpack.c.l.b16 %v1803
      %v1875 = vunpack.c.h.b16 %v1803
      %v1876 = vunpack.c.l.b16 %v1804
      %v1877 = vunpack.c.h.b16 %v1804
      %v1878 = vunpack.c.l.b16 %v1805
      %v1879 = vunpack.c.h.b16 %v1805
      %v1880 = vunpack.c.l.b16 %v1806
      %v1881 = vunpack.c.h.b16 %v1806
      %v1882 = vunpack.c.l.b16 %v1807
      %v1883 = vunpack.c.h.b16 %v1807
      %v1884 = vunpack.c.l.b16 %v1808
      %v1885 = vunpack.c.h.b16 %v1808
      %v1886 = vunpack.c.l.b16 %v1809
      %v1887 = vunpack.c.h.b16 %v1809
      %v1888 = vunpack.c.l.b16 %v1810
      %v1889 = vunpack.c.h.b16 %v1810
      %v1890 = vunpack.c.l.b16 %v1811
      %v1891 = vunpack.c.h.b16 %v1811
      %v1892 = vunpack.c.l.b16 %v1812
      %v1893 = vunpack.c.h.b16 %v1812
      %v1894 = vunpack.c.l.b16 %v1813
      %v1895 = vunpack.c.h.b16 %v1813
      %v1896 = vunpack.c.l.b16 %v1814
      %v1897 = vunpack.c.h.b16 %v1814
      %v1898 = vunpack.c.l.b16 %v1815
      %v1899 = vunpack.c.h.b16 %v1815
      %v1900 = vunpack.c.l.b16 %v1816
      %v1901 = vunpack.c.h.b16 %v1816
      %v1902 = vunpack.c.l.b16 %v1817
      %v1903 = vunpack.c.h.b16 %v1817
      %v1904 = vunpack.c.l.b16 %v1818
      %v1905 = vunpack.c.h.b16 %v1818
      %v1906 = vunpack.c.l.b16 %v1819
      %v1907 = vunpack.c.h.b16 %v1819
      %v1908 = vunpack.c.l.b16 %v1820
      %v1909 = vunpack.c.h.b16 %v1820
      %v1910 = vunpack.c.l.b16 %v1821
      %v1911 = vunpack.c.h.b16 %v1821
      %v1912 = vunpack.c.l.b16 %v1822
      %v1913 = vunpack.c.h.b16 %v1822
      %v1914 = vunpack.c.l.b16 %v1823
      %v1915 = vunpack.c.h.b16 %v1823
      %v1916 = vunpack.c.l.b16 %v1824
      %v1917 = vunpack.c.h.b16 %v1824
      %v1918 = vunpack.c.l.b16 %v1825
      %v1919 = vunpack.c.h.b16 %v1825
      %v1920 = vunpack.c.l.b16 %v1826
      %v1921 = vunpack.c.h.b16 %v1826
      %v1922 = vunpack.c.l.b16 %v1827
      %v1923 = vunpack.c.h.b16 %v1827
      %v1924 = vpack.c.b16 %v1862, %v1860
      %v1925 = vpack.c.b16 %v1863, %v1861
      %v1926 = vpack.c.b16 %v1866, %v1864
      %v1927 = vpack.c.b16 %v1867, %v1865
      %v1928 = vpack.c.b16 %v1870, %v1868
      %v1929 = vpack.c.b16 %v1871, %v1869
      %v1930 = vpack.c.b16 %v1874, %v1872
      %v1931 = vpack.c.b16 %v1875, %v1873
      %v1932 = vpack.c.b16 %v1878, %v1876
      %v1933 = vpack.c.b16 %v1879, %v1877
      %v1934 = vpack.c.b16 %v1882, %v1880
      %v1935 = vpack.c.b16 %v1883, %v1881
      %v1936 = vpack.c.b16 %v1886, %v1884
      %v1937 = vpack.c.b16 %v1887, %v1885
      %v1938 = vpack.c.b16 %v1890, %v1888
      %v1939 = vpack.c.b16 %v1891, %v1889
      %v1940 = vpack.c.b16 %v1894, %v1892
      %v1941 = vpack.c.b16 %v1895, %v1893
      %v1942 = vpack.c.b16 %v1898, %v1896
      %v1943 = vpack.c.b16 %v1899, %v1897
      %v1944 = vpack.c.b16 %v1902, %v1900
      %v1945 = vpack.c.b16 %v1903, %v1901
      %v1946 = vpack.c.b16 %v1906, %v1904
      %v1947 = vpack.c.b16 %v1907, %v1905
      %v1948 = vpack.c.b16 %v1910, %v1908
      %v1949 = vpack.c.b16 %v1911, %v1909
      %v1950 = vpack.c.b16 %v1914, %v1912
      %v1951 = vpack.c.b16 %v1915, %v1913
      %v1952 = vpack.c.b16 %v1918, %v1916
      %v1953 = vpack.c.b16 %v1919, %v1917
      %v1954 = vpack.c.b16 %v1922, %v1920
      %v1955 = vpack.c.b16 %v1923, %v1921
      %1988 = vmatprep.subr.bf16.mxu0 %v1925
      %1989 = vmatpush1.bf16.msra.mxu0 %v1924
      %1990 = vmatprep.subr.bf16.mxu0 %v1927
      %1991 = vmatpush1.bf16.msra.mxu0 %v1926
      %1992 = vmatprep.subr.bf16.mxu0 %v1929
      %1993 = vmatpush1.bf16.msra.mxu0 %v1928
      %1994 = vmatprep.subr.bf16.mxu0 %v1931
      %1995 = vmatpush1.bf16.msra.mxu0 %v1930
      %1996 = vmatprep.subr.bf16.mxu0 %v1933
      %1997 = vmatpush1.bf16.msra.mxu0 %v1932
      %1998 = vmatprep.subr.bf16.mxu0 %v1935
      %1999 = vmatpush1.bf16.msra.mxu0 %v1934
      %2000 = vmatprep.subr.bf16.mxu0 %v1937
      %2001 = vmatpush1.bf16.msra.mxu0 %v1936
      %2002 = vmatprep.subr.bf16.mxu0 %v1939
      %2003 = vmatpush1.bf16.msra.mxu0 %v1938
      %2004 = vmatprep.subr.bf16.mxu0 %v1941
      %2005 = vmatpush1.bf16.msra.mxu0 %v1940
      %2006 = vmatprep.subr.bf16.mxu0 %v1943
      %2007 = vmatpush1.bf16.msra.mxu0 %v1942
      %2008 = vmatprep.subr.bf16.mxu0 %v1945
      %2009 = vmatpush1.bf16.msra.mxu0 %v1944
      %2010 = vmatprep.subr.bf16.mxu0 %v1947
      %2011 = vmatpush1.bf16.msra.mxu0 %v1946
      %2012 = vmatprep.subr.bf16.mxu0 %v1949
      %2013 = vmatpush1.bf16.msra.mxu0 %v1948
      %2014 = vmatprep.subr.bf16.mxu0 %v1951
      %2015 = vmatpush1.bf16.msra.mxu0 %v1950
      %2016 = vmatprep.subr.bf16.mxu0 %v1953
      %2017 = vmatpush1.bf16.msra.mxu0 %v1952
      %2018 = vmatprep.subr.bf16.mxu0 %v1955
      %2019 = vmatpush1.bf16.msra.mxu0 %v1954
      %2020 = vmatprep.mubr.bf16.mxu0 %v1788
      %2021 = vmatmul.mubr.bf16.gmra.mrb[0].mxu0 %v1787
      %v2022 = vpop.f32.mrb[0].mxu0
      %v2023 = vadd.f32 0.0, %v2022
      %v2024 = vpop.f32.mrb[0].mxu0
      %v2025 = vadd.f32 0.0, %v2024
      %v2026 = vpop.f32.mrb[0].mxu0
      %v2027 = vadd.f32 0.0, %v2026
      %v2028 = vpop.f32.mrb[0].mxu0
      %v2029 = vadd.f32 0.0, %v2028
      %2030 = vmatprep.mubr.bf16.mxu0 %v1790
      %2031 = vmatmul.mubr.bf16.gmra.mrb[0].mxu0 %v1789
      %v2032 = vpop.f32.mrb[0].mxu0
      %v2033 = vadd.f32 0.0, %v2032
      %v2034 = vpop.f32.mrb[0].mxu0
      %v2035 = vadd.f32 0.0, %v2034
      %v2036 = vpop.f32.mrb[0].mxu0
      %v2037 = vadd.f32 0.0, %v2036
      %v2038 = vpop.f32.mrb[0].mxu0
      %v2039 = vadd.f32 0.0, %v2038
      %2040 = vmatprep.mubr.bf16.mxu0 %v1792
      %2041 = vmatmul.mubr.bf16.gmra.mrb[0].mxu0 %v1791
      %v2042 = vpop.f32.mrb[0].mxu0
      %v2043 = vadd.f32 0.0, %v2042
      %v2044 = vpop.f32.mrb[0].mxu0
      %v2045 = vadd.f32 0.0, %v2044
      %v2046 = vpop.f32.mrb[0].mxu0
      %v2047 = vadd.f32 0.0, %v2046
      %v2048 = vpop.f32.mrb[0].mxu0
      %v2049 = vadd.f32 0.0, %v2048
      %2050 = vmatprep.mubr.bf16.mxu0 %v1794
      %2051 = vmatmul.mubr.bf16.gmra.mrb[0].mxu0 %v1793
      %v2052 = vpop.f32.mrb[0].mxu0
      %v2053 = vadd.f32 0.0, %v2052
      %v2054 = vpop.f32.mrb[0].mxu0
      %v2055 = vadd.f32 0.0, %v2054
      %v2056 = vpop.f32.mrb[0].mxu0
      %v2057 = vadd.f32 0.0, %v2056
      %v2058 = vpop.f32.mrb[0].mxu0
      %v2059 = vadd.f32 0.0, %v2058
      %2060 = vdwg.mxu0
      %v2061 = vadd.f32 %v1755, %v2023
      %v2062 = vadd.f32 %v1756, %v2025
      %v2063 = vadd.f32 %v1757, %v2027
      %v2064 = vadd.f32 %v1758, %v2029
      %v2065 = vadd.f32 %v1759, %v2033
      %v2066 = vadd.f32 %v1760, %v2035
      %v2067 = vadd.f32 %v1761, %v2037
      %v2068 = vadd.f32 %v1762, %v2039
      %v2069 = vadd.f32 %v1763, %v2043
      %v2070 = vadd.f32 %v1764, %v2045
      %v2071 = vadd.f32 %v1765, %v2047
      %v2072 = vadd.f32 %v1766, %v2049
      %v2073 = vadd.f32 %v1767, %v2053
      %v2074 = vadd.f32 %v1768, %v2055
      %v2075 = vadd.f32 %v1769, %v2057
      %v2076 = vadd.f32 %v1770, %v2059
      %v2077 = vld [vmem:[%s627] sm:$0xfe]
      %v2078 = vld [vmem:[%s627 + $0x8] sm:$0xfe]
      %v2079 = vld [vmem:[%s627 + $0x10] sm:$0x1]
      %v2080 = vld [vmem:[%s627 + $0x18] sm:$0x1]
      %v2081 = vld [vmem:[%s627 + $0x20] sm:$0xfe]
      %v2082 = vld [vmem:[%s627 + $0x28] sm:$0xfe]
      %v2083 = vld [vmem:[%s627 + $0x30] sm:$0x1]
      %v2084 = vld [vmem:[%s627 + $0x38] sm:$0x1]
      %v2085 = vld [vmem:[%s627 + $0x40] sm:$0xfe]
      %v2086 = vld [vmem:[%s627 + $0x48] sm:$0xfe]
      %v2087 = vld [vmem:[%s627 + $0x50] sm:$0x1]
      %v2088 = vld [vmem:[%s627 + $0x58] sm:$0x1]
      %v2089 = vld [vmem:[%s627 + $0x60] sm:$0xfe]
      %v2090 = vld [vmem:[%s627 + $0x68] sm:$0xfe]
      %v2091 = vld [vmem:[%s627 + $0x70] sm:$0x1]
      %v2092 = vld [vmem:[%s627 + $0x78] sm:$0x1]
      %v2093 = vld [vmem:[%s627 + $0x80] sm:$0xfe]
      %v2094 = vld [vmem:[%s627 + $0x88] sm:$0xfe]
      %v2095 = vld [vmem:[%s627 + $0x90] sm:$0x1]
      %v2096 = vld [vmem:[%s627 + $0x98] sm:$0x1]
      %v2097 = vld [vmem:[%s627 + $0xa0] sm:$0xfe]
      %v2098 = vld [vmem:[%s627 + $0xa8] sm:$0xfe]
      %v2099 = vld [vmem:[%s627 + $0xb0] sm:$0x1]
      %v2100 = vld [vmem:[%s627 + $0xb8] sm:$0x1]
      %v2101 = vld [vmem:[%s627 + $0xc0] sm:$0xfe]
      %v2102 = vld [vmem:[%s627 + $0xc8] sm:$0xfe]
      %v2103 = vld [vmem:[%s627 + $0xd0] sm:$0x1]
      %v2104 = vld [vmem:[%s627 + $0xd8] sm:$0x1]
      %v2105 = vld [vmem:[%s627 + $0xe0] sm:$0xfe]
      %v2106 = vld [vmem:[%s627 + $0xe8] sm:$0xfe]
      %v2107 = vld [vmem:[%s627 + $0xf0] sm:$0x1]
      %v2108 = vld [vmem:[%s627 + $0xf8] sm:$0x1]
      %v2141 = vrot.slane %v2077, 1
      %v2142 = vrot.slane %v2079, 1
      %v2143 = vsel %vm780, %v2141, %v2142
      %v2144 = vrot.slane %v2078, 1
      %v2145 = vrot.slane %v2080, 1
      %v2146 = vsel %vm780, %v2144, %v2145
      %v2147 = vrot.slane %v2081, 1
      %v2148 = vrot.slane %v2083, 1
      %v2149 = vsel %vm780, %v2147, %v2148
      %v2150 = vrot.slane %v2082, 1
      %v2151 = vrot.slane %v2084, 1
      %v2152 = vsel %vm780, %v2150, %v2151
      %v2153 = vrot.slane %v2085, 1
      %v2154 = vrot.slane %v2087, 1
      %v2155 = vsel %vm780, %v2153, %v2154
      %v2156 = vrot.slane %v2086, 1
      %v2157 = vrot.slane %v2088, 1
      %v2158 = vsel %vm780, %v2156, %v2157
      %v2159 = vrot.slane %v2089, 1
      %v2160 = vrot.slane %v2091, 1
      %v2161 = vsel %vm780, %v2159, %v2160
      %v2162 = vrot.slane %v2090, 1
      %v2163 = vrot.slane %v2092, 1
      %v2164 = vsel %vm780, %v2162, %v2163
      %v2165 = vrot.slane %v2093, 1
      %v2166 = vrot.slane %v2095, 1
      %v2167 = vsel %vm780, %v2165, %v2166
      %v2168 = vrot.slane %v2094, 1
      %v2169 = vrot.slane %v2096, 1
      %v2170 = vsel %vm780, %v2168, %v2169
      %v2171 = vrot.slane %v2097, 1
      %v2172 = vrot.slane %v2099, 1
      %v2173 = vsel %vm780, %v2171, %v2172
      %v2174 = vrot.slane %v2098, 1
      %v2175 = vrot.slane %v2100, 1
      %v2176 = vsel %vm780, %v2174, %v2175
      %v2177 = vrot.slane %v2101, 1
      %v2178 = vrot.slane %v2103, 1
      %v2179 = vsel %vm780, %v2177, %v2178
      %v2180 = vrot.slane %v2102, 1
      %v2181 = vrot.slane %v2104, 1
      %v2182 = vsel %vm780, %v2180, %v2181
      %v2183 = vrot.slane %v2105, 1
      %v2184 = vrot.slane %v2107, 1
      %v2185 = vsel %vm780, %v2183, %v2184
      %v2186 = vrot.slane %v2106, 1
      %v2187 = vrot.slane %v2108, 1
      %v2188 = vsel %vm780, %v2186, %v2187
      %v2205 = vpack.c.bf16 %v2149, %v2143
      %v2206 = vpack.c.bf16 %v2152, %v2146
      %v2207 = vpack.c.bf16 %v2161, %v2155
      %v2208 = vpack.c.bf16 %v2164, %v2158
      %v2209 = vpack.c.bf16 %v2173, %v2167
      %v2210 = vpack.c.bf16 %v2176, %v2170
      %v2211 = vpack.c.bf16 %v2185, %v2179
      %v2212 = vpack.c.bf16 %v2188, %v2182
      %s2213 = scalar_lea.vmem %s3, 1024
      %v2214 = vld [vmem:[%s2213] sm:$0xff]
      %v2215 = vld [vmem:[%s2213 + $0x8] sm:$0xff]
      %v2216 = vld [vmem:[%s2213 + $0x10] sm:$0xff]
      %v2217 = vld [vmem:[%s2213 + $0x18] sm:$0xff]
      %v2218 = vld [vmem:[%s2213 + $0x20] sm:$0xff]
      %v2219 = vld [vmem:[%s2213 + $0x28] sm:$0xff]
      %v2220 = vld [vmem:[%s2213 + $0x30] sm:$0xff]
      %v2221 = vld [vmem:[%s2213 + $0x38] sm:$0xff]
      %v2222 = vld [vmem:[%s2213 + $0x40] sm:$0xff]
      %v2223 = vld [vmem:[%s2213 + $0x48] sm:$0xff]
      %v2224 = vld [vmem:[%s2213 + $0x50] sm:$0xff]
      %v2225 = vld [vmem:[%s2213 + $0x58] sm:$0xff]
      %v2226 = vld [vmem:[%s2213 + $0x60] sm:$0xff]
      %v2227 = vld [vmem:[%s2213 + $0x68] sm:$0xff]
      %v2228 = vld [vmem:[%s2213 + $0x70] sm:$0xff]
      %v2229 = vld [vmem:[%s2213 + $0x78] sm:$0xff]
      %v2230 = vld [vmem:[%s2213 + $0x80] sm:$0xff]
      %v2231 = vld [vmem:[%s2213 + $0x88] sm:$0xff]
      %v2232 = vld [vmem:[%s2213 + $0x90] sm:$0xff]
      %v2233 = vld [vmem:[%s2213 + $0x98] sm:$0xff]
      %v2234 = vld [vmem:[%s2213 + $0xa0] sm:$0xff]
      %v2235 = vld [vmem:[%s2213 + $0xa8] sm:$0xff]
      %v2236 = vld [vmem:[%s2213 + $0xb0] sm:$0xff]
      %v2237 = vld [vmem:[%s2213 + $0xb8] sm:$0xff]
      %v2238 = vld [vmem:[%s2213 + $0xc0] sm:$0xff]
      %v2239 = vld [vmem:[%s2213 + $0xc8] sm:$0xff]
      %v2240 = vld [vmem:[%s2213 + $0xd0] sm:$0xff]
      %v2241 = vld [vmem:[%s2213 + $0xd8] sm:$0xff]
      %v2242 = vld [vmem:[%s2213 + $0xe0] sm:$0xff]
      %v2243 = vld [vmem:[%s2213 + $0xe8] sm:$0xff]
      %v2244 = vld [vmem:[%s2213 + $0xf0] sm:$0xff]
      %v2245 = vld [vmem:[%s2213 + $0xf8] sm:$0xff]
      %v2278 = vunpack.c.l.b16 %v2214
      %v2279 = vunpack.c.h.b16 %v2214
      %v2280 = vunpack.c.l.b16 %v2215
      %v2281 = vunpack.c.h.b16 %v2215
      %v2282 = vunpack.c.l.b16 %v2216
      %v2283 = vunpack.c.h.b16 %v2216
      %v2284 = vunpack.c.l.b16 %v2217
      %v2285 = vunpack.c.h.b16 %v2217
      %v2286 = vunpack.c.l.b16 %v2218
      %v2287 = vunpack.c.h.b16 %v2218
      %v2288 = vunpack.c.l.b16 %v2219
      %v2289 = vunpack.c.h.b16 %v2219
      %v2290 = vunpack.c.l.b16 %v2220
      %v2291 = vunpack.c.h.b16 %v2220
      %v2292 = vunpack.c.l.b16 %v2221
      %v2293 = vunpack.c.h.b16 %v2221
      %v2294 = vunpack.c.l.b16 %v2222
      %v2295 = vunpack.c.h.b16 %v2222
      %v2296 = vunpack.c.l.b16 %v2223
      %v2297 = vunpack.c.h.b16 %v2223
      %v2298 = vunpack.c.l.b16 %v2224
      %v2299 = vunpack.c.h.b16 %v2224
      %v2300 = vunpack.c.l.b16 %v2225
      %v2301 = vunpack.c.h.b16 %v2225
      %v2302 = vunpack.c.l.b16 %v2226
      %v2303 = vunpack.c.h.b16 %v2226
      %v2304 = vunpack.c.l.b16 %v2227
      %v2305 = vunpack.c.h.b16 %v2227
      %v2306 = vunpack.c.l.b16 %v2228
      %v2307 = vunpack.c.h.b16 %v2228
      %v2308 = vunpack.c.l.b16 %v2229
      %v2309 = vunpack.c.h.b16 %v2229
      %v2310 = vunpack.c.l.b16 %v2230
      %v2311 = vunpack.c.h.b16 %v2230
      %v2312 = vunpack.c.l.b16 %v2231
      %v2313 = vunpack.c.h.b16 %v2231
      %v2314 = vunpack.c.l.b16 %v2232
      %v2315 = vunpack.c.h.b16 %v2232
      %v2316 = vunpack.c.l.b16 %v2233
      %v2317 = vunpack.c.h.b16 %v2233
      %v2318 = vunpack.c.l.b16 %v2234
      %v2319 = vunpack.c.h.b16 %v2234
      %v2320 = vunpack.c.l.b16 %v2235
      %v2321 = vunpack.c.h.b16 %v2235
      %v2322 = vunpack.c.l.b16 %v2236
      %v2323 = vunpack.c.h.b16 %v2236
      %v2324 = vunpack.c.l.b16 %v2237
      %v2325 = vunpack.c.h.b16 %v2237
      %v2326 = vunpack.c.l.b16 %v2238
      %v2327 = vunpack.c.h.b16 %v2238
      %v2328 = vunpack.c.l.b16 %v2239
      %v2329 = vunpack.c.h.b16 %v2239
      %v2330 = vunpack.c.l.b16 %v2240
      %v2331 = vunpack.c.h.b16 %v2240
      %v2332 = vunpack.c.l.b16 %v2241
      %v2333 = vunpack.c.h.b16 %v2241
      %v2334 = vunpack.c.l.b16 %v2242
      %v2335 = vunpack.c.h.b16 %v2242
      %v2336 = vunpack.c.l.b16 %v2243
      %v2337 = vunpack.c.h.b16 %v2243
      %v2338 = vunpack.c.l.b16 %v2244
      %v2339 = vunpack.c.h.b16 %v2244
      %v2340 = vunpack.c.l.b16 %v2245
      %v2341 = vunpack.c.h.b16 %v2245
      %v2342 = vpack.c.b16 %v2280, %v2278
      %v2343 = vpack.c.b16 %v2281, %v2279
      %v2344 = vpack.c.b16 %v2284, %v2282
      %v2345 = vpack.c.b16 %v2285, %v2283
      %v2346 = vpack.c.b16 %v2288, %v2286
      %v2347 = vpack.c.b16 %v2289, %v2287
      %v2348 = vpack.c.b16 %v2292, %v2290
      %v2349 = vpack.c.b16 %v2293, %v2291
      %v2350 = vpack.c.b16 %v2296, %v2294
      %v2351 = vpack.c.b16 %v2297, %v2295
      %v2352 = vpack.c.b16 %v2300, %v2298
      %v2353 = vpack.c.b16 %v2301, %v2299
      %v2354 = vpack.c.b16 %v2304, %v2302
      %v2355 = vpack.c.b16 %v2305, %v2303
      %v2356 = vpack.c.b16 %v2308, %v2306
      %v2357 = vpack.c.b16 %v2309, %v2307
      %v2358 = vpack.c.b16 %v2312, %v2310
      %v2359 = vpack.c.b16 %v2313, %v2311
      %v2360 = vpack.c.b16 %v2316, %v2314
      %v2361 = vpack.c.b16 %v2317, %v2315
      %v2362 = vpack.c.b16 %v2320, %v2318
      %v2363 = vpack.c.b16 %v2321, %v2319
      %v2364 = vpack.c.b16 %v2324, %v2322
      %v2365 = vpack.c.b16 %v2325, %v2323
      %v2366 = vpack.c.b16 %v2328, %v2326
      %v2367 = vpack.c.b16 %v2329, %v2327
      %v2368 = vpack.c.b16 %v2332, %v2330
      %v2369 = vpack.c.b16 %v2333, %v2331
      %v2370 = vpack.c.b16 %v2336, %v2334
      %v2371 = vpack.c.b16 %v2337, %v2335
      %v2372 = vpack.c.b16 %v2340, %v2338
      %v2373 = vpack.c.b16 %v2341, %v2339
      %2406 = vmatprep.subr.bf16.mxu0 %v2343
      %2407 = vmatpush1.bf16.msra.mxu0 %v2342
      %2408 = vmatprep.subr.bf16.mxu0 %v2345
      %2409 = vmatpush1.bf16.msra.mxu0 %v2344
      %2410 = vmatprep.subr.bf16.mxu0 %v2347
      %2411 = vmatpush1.bf16.msra.mxu0 %v2346
      %2412 = vmatprep.subr.bf16.mxu0 %v2349
      %2413 = vmatpush1.bf16.msra.mxu0 %v2348
      %2414 = vmatprep.subr.bf16.mxu0 %v2351
      %2415 = vmatpush1.bf16.msra.mxu0 %v2350
      %2416 = vmatprep.subr.bf16.mxu0 %v2353
      %2417 = vmatpush1.bf16.msra.mxu0 %v2352
      %2418 = vmatprep.subr.bf16.mxu0 %v2355
      %2419 = vmatpush1.bf16.msra.mxu0 %v2354
      %2420 = vmatprep.subr.bf16.mxu0 %v2357
      %2421 = vmatpush1.bf16.msra.mxu0 %v2356
      %2422 = vmatprep.subr.bf16.mxu0 %v2359
      %2423 = vmatpush1.bf16.msra.mxu0 %v2358
      %2424 = vmatprep.subr.bf16.mxu0 %v2361
      %2425 = vmatpush1.bf16.msra.mxu0 %v2360
      %2426 = vmatprep.subr.bf16.mxu0 %v2363
      %2427 = vmatpush1.bf16.msra.mxu0 %v2362
      %2428 = vmatprep.subr.bf16.mxu0 %v2365
      %2429 = vmatpush1.bf16.msra.mxu0 %v2364
      %2430 = vmatprep.subr.bf16.mxu0 %v2367
      %2431 = vmatpush1.bf16.msra.mxu0 %v2366
      %2432 = vmatprep.subr.bf16.mxu0 %v2369
      %2433 = vmatpush1.bf16.msra.mxu0 %v2368
      %2434 = vmatprep.subr.bf16.mxu0 %v2371
      %2435 = vmatpush1.bf16.msra.mxu0 %v2370
      %2436 = vmatprep.subr.bf16.mxu0 %v2373
      %2437 = vmatpush1.bf16.msra.mxu0 %v2372
      %2438 = vmatprep.mubr.bf16.mxu0 %v2206
      %2439 = vmatmul.mubr.bf16.gmra.mrb[0].mxu0 %v2205
      %v2440 = vpop.f32.mrb[0].mxu0
      %v2441 = vadd.f32 0.0, %v2440
      %v2442 = vpop.f32.mrb[0].mxu0
      %v2443 = vadd.f32 0.0, %v2442
      %v2444 = vpop.f32.mrb[0].mxu0
      %v2445 = vadd.f32 0.0, %v2444
      %v2446 = vpop.f32.mrb[0].mxu0
      %v2447 = vadd.f32 0.0, %v2446
      %2448 = vmatprep.mubr.bf16.mxu0 %v2208
      %2449 = vmatmul.mubr.bf16.gmra.mrb[0].mxu0 %v2207
      %v2450 = vpop.f32.mrb[0].mxu0
      %v2451 = vadd.f32 0.0, %v2450
      %v2452 = vpop.f32.mrb[0].mxu0
      %v2453 = vadd.f32 0.0, %v2452
      %v2454 = vpop.f32.mrb[0].mxu0
      %v2455 = vadd.f32 0.0, %v2454
      %v2456 = vpop.f32.mrb[0].mxu0
      %v2457 = vadd.f32 0.0, %v2456
      %2458 = vmatprep.mubr.bf16.mxu0 %v2210
      %2459 = vmatmul.mubr.bf16.gmra.mrb[0].mxu0 %v2209
      %v2460 = vpop.f32.mrb[0].mxu0
      %v2461 = vadd.f32 0.0, %v2460
      %v2462 = vpop.f32.mrb[0].mxu0
      %v2463 = vadd.f32 0.0, %v2462
      %v2464 = vpop.f32.mrb[0].mxu0
      %v2465 = vadd.f32 0.0, %v2464
      %v2466 = vpop.f32.mrb[0].mxu0
      %v2467 = vadd.f32 0.0, %v2466
      %2468 = vmatprep.mubr.bf16.mxu0 %v2212
      %2469 = vmatmul.mubr.bf16.gmra.mrb[0].mxu0 %v2211
      %v2470 = vpop.f32.mrb[0].mxu0
      %v2471 = vadd.f32 0.0, %v2470
      %v2472 = vpop.f32.mrb[0].mxu0
      %v2473 = vadd.f32 0.0, %v2472
      %v2474 = vpop.f32.mrb[0].mxu0
      %v2475 = vadd.f32 0.0, %v2474
      %v2476 = vpop.f32.mrb[0].mxu0
      %v2477 = vadd.f32 0.0, %v2476
      %2478 = vdwg.mxu0
      %v2479 = vadd.f32 %v2061, %v2441
      %v2480 = vadd.f32 %v2062, %v2443
      %v2481 = vadd.f32 %v2063, %v2445
      %v2482 = vadd.f32 %v2064, %v2447
      %v2483 = vadd.f32 %v2065, %v2451
      %v2484 = vadd.f32 %v2066, %v2453
      %v2485 = vadd.f32 %v2067, %v2455
      %v2486 = vadd.f32 %v2068, %v2457
      %v2487 = vadd.f32 %v2069, %v2461
      %v2488 = vadd.f32 %v2070, %v2463
      %v2489 = vadd.f32 %v2071, %v2465
      %v2490 = vadd.f32 %v2072, %v2467
      %v2491 = vadd.f32 %v2073, %v2471
      %v2492 = vadd.f32 %v2074, %v2473
      %v2493 = vadd.f32 %v2075, %v2475
      %v2494 = vadd.f32 %v2076, %v2477
      %v2495 = vld [vmem:[%s627] sm:$0xfc]
      %v2496 = vld [vmem:[%s627 + $0x8] sm:$0xfc]
      %v2497 = vld [vmem:[%s627 + $0x10] sm:$0x3]
      %v2498 = vld [vmem:[%s627 + $0x18] sm:$0x3]
      %v2499 = vld [vmem:[%s627 + $0x20] sm:$0xfc]
      %v2500 = vld [vmem:[%s627 + $0x28] sm:$0xfc]
      %v2501 = vld [vmem:[%s627 + $0x30] sm:$0x3]
      %v2502 = vld [vmem:[%s627 + $0x38] sm:$0x3]
      %v2503 = vld [vmem:[%s627 + $0x40] sm:$0xfc]
      %v2504 = vld [vmem:[%s627 + $0x48] sm:$0xfc]
      %v2505 = vld [vmem:[%s627 + $0x50] sm:$0x3]
      %v2506 = vld [vmem:[%s627 + $0x58] sm:$0x3]
      %v2507 = vld [vmem:[%s627 + $0x60] sm:$0xfc]
      %v2508 = vld [vmem:[%s627 + $0x68] sm:$0xfc]
      %v2509 = vld [vmem:[%s627 + $0x70] sm:$0x3]
      %v2510 = vld [vmem:[%s627 + $0x78] sm:$0x3]
      %v2511 = vld [vmem:[%s627 + $0x80] sm:$0xfc]
      %v2512 = vld [vmem:[%s627 + $0x88] sm:$0xfc]
      %v2513 = vld [vmem:[%s627 + $0x90] sm:$0x3]
      %v2514 = vld [vmem:[%s627 + $0x98] sm:$0x3]
      %v2515 = vld [vmem:[%s627 + $0xa0] sm:$0xfc]
      %v2516 = vld [vmem:[%s627 + $0xa8] sm:$0xfc]
      %v2517 = vld [vmem:[%s627 + $0xb0] sm:$0x3]
      %v2518 = vld [vmem:[%s627 + $0xb8] sm:$0x3]
      %v2519 = vld [vmem:[%s627 + $0xc0] sm:$0xfc]
      %v2520 = vld [vmem:[%s627 + $0xc8] sm:$0xfc]
      %v2521 = vld [vmem:[%s627 + $0xd0] sm:$0x3]
      %v2522 = vld [vmem:[%s627 + $0xd8] sm:$0x3]
      %v2523 = vld [vmem:[%s627 + $0xe0] sm:$0xfc]
      %v2524 = vld [vmem:[%s627 + $0xe8] sm:$0xfc]
      %v2525 = vld [vmem:[%s627 + $0xf0] sm:$0x3]
      %v2526 = vld [vmem:[%s627 + $0xf8] sm:$0x3]
      %v2559 = vrot.slane %v2495, 2
      %v2560 = vrot.slane %v2497, 2
      %v2561 = vsel %vm1416, %v2559, %v2560
      %v2562 = vrot.slane %v2496, 2
      %v2563 = vrot.slane %v2498, 2
      %v2564 = vsel %vm1416, %v2562, %v2563
      %v2565 = vrot.slane %v2499, 2
      %v2566 = vrot.slane %v2501, 2
      %v2567 = vsel %vm1416, %v2565, %v2566
      %v2568 = vrot.slane %v2500, 2
      %v2569 = vrot.slane %v2502, 2
      %v2570 = vsel %vm1416, %v2568, %v2569
      %v2571 = vrot.slane %v2503, 2
      %v2572 = vrot.slane %v2505, 2
      %v2573 = vsel %vm1416, %v2571, %v2572
      %v2574 = vrot.slane %v2504, 2
      %v2575 = vrot.slane %v2506, 2
      %v2576 = vsel %vm1416, %v2574, %v2575
      %v2577 = vrot.slane %v2507, 2
      %v2578 = vrot.slane %v2509, 2
      %v2579 = vsel %vm1416, %v2577, %v2578
      %v2580 = vrot.slane %v2508, 2
      %v2581 = vrot.slane %v2510, 2
      %v2582 = vsel %vm1416, %v2580, %v2581
      %v2583 = vrot.slane %v2511, 2
      %v2584 = vrot.slane %v2513, 2
      %v2585 = vsel %vm1416, %v2583, %v2584
      %v2586 = vrot.slane %v2512, 2
      %v2587 = vrot.slane %v2514, 2
      %v2588 = vsel %vm1416, %v2586, %v2587
      %v2589 = vrot.slane %v2515, 2
      %v2590 = vrot.slane %v2517, 2
      %v2591 = vsel %vm1416, %v2589, %v2590
      %v2592 = vrot.slane %v2516, 2
      %v2593 = vrot.slane %v2518, 2
      %v2594 = vsel %vm1416, %v2592, %v2593
      %v2595 = vrot.slane %v2519, 2
      %v2596 = vrot.slane %v2521, 2
      %v2597 = vsel %vm1416, %v2595, %v2596
      %v2598 = vrot.slane %v2520, 2
      %v2599 = vrot.slane %v2522, 2
      %v2600 = vsel %vm1416, %v2598, %v2599
      %v2601 = vrot.slane %v2523, 2
      %v2602 = vrot.slane %v2525, 2
      %v2603 = vsel %vm1416, %v2601, %v2602
      %v2604 = vrot.slane %v2524, 2
      %v2605 = vrot.slane %v2526, 2
      %v2606 = vsel %vm1416, %v2604, %v2605
      %v2623 = vpack.c.bf16 %v2567, %v2561
      %v2624 = vpack.c.bf16 %v2570, %v2564
      %v2625 = vpack.c.bf16 %v2579, %v2573
      %v2626 = vpack.c.bf16 %v2582, %v2576
      %v2627 = vpack.c.bf16 %v2591, %v2585
      %v2628 = vpack.c.bf16 %v2594, %v2588
      %v2629 = vpack.c.bf16 %v2603, %v2597
      %v2630 = vpack.c.bf16 %v2606, %v2600
      %s2631 = scalar_lea.vmem %s3, 1280
      %v2632 = vld [vmem:[%s2631] sm:$0xff]
      %v2633 = vld [vmem:[%s2631 + $0x8] sm:$0xff]
      %v2634 = vld [vmem:[%s2631 + $0x10] sm:$0xff]
      %v2635 = vld [vmem:[%s2631 + $0x18] sm:$0xff]
      %v2636 = vld [vmem:[%s2631 + $0x20] sm:$0xff]
      %v2637 = vld [vmem:[%s2631 + $0x28] sm:$0xff]
      %v2638 = vld [vmem:[%s2631 + $0x30] sm:$0xff]
      %v2639 = vld [vmem:[%s2631 + $0x38] sm:$0xff]
      %v2640 = vld [vmem:[%s2631 + $0x40] sm:$0xff]
      %v2641 = vld [vmem:[%s2631 + $0x48] sm:$0xff]
      %v2642 = vld [vmem:[%s2631 + $0x50] sm:$0xff]
      %v2643 = vld [vmem:[%s2631 + $0x58] sm:$0xff]
      %v2644 = vld [vmem:[%s2631 + $0x60] sm:$0xff]
      %v2645 = vld [vmem:[%s2631 + $0x68] sm:$0xff]
      %v2646 = vld [vmem:[%s2631 + $0x70] sm:$0xff]
      %v2647 = vld [vmem:[%s2631 + $0x78] sm:$0xff]
      %v2648 = vld [vmem:[%s2631 + $0x80] sm:$0xff]
      %v2649 = vld [vmem:[%s2631 + $0x88] sm:$0xff]
      %v2650 = vld [vmem:[%s2631 + $0x90] sm:$0xff]
      %v2651 = vld [vmem:[%s2631 + $0x98] sm:$0xff]
      %v2652 = vld [vmem:[%s2631 + $0xa0] sm:$0xff]
      %v2653 = vld [vmem:[%s2631 + $0xa8] sm:$0xff]
      %v2654 = vld [vmem:[%s2631 + $0xb0] sm:$0xff]
      %v2655 = vld [vmem:[%s2631 + $0xb8] sm:$0xff]
      %v2656 = vld [vmem:[%s2631 + $0xc0] sm:$0xff]
      %v2657 = vld [vmem:[%s2631 + $0xc8] sm:$0xff]
      %v2658 = vld [vmem:[%s2631 + $0xd0] sm:$0xff]
      %v2659 = vld [vmem:[%s2631 + $0xd8] sm:$0xff]
      %v2660 = vld [vmem:[%s2631 + $0xe0] sm:$0xff]
      %v2661 = vld [vmem:[%s2631 + $0xe8] sm:$0xff]
      %v2662 = vld [vmem:[%s2631 + $0xf0] sm:$0xff]
      %v2663 = vld [vmem:[%s2631 + $0xf8] sm:$0xff]
      %v2696 = vunpack.c.l.b16 %v2632
      %v2697 = vunpack.c.h.b16 %v2632
      %v2698 = vunpack.c.l.b16 %v2633
      %v2699 = vunpack.c.h.b16 %v2633
      %v2700 = vunpack.c.l.b16 %v2634
      %v2701 = vunpack.c.h.b16 %v2634
      %v2702 = vunpack.c.l.b16 %v2635
      %v2703 = vunpack.c.h.b16 %v2635
      %v2704 = vunpack.c.l.b16 %v2636
      %v2705 = vunpack.c.h.b16 %v2636
      %v2706 = vunpack.c.l.b16 %v2637
      %v2707 = vunpack.c.h.b16 %v2637
      %v2708 = vunpack.c.l.b16 %v2638
      %v2709 = vunpack.c.h.b16 %v2638
      %v2710 = vunpack.c.l.b16 %v2639
      %v2711 = vunpack.c.h.b16 %v2639
      %v2712 = vunpack.c.l.b16 %v2640
      %v2713 = vunpack.c.h.b16 %v2640
      %v2714 = vunpack.c.l.b16 %v2641
      %v2715 = vunpack.c.h.b16 %v2641
      %v2716 = vunpack.c.l.b16 %v2642
      %v2717 = vunpack.c.h.b16 %v2642
      %v2718 = vunpack.c.l.b16 %v2643
      %v2719 = vunpack.c.h.b16 %v2643
      %v2720 = vunpack.c.l.b16 %v2644
      %v2721 = vunpack.c.h.b16 %v2644
      %v2722 = vunpack.c.l.b16 %v2645
      %v2723 = vunpack.c.h.b16 %v2645
      %v2724 = vunpack.c.l.b16 %v2646
      %v2725 = vunpack.c.h.b16 %v2646
      %v2726 = vunpack.c.l.b16 %v2647
      %v2727 = vunpack.c.h.b16 %v2647
      %v2728 = vunpack.c.l.b16 %v2648
      %v2729 = vunpack.c.h.b16 %v2648
      %v2730 = vunpack.c.l.b16 %v2649
      %v2731 = vunpack.c.h.b16 %v2649
      %v2732 = vunpack.c.l.b16 %v2650
      %v2733 = vunpack.c.h.b16 %v2650
      %v2734 = vunpack.c.l.b16 %v2651
      %v2735 = vunpack.c.h.b16 %v2651
      %v2736 = vunpack.c.l.b16 %v2652
      %v2737 = vunpack.c.h.b16 %v2652
      %v2738 = vunpack.c.l.b16 %v2653
      %v2739 = vunpack.c.h.b16 %v2653
      %v2740 = vunpack.c.l.b16 %v2654
      %v2741 = vunpack.c.h.b16 %v2654
      %v2742 = vunpack.c.l.b16 %v2655
      %v2743 = vunpack.c.h.b16 %v2655
      %v2744 = vunpack.c.l.b16 %v2656
      %v2745 = vunpack.c.h.b16 %v2656
      %v2746 = vunpack.c.l.b16 %v2657
      %v2747 = vunpack.c.h.b16 %v2657
      %v2748 = vunpack.c.l.b16 %v2658
      %v2749 = vunpack.c.h.b16 %v2658
      %v2750 = vunpack.c.l.b16 %v2659
      %v2751 = vunpack.c.h.b16 %v2659
      %v2752 = vunpack.c.l.b16 %v2660
      %v2753 = vunpack.c.h.b16 %v2660
      %v2754 = vunpack.c.l.b16 %v2661
      %v2755 = vunpack.c.h.b16 %v2661
      %v2756 = vunpack.c.l.b16 %v2662
      %v2757 = vunpack.c.h.b16 %v2662
      %v2758 = vunpack.c.l.b16 %v2663
      %v2759 = vunpack.c.h.b16 %v2663
      %v2760 = vpack.c.b16 %v2698, %v2696
      %v2761 = vpack.c.b16 %v2699, %v2697
      %v2762 = vpack.c.b16 %v2702, %v2700
      %v2763 = vpack.c.b16 %v2703, %v2701
      %v2764 = vpack.c.b16 %v2706, %v2704
      %v2765 = vpack.c.b16 %v2707, %v2705
      %v2766 = vpack.c.b16 %v2710, %v2708
      %v2767 = vpack.c.b16 %v2711, %v2709
      %v2768 = vpack.c.b16 %v2714, %v2712
      %v2769 = vpack.c.b16 %v2715, %v2713
      %v2770 = vpack.c.b16 %v2718, %v2716
      %v2771 = vpack.c.b16 %v2719, %v2717
      %v2772 = vpack.c.b16 %v2722, %v2720
      %v2773 = vpack.c.b16 %v2723, %v2721
      %v2774 = vpack.c.b16 %v2726, %v2724
      %v2775 = vpack.c.b16 %v2727, %v2725
      %v2776 = vpack.c.b16 %v2730, %v2728
      %v2777 = vpack.c.b16 %v2731, %v2729
      %v2778 = vpack.c.b16 %v2734, %v2732
      %v2779 = vpack.c.b16 %v2735, %v2733
      %v2780 = vpack.c.b16 %v2738, %v2736
      %v2781 = vpack.c.b16 %v2739, %v2737
      %v2782 = vpack.c.b16 %v2742, %v2740
      %v2783 = vpack.c.b16 %v2743, %v2741
      %v2784 = vpack.c.b16 %v2746, %v2744
      %v2785 = vpack.c.b16 %v2747, %v2745
      %v2786 = vpack.c.b16 %v2750, %v2748
      %v2787 = vpack.c.b16 %v2751, %v2749
      %v2788 = vpack.c.b16 %v2754, %v2752
      %v2789 = vpack.c.b16 %v2755, %v2753
      %v2790 = vpack.c.b16 %v2758, %v2756
      %v2791 = vpack.c.b16 %v2759, %v2757
      %2824 = vmatprep.subr.bf16.mxu0 %v2761
      %2825 = vmatpush1.bf16.msra.mxu0 %v2760
      %2826 = vmatprep.subr.bf16.mxu0 %v2763
      %2827 = vmatpush1.bf16.msra.mxu0 %v2762
      %2828 = vmatprep.subr.bf16.mxu0 %v2765
      %2829 = vmatpush1.bf16.msra.mxu0 %v2764
      %2830 = vmatprep.subr.bf16.mxu0 %v2767
      %2831 = vmatpush1.bf16.msra.mxu0 %v2766
      %2832 = vmatprep.subr.bf16.mxu0 %v2769
      %2833 = vmatpush1.bf16.msra.mxu0 %v2768
      %2834 = vmatprep.subr.bf16.mxu0 %v2771
      %2835 = vmatpush1.bf16.msra.mxu0 %v2770
      %2836 = vmatprep.subr.bf16.mxu0 %v2773
      %2837 = vmatpush1.bf16.msra.mxu0 %v2772
      %2838 = vmatprep.subr.bf16.mxu0 %v2775
      %2839 = vmatpush1.bf16.msra.mxu0 %v2774
      %2840 = vmatprep.subr.bf16.mxu0 %v2777
      %2841 = vmatpush1.bf16.msra.mxu0 %v2776
      %2842 = vmatprep.subr.bf16.mxu0 %v2779
      %2843 = vmatpush1.bf16.msra.mxu0 %v2778
      %2844 = vmatprep.subr.bf16.mxu0 %v2781
      %2845 = vmatpush1.bf16.msra.mxu0 %v2780
      %2846 = vmatprep.subr.bf16.mxu0 %v2783
      %2847 = vmatpush1.bf16.msra.mxu0 %v2782
      %2848 = vmatprep.subr.bf16.mxu0 %v2785
      %2849 = vmatpush1.bf16.msra.mxu0 %v2784
      %2850 = vmatprep.subr.bf16.mxu0 %v2787
      %2851 = vmatpush1.bf16.msra.mxu0 %v2786
      %2852 = vmatprep.subr.bf16.mxu0 %v2789
      %2853 = vmatpush1.bf16.msra.mxu0 %v2788
      %2854 = vmatprep.subr.bf16.mxu0 %v2791
      %2855 = vmatpush1.bf16.msra.mxu0 %v2790
      %2856 = vmatprep.mubr.bf16.mxu0 %v2624
      %2857 = vmatmul.mubr.bf16.gmra.mrb[0].mxu0 %v2623
      %v2858 = vpop.f32.mrb[0].mxu0
      %v2859 = vadd.f32 0.0, %v2858
      %v2860 = vpop.f32.mrb[0].mxu0
      %v2861 = vadd.f32 0.0, %v2860
      %v2862 = vpop.f32.mrb[0].mxu0
      %v2863 = vadd.f32 0.0, %v2862
      %v2864 = vpop.f32.mrb[0].mxu0
      %v2865 = vadd.f32 0.0, %v2864
      %2866 = vmatprep.mubr.bf16.mxu0 %v2626
      %2867 = vmatmul.mubr.bf16.gmra.mrb[0].mxu0 %v2625
      %v2868 = vpop.f32.mrb[0].mxu0
      %v2869 = vadd.f32 0.0, %v2868
      %v2870 = vpop.f32.mrb[0].mxu0
      %v2871 = vadd.f32 0.0, %v2870
      %v2872 = vpop.f32.mrb[0].mxu0
      %v2873 = vadd.f32 0.0, %v2872
      %v2874 = vpop.f32.mrb[0].mxu0
      %v2875 = vadd.f32 0.0, %v2874
      %2876 = vmatprep.mubr.bf16.mxu0 %v2628
      %2877 = vmatmul.mubr.bf16.gmra.mrb[0].mxu0 %v2627
      %v2878 = vpop.f32.mrb[0].mxu0
      %v2879 = vadd.f32 0.0, %v2878
      %v2880 = vpop.f32.mrb[0].mxu0
      %v2881 = vadd.f32 0.0, %v2880
      %v2882 = vpop.f32.mrb[0].mxu0
      %v2883 = vadd.f32 0.0, %v2882
      %v2884 = vpop.f32.mrb[0].mxu0
      %v2885 = vadd.f32 0.0, %v2884
      %2886 = vmatprep.mubr.bf16.mxu0 %v2630
      %2887 = vmatmul.mubr.bf16.gmra.mrb[0].mxu0 %v2629
      %v2888 = vpop.f32.mrb[0].mxu0
      %v2889 = vadd.f32 0.0, %v2888
      %v2890 = vpop.f32.mrb[0].mxu0
      %v2891 = vadd.f32 0.0, %v2890
      %v2892 = vpop.f32.mrb[0].mxu0
      %v2893 = vadd.f32 0.0, %v2892
      %v2894 = vpop.f32.mrb[0].mxu0
      %v2895 = vadd.f32 0.0, %v2894
      %2896 = vdwg.mxu0
      %v2897 = vadd.f32 %v2479, %v2859
      %v2898 = vadd.f32 %v2480, %v2861
      %v2899 = vadd.f32 %v2481, %v2863
      %v2900 = vadd.f32 %v2482, %v2865
      %v2901 = vadd.f32 %v2483, %v2869
      %v2902 = vadd.f32 %v2484, %v2871
      %v2903 = vadd.f32 %v2485, %v2873
      %v2904 = vadd.f32 %v2486, %v2875
      %v2905 = vadd.f32 %v2487, %v2879
      %v2906 = vadd.f32 %v2488, %v2881
      %v2907 = vadd.f32 %v2489, %v2883
      %v2908 = vadd.f32 %v2490, %v2885
      %v2909 = vadd.f32 %v2491, %v2889
      %v2910 = vadd.f32 %v2492, %v2891
      %v2911 = vadd.f32 %v2493, %v2893
      %v2912 = vadd.f32 %v2494, %v2895
      %s2913 = scalar_lea.vmem [#allocation2], 64
      %v2914 = vld [vmem:[%s2913] sm:$0xff]
      %v2915 = vld [vmem:[%s2913 + $0x8] sm:$0xff]
      %v2916 = vld [vmem:[%s2913 + $0x20] sm:$0xff]
      %v2917 = vld [vmem:[%s2913 + $0x28] sm:$0xff]
      %v2918 = vld [vmem:[%s2913 + $0x40] sm:$0xff]
      %v2919 = vld [vmem:[%s2913 + $0x48] sm:$0xff]
      %v2920 = vld [vmem:[%s2913 + $0x60] sm:$0xff]
      %v2921 = vld [vmem:[%s2913 + $0x68] sm:$0xff]
      %v2922 = vld [vmem:[%s2913 + $0x80] sm:$0xff]
      %v2923 = vld [vmem:[%s2913 + $0x88] sm:$0xff]
      %v2924 = vld [vmem:[%s2913 + $0xa0] sm:$0xff]
      %v2925 = vld [vmem:[%s2913 + $0xa8] sm:$0xff]
      %v2926 = vld [vmem:[%s2913 + $0xc0] sm:$0xff]
      %v2927 = vld [vmem:[%s2913 + $0xc8] sm:$0xff]
      %v2928 = vld [vmem:[%s2913 + $0xe0] sm:$0xff]
      %v2929 = vld [vmem:[%s2913 + $0xe8] sm:$0xff]
      %v2930 = vpack.c.bf16 %v2916, %v2914
      %v2931 = vpack.c.bf16 %v2917, %v2915
      %v2932 = vpack.c.bf16 %v2920, %v2918
      %v2933 = vpack.c.bf16 %v2921, %v2919
      %v2934 = vpack.c.bf16 %v2924, %v2922
      %v2935 = vpack.c.bf16 %v2925, %v2923
      %v2936 = vpack.c.bf16 %v2928, %v2926
      %v2937 = vpack.c.bf16 %v2929, %v2927
      %s2938 = scalar_lea.vmem %s3, 1536
      %v2939 = vld [vmem:[%s2938] sm:$0xff]
      %v2940 = vld [vmem:[%s2938 + $0x8] sm:$0xff]
      %v2941 = vld [vmem:[%s2938 + $0x10] sm:$0xff]
      %v2942 = vld [vmem:[%s2938 + $0x18] sm:$0xff]
      %v2943 = vld [vmem:[%s2938 + $0x20] sm:$0xff]
      %v2944 = vld [vmem:[%s2938 + $0x28] sm:$0xff]
      %v2945 = vld [vmem:[%s2938 + $0x30] sm:$0xff]
      %v2946 = vld [vmem:[%s2938 + $0x38] sm:$0xff]
      %v2947 = vld [vmem:[%s2938 + $0x40] sm:$0xff]
      %v2948 = vld [vmem:[%s2938 + $0x48] sm:$0xff]
      %v2949 = vld [vmem:[%s2938 + $0x50] sm:$0xff]
      %v2950 = vld [vmem:[%s2938 + $0x58] sm:$0xff]
      %v2951 = vld [vmem:[%s2938 + $0x60] sm:$0xff]
      %v2952 = vld [vmem:[%s2938 + $0x68] sm:$0xff]
      %v2953 = vld [vmem:[%s2938 + $0x70] sm:$0xff]
      %v2954 = vld [vmem:[%s2938 + $0x78] sm:$0xff]
      %v2955 = vld [vmem:[%s2938 + $0x80] sm:$0xff]
      %v2956 = vld [vmem:[%s2938 + $0x88] sm:$0xff]
      %v2957 = vld [vmem:[%s2938 + $0x90] sm:$0xff]
      %v2958 = vld [vmem:[%s2938 + $0x98] sm:$0xff]
      %v2959 = vld [vmem:[%s2938 + $0xa0] sm:$0xff]
      %v2960 = vld [vmem:[%s2938 + $0xa8] sm:$0xff]
      %v2961 = vld [vmem:[%s2938 + $0xb0] sm:$0xff]
      %v2962 = vld [vmem:[%s2938 + $0xb8] sm:$0xff]
      %v2963 = vld [vmem:[%s2938 + $0xc0] sm:$0xff]
      %v2964 = vld [vmem:[%s2938 + $0xc8] sm:$0xff]
      %v2965 = vld [vmem:[%s2938 + $0xd0] sm:$0xff]
      %v2966 = vld [vmem:[%s2938 + $0xd8] sm:$0xff]
      %v2967 = vld [vmem:[%s2938 + $0xe0] sm:$0xff]
      %v2968 = vld [vmem:[%s2938 + $0xe8] sm:$0xff]
      %v2969 = vld [vmem:[%s2938 + $0xf0] sm:$0xff]
      %v2970 = vld [vmem:[%s2938 + $0xf8] sm:$0xff]
      %v3003 = vunpack.c.l.b16 %v2939
      %v3004 = vunpack.c.h.b16 %v2939
      %v3005 = vunpack.c.l.b16 %v2940
      %v3006 = vunpack.c.h.b16 %v2940
      %v3007 = vunpack.c.l.b16 %v2941
      %v3008 = vunpack.c.h.b16 %v2941
      %v3009 = vunpack.c.l.b16 %v2942
      %v3010 = vunpack.c.h.b16 %v2942
      %v3011 = vunpack.c.l.b16 %v2943
      %v3012 = vunpack.c.h.b16 %v2943
      %v3013 = vunpack.c.l.b16 %v2944
      %v3014 = vunpack.c.h.b16 %v2944
      %v3015 = vunpack.c.l.b16 %v2945
      %v3016 = vunpack.c.h.b16 %v2945
      %v3017 = vunpack.c.l.b16 %v2946
      %v3018 = vunpack.c.h.b16 %v2946
      %v3019 = vunpack.c.l.b16 %v2947
      %v3020 = vunpack.c.h.b16 %v2947
      %v3021 = vunpack.c.l.b16 %v2948
      %v3022 = vunpack.c.h.b16 %v2948
      %v3023 = vunpack.c.l.b16 %v2949
      %v3024 = vunpack.c.h.b16 %v2949
      %v3025 = vunpack.c.l.b16 %v2950
      %v3026 = vunpack.c.h.b16 %v2950
      %v3027 = vunpack.c.l.b16 %v2951
      %v3028 = vunpack.c.h.b16 %v2951
      %v3029 = vunpack.c.l.b16 %v2952
      %v3030 = vunpack.c.h.b16 %v2952
      %v3031 = vunpack.c.l.b16 %v2953
      %v3032 = vunpack.c.h.b16 %v2953
      %v3033 = vunpack.c.l.b16 %v2954
      %v3034 = vunpack.c.h.b16 %v2954
      %v3035 = vunpack.c.l.b16 %v2955
      %v3036 = vunpack.c.h.b16 %v2955
      %v3037 = vunpack.c.l.b16 %v2956
      %v3038 = vunpack.c.h.b16 %v2956
      %v3039 = vunpack.c.l.b16 %v2957
      %v3040 = vunpack.c.h.b16 %v2957
      %v3041 = vunpack.c.l.b16 %v2958
      %v3042 = vunpack.c.h.b16 %v2958
      %v3043 = vunpack.c.l.b16 %v2959
      %v3044 = vunpack.c.h.b16 %v2959
      %v3045 = vunpack.c.l.b16 %v2960
      %v3046 = vunpack.c.h.b16 %v2960
      %v3047 = vunpack.c.l.b16 %v2961
      %v3048 = vunpack.c.h.b16 %v2961
      %v3049 = vunpack.c.l.b16 %v2962
      %v3050 = vunpack.c.h.b16 %v2962
      %v3051 = vunpack.c.l.b16 %v2963
      %v3052 = vunpack.c.h.b16 %v2963
      %v3053 = vunpack.c.l.b16 %v2964
      %v3054 = vunpack.c.h.b16 %v2964
      %v3055 = vunpack.c.l.b16 %v2965
      %v3056 = vunpack.c.h.b16 %v2965
      %v3057 = vunpack.c.l.b16 %v2966
      %v3058 = vunpack.c.h.b16 %v2966
      %v3059 = vunpack.c.l.b16 %v2967
      %v3060 = vunpack.c.h.b16 %v2967
      %v3061 = vunpack.c.l.b16 %v2968
      %v3062 = vunpack.c.h.b16 %v2968
      %v3063 = vunpack.c.l.b16 %v2969
      %v3064 = vunpack.c.h.b16 %v2969
      %v3065 = vunpack.c.l.b16 %v2970
      %v3066 = vunpack.c.h.b16 %v2970
      %v3067 = vpack.c.b16 %v3005, %v3003
      %v3068 = vpack.c.b16 %v3006, %v3004
      %v3069 = vpack.c.b16 %v3009, %v3007
      %v3070 = vpack.c.b16 %v3010, %v3008
      %v3071 = vpack.c.b16 %v3013, %v3011
      %v3072 = vpack.c.b16 %v3014, %v3012
      %v3073 = vpack.c.b16 %v3017, %v3015
      %v3074 = vpack.c.b16 %v3018, %v3016
      %v3075 = vpack.c.b16 %v3021, %v3019
      %v3076 = vpack.c.b16 %v3022, %v3020
      %v3077 = vpack.c.b16 %v3025, %v3023
      %v3078 = vpack.c.b16 %v3026, %v3024
      %v3079 = vpack.c.b16 %v3029, %v3027
      %v3080 = vpack.c.b16 %v3030, %v3028
      %v3081 = vpack.c.b16 %v3033, %v3031
      %v3082 = vpack.c.b16 %v3034, %v3032
      %v3083 = vpack.c.b16 %v3037, %v3035
      %v3084 = vpack.c.b16 %v3038, %v3036
      %v3085 = vpack.c.b16 %v3041, %v3039
      %v3086 = vpack.c.b16 %v3042, %v3040
      %v3087 = vpack.c.b16 %v3045, %v3043
      %v3088 = vpack.c.b16 %v3046, %v3044
      %v3089 = vpack.c.b16 %v3049, %v3047
      %v3090 = vpack.c.b16 %v3050, %v3048
      %v3091 = vpack.c.b16 %v3053, %v3051
      %v3092 = vpack.c.b16 %v3054, %v3052
      %v3093 = vpack.c.b16 %v3057, %v3055
      %v3094 = vpack.c.b16 %v3058, %v3056
      %v3095 = vpack.c.b16 %v3061, %v3059
      %v3096 = vpack.c.b16 %v3062, %v3060
      %v3097 = vpack.c.b16 %v3065, %v3063
      %v3098 = vpack.c.b16 %v3066, %v3064
      %3131 = vmatprep.subr.bf16.mxu0 %v3068
      %3132 = vmatpush1.bf16.msra.mxu0 %v3067
      %3133 = vmatprep.subr.bf16.mxu0 %v3070
      %3134 = vmatpush1.bf16.msra.mxu0 %v3069
      %3135 = vmatprep.subr.bf16.mxu0 %v3072
      %3136 = vmatpush1.bf16.msra.mxu0 %v3071
      %3137 = vmatprep.subr.bf16.mxu0 %v3074
      %3138 = vmatpush1.bf16.msra.mxu0 %v3073
      %3139 = vmatprep.subr.bf16.mxu0 %v3076
      %3140 = vmatpush1.bf16.msra.mxu0 %v3075
      %3141 = vmatprep.subr.bf16.mxu0 %v3078
      %3142 = vmatpush1.bf16.msra.mxu0 %v3077
      %3143 = vmatprep.subr.bf16.mxu0 %v3080
      %3144 = vmatpush1.bf16.msra.mxu0 %v3079
      %3145 = vmatprep.subr.bf16.mxu0 %v3082
      %3146 = vmatpush1.bf16.msra.mxu0 %v3081
      %3147 = vmatprep.subr.bf16.mxu0 %v3084
      %3148 = vmatpush1.bf16.msra.mxu0 %v3083
      %3149 = vmatprep.subr.bf16.mxu0 %v3086
      %3150 = vmatpush1.bf16.msra.mxu0 %v3085
      %3151 = vmatprep.subr.bf16.mxu0 %v3088
      %3152 = vmatpush1.bf16.msra.mxu0 %v3087
      %3153 = vmatprep.subr.bf16.mxu0 %v3090
      %3154 = vmatpush1.bf16.msra.mxu0 %v3089
      %3155 = vmatprep.subr.bf16.mxu0 %v3092
      %3156 = vmatpush1.bf16.msra.mxu0 %v3091
      %3157 = vmatprep.subr.bf16.mxu0 %v3094
      %3158 = vmatpush1.bf16.msra.mxu0 %v3093
      %3159 = vmatprep.subr.bf16.mxu0 %v3096
      %3160 = vmatpush1.bf16.msra.mxu0 %v3095
      %3161 = vmatprep.subr.bf16.mxu0 %v3098
      %3162 = vmatpush1.bf16.msra.mxu0 %v3097
      %3163 = vmatprep.mubr.bf16.mxu0 %v2931
      %3164 = vmatmul.mubr.bf16.gmra.mrb[0].mxu0 %v2930
      %v3165 = vpop.f32.mrb[0].mxu0
      %v3166 = vadd.f32 0.0, %v3165
      %v3167 = vpop.f32.mrb[0].mxu0
      %v3168 = vadd.f32 0.0, %v3167
      %v3169 = vpop.f32.mrb[0].mxu0
      %v3170 = vadd.f32 0.0, %v3169
      %v3171 = vpop.f32.mrb[0].mxu0
      %v3172 = vadd.f32 0.0, %v3171
      %3173 = vmatprep.mubr.bf16.mxu0 %v2933
      %3174 = vmatmul.mubr.bf16.gmra.mrb[0].mxu0 %v2932
      %v3175 = vpop.f32.mrb[0].mxu0
      %v3176 = vadd.f32 0.0, %v3175
      %v3177 = vpop.f32.mrb[0].mxu0
      %v3178 = vadd.f32 0.0, %v3177
      %v3179 = vpop.f32.mrb[0].mxu0
      %v3180 = vadd.f32 0.0, %v3179
      %v3181 = vpop.f32.mrb[0].mxu0
      %v3182 = vadd.f32 0.0, %v3181
      %3183 = vmatprep.mubr.bf16.mxu0 %v2935
      %3184 = vmatmul.mubr.bf16.gmra.mrb[0].mxu0 %v2934
      %v3185 = vpop.f32.mrb[0].mxu0
      %v3186 = vadd.f32 0.0, %v3185
      %v3187 = vpop.f32.mrb[0].mxu0
      %v3188 = vadd.f32 0.0, %v3187
      %v3189 = vpop.f32.mrb[0].mxu0
      %v3190 = vadd.f32 0.0, %v3189
      %v3191 = vpop.f32.mrb[0].mxu0
      %v3192 = vadd.f32 0.0, %v3191
      %3193 = vmatprep.mubr.bf16.mxu0 %v2937
      %3194 = vmatmul.mubr.bf16.gmra.mrb[0].mxu0 %v2936
      %v3195 = vpop.f32.mrb[0].mxu0
      %v3196 = vadd.f32 0.0, %v3195
      %v3197 = vpop.f32.mrb[0].mxu0
      %v3198 = vadd.f32 0.0, %v3197
      %v3199 = vpop.f32.mrb[0].mxu0
      %v3200 = vadd.f32 0.0, %v3199
      %v3201 = vpop.f32.mrb[0].mxu0
      %v3202 = vadd.f32 0.0, %v3201
      %3203 = vdwg.mxu0
      %v3204 = vadd.f32 %v2897, %v3166
      %v3205 = vadd.f32 %v2898, %v3168
      %v3206 = vadd.f32 %v2899, %v3170
      %v3207 = vadd.f32 %v2900, %v3172
      %v3208 = vadd.f32 %v2901, %v3176
      %v3209 = vadd.f32 %v2902, %v3178
      %v3210 = vadd.f32 %v2903, %v3180
      %v3211 = vadd.f32 %v2904, %v3182
      %v3212 = vadd.f32 %v2905, %v3186
      %v3213 = vadd.f32 %v2906, %v3188
      %v3214 = vadd.f32 %v2907, %v3190
      %v3215 = vadd.f32 %v2908, %v3192
      %v3216 = vadd.f32 %v2909, %v3196
      %v3217 = vadd.f32 %v2910, %v3198
      %v3218 = vadd.f32 %v2911, %v3200
      %v3219 = vadd.f32 %v2912, %v3202
      %v3220 = vld [vmem:[%s2913] sm:$0xfe]
      %v3221 = vld [vmem:[%s2913 + $0x8] sm:$0xfe]
      %v3222 = vld [vmem:[%s2913 + $0x10] sm:$0x1]
      %v3223 = vld [vmem:[%s2913 + $0x18] sm:$0x1]
      %v3224 = vld [vmem:[%s2913 + $0x20] sm:$0xfe]
      %v3225 = vld [vmem:[%s2913 + $0x28] sm:$0xfe]
      %v3226 = vld [vmem:[%s2913 + $0x30] sm:$0x1]
      %v3227 = vld [vmem:[%s2913 + $0x38] sm:$0x1]
      %v3228 = vld [vmem:[%s2913 + $0x40] sm:$0xfe]
      %v3229 = vld [vmem:[%s2913 + $0x48] sm:$0xfe]
      %v3230 = vld [vmem:[%s2913 + $0x50] sm:$0x1]
      %v3231 = vld [vmem:[%s2913 + $0x58] sm:$0x1]
      %v3232 = vld [vmem:[%s2913 + $0x60] sm:$0xfe]
      %v3233 = vld [vmem:[%s2913 + $0x68] sm:$0xfe]
      %v3234 = vld [vmem:[%s2913 + $0x70] sm:$0x1]
      %v3235 = vld [vmem:[%s2913 + $0x78] sm:$0x1]
      %v3236 = vld [vmem:[%s2913 + $0x80] sm:$0xfe]
      %v3237 = vld [vmem:[%s2913 + $0x88] sm:$0xfe]
      %v3238 = vld [vmem:[%s2913 + $0x90] sm:$0x1]
      %v3239 = vld [vmem:[%s2913 + $0x98] sm:$0x1]
      %v3240 = vld [vmem:[%s2913 + $0xa0] sm:$0xfe]
      %v3241 = vld [vmem:[%s2913 + $0xa8] sm:$0xfe]
      %v3242 = vld [vmem:[%s2913 + $0xb0] sm:$0x1]
      %v3243 = vld [vmem:[%s2913 + $0xb8] sm:$0x1]
      %v3244 = vld [vmem:[%s2913 + $0xc0] sm:$0xfe]
      %v3245 = vld [vmem:[%s2913 + $0xc8] sm:$0xfe]
      %v3246 = vld [vmem:[%s2913 + $0xd0] sm:$0x1]
      %v3247 = vld [vmem:[%s2913 + $0xd8] sm:$0x1]
      %v3248 = vld [vmem:[%s2913 + $0xe0] sm:$0xfe]
      %v3249 = vld [vmem:[%s2913 + $0xe8] sm:$0xfe]
      %v3250 = vld [vmem:[%s2913 + $0xf0] sm:$0x1]
      %v3251 = vld [vmem:[%s2913 + $0xf8] sm:$0x1]
      %v3284 = vrot.slane %v3220, 1
      %v3285 = vrot.slane %v3222, 1
      %v3286 = vsel %vm780, %v3284, %v3285
      %v3287 = vrot.slane %v3221, 1
      %v3288 = vrot.slane %v3223, 1
      %v3289 = vsel %vm780, %v3287, %v3288
      %v3290 = vrot.slane %v3224, 1
      %v3291 = vrot.slane %v3226, 1
      %v3292 = vsel %vm780, %v3290, %v3291
      %v3293 = vrot.slane %v3225, 1
      %v3294 = vrot.slane %v3227, 1
      %v3295 = vsel %vm780, %v3293, %v3294
      %v3296 = vrot.slane %v3228, 1
      %v3297 = vrot.slane %v3230, 1
      %v3298 = vsel %vm780, %v3296, %v3297
      %v3299 = vrot.slane %v3229, 1
      %v3300 = vrot.slane %v3231, 1
      %v3301 = vsel %vm780, %v3299, %v3300
      %v3302 = vrot.slane %v3232, 1
      %v3303 = vrot.slane %v3234, 1
      %v3304 = vsel %vm780, %v3302, %v3303
      %v3305 = vrot.slane %v3233, 1
      %v3306 = vrot.slane %v3235, 1
      %v3307 = vsel %vm780, %v3305, %v3306
      %v3308 = vrot.slane %v3236, 1
      %v3309 = vrot.slane %v3238, 1
      %v3310 = vsel %vm780, %v3308, %v3309
      %v3311 = vrot.slane %v3237, 1
      %v3312 = vrot.slane %v3239, 1
      %v3313 = vsel %vm780, %v3311, %v3312
      %v3314 = vrot.slane %v3240, 1
      %v3315 = vrot.slane %v3242, 1
      %v3316 = vsel %vm780, %v3314, %v3315
      %v3317 = vrot.slane %v3241, 1
      %v3318 = vrot.slane %v3243, 1
      %v3319 = vsel %vm780, %v3317, %v3318
      %v3320 = vrot.slane %v3244, 1
      %v3321 = vrot.slane %v3246, 1
      %v3322 = vsel %vm780, %v3320, %v3321
      %v3323 = vrot.slane %v3245, 1
      %v3324 = vrot.slane %v3247, 1
      %v3325 = vsel %vm780, %v3323, %v3324
      %v3326 = vrot.slane %v3248, 1
      %v3327 = vrot.slane %v3250, 1
      %v3328 = vsel %vm780, %v3326, %v3327
      %v3329 = vrot.slane %v3249, 1
      %v3330 = vrot.slane %v3251, 1
      %v3331 = vsel %vm780, %v3329, %v3330
      %v3348 = vpack.c.bf16 %v3292, %v3286
      %v3349 = vpack.c.bf16 %v3295, %v3289
      %v3350 = vpack.c.bf16 %v3304, %v3298
      %v3351 = vpack.c.bf16 %v3307, %v3301
      %v3352 = vpack.c.bf16 %v3316, %v3310
      %v3353 = vpack.c.bf16 %v3319, %v3313
      %v3354 = vpack.c.bf16 %v3328, %v3322
      %v3355 = vpack.c.bf16 %v3331, %v3325
      %s3356 = scalar_lea.vmem %s3, 1792
      %v3357 = vld [vmem:[%s3356] sm:$0xff]
      %v3358 = vld [vmem:[%s3356 + $0x8] sm:$0xff]
      %v3359 = vld [vmem:[%s3356 + $0x10] sm:$0xff]
      %v3360 = vld [vmem:[%s3356 + $0x18] sm:$0xff]
      %v3361 = vld [vmem:[%s3356 + $0x20] sm:$0xff]
      %v3362 = vld [vmem:[%s3356 + $0x28] sm:$0xff]
      %v3363 = vld [vmem:[%s3356 + $0x30] sm:$0xff]
      %v3364 = vld [vmem:[%s3356 + $0x38] sm:$0xff]
      %v3365 = vld [vmem:[%s3356 + $0x40] sm:$0xff]
      %v3366 = vld [vmem:[%s3356 + $0x48] sm:$0xff]
      %v3367 = vld [vmem:[%s3356 + $0x50] sm:$0xff]
      %v3368 = vld [vmem:[%s3356 + $0x58] sm:$0xff]
      %v3369 = vld [vmem:[%s3356 + $0x60] sm:$0xff]
      %v3370 = vld [vmem:[%s3356 + $0x68] sm:$0xff]
      %v3371 = vld [vmem:[%s3356 + $0x70] sm:$0xff]
      %v3372 = vld [vmem:[%s3356 + $0x78] sm:$0xff]
      %v3373 = vld [vmem:[%s3356 + $0x80] sm:$0xff]
      %v3374 = vld [vmem:[%s3356 + $0x88] sm:$0xff]
      %v3375 = vld [vmem:[%s3356 + $0x90] sm:$0xff]
      %v3376 = vld [vmem:[%s3356 + $0x98] sm:$0xff]
      %v3377 = vld [vmem:[%s3356 + $0xa0] sm:$0xff]
      %v3378 = vld [vmem:[%s3356 + $0xa8] sm:$0xff]
      %v3379 = vld [vmem:[%s3356 + $0xb0] sm:$0xff]
      %v3380 = vld [vmem:[%s3356 + $0xb8] sm:$0xff]
      %v3381 = vld [vmem:[%s3356 + $0xc0] sm:$0xff]
      %v3382 = vld [vmem:[%s3356 + $0xc8] sm:$0xff]
      %v3383 = vld [vmem:[%s3356 + $0xd0] sm:$0xff]
      %v3384 = vld [vmem:[%s3356 + $0xd8] sm:$0xff]
      %v3385 = vld [vmem:[%s3356 + $0xe0] sm:$0xff]
      %v3386 = vld [vmem:[%s3356 + $0xe8] sm:$0xff]
      %v3387 = vld [vmem:[%s3356 + $0xf0] sm:$0xff]
      %v3388 = vld [vmem:[%s3356 + $0xf8] sm:$0xff]
      %v3421 = vunpack.c.l.b16 %v3357
      %v3422 = vunpack.c.h.b16 %v3357
      %v3423 = vunpack.c.l.b16 %v3358
      %v3424 = vunpack.c.h.b16 %v3358
      %v3425 = vunpack.c.l.b16 %v3359
      %v3426 = vunpack.c.h.b16 %v3359
      %v3427 = vunpack.c.l.b16 %v3360
      %v3428 = vunpack.c.h.b16 %v3360
      %v3429 = vunpack.c.l.b16 %v3361
      %v3430 = vunpack.c.h.b16 %v3361
      %v3431 = vunpack.c.l.b16 %v3362
      %v3432 = vunpack.c.h.b16 %v3362
      %v3433 = vunpack.c.l.b16 %v3363
      %v3434 = vunpack.c.h.b16 %v3363
      %v3435 = vunpack.c.l.b16 %v3364
      %v3436 = vunpack.c.h.b16 %v3364
      %v3437 = vunpack.c.l.b16 %v3365
      %v3438 = vunpack.c.h.b16 %v3365
      %v3439 = vunpack.c.l.b16 %v3366
      %v3440 = vunpack.c.h.b16 %v3366
      %v3441 = vunpack.c.l.b16 %v3367
      %v3442 = vunpack.c.h.b16 %v3367
      %v3443 = vunpack.c.l.b16 %v3368
      %v3444 = vunpack.c.h.b16 %v3368
      %v3445 = vunpack.c.l.b16 %v3369
      %v3446 = vunpack.c.h.b16 %v3369
      %v3447 = vunpack.c.l.b16 %v3370
      %v3448 = vunpack.c.h.b16 %v3370
      %v3449 = vunpack.c.l.b16 %v3371
      %v3450 = vunpack.c.h.b16 %v3371
      %v3451 = vunpack.c.l.b16 %v3372
      %v3452 = vunpack.c.h.b16 %v3372
      %v3453 = vunpack.c.l.b16 %v3373
      %v3454 = vunpack.c.h.b16 %v3373
      %v3455 = vunpack.c.l.b16 %v3374
      %v3456 = vunpack.c.h.b16 %v3374
      %v3457 = vunpack.c.l.b16 %v3375
      %v3458 = vunpack.c.h.b16 %v3375
      %v3459 = vunpack.c.l.b16 %v3376
      %v3460 = vunpack.c.h.b16 %v3376
      %v3461 = vunpack.c.l.b16 %v3377
      %v3462 = vunpack.c.h.b16 %v3377
      %v3463 = vunpack.c.l.b16 %v3378
      %v3464 = vunpack.c.h.b16 %v3378
      %v3465 = vunpack.c.l.b16 %v3379
      %v3466 = vunpack.c.h.b16 %v3379
      %v3467 = vunpack.c.l.b16 %v3380
      %v3468 = vunpack.c.h.b16 %v3380
      %v3469 = vunpack.c.l.b16 %v3381
      %v3470 = vunpack.c.h.b16 %v3381
      %v3471 = vunpack.c.l.b16 %v3382
      %v3472 = vunpack.c.h.b16 %v3382
      %v3473 = vunpack.c.l.b16 %v3383
      %v3474 = vunpack.c.h.b16 %v3383
      %v3475 = vunpack.c.l.b16 %v3384
      %v3476 = vunpack.c.h.b16 %v3384
      %v3477 = vunpack.c.l.b16 %v3385
      %v3478 = vunpack.c.h.b16 %v3385
      %v3479 = vunpack.c.l.b16 %v3386
      %v3480 = vunpack.c.h.b16 %v3386
      %v3481 = vunpack.c.l.b16 %v3387
      %v3482 = vunpack.c.h.b16 %v3387
      %v3483 = vunpack.c.l.b16 %v3388
      %v3484 = vunpack.c.h.b16 %v3388
      %v3485 = vpack.c.b16 %v3423, %v3421
      %v3486 = vpack.c.b16 %v3424, %v3422
      %v3487 = vpack.c.b16 %v3427, %v3425
      %v3488 = vpack.c.b16 %v3428, %v3426
      %v3489 = vpack.c.b16 %v3431, %v3429
      %v3490 = vpack.c.b16 %v3432, %v3430
      %v3491 = vpack.c.b16 %v3435, %v3433
      %v3492 = vpack.c.b16 %v3436, %v3434
      %v3493 = vpack.c.b16 %v3439, %v3437
      %v3494 = vpack.c.b16 %v3440, %v3438
      %v3495 = vpack.c.b16 %v3443, %v3441
      %v3496 = vpack.c.b16 %v3444, %v3442
      %v3497 = vpack.c.b16 %v3447, %v3445
      %v3498 = vpack.c.b16 %v3448, %v3446
      %v3499 = vpack.c.b16 %v3451, %v3449
      %v3500 = vpack.c.b16 %v3452, %v3450
      %v3501 = vpack.c.b16 %v3455, %v3453
      %v3502 = vpack.c.b16 %v3456, %v3454
      %v3503 = vpack.c.b16 %v3459, %v3457
      %v3504 = vpack.c.b16 %v3460, %v3458
      %v3505 = vpack.c.b16 %v3463, %v3461
      %v3506 = vpack.c.b16 %v3464, %v3462
      %v3507 = vpack.c.b16 %v3467, %v3465
      %v3508 = vpack.c.b16 %v3468, %v3466
      %v3509 = vpack.c.b16 %v3471, %v3469
      %v3510 = vpack.c.b16 %v3472, %v3470
      %v3511 = vpack.c.b16 %v3475, %v3473
      %v3512 = vpack.c.b16 %v3476, %v3474
      %v3513 = vpack.c.b16 %v3479, %v3477
      %v3514 = vpack.c.b16 %v3480, %v3478
      %v3515 = vpack.c.b16 %v3483, %v3481
      %v3516 = vpack.c.b16 %v3484, %v3482
      %3549 = vmatprep.subr.bf16.mxu0 %v3486
      %3550 = vmatpush1.bf16.msra.mxu0 %v3485
      %3551 = vmatprep.subr.bf16.mxu0 %v3488
      %3552 = vmatpush1.bf16.msra.mxu0 %v3487
      %3553 = vmatprep.subr.bf16.mxu0 %v3490
      %3554 = vmatpush1.bf16.msra.mxu0 %v3489
      %3555 = vmatprep.subr.bf16.mxu0 %v3492
      %3556 = vmatpush1.bf16.msra.mxu0 %v3491
      %3557 = vmatprep.subr.bf16.mxu0 %v3494
      %3558 = vmatpush1.bf16.msra.mxu0 %v3493
      %3559 = vmatprep.subr.bf16.mxu0 %v3496
      %3560 = vmatpush1.bf16.msra.mxu0 %v3495
      %3561 = vmatprep.subr.bf16.mxu0 %v3498
      %3562 = vmatpush1.bf16.msra.mxu0 %v3497
      %3563 = vmatprep.subr.bf16.mxu0 %v3500
      %3564 = vmatpush1.bf16.msra.mxu0 %v3499
      %3565 = vmatprep.subr.bf16.mxu0 %v3502
      %3566 = vmatpush1.bf16.msra.mxu0 %v3501
      %3567 = vmatprep.subr.bf16.mxu0 %v3504
      %3568 = vmatpush1.bf16.msra.mxu0 %v3503
      %3569 = vmatprep.subr.bf16.mxu0 %v3506
      %3570 = vmatpush1.bf16.msra.mxu0 %v3505
      %3571 = vmatprep.subr.bf16.mxu0 %v3508
      %3572 = vmatpush1.bf16.msra.mxu0 %v3507
      %3573 = vmatprep.subr.bf16.mxu0 %v3510
      %3574 = vmatpush1.bf16.msra.mxu0 %v3509
      %3575 = vmatprep.subr.bf16.mxu0 %v3512
      %3576 = vmatpush1.bf16.msra.mxu0 %v3511
      %3577 = vmatprep.subr.bf16.mxu0 %v3514
      %3578 = vmatpush1.bf16.msra.mxu0 %v3513
      %3579 = vmatprep.subr.bf16.mxu0 %v3516
      %3580 = vmatpush1.bf16.msra.mxu0 %v3515
      %3581 = vmatprep.mubr.bf16.mxu0 %v3349
      %3582 = vmatmul.mubr.bf16.gmra.mrb[0].mxu0 %v3348
      %v3583 = vpop.f32.mrb[0].mxu0
      %v3584 = vadd.f32 0.0, %v3583
      %v3585 = vpop.f32.mrb[0].mxu0
      %v3586 = vadd.f32 0.0, %v3585
      %v3587 = vpop.f32.mrb[0].mxu0
      %v3588 = vadd.f32 0.0, %v3587
      %v3589 = vpop.f32.mrb[0].mxu0
      %v3590 = vadd.f32 0.0, %v3589
      %3591 = vmatprep.mubr.bf16.mxu0 %v3351
      %3592 = vmatmul.mubr.bf16.gmra.mrb[0].mxu0 %v3350
      %v3593 = vpop.f32.mrb[0].mxu0
      %v3594 = vadd.f32 0.0, %v3593
      %v3595 = vpop.f32.mrb[0].mxu0
      %v3596 = vadd.f32 0.0, %v3595
      %v3597 = vpop.f32.mrb[0].mxu0
      %v3598 = vadd.f32 0.0, %v3597
      %v3599 = vpop.f32.mrb[0].mxu0
      %v3600 = vadd.f32 0.0, %v3599
      %3601 = vmatprep.mubr.bf16.mxu0 %v3353
      %3602 = vmatmul.mubr.bf16.gmra.mrb[0].mxu0 %v3352
      %v3603 = vpop.f32.mrb[0].mxu0
      %v3604 = vadd.f32 0.0, %v3603
      %v3605 = vpop.f32.mrb[0].mxu0
      %v3606 = vadd.f32 0.0, %v3605
      %v3607 = vpop.f32.mrb[0].mxu0
      %v3608 = vadd.f32 0.0, %v3607
      %v3609 = vpop.f32.mrb[0].mxu0
      %v3610 = vadd.f32 0.0, %v3609
      %3611 = vmatprep.mubr.bf16.mxu0 %v3355
      %3612 = vmatmul.mubr.bf16.gmra.mrb[0].mxu0 %v3354
      %v3613 = vpop.f32.mrb[0].mxu0
      %v3614 = vadd.f32 0.0, %v3613
      %v3615 = vpop.f32.mrb[0].mxu0
      %v3616 = vadd.f32 0.0, %v3615
      %v3617 = vpop.f32.mrb[0].mxu0
      %v3618 = vadd.f32 0.0, %v3617
      %v3619 = vpop.f32.mrb[0].mxu0
      %v3620 = vadd.f32 0.0, %v3619
      %3621 = vdwg.mxu0
      %v3622 = vadd.f32 %v3204, %v3584
      %v3623 = vadd.f32 %v3205, %v3586
      %v3624 = vadd.f32 %v3206, %v3588
      %v3625 = vadd.f32 %v3207, %v3590
      %v3626 = vadd.f32 %v3208, %v3594
      %v3627 = vadd.f32 %v3209, %v3596
      %v3628 = vadd.f32 %v3210, %v3598
      %v3629 = vadd.f32 %v3211, %v3600
      %v3630 = vadd.f32 %v3212, %v3604
      %v3631 = vadd.f32 %v3213, %v3606
      %v3632 = vadd.f32 %v3214, %v3608
      %v3633 = vadd.f32 %v3215, %v3610
      %v3634 = vadd.f32 %v3216, %v3614
      %v3635 = vadd.f32 %v3217, %v3616
      %v3636 = vadd.f32 %v3218, %v3618
      %v3637 = vadd.f32 %v3219, %v3620
      %v3638 = vld [vmem:[%s2913] sm:$0xfc]
      %v3639 = vld [vmem:[%s2913 + $0x8] sm:$0xfc]
      %v3640 = vld [vmem:[%s2913 + $0x10] sm:$0x3]
      %v3641 = vld [vmem:[%s2913 + $0x18] sm:$0x3]
      %v3642 = vld [vmem:[%s2913 + $0x20] sm:$0xfc]
      %v3643 = vld [vmem:[%s2913 + $0x28] sm:$0xfc]
      %v3644 = vld [vmem:[%s2913 + $0x30] sm:$0x3]
      %v3645 = vld [vmem:[%s2913 + $0x38] sm:$0x3]
      %v3646 = vld [vmem:[%s2913 + $0x40] sm:$0xfc]
      %v3647 = vld [vmem:[%s2913 + $0x48] sm:$0xfc]
      %v3648 = vld [vmem:[%s2913 + $0x50] sm:$0x3]
      %v3649 = vld [vmem:[%s2913 + $0x58] sm:$0x3]
      %v3650 = vld [vmem:[%s2913 + $0x60] sm:$0xfc]
      %v3651 = vld [vmem:[%s2913 + $0x68] sm:$0xfc]
      %v3652 = vld [vmem:[%s2913 + $0x70] sm:$0x3]
      %v3653 = vld [vmem:[%s2913 + $0x78] sm:$0x3]
      %v3654 = vld [vmem:[%s2913 + $0x80] sm:$0xfc]
      %v3655 = vld [vmem:[%s2913 + $0x88] sm:$0xfc]
      %v3656 = vld [vmem:[%s2913 + $0x90] sm:$0x3]
      %v3657 = vld [vmem:[%s2913 + $0x98] sm:$0x3]
      %v3658 = vld [vmem:[%s2913 + $0xa0] sm:$0xfc]
      %v3659 = vld [vmem:[%s2913 + $0xa8] sm:$0xfc]
      %v3660 = vld [vmem:[%s2913 + $0xb0] sm:$0x3]
      %v3661 = vld [vmem:[%s2913 + $0xb8] sm:$0x3]
      %v3662 = vld [vmem:[%s2913 + $0xc0] sm:$0xfc]
      %v3663 = vld [vmem:[%s2913 + $0xc8] sm:$0xfc]
      %v3664 = vld [vmem:[%s2913 + $0xd0] sm:$0x3]
      %v3665 = vld [vmem:[%s2913 + $0xd8] sm:$0x3]
      %v3666 = vld [vmem:[%s2913 + $0xe0] sm:$0xfc]
      %v3667 = vld [vmem:[%s2913 + $0xe8] sm:$0xfc]
      %v3668 = vld [vmem:[%s2913 + $0xf0] sm:$0x3]
      %v3669 = vld [vmem:[%s2913 + $0xf8] sm:$0x3]
      %v3702 = vrot.slane %v3638, 2
      %v3703 = vrot.slane %v3640, 2
      %v3704 = vsel %vm1416, %v3702, %v3703
      %v3705 = vrot.slane %v3639, 2
      %v3706 = vrot.slane %v3641, 2
      %v3707 = vsel %vm1416, %v3705, %v3706
      %v3708 = vrot.slane %v3642, 2
      %v3709 = vrot.slane %v3644, 2
      %v3710 = vsel %vm1416, %v3708, %v3709
      %v3711 = vrot.slane %v3643, 2
      %v3712 = vrot.slane %v3645, 2
      %v3713 = vsel %vm1416, %v3711, %v3712
      %v3714 = vrot.slane %v3646, 2
      %v3715 = vrot.slane %v3648, 2
      %v3716 = vsel %vm1416, %v3714, %v3715
      %v3717 = vrot.slane %v3647, 2
      %v3718 = vrot.slane %v3649, 2
      %v3719 = vsel %vm1416, %v3717, %v3718
      %v3720 = vrot.slane %v3650, 2
      %v3721 = vrot.slane %v3652, 2
      %v3722 = vsel %vm1416, %v3720, %v3721
      %v3723 = vrot.slane %v3651, 2
      %v3724 = vrot.slane %v3653, 2
      %v3725 = vsel %vm1416, %v3723, %v3724
      %v3726 = vrot.slane %v3654, 2
      %v3727 = vrot.slane %v3656, 2
      %v3728 = vsel %vm1416, %v3726, %v3727
      %v3729 = vrot.slane %v3655, 2
      %v3730 = vrot.slane %v3657, 2
      %v3731 = vsel %vm1416, %v3729, %v3730
      %v3732 = vrot.slane %v3658, 2
      %v3733 = vrot.slane %v3660, 2
      %v3734 = vsel %vm1416, %v3732, %v3733
      %v3735 = vrot.slane %v3659, 2
      %v3736 = vrot.slane %v3661, 2
      %v3737 = vsel %vm1416, %v3735, %v3736
      %v3738 = vrot.slane %v3662, 2
      %v3739 = vrot.slane %v3664, 2
      %v3740 = vsel %vm1416, %v3738, %v3739
      %v3741 = vrot.slane %v3663, 2
      %v3742 = vrot.slane %v3665, 2
      %v3743 = vsel %vm1416, %v3741, %v3742
      %v3744 = vrot.slane %v3666, 2
      %v3745 = vrot.slane %v3668, 2
      %v3746 = vsel %vm1416, %v3744, %v3745
      %v3747 = vrot.slane %v3667, 2
      %v3748 = vrot.slane %v3669, 2
      %v3749 = vsel %vm1416, %v3747, %v3748
      %v3766 = vpack.c.bf16 %v3710, %v3704
      %v3767 = vpack.c.bf16 %v3713, %v3707
      %v3768 = vpack.c.bf16 %v3722, %v3716
      %v3769 = vpack.c.bf16 %v3725, %v3719
      %v3770 = vpack.c.bf16 %v3734, %v3728
      %v3771 = vpack.c.bf16 %v3737, %v3731
      %v3772 = vpack.c.bf16 %v3746, %v3740
      %v3773 = vpack.c.bf16 %v3749, %v3743
      %s3774 = scalar_lea.vmem %s3, 2048
      %v3775 = vld [vmem:[%s3774] sm:$0xff]
      %v3776 = vld [vmem:[%s3774 + $0x8] sm:$0xff]
      %v3777 = vld [vmem:[%s3774 + $0x10] sm:$0xff]
      %v3778 = vld [vmem:[%s3774 + $0x18] sm:$0xff]
      %v3779 = vld [vmem:[%s3774 + $0x20] sm:$0xff]
      %v3780 = vld [vmem:[%s3774 + $0x28] sm:$0xff]
      %v3781 = vld [vmem:[%s3774 + $0x30] sm:$0xff]
      %v3782 = vld [vmem:[%s3774 + $0x38] sm:$0xff]
      %v3783 = vld [vmem:[%s3774 + $0x40] sm:$0xff]
      %v3784 = vld [vmem:[%s3774 + $0x48] sm:$0xff]
      %v3785 = vld [vmem:[%s3774 + $0x50] sm:$0xff]
      %v3786 = vld [vmem:[%s3774 + $0x58] sm:$0xff]
      %v3787 = vld [vmem:[%s3774 + $0x60] sm:$0xff]
      %v3788 = vld [vmem:[%s3774 + $0x68] sm:$0xff]
      %v3789 = vld [vmem:[%s3774 + $0x70] sm:$0xff]
      %v3790 = vld [vmem:[%s3774 + $0x78] sm:$0xff]
      %v3791 = vld [vmem:[%s3774 + $0x80] sm:$0xff]
      %v3792 = vld [vmem:[%s3774 + $0x88] sm:$0xff]
      %v3793 = vld [vmem:[%s3774 + $0x90] sm:$0xff]
      %v3794 = vld [vmem:[%s3774 + $0x98] sm:$0xff]
      %v3795 = vld [vmem:[%s3774 + $0xa0] sm:$0xff]
      %v3796 = vld [vmem:[%s3774 + $0xa8] sm:$0xff]
      %v3797 = vld [vmem:[%s3774 + $0xb0] sm:$0xff]
      %v3798 = vld [vmem:[%s3774 + $0xb8] sm:$0xff]
      %v3799 = vld [vmem:[%s3774 + $0xc0] sm:$0xff]
      %v3800 = vld [vmem:[%s3774 + $0xc8] sm:$0xff]
      %v3801 = vld [vmem:[%s3774 + $0xd0] sm:$0xff]
      %v3802 = vld [vmem:[%s3774 + $0xd8] sm:$0xff]
      %v3803 = vld [vmem:[%s3774 + $0xe0] sm:$0xff]
      %v3804 = vld [vmem:[%s3774 + $0xe8] sm:$0xff]
      %v3805 = vld [vmem:[%s3774 + $0xf0] sm:$0xff]
      %v3806 = vld [vmem:[%s3774 + $0xf8] sm:$0xff]
      %v3839 = vunpack.c.l.b16 %v3775
      %v3840 = vunpack.c.h.b16 %v3775
      %v3841 = vunpack.c.l.b16 %v3776
      %v3842 = vunpack.c.h.b16 %v3776
      %v3843 = vunpack.c.l.b16 %v3777
      %v3844 = vunpack.c.h.b16 %v3777
      %v3845 = vunpack.c.l.b16 %v3778
      %v3846 = vunpack.c.h.b16 %v3778
      %v3847 = vunpack.c.l.b16 %v3779
      %v3848 = vunpack.c.h.b16 %v3779
      %v3849 = vunpack.c.l.b16 %v3780
      %v3850 = vunpack.c.h.b16 %v3780
      %v3851 = vunpack.c.l.b16 %v3781
      %v3852 = vunpack.c.h.b16 %v3781
      %v3853 = vunpack.c.l.b16 %v3782
      %v3854 = vunpack.c.h.b16 %v3782
      %v3855 = vunpack.c.l.b16 %v3783
      %v3856 = vunpack.c.h.b16 %v3783
      %v3857 = vunpack.c.l.b16 %v3784
      %v3858 = vunpack.c.h.b16 %v3784
      %v3859 = vunpack.c.l.b16 %v3785
      %v3860 = vunpack.c.h.b16 %v3785
      %v3861 = vunpack.c.l.b16 %v3786
      %v3862 = vunpack.c.h.b16 %v3786
      %v3863 = vunpack.c.l.b16 %v3787
      %v3864 = vunpack.c.h.b16 %v3787
      %v3865 = vunpack.c.l.b16 %v3788
      %v3866 = vunpack.c.h.b16 %v3788
      %v3867 = vunpack.c.l.b16 %v3789
      %v3868 = vunpack.c.h.b16 %v3789
      %v3869 = vunpack.c.l.b16 %v3790
      %v3870 = vunpack.c.h.b16 %v3790
      %v3871 = vunpack.c.l.b16 %v3791
      %v3872 = vunpack.c.h.b16 %v3791
      %v3873 = vunpack.c.l.b16 %v3792
      %v3874 = vunpack.c.h.b16 %v3792
      %v3875 = vunpack.c.l.b16 %v3793
      %v3876 = vunpack.c.h.b16 %v3793
      %v3877 = vunpack.c.l.b16 %v3794
      %v3878 = vunpack.c.h.b16 %v3794
      %v3879 = vunpack.c.l.b16 %v3795
      %v3880 = vunpack.c.h.b16 %v3795
      %v3881 = vunpack.c.l.b16 %v3796
      %v3882 = vunpack.c.h.b16 %v3796
      %v3883 = vunpack.c.l.b16 %v3797
      %v3884 = vunpack.c.h.b16 %v3797
      %v3885 = vunpack.c.l.b16 %v3798
      %v3886 = vunpack.c.h.b16 %v3798
      %v3887 = vunpack.c.l.b16 %v3799
      %v3888 = vunpack.c.h.b16 %v3799
      %v3889 = vunpack.c.l.b16 %v3800
      %v3890 = vunpack.c.h.b16 %v3800
      %v3891 = vunpack.c.l.b16 %v3801
      %v3892 = vunpack.c.h.b16 %v3801
      %v3893 = vunpack.c.l.b16 %v3802
      %v3894 = vunpack.c.h.b16 %v3802
      %v3895 = vunpack.c.l.b16 %v3803
      %v3896 = vunpack.c.h.b16 %v3803
      %v3897 = vunpack.c.l.b16 %v3804
      %v3898 = vunpack.c.h.b16 %v3804
      %v3899 = vunpack.c.l.b16 %v3805
      %v3900 = vunpack.c.h.b16 %v3805
      %v3901 = vunpack.c.l.b16 %v3806
      %v3902 = vunpack.c.h.b16 %v3806
      %v3903 = vpack.c.b16 %v3841, %v3839
      %v3904 = vpack.c.b16 %v3842, %v3840
      %v3905 = vpack.c.b16 %v3845, %v3843
      %v3906 = vpack.c.b16 %v3846, %v3844
      %v3907 = vpack.c.b16 %v3849, %v3847
      %v3908 = vpack.c.b16 %v3850, %v3848
      %v3909 = vpack.c.b16 %v3853, %v3851
      %v3910 = vpack.c.b16 %v3854, %v3852
      %v3911 = vpack.c.b16 %v3857, %v3855
      %v3912 = vpack.c.b16 %v3858, %v3856
      %v3913 = vpack.c.b16 %v3861, %v3859
      %v3914 = vpack.c.b16 %v3862, %v3860
      %v3915 = vpack.c.b16 %v3865, %v3863
      %v3916 = vpack.c.b16 %v3866, %v3864
      %v3917 = vpack.c.b16 %v3869, %v3867
      %v3918 = vpack.c.b16 %v3870, %v3868
      %v3919 = vpack.c.b16 %v3873, %v3871
      %v3920 = vpack.c.b16 %v3874, %v3872
      %v3921 = vpack.c.b16 %v3877, %v3875
      %v3922 = vpack.c.b16 %v3878, %v3876
      %v3923 = vpack.c.b16 %v3881, %v3879
      %v3924 = vpack.c.b16 %v3882, %v3880
      %v3925 = vpack.c.b16 %v3885, %v3883
      %v3926 = vpack.c.b16 %v3886, %v3884
      %v3927 = vpack.c.b16 %v3889, %v3887
      %v3928 = vpack.c.b16 %v3890, %v3888
      %v3929 = vpack.c.b16 %v3893, %v3891
      %v3930 = vpack.c.b16 %v3894, %v3892
      %v3931 = vpack.c.b16 %v3897, %v3895
      %v3932 = vpack.c.b16 %v3898, %v3896
      %v3933 = vpack.c.b16 %v3901, %v3899
      %v3934 = vpack.c.b16 %v3902, %v3900
      %3967 = vmatprep.subr.bf16.mxu0 %v3904
      %3968 = vmatpush1.bf16.msra.mxu0 %v3903
      %3969 = vmatprep.subr.bf16.mxu0 %v3906
      %3970 = vmatpush1.bf16.msra.mxu0 %v3905
      %3971 = vmatprep.subr.bf16.mxu0 %v3908
      %3972 = vmatpush1.bf16.msra.mxu0 %v3907
      %3973 = vmatprep.subr.bf16.mxu0 %v3910
      %3974 = vmatpush1.bf16.msra.mxu0 %v3909
      %3975 = vmatprep.subr.bf16.mxu0 %v3912
      %3976 = vmatpush1.bf16.msra.mxu0 %v3911
      %3977 = vmatprep.subr.bf16.mxu0 %v3914
      %3978 = vmatpush1.bf16.msra.mxu0 %v3913
      %3979 = vmatprep.subr.bf16.mxu0 %v3916
      %3980 = vmatpush1.bf16.msra.mxu0 %v3915
      %3981 = vmatprep.subr.bf16.mxu0 %v3918
      %3982 = vmatpush1.bf16.msra.mxu0 %v3917
      %3983 = vmatprep.subr.bf16.mxu0 %v3920
      %3984 = vmatpush1.bf16.msra.mxu0 %v3919
      %3985 = vmatprep.subr.bf16.mxu0 %v3922
      %3986 = vmatpush1.bf16.msra.mxu0 %v3921
      %3987 = vmatprep.subr.bf16.mxu0 %v3924
      %3988 = vmatpush1.bf16.msra.mxu0 %v3923
      %3989 = vmatprep.subr.bf16.mxu0 %v3926
      %3990 = vmatpush1.bf16.msra.mxu0 %v3925
      %3991 = vmatprep.subr.bf16.mxu0 %v3928
      %3992 = vmatpush1.bf16.msra.mxu0 %v3927
      %3993 = vmatprep.subr.bf16.mxu0 %v3930
      %3994 = vmatpush1.bf16.msra.mxu0 %v3929
      %3995 = vmatprep.subr.bf16.mxu0 %v3932
      %3996 = vmatpush1.bf16.msra.mxu0 %v3931
      %3997 = vmatprep.subr.bf16.mxu0 %v3934
      %3998 = vmatpush1.bf16.msra.mxu0 %v3933
      %3999 = vmatprep.mubr.bf16.mxu0 %v3767
      %4000 = vmatmul.mubr.bf16.gmra.mrb[0].mxu0 %v3766
      %v4001 = vpop.f32.mrb[0].mxu0
      %v4002 = vadd.f32 0.0, %v4001
      %v4003 = vpop.f32.mrb[0].mxu0
      %v4004 = vadd.f32 0.0, %v4003
      %v4005 = vpop.f32.mrb[0].mxu0
      %v4006 = vadd.f32 0.0, %v4005
      %v4007 = vpop.f32.mrb[0].mxu0
      %v4008 = vadd.f32 0.0, %v4007
      %4009 = vmatprep.mubr.bf16.mxu0 %v3769
      %4010 = vmatmul.mubr.bf16.gmra.mrb[0].mxu0 %v3768
      %v4011 = vpop.f32.mrb[0].mxu0
      %v4012 = vadd.f32 0.0, %v4011
      %v4013 = vpop.f32.mrb[0].mxu0
      %v4014 = vadd.f32 0.0, %v4013
      %v4015 = vpop.f32.mrb[0].mxu0
      %v4016 = vadd.f32 0.0, %v4015
      %v4017 = vpop.f32.mrb[0].mxu0
      %v4018 = vadd.f32 0.0, %v4017
      %4019 = vmatprep.mubr.bf16.mxu0 %v3771
      %4020 = vmatmul.mubr.bf16.gmra.mrb[0].mxu0 %v3770
      %v4021 = vpop.f32.mrb[0].mxu0
      %v4022 = vadd.f32 0.0, %v4021
      %v4023 = vpop.f32.mrb[0].mxu0
      %v4024 = vadd.f32 0.0, %v4023
      %v4025 = vpop.f32.mrb[0].mxu0
      %v4026 = vadd.f32 0.0, %v4025
      %v4027 = vpop.f32.mrb[0].mxu0
      %v4028 = vadd.f32 0.0, %v4027
      %4029 = vmatprep.mubr.bf16.mxu0 %v3773
      %4030 = vmatmul.mubr.bf16.gmra.mrb[0].mxu0 %v3772
      %v4031 = vpop.f32.mrb[0].mxu0
      %v4032 = vadd.f32 0.0, %v4031
      %v4033 = vpop.f32.mrb[0].mxu0
      %v4034 = vadd.f32 0.0, %v4033
      %v4035 = vpop.f32.mrb[0].mxu0
      %v4036 = vadd.f32 0.0, %v4035
      %v4037 = vpop.f32.mrb[0].mxu0
      %v4038 = vadd.f32 0.0, %v4037
      %4039 = vdwg.mxu0
      %v4040 = vadd.f32 %v3622, %v4002
      %v4041 = vadd.f32 %v3623, %v4004
      %v4042 = vadd.f32 %v3624, %v4006
      %v4043 = vadd.f32 %v3625, %v4008
      %v4044 = vadd.f32 %v3626, %v4012
      %v4045 = vadd.f32 %v3627, %v4014
      %v4046 = vadd.f32 %v3628, %v4016
      %v4047 = vadd.f32 %v3629, %v4018
      %v4048 = vadd.f32 %v3630, %v4022
      %v4049 = vadd.f32 %v3631, %v4024
      %v4050 = vadd.f32 %v3632, %v4026
      %v4051 = vadd.f32 %v3633, %v4028
      %v4052 = vadd.f32 %v3634, %v4032
      %v4053 = vadd.f32 %v3635, %v4034
      %v4054 = vadd.f32 %v3636, %v4036
      %v4055 = vadd.f32 %v3637, %v4038
      %v4056 = vld [vmem:[%s4] ss:$4 sm:$0x3]
      %v4058 = vlaneseq
      %v4059 = vshrl.u32 %v4058, 7
      %v4060 = vsub.s32 0, %v4059
      %v4061 = vrot.slane %v4056, %v4060
      %v4062 = vlaneseq
      %v4063 = vshrl.u32 %v4062, 7
      %v4064 = vsub.s32 1, %v4063
      %v4065 = vrot.slane %v4056, %v4064
      %v4068 = vadd.f32 %v4040, %v4061
      %v4069 = vadd.f32 %v4041, %v4065
      %v4070 = vadd.f32 %v4042, %v4061
      %v4071 = vadd.f32 %v4043, %v4065
      %v4072 = vadd.f32 %v4044, %v4061
      %v4073 = vadd.f32 %v4045, %v4065
      %v4074 = vadd.f32 %v4046, %v4061
      %v4075 = vadd.f32 %v4047, %v4065
      %v4076 = vadd.f32 %v4048, %v4061
      %v4077 = vadd.f32 %v4049, %v4065
      %v4078 = vadd.f32 %v4050, %v4061
      %v4079 = vadd.f32 %v4051, %v4065
      %v4080 = vadd.f32 %v4052, %v4061
      %v4081 = vadd.f32 %v4053, %v4065
      %v4082 = vadd.f32 %v4054, %v4061
      %v4083 = vadd.f32 %v4055, %v4065
      %v4084 = vmax.f32 %v4068, 0.0
      %v4085 = vmax.f32 %v4069, 0.0
      %v4086 = vmax.f32 %v4070, 0.0
      %v4087 = vmax.f32 %v4071, 0.0
      %v4088 = vmax.f32 %v4072, 0.0
      %v4089 = vmax.f32 %v4073, 0.0
      %v4090 = vmax.f32 %v4074, 0.0
      %v4091 = vmax.f32 %v4075, 0.0
      %v4092 = vmax.f32 %v4076, 0.0
      %v4093 = vmax.f32 %v4077, 0.0
      %v4094 = vmax.f32 %v4078, 0.0
      %v4095 = vmax.f32 %v4079, 0.0
      %v4096 = vmax.f32 %v4080, 0.0
      %v4097 = vmax.f32 %v4081, 0.0
      %v4098 = vmax.f32 %v4082, 0.0
      %v4099 = vmax.f32 %v4083, 0.0
      %s4100 = scalar_lea.vmem %s4, 1
      %v4101 = vld [vmem:[%s4100] ss:$4 sm:$0x3]
      %v4103 = vlaneseq
      %v4104 = vshrl.u32 %v4103, 7
      %v4105 = vsub.s32 0, %v4104
      %v4106 = vrot.slane %v4101, %v4105
      %v4107 = vlaneseq
      %v4108 = vshrl.u32 %v4107, 7
      %v4109 = vsub.s32 1, %v4108
      %v4110 = vrot.slane %v4101, %v4109
      %v4113 = vmul.f32 %v4084, %v4106
      %v4114 = vmul.f32 %v4085, %v4110
      %v4115 = vmul.f32 %v4086, %v4106
      %v4116 = vmul.f32 %v4087, %v4110
      %v4117 = vmul.f32 %v4088, %v4106
      %v4118 = vmul.f32 %v4089, %v4110
      %v4119 = vmul.f32 %v4090, %v4106
      %v4120 = vmul.f32 %v4091, %v4110
      %v4121 = vmul.f32 %v4092, %v4106
      %v4122 = vmul.f32 %v4093, %v4110
      %v4123 = vmul.f32 %v4094, %v4106
      %v4124 = vmul.f32 %v4095, %v4110
      %v4125 = vmul.f32 %v4096, %v4106
      %v4126 = vmul.f32 %v4097, %v4110
      %v4127 = vmul.f32 %v4098, %v4106
      %v4128 = vmul.f32 %v4099, %v4110
      %s4129 = scalar_lea.vmem %s4, 2
      %v4130 = vld [vmem:[%s4129] ss:$4 sm:$0x3]
      %v4132 = vlaneseq
      %v4133 = vshrl.u32 %v4132, 7
      %v4134 = vsub.s32 0, %v4133
      %v4135 = vrot.slane %v4130, %v4134
      %v4136 = vlaneseq
      %v4137 = vshrl.u32 %v4136, 7
      %v4138 = vsub.s32 1, %v4137
      %v4139 = vrot.slane %v4130, %v4138
      %v4142 = vadd.f32 %v4113, %v4135
      %v4143 = vadd.f32 %v4114, %v4139
      %v4144 = vadd.f32 %v4115, %v4135
      %v4145 = vadd.f32 %v4116, %v4139
      %v4146 = vadd.f32 %v4117, %v4135
      %v4147 = vadd.f32 %v4118, %v4139
      %v4148 = vadd.f32 %v4119, %v4135
      %v4149 = vadd.f32 %v4120, %v4139
      %v4150 = vadd.f32 %v4121, %v4135
      %v4151 = vadd.f32 %v4122, %v4139
      %v4152 = vadd.f32 %v4123, %v4135
      %v4153 = vadd.f32 %v4124, %v4139
      %v4154 = vadd.f32 %v4125, %v4135
      %v4155 = vadd.f32 %v4126, %v4139
      %v4156 = vadd.f32 %v4127, %v4135
      %v4157 = vadd.f32 %v4128, %v4139
      %v4174 = vrot.slane %v4142, 7
      %v4175 = vrot.slane %v4143, 7
      %v4176 = vrot.slane %v4144, 7
      %v4177 = vrot.slane %v4145, 7
      %v4178 = vrot.slane %v4146, 7
      %v4179 = vrot.slane %v4147, 7
      %v4180 = vrot.slane %v4148, 7
      %v4181 = vrot.slane %v4149, 7
      %v4182 = vrot.slane %v4150, 7
      %v4183 = vrot.slane %v4151, 7
      %v4184 = vrot.slane %v4152, 7
      %v4185 = vrot.slane %v4153, 7
      %v4186 = vrot.slane %v4154, 7
      %v4187 = vrot.slane %v4155, 7
      %v4188 = vrot.slane %v4156, 7
      %v4189 = vrot.slane %v4157, 7
      %4206 = vst [vmem:[%s627] sm:$0xfe] %v4174
      %4207 = vst [vmem:[%s627 + $0x8] sm:$0xfe] %v4175
      %4208 = vst [vmem:[%s627 + $0x10] sm:$0x1] %v4174
      %4209 = vst [vmem:[%s627 + $0x18] sm:$0x1] %v4175
      %4210 = vst [vmem:[%s627 + $0x20] sm:$0xfe] %v4176
      %4211 = vst [vmem:[%s627 + $0x28] sm:$0xfe] %v4177
      %4212 = vst [vmem:[%s627 + $0x30] sm:$0x1] %v4176
      %4213 = vst [vmem:[%s627 + $0x38] sm:$0x1] %v4177
      %4214 = vst [vmem:[%s627 + $0x40] sm:$0xfe] %v4178
      %4215 = vst [vmem:[%s627 + $0x48] sm:$0xfe] %v4179
      %4216 = vst [vmem:[%s627 + $0x50] sm:$0x1] %v4178
      %4217 = vst [vmem:[%s627 + $0x58] sm:$0x1] %v4179
      %4218 = vst [vmem:[%s627 + $0x60] sm:$0xfe] %v4180
      %4219 = vst [vmem:[%s627 + $0x68] sm:$0xfe] %v4181
      %4220 = vst [vmem:[%s627 + $0x70] sm:$0x1] %v4180
      %4221 = vst [vmem:[%s627 + $0x78] sm:$0x1] %v4181
      %4222 = vst [vmem:[%s627 + $0x80] sm:$0xfe] %v4182
      %4223 = vst [vmem:[%s627 + $0x88] sm:$0xfe] %v4183
      %4224 = vst [vmem:[%s627 + $0x90] sm:$0x1] %v4182
      %4225 = vst [vmem:[%s627 + $0x98] sm:$0x1] %v4183
      %4226 = vst [vmem:[%s627 + $0xa0] sm:$0xfe] %v4184
      %4227 = vst [vmem:[%s627 + $0xa8] sm:$0xfe] %v4185
      %4228 = vst [vmem:[%s627 + $0xb0] sm:$0x1] %v4184
      %4229 = vst [vmem:[%s627 + $0xb8] sm:$0x1] %v4185
      %4230 = vst [vmem:[%s627 + $0xc0] sm:$0xfe] %v4186
      %4231 = vst [vmem:[%s627 + $0xc8] sm:$0xfe] %v4187
      %4232 = vst [vmem:[%s627 + $0xd0] sm:$0x1] %v4186
      %4233 = vst [vmem:[%s627 + $0xd8] sm:$0x1] %v4187
      %4234 = vst [vmem:[%s627 + $0xe0] sm:$0xfe] %v4188
      %4235 = vst [vmem:[%s627 + $0xe8] sm:$0xfe] %v4189
      %4236 = vst [vmem:[%s627 + $0xf0] sm:$0x1] %v4188
      %4237 = vst [vmem:[%s627 + $0xf8] sm:$0x1] %v4189
      %v4238 = vld [vmem:[#allocation2] sm:$0xff]
      %v4239 = vld [vmem:[#allocation2 + $0x8] sm:$0xff]
      %v4240 = vld [vmem:[#allocation2 + $0x20] sm:$0xff]
      %v4241 = vld [vmem:[#allocation2 + $0x28] sm:$0xff]
      %v4242 = vld [vmem:[#allocation2 + $0x40] sm:$0xff]
      %v4243 = vld [vmem:[#allocation2 + $0x48] sm:$0xff]
      %v4244 = vld [vmem:[#allocation2 + $0x60] sm:$0xff]
      %v4245 = vld [vmem:[#allocation2 + $0x68] sm:$0xff]
      %v4246 = vld [vmem:[#allocation2 + $0x80] sm:$0xff]
      %v4247 = vld [vmem:[#allocation2 + $0x88] sm:$0xff]
      %v4248 = vld [vmem:[#allocation2 + $0xa0] sm:$0xff]
      %v4249 = vld [vmem:[#allocation2 + $0xa8] sm:$0xff]
      %v4250 = vld [vmem:[#allocation2 + $0xc0] sm:$0xff]
      %v4251 = vld [vmem:[#allocation2 + $0xc8] sm:$0xff]
      %v4252 = vld [vmem:[#allocation2 + $0xe0] sm:$0xff]
      %v4253 = vld [vmem:[#allocation2 + $0xe8] sm:$0xff]
      %v4254 = vpack.c.bf16 %v4240, %v4238
      %v4255 = vpack.c.bf16 %v4241, %v4239
      %v4256 = vpack.c.bf16 %v4244, %v4242
      %v4257 = vpack.c.bf16 %v4245, %v4243
      %v4258 = vpack.c.bf16 %v4248, %v4246
      %v4259 = vpack.c.bf16 %v4249, %v4247
      %v4260 = vpack.c.bf16 %v4252, %v4250
      %v4261 = vpack.c.bf16 %v4253, %v4251
      %v4262 = vld [vmem:[%s5] sm:$0xff]
      %v4263 = vld [vmem:[%s5 + $0x8] sm:$0xff]
      %v4264 = vld [vmem:[%s5 + $0x10] sm:$0xff]
      %v4265 = vld [vmem:[%s5 + $0x18] sm:$0xff]
      %v4266 = vld [vmem:[%s5 + $0x20] sm:$0xff]
      %v4267 = vld [vmem:[%s5 + $0x28] sm:$0xff]
      %v4268 = vld [vmem:[%s5 + $0x30] sm:$0xff]
      %v4269 = vld [vmem:[%s5 + $0x38] sm:$0xff]
      %v4270 = vld [vmem:[%s5 + $0x40] sm:$0xff]
      %v4271 = vld [vmem:[%s5 + $0x48] sm:$0xff]
      %v4272 = vld [vmem:[%s5 + $0x50] sm:$0xff]
      %v4273 = vld [vmem:[%s5 + $0x58] sm:$0xff]
      %v4274 = vld [vmem:[%s5 + $0x60] sm:$0xff]
      %v4275 = vld [vmem:[%s5 + $0x68] sm:$0xff]
      %v4276 = vld [vmem:[%s5 + $0x70] sm:$0xff]
      %v4277 = vld [vmem:[%s5 + $0x78] sm:$0xff]
      %v4278 = vld [vmem:[%s5 + $0x80] sm:$0xff]
      %v4279 = vld [vmem:[%s5 + $0x88] sm:$0xff]
      %v4280 = vld [vmem:[%s5 + $0x90] sm:$0xff]
      %v4281 = vld [vmem:[%s5 + $0x98] sm:$0xff]
      %v4282 = vld [vmem:[%s5 + $0xa0] sm:$0xff]
      %v4283 = vld [vmem:[%s5 + $0xa8] sm:$0xff]
      %v4284 = vld [vmem:[%s5 + $0xb0] sm:$0xff]
      %v4285 = vld [vmem:[%s5 + $0xb8] sm:$0xff]
      %v4286 = vld [vmem:[%s5 + $0xc0] sm:$0xff]
      %v4287 = vld [vmem:[%s5 + $0xc8] sm:$0xff]
      %v4288 = vld [vmem:[%s5 + $0xd0] sm:$0xff]
      %v4289 = vld [vmem:[%s5 + $0xd8] sm:$0xff]
      %v4290 = vld [vmem:[%s5 + $0xe0] sm:$0xff]
      %v4291 = vld [vmem:[%s5 + $0xe8] sm:$0xff]
      %v4292 = vld [vmem:[%s5 + $0xf0] sm:$0xff]
      %v4293 = vld [vmem:[%s5 + $0xf8] sm:$0xff]
      %v4294 = vld [vmem:[#allocation2] sm:$0xfe]
      %v4295 = vld [vmem:[#allocation2 + $0x8] sm:$0xfe]
      %v4296 = vld [vmem:[#allocation2 + $0x10] sm:$0x1]
      %v4297 = vld [vmem:[#allocation2 + $0x18] sm:$0x1]
      %v4298 = vld [vmem:[#allocation2 + $0x20] sm:$0xfe]
      %v4299 = vld [vmem:[#allocation2 + $0x28] sm:$0xfe]
      %v4300 = vld [vmem:[#allocation2 + $0x30] sm:$0x1]
      %v4301 = vld [vmem:[#allocation2 + $0x38] sm:$0x1]
      %v4302 = vld [vmem:[#allocation2 + $0x40] sm:$0xfe]
      %v4303 = vld [vmem:[#allocation2 + $0x48] sm:$0xfe]
      %v4304 = vld [vmem:[#allocation2 + $0x50] sm:$0x1]
      %v4305 = vld [vmem:[#allocation2 + $0x58] sm:$0x1]
      %v4306 = vld [vmem:[#allocation2 + $0x60] sm:$0xfe]
      %v4307 = vld [vmem:[#allocation2 + $0x68] sm:$0xfe]
      %v4308 = vld [vmem:[#allocation2 + $0x70] sm:$0x1]
      %v4309 = vld [vmem:[#allocation2 + $0x78] sm:$0x1]
      %v4310 = vld [vmem:[#allocation2 + $0x80] sm:$0xfe]
      %v4311 = vld [vmem:[#allocation2 + $0x88] sm:$0xfe]
      %v4312 = vld [vmem:[#allocation2 + $0x90] sm:$0x1]
      %v4313 = vld [vmem:[#allocation2 + $0x98] sm:$0x1]
      %v4314 = vld [vmem:[#allocation2 + $0xa0] sm:$0xfe]
      %v4315 = vld [vmem:[#allocation2 + $0xa8] sm:$0xfe]
      %v4316 = vld [vmem:[#allocation2 + $0xb0] sm:$0x1]
      %v4317 = vld [vmem:[#allocation2 + $0xb8] sm:$0x1]
      %v4318 = vld [vmem:[#allocation2 + $0xc0] sm:$0xfe]
      %v4319 = vld [vmem:[#allocation2 + $0xc8] sm:$0xfe]
      %v4320 = vld [vmem:[#allocation2 + $0xd0] sm:$0x1]
      %v4321 = vld [vmem:[#allocation2 + $0xd8] sm:$0x1]
      %v4322 = vld [vmem:[#allocation2 + $0xe0] sm:$0xfe]
      %v4323 = vld [vmem:[#allocation2 + $0xe8] sm:$0xfe]
      %v4324 = vld [vmem:[#allocation2 + $0xf0] sm:$0x1]
      %v4325 = vld [vmem:[#allocation2 + $0xf8] sm:$0x1]
      %v4358 = vrot.slane %v4294, 1
      %v4359 = vrot.slane %v4296, 1
      %v4360 = vsel %vm780, %v4358, %v4359
      %v4361 = vrot.slane %v4295, 1
      %v4362 = vrot.slane %v4297, 1
      %v4363 = vsel %vm780, %v4361, %v4362
      %v4364 = vrot.slane %v4298, 1
      %v4365 = vrot.slane %v4300, 1
      %v4366 = vsel %vm780, %v4364, %v4365
      %v4367 = vrot.slane %v4299, 1
      %v4368 = vrot.slane %v4301, 1
      %v4369 = vsel %vm780, %v4367, %v4368
      %v4370 = vrot.slane %v4302, 1
      %v4371 = vrot.slane %v4304, 1
      %v4372 = vsel %vm780, %v4370, %v4371
      %v4373 = vrot.slane %v4303, 1
      %v4374 = vrot.slane %v4305, 1
      %v4375 = vsel %vm780, %v4373, %v4374
      %v4376 = vrot.slane %v4306, 1
      %v4377 = vrot.slane %v4308, 1
      %v4378 = vsel %vm780, %v4376, %v4377
      %v4379 = vrot.slane %v4307, 1
      %v4380 = vrot.slane %v4309, 1
      %v4381 = vsel %vm780, %v4379, %v4380
      %v4382 = vrot.slane %v4310, 1
      %v4383 = vrot.slane %v4312, 1
      %v4384 = vsel %vm780, %v4382, %v4383
      %v4385 = vrot.slane %v4311, 1
      %v4386 = vrot.slane %v4313, 1
      %v4387 = vsel %vm780, %v4385, %v4386
      %v4388 = vrot.slane %v4314, 1
      %v4389 = vrot.slane %v4316, 1
      %v4390 = vsel %vm780, %v4388, %v4389
      %v4391 = vrot.slane %v4315, 1
      %v4392 = vrot.slane %v4317, 1
      %v4393 = vsel %vm780, %v4391, %v4392
      %v4394 = vrot.slane %v4318, 1
      %v4395 = vrot.slane %v4320, 1
      %v4396 = vsel %vm780, %v4394, %v4395
      %v4397 = vrot.slane %v4319, 1
      %v4398 = vrot.slane %v4321, 1
      %v4399 = vsel %vm780, %v4397, %v4398
      %v4400 = vrot.slane %v4322, 1
      %v4401 = vrot.slane %v4324, 1
      %v4402 = vsel %vm780, %v4400, %v4401
      %v4403 = vrot.slane %v4323, 1
      %v4404 = vrot.slane %v4325, 1
      %v4405 = vsel %vm780, %v4403, %v4404
      %v4422 = vpack.c.bf16 %v4366, %v4360
      %v4423 = vpack.c.bf16 %v4369, %v4363
      %v4424 = vpack.c.bf16 %v4378, %v4372
      %v4425 = vpack.c.bf16 %v4381, %v4375
      %v4426 = vpack.c.bf16 %v4390, %v4384
      %v4427 = vpack.c.bf16 %v4393, %v4387
      %v4428 = vpack.c.bf16 %v4402, %v4396
      %v4429 = vpack.c.bf16 %v4405, %v4399
      %s4430 = scalar_lea.vmem %s5, 256
      %v4431 = vld [vmem:[%s4430] sm:$0xff]
      %v4432 = vld [vmem:[%s4430 + $0x8] sm:$0xff]
      %v4433 = vld [vmem:[%s4430 + $0x10] sm:$0xff]
      %v4434 = vld [vmem:[%s4430 + $0x18] sm:$0xff]
      %v4435 = vld [vmem:[%s4430 + $0x20] sm:$0xff]
      %v4436 = vld [vmem:[%s4430 + $0x28] sm:$0xff]
      %v4437 = vld [vmem:[%s4430 + $0x30] sm:$0xff]
      %v4438 = vld [vmem:[%s4430 + $0x38] sm:$0xff]
      %v4439 = vld [vmem:[%s4430 + $0x40] sm:$0xff]
      %v4440 = vld [vmem:[%s4430 + $0x48] sm:$0xff]
      %v4441 = vld [vmem:[%s4430 + $0x50] sm:$0xff]
      %v4442 = vld [vmem:[%s4430 + $0x58] sm:$0xff]
      %v4443 = vld [vmem:[%s4430 + $0x60] sm:$0xff]
      %v4444 = vld [vmem:[%s4430 + $0x68] sm:$0xff]
      %v4445 = vld [vmem:[%s4430 + $0x70] sm:$0xff]
      %v4446 = vld [vmem:[%s4430 + $0x78] sm:$0xff]
      %v4447 = vld [vmem:[%s4430 + $0x80] sm:$0xff]
      %v4448 = vld [vmem:[%s4430 + $0x88] sm:$0xff]
      %v4449 = vld [vmem:[%s4430 + $0x90] sm:$0xff]
      %v4450 = vld [vmem:[%s4430 + $0x98] sm:$0xff]
      %v4451 = vld [vmem:[%s4430 + $0xa0] sm:$0xff]
      %v4452 = vld [vmem:[%s4430 + $0xa8] sm:$0xff]
      %v4453 = vld [vmem:[%s4430 + $0xb0] sm:$0xff]
      %v4454 = vld [vmem:[%s4430 + $0xb8] sm:$0xff]
      %v4455 = vld [vmem:[%s4430 + $0xc0] sm:$0xff]
      %v4456 = vld [vmem:[%s4430 + $0xc8] sm:$0xff]
      %v4457 = vld [vmem:[%s4430 + $0xd0] sm:$0xff]
      %v4458 = vld [vmem:[%s4430 + $0xd8] sm:$0xff]
      %v4459 = vld [vmem:[%s4430 + $0xe0] sm:$0xff]
      %v4460 = vld [vmem:[%s4430 + $0xe8] sm:$0xff]
      %v4461 = vld [vmem:[%s4430 + $0xf0] sm:$0xff]
      %v4462 = vld [vmem:[%s4430 + $0xf8] sm:$0xff]
      %v4495 = vunpack.c.l.b16 %v4431
      %v4496 = vunpack.c.h.b16 %v4431
      %v4497 = vunpack.c.l.b16 %v4432
      %v4498 = vunpack.c.h.b16 %v4432
      %v4499 = vunpack.c.l.b16 %v4433
      %v4500 = vunpack.c.h.b16 %v4433
      %v4501 = vunpack.c.l.b16 %v4434
      %v4502 = vunpack.c.h.b16 %v4434
      %v4503 = vunpack.c.l.b16 %v4435
      %v4504 = vunpack.c.h.b16 %v4435
      %v4505 = vunpack.c.l.b16 %v4436
      %v4506 = vunpack.c.h.b16 %v4436
      %v4507 = vunpack.c.l.b16 %v4437
      %v4508 = vunpack.c.h.b16 %v4437
      %v4509 = vunpack.c.l.b16 %v4438
      %v4510 = vunpack.c.h.b16 %v4438
      %v4511 = vunpack.c.l.b16 %v4439
      %v4512 = vunpack.c.h.b16 %v4439
      %v4513 = vunpack.c.l.b16 %v4440
      %v4514 = vunpack.c.h.b16 %v4440
      %v4515 = vunpack.c.l.b16 %v4441
      %v4516 = vunpack.c.h.b16 %v4441
      %v4517 = vunpack.c.l.b16 %v4442
      %v4518 = vunpack.c.h.b16 %v4442
      %v4519 = vunpack.c.l.b16 %v4443
      %v4520 = vunpack.c.h.b16 %v4443
      %v4521 = vunpack.c.l.b16 %v4444
      %v4522 = vunpack.c.h.b16 %v4444
      %v4523 = vunpack.c.l.b16 %v4445
      %v4524 = vunpack.c.h.b16 %v4445
      %v4525 = vunpack.c.l.b16 %v4446
      %v4526 = vunpack.c.h.b16 %v4446
      %v4527 = vunpack.c.l.b16 %v4447
      %v4528 = vunpack.c.h.b16 %v4447
      %v4529 = vunpack.c.l.b16 %v4448
      %v4530 = vunpack.c.h.b16 %v4448
      %v4531 = vunpack.c.l.b16 %v4449
      %v4532 = vunpack.c.h.b16 %v4449
      %v4533 = vunpack.c.l.b16 %v4450
      %v4534 = vunpack.c.h.b16 %v4450
      %v4535 = vunpack.c.l.b16 %v4451
      %v4536 = vunpack.c.h.b16 %v4451
      %v4537 = vunpack.c.l.b16 %v4452
      %v4538 = vunpack.c.h.b16 %v4452
      %v4539 = vunpack.c.l.b16 %v4453
      %v4540 = vunpack.c.h.b16 %v4453
      %v4541 = vunpack.c.l.b16 %v4454
      %v4542 = vunpack.c.h.b16 %v4454
      %v4543 = vunpack.c.l.b16 %v4455
      %v4544 = vunpack.c.h.b16 %v4455
      %v4545 = vunpack.c.l.b16 %v4456
      %v4546 = vunpack.c.h.b16 %v4456
      %v4547 = vunpack.c.l.b16 %v4457
      %v4548 = vunpack.c.h.b16 %v4457
      %v4549 = vunpack.c.l.b16 %v4458
      %v4550 = vunpack.c.h.b16 %v4458
      %v4551 = vunpack.c.l.b16 %v4459
      %v4552 = vunpack.c.h.b16 %v4459
      %v4553 = vunpack.c.l.b16 %v4460
      %v4554 = vunpack.c.h.b16 %v4460
      %v4555 = vunpack.c.l.b16 %v4461
      %v4556 = vunpack.c.h.b16 %v4461
      %v4557 = vunpack.c.l.b16 %v4462
      %v4558 = vunpack.c.h.b16 %v4462
      %v4559 = vpack.c.b16 %v4497, %v4495
      %v4560 = vpack.c.b16 %v4498, %v4496
      %v4561 = vpack.c.b16 %v4501, %v4499
      %v4562 = vpack.c.b16 %v4502, %v4500
      %v4563 = vpack.c.b16 %v4505, %v4503
      %v4564 = vpack.c.b16 %v4506, %v4504
      %v4565 = vpack.c.b16 %v4509, %v4507
      %v4566 = vpack.c.b16 %v4510, %v4508
      %v4567 = vpack.c.b16 %v4513, %v4511
      %v4568 = vpack.c.b16 %v4514, %v4512
      %v4569 = vpack.c.b16 %v4517, %v4515
      %v4570 = vpack.c.b16 %v4518, %v4516
      %v4571 = vpack.c.b16 %v4521, %v4519
      %v4572 = vpack.c.b16 %v4522, %v4520
      %v4573 = vpack.c.b16 %v4525, %v4523
      %v4574 = vpack.c.b16 %v4526, %v4524
      %v4575 = vpack.c.b16 %v4529, %v4527
      %v4576 = vpack.c.b16 %v4530, %v4528
      %v4577 = vpack.c.b16 %v4533, %v4531
      %v4578 = vpack.c.b16 %v4534, %v4532
      %v4579 = vpack.c.b16 %v4537, %v4535
      %v4580 = vpack.c.b16 %v4538, %v4536
      %v4581 = vpack.c.b16 %v4541, %v4539
      %v4582 = vpack.c.b16 %v4542, %v4540
      %v4583 = vpack.c.b16 %v4545, %v4543
      %v4584 = vpack.c.b16 %v4546, %v4544
      %v4585 = vpack.c.b16 %v4549, %v4547
      %v4586 = vpack.c.b16 %v4550, %v4548
      %v4587 = vpack.c.b16 %v4553, %v4551
      %v4588 = vpack.c.b16 %v4554, %v4552
      %v4589 = vpack.c.b16 %v4557, %v4555
      %v4590 = vpack.c.b16 %v4558, %v4556
      %4623 = vmatprep.subr.bf16.mxu0 %v4560
      %4624 = vmatpush1.bf16.msra.mxu0 %v4559
      %4625 = vmatprep.subr.bf16.mxu0 %v4562
      %4626 = vmatpush1.bf16.msra.mxu0 %v4561
      %4627 = vmatprep.subr.bf16.mxu0 %v4564
      %4628 = vmatpush1.bf16.msra.mxu0 %v4563
      %4629 = vmatprep.subr.bf16.mxu0 %v4566
      %4630 = vmatpush1.bf16.msra.mxu0 %v4565
      %4631 = vmatprep.subr.bf16.mxu0 %v4568
      %4632 = vmatpush1.bf16.msra.mxu0 %v4567
      %4633 = vmatprep.subr.bf16.mxu0 %v4570
      %4634 = vmatpush1.bf16.msra.mxu0 %v4569
      %4635 = vmatprep.subr.bf16.mxu0 %v4572
      %4636 = vmatpush1.bf16.msra.mxu0 %v4571
      %4637 = vmatprep.subr.bf16.mxu0 %v4574
      %4638 = vmatpush1.bf16.msra.mxu0 %v4573
      %4639 = vmatprep.subr.bf16.mxu0 %v4576
      %4640 = vmatpush1.bf16.msra.mxu0 %v4575
      %4641 = vmatprep.subr.bf16.mxu0 %v4578
      %4642 = vmatpush1.bf16.msra.mxu0 %v4577
      %4643 = vmatprep.subr.bf16.mxu0 %v4580
      %4644 = vmatpush1.bf16.msra.mxu0 %v4579
      %4645 = vmatprep.subr.bf16.mxu0 %v4582
      %4646 = vmatpush1.bf16.msra.mxu0 %v4581
      %4647 = vmatprep.subr.bf16.mxu0 %v4584
      %4648 = vmatpush1.bf16.msra.mxu0 %v4583
      %4649 = vmatprep.subr.bf16.mxu0 %v4586
      %4650 = vmatpush1.bf16.msra.mxu0 %v4585
      %4651 = vmatprep.subr.bf16.mxu0 %v4588
      %4652 = vmatpush1.bf16.msra.mxu0 %v4587
      %4653 = vmatprep.subr.bf16.mxu0 %v4590
      %4654 = vmatpush1.bf16.msra.mxu0 %v4589
      %4655 = vmatprep.mubr.bf16.mxu0 %v4423
      %4656 = vmatmul.mubr.bf16.gmra.mrb[0].mxu0 %v4422
      %v4657 = vpop.f32.mrb[0].mxu0
      %v4658 = vadd.f32 0.0, %v4657
      %v4659 = vpop.f32.mrb[0].mxu0
      %v4660 = vadd.f32 0.0, %v4659
      %v4661 = vpop.f32.mrb[0].mxu0
      %v4662 = vadd.f32 0.0, %v4661
      %v4663 = vpop.f32.mrb[0].mxu0
      %v4664 = vadd.f32 0.0, %v4663
      %4665 = vmatprep.mubr.bf16.mxu0 %v4425
      %4666 = vmatmul.mubr.bf16.gmra.mrb[0].mxu0 %v4424
      %v4667 = vpop.f32.mrb[0].mxu0
      %v4668 = vadd.f32 0.0, %v4667
      %v4669 = vpop.f32.mrb[0].mxu0
      %v4670 = vadd.f32 0.0, %v4669
      %v4671 = vpop.f32.mrb[0].mxu0
      %v4672 = vadd.f32 0.0, %v4671
      %v4673 = vpop.f32.mrb[0].mxu0
      %v4674 = vadd.f32 0.0, %v4673
      %4675 = vmatprep.mubr.bf16.mxu0 %v4427
      %4676 = vmatmul.mubr.bf16.gmra.mrb[0].mxu0 %v4426
      %v4677 = vpop.f32.mrb[0].mxu0
      %v4678 = vadd.f32 0.0, %v4677
      %v4679 = vpop.f32.mrb[0].mxu0
      %v4680 = vadd.f32 0.0, %v4679
      %v4681 = vpop.f32.mrb[0].mxu0
      %v4682 = vadd.f32 0.0, %v4681
      %v4683 = vpop.f32.mrb[0].mxu0
      %v4684 = vadd.f32 0.0, %v4683
      %4685 = vmatprep.mubr.bf16.mxu0 %v4429
      %4686 = vmatmul.mubr.bf16.gmra.mrb[0].mxu0 %v4428
      %v4687 = vpop.f32.mrb[0].mxu0
      %v4688 = vadd.f32 0.0, %v4687
      %v4689 = vpop.f32.mrb[0].mxu0
      %v4690 = vadd.f32 0.0, %v4689
      %v4691 = vpop.f32.mrb[0].mxu0
      %v4692 = vadd.f32 0.0, %v4691
      %v4693 = vpop.f32.mrb[0].mxu0
      %v4694 = vadd.f32 0.0, %v4693
      %4695 = vdwg.mxu0
      %v4728 = vunpack.c.l.b16 %v4262
      %v4729 = vunpack.c.h.b16 %v4262
      %v4730 = vunpack.c.l.b16 %v4263
      %v4731 = vunpack.c.h.b16 %v4263
      %v4732 = vunpack.c.l.b16 %v4264
      %v4733 = vunpack.c.h.b16 %v4264
      %v4734 = vunpack.c.l.b16 %v4265
      %v4735 = vunpack.c.h.b16 %v4265
      %v4736 = vunpack.c.l.b16 %v4266
      %v4737 = vunpack.c.h.b16 %v4266
      %v4738 = vunpack.c.l.b16 %v4267
      %v4739 = vunpack.c.h.b16 %v4267
      %v4740 = vunpack.c.l.b16 %v4268
      %v4741 = vunpack.c.h.b16 %v4268
      %v4742 = vunpack.c.l.b16 %v4269
      %v4743 = vunpack.c.h.b16 %v4269
      %v4744 = vunpack.c.l.b16 %v4270
      %v4745 = vunpack.c.h.b16 %v4270
      %v4746 = vunpack.c.l.b16 %v4271
      %v4747 = vunpack.c.h.b16 %v4271
      %v4748 = vunpack.c.l.b16 %v4272
      %v4749 = vunpack.c.h.b16 %v4272
      %v4750 = vunpack.c.l.b16 %v4273
      %v4751 = vunpack.c.h.b16 %v4273
      %v4752 = vunpack.c.l.b16 %v4274
      %v4753 = vunpack.c.h.b16 %v4274
      %v4754 = vunpack.c.l.b16 %v4275
      %v4755 = vunpack.c.h.b16 %v4275
      %v4756 = vunpack.c.l.b16 %v4276
      %v4757 = vunpack.c.h.b16 %v4276
      %v4758 = vunpack.c.l.b16 %v4277
      %v4759 = vunpack.c.h.b16 %v4277
      %v4760 = vunpack.c.l.b16 %v4278
      %v4761 = vunpack.c.h.b16 %v4278
      %v4762 = vunpack.c.l.b16 %v4279
      %v4763 = vunpack.c.h.b16 %v4279
      %v4764 = vunpack.c.l.b16 %v4280
      %v4765 = vunpack.c.h.b16 %v4280
      %v4766 = vunpack.c.l.b16 %v4281
      %v4767 = vunpack.c.h.b16 %v4281
      %v4768 = vunpack.c.l.b16 %v4282
      %v4769 = vunpack.c.h.b16 %v4282
      %v4770 = vunpack.c.l.b16 %v4283
      %v4771 = vunpack.c.h.b16 %v4283
      %v4772 = vunpack.c.l.b16 %v4284
      %v4773 = vunpack.c.h.b16 %v4284
      %v4774 = vunpack.c.l.b16 %v4285
      %v4775 = vunpack.c.h.b16 %v4285
      %v4776 = vunpack.c.l.b16 %v4286
      %v4777 = vunpack.c.h.b16 %v4286
      %v4778 = vunpack.c.l.b16 %v4287
      %v4779 = vunpack.c.h.b16 %v4287
      %v4780 = vunpack.c.l.b16 %v4288
      %v4781 = vunpack.c.h.b16 %v4288
      %v4782 = vunpack.c.l.b16 %v4289
      %v4783 = vunpack.c.h.b16 %v4289
      %v4784 = vunpack.c.l.b16 %v4290
      %v4785 = vunpack.c.h.b16 %v4290
      %v4786 = vunpack.c.l.b16 %v4291
      %v4787 = vunpack.c.h.b16 %v4291
      %v4788 = vunpack.c.l.b16 %v4292
      %v4789 = vunpack.c.h.b16 %v4292
      %v4790 = vunpack.c.l.b16 %v4293
      %v4791 = vunpack.c.h.b16 %v4293
      %v4792 = vpack.c.b16 %v4730, %v4728
      %v4793 = vpack.c.b16 %v4731, %v4729
      %v4794 = vpack.c.b16 %v4734, %v4732
      %v4795 = vpack.c.b16 %v4735, %v4733
      %v4796 = vpack.c.b16 %v4738, %v4736
      %v4797 = vpack.c.b16 %v4739, %v4737
      %v4798 = vpack.c.b16 %v4742, %v4740
      %v4799 = vpack.c.b16 %v4743, %v4741
      %v4800 = vpack.c.b16 %v4746, %v4744
      %v4801 = vpack.c.b16 %v4747, %v4745
      %v4802 = vpack.c.b16 %v4750, %v4748
      %v4803 = vpack.c.b16 %v4751, %v4749
      %v4804 = vpack.c.b16 %v4754, %v4752
      %v4805 = vpack.c.b16 %v4755, %v4753
      %v4806 = vpack.c.b16 %v4758, %v4756
      %v4807 = vpack.c.b16 %v4759, %v4757
      %v4808 = vpack.c.b16 %v4762, %v4760
      %v4809 = vpack.c.b16 %v4763, %v4761
      %v4810 = vpack.c.b16 %v4766, %v4764
      %v4811 = vpack.c.b16 %v4767, %v4765
      %v4812 = vpack.c.b16 %v4770, %v4768
      %v4813 = vpack.c.b16 %v4771, %v4769
      %v4814 = vpack.c.b16 %v4774, %v4772
      %v4815 = vpack.c.b16 %v4775, %v4773
      %v4816 = vpack.c.b16 %v4778, %v4776
      %v4817 = vpack.c.b16 %v4779, %v4777
      %v4818 = vpack.c.b16 %v4782, %v4780
      %v4819 = vpack.c.b16 %v4783, %v4781
      %v4820 = vpack.c.b16 %v4786, %v4784
      %v4821 = vpack.c.b16 %v4787, %v4785
      %v4822 = vpack.c.b16 %v4790, %v4788
      %v4823 = vpack.c.b16 %v4791, %v4789
      %4856 = vmatprep.subr.bf16.mxu0 %v4793
      %4857 = vmatpush1.bf16.msra.mxu0 %v4792
      %4858 = vmatprep.subr.bf16.mxu0 %v4795
      %4859 = vmatpush1.bf16.msra.mxu0 %v4794
      %4860 = vmatprep.subr.bf16.mxu0 %v4797
      %4861 = vmatpush1.bf16.msra.mxu0 %v4796
      %4862 = vmatprep.subr.bf16.mxu0 %v4799
      %4863 = vmatpush1.bf16.msra.mxu0 %v4798
      %4864 = vmatprep.subr.bf16.mxu0 %v4801
      %4865 = vmatpush1.bf16.msra.mxu0 %v4800
      %4866 = vmatprep.subr.bf16.mxu0 %v4803
      %4867 = vmatpush1.bf16.msra.mxu0 %v4802
      %4868 = vmatprep.subr.bf16.mxu0 %v4805
      %4869 = vmatpush1.bf16.msra.mxu0 %v4804
      %4870 = vmatprep.subr.bf16.mxu0 %v4807
      %4871 = vmatpush1.bf16.msra.mxu0 %v4806
      %4872 = vmatprep.subr.bf16.mxu0 %v4809
      %4873 = vmatpush1.bf16.msra.mxu0 %v4808
      %4874 = vmatprep.subr.bf16.mxu0 %v4811
      %4875 = vmatpush1.bf16.msra.mxu0 %v4810
      %4876 = vmatprep.subr.bf16.mxu0 %v4813
      %4877 = vmatpush1.bf16.msra.mxu0 %v4812
      %4878 = vmatprep.subr.bf16.mxu0 %v4815
      %4879 = vmatpush1.bf16.msra.mxu0 %v4814
      %4880 = vmatprep.subr.bf16.mxu0 %v4817
      %4881 = vmatpush1.bf16.msra.mxu0 %v4816
      %4882 = vmatprep.subr.bf16.mxu0 %v4819
      %4883 = vmatpush1.bf16.msra.mxu0 %v4818
      %4884 = vmatprep.subr.bf16.mxu0 %v4821
      %4885 = vmatpush1.bf16.msra.mxu0 %v4820
      %4886 = vmatprep.subr.bf16.mxu0 %v4823
      %4887 = vmatpush1.bf16.msra.mxu0 %v4822
      %4888 = vmatprep.mubr.bf16.mxu0 %v4255
      %4889 = vmatmul.mubr.bf16.gmra.mrb[0].mxu0 %v4254
      %v4890 = vpop.f32.mrb[0].mxu0
      %v4891 = vadd.f32 %v4658, %v4890
      %v4892 = vpop.f32.mrb[0].mxu0
      %v4893 = vadd.f32 %v4660, %v4892
      %v4894 = vpop.f32.mrb[0].mxu0
      %v4895 = vadd.f32 %v4662, %v4894
      %v4896 = vpop.f32.mrb[0].mxu0
      %v4897 = vadd.f32 %v4664, %v4896
      %4898 = vmatprep.mubr.bf16.mxu0 %v4257
      %4899 = vmatmul.mubr.bf16.gmra.mrb[0].mxu0 %v4256
      %v4900 = vpop.f32.mrb[0].mxu0
      %v4901 = vadd.f32 %v4668, %v4900
      %v4902 = vpop.f32.mrb[0].mxu0
      %v4903 = vadd.f32 %v4670, %v4902
      %v4904 = vpop.f32.mrb[0].mxu0
      %v4905 = vadd.f32 %v4672, %v4904
      %v4906 = vpop.f32.mrb[0].mxu0
      %v4907 = vadd.f32 %v4674, %v4906
      %4908 = vmatprep.mubr.bf16.mxu0 %v4259
      %4909 = vmatmul.mubr.bf16.gmra.mrb[0].mxu0 %v4258
      %v4910 = vpop.f32.mrb[0].mxu0
      %v4911 = vadd.f32 %v4678, %v4910
      %v4912 = vpop.f32.mrb[0].mxu0
      %v4913 = vadd.f32 %v4680, %v4912
      %v4914 = vpop.f32.mrb[0].mxu0
      %v4915 = vadd.f32 %v4682, %v4914
      %v4916 = vpop.f32.mrb[0].mxu0
      %v4917 = vadd.f32 %v4684, %v4916
      %4918 = vmatprep.mubr.bf16.mxu0 %v4261
      %4919 = vmatmul.mubr.bf16.gmra.mrb[0].mxu0 %v4260
      %v4920 = vpop.f32.mrb[0].mxu0
      %v4921 = vadd.f32 %v4688, %v4920
      %v4922 = vpop.f32.mrb[0].mxu0
      %v4923 = vadd.f32 %v4690, %v4922
      %v4924 = vpop.f32.mrb[0].mxu0
      %v4925 = vadd.f32 %v4692, %v4924
      %v4926 = vpop.f32.mrb[0].mxu0
      %v4927 = vadd.f32 %v4694, %v4926
      %4928 = vdwg.mxu0
      %v4929 = vld [vmem:[#allocation2] sm:$0xfc]
      %v4930 = vld [vmem:[#allocation2 + $0x8] sm:$0xfc]
      %v4931 = vld [vmem:[#allocation2 + $0x10] sm:$0x3]
      %v4932 = vld [vmem:[#allocation2 + $0x18] sm:$0x3]
      %v4933 = vld [vmem:[#allocation2 + $0x20] sm:$0xfc]
      %v4934 = vld [vmem:[#allocation2 + $0x28] sm:$0xfc]
      %v4935 = vld [vmem:[#allocation2 + $0x30] sm:$0x3]
      %v4936 = vld [vmem:[#allocation2 + $0x38] sm:$0x3]
      %v4937 = vld [vmem:[#allocation2 + $0x40] sm:$0xfc]
      %v4938 = vld [vmem:[#allocation2 + $0x48] sm:$0xfc]
      %v4939 = vld [vmem:[#allocation2 + $0x50] sm:$0x3]
      %v4940 = vld [vmem:[#allocation2 + $0x58] sm:$0x3]
      %v4941 = vld [vmem:[#allocation2 + $0x60] sm:$0xfc]
      %v4942 = vld [vmem:[#allocation2 + $0x68] sm:$0xfc]
      %v4943 = vld [vmem:[#allocation2 + $0x70] sm:$0x3]
      %v4944 = vld [vmem:[#allocation2 + $0x78] sm:$0x3]
      %v4945 = vld [vmem:[#allocation2 + $0x80] sm:$0xfc]
      %v4946 = vld [vmem:[#allocation2 + $0x88] sm:$0xfc]
      %v4947 = vld [vmem:[#allocation2 + $0x90] sm:$0x3]
      %v4948 = vld [vmem:[#allocation2 + $0x98] sm:$0x3]
      %v4949 = vld [vmem:[#allocation2 + $0xa0] sm:$0xfc]
      %v4950 = vld [vmem:[#allocation2 + $0xa8] sm:$0xfc]
      %v4951 = vld [vmem:[#allocation2 + $0xb0] sm:$0x3]
      %v4952 = vld [vmem:[#allocation2 + $0xb8] sm:$0x3]
      %v4953 = vld [vmem:[#allocation2 + $0xc0] sm:$0xfc]
      %v4954 = vld [vmem:[#allocation2 + $0xc8] sm:$0xfc]
      %v4955 = vld [vmem:[#allocation2 + $0xd0] sm:$0x3]
      %v4956 = vld [vmem:[#allocation2 + $0xd8] sm:$0x3]
      %v4957 = vld [vmem:[#allocation2 + $0xe0] sm:$0xfc]
      %v4958 = vld [vmem:[#allocation2 + $0xe8] sm:$0xfc]
      %v4959 = vld [vmem:[#allocation2 + $0xf0] sm:$0x3]
      %v4960 = vld [vmem:[#allocation2 + $0xf8] sm:$0x3]
      %v4993 = vrot.slane %v4929, 2
      %v4994 = vrot.slane %v4931, 2
      %v4995 = vsel %vm1416, %v4993, %v4994
      %v4996 = vrot.slane %v4930, 2
      %v4997 = vrot.slane %v4932, 2
      %v4998 = vsel %vm1416, %v4996, %v4997
      %v4999 = vrot.slane %v4933, 2
      %v5000 = vrot.slane %v4935, 2
      %v5001 = vsel %vm1416, %v4999, %v5000
      %v5002 = vrot.slane %v4934, 2
      %v5003 = vrot.slane %v4936, 2
      %v5004 = vsel %vm1416, %v5002, %v5003
      %v5005 = vrot.slane %v4937, 2
      %v5006 = vrot.slane %v4939, 2
      %v5007 = vsel %vm1416, %v5005, %v5006
      %v5008 = vrot.slane %v4938, 2
      %v5009 = vrot.slane %v4940, 2
      %v5010 = vsel %vm1416, %v5008, %v5009
      %v5011 = vrot.slane %v4941, 2
      %v5012 = vrot.slane %v4943, 2
      %v5013 = vsel %vm1416, %v5011, %v5012
      %v5014 = vrot.slane %v4942, 2
      %v5015 = vrot.slane %v4944, 2
      %v5016 = vsel %vm1416, %v5014, %v5015
      %v5017 = vrot.slane %v4945, 2
      %v5018 = vrot.slane %v4947, 2
      %v5019 = vsel %vm1416, %v5017, %v5018
      %v5020 = vrot.slane %v4946, 2
      %v5021 = vrot.slane %v4948, 2
      %v5022 = vsel %vm1416, %v5020, %v5021
      %v5023 = vrot.slane %v4949, 2
      %v5024 = vrot.slane %v4951, 2
      %v5025 = vsel %vm1416, %v5023, %v5024
      %v5026 = vrot.slane %v4950, 2
      %v5027 = vrot.slane %v4952, 2
      %v5028 = vsel %vm1416, %v5026, %v5027
      %v5029 = vrot.slane %v4953, 2
      %v5030 = vrot.slane %v4955, 2
      %v5031 = vsel %vm1416, %v5029, %v5030
      %v5032 = vrot.slane %v4954, 2
      %v5033 = vrot.slane %v4956, 2
      %v5034 = vsel %vm1416, %v5032, %v5033
      %v5035 = vrot.slane %v4957, 2
      %v5036 = vrot.slane %v4959, 2
      %v5037 = vsel %vm1416, %v5035, %v5036
      %v5038 = vrot.slane %v4958, 2
      %v5039 = vrot.slane %v4960, 2
      %v5040 = vsel %vm1416, %v5038, %v5039
      %v5057 = vpack.c.bf16 %v5001, %v4995
      %v5058 = vpack.c.bf16 %v5004, %v4998
      %v5059 = vpack.c.bf16 %v5013, %v5007
      %v5060 = vpack.c.bf16 %v5016, %v5010
      %v5061 = vpack.c.bf16 %v5025, %v5019
      %v5062 = vpack.c.bf16 %v5028, %v5022
      %v5063 = vpack.c.bf16 %v5037, %v5031
      %v5064 = vpack.c.bf16 %v5040, %v5034
      %s5065 = scalar_lea.vmem %s5, 512
      %v5066 = vld [vmem:[%s5065] sm:$0xff]
      %v5067 = vld [vmem:[%s5065 + $0x8] sm:$0xff]
      %v5068 = vld [vmem:[%s5065 + $0x10] sm:$0xff]
      %v5069 = vld [vmem:[%s5065 + $0x18] sm:$0xff]
      %v5070 = vld [vmem:[%s5065 + $0x20] sm:$0xff]
      %v5071 = vld [vmem:[%s5065 + $0x28] sm:$0xff]
      %v5072 = vld [vmem:[%s5065 + $0x30] sm:$0xff]
      %v5073 = vld [vmem:[%s5065 + $0x38] sm:$0xff]
      %v5074 = vld [vmem:[%s5065 + $0x40] sm:$0xff]
      %v5075 = vld [vmem:[%s5065 + $0x48] sm:$0xff]
      %v5076 = vld [vmem:[%s5065 + $0x50] sm:$0xff]
      %v5077 = vld [vmem:[%s5065 + $0x58] sm:$0xff]
      %v5078 = vld [vmem:[%s5065 + $0x60] sm:$0xff]
      %v5079 = vld [vmem:[%s5065 + $0x68] sm:$0xff]
      %v5080 = vld [vmem:[%s5065 + $0x70] sm:$0xff]
      %v5081 = vld [vmem:[%s5065 + $0x78] sm:$0xff]
      %v5082 = vld [vmem:[%s5065 + $0x80] sm:$0xff]
      %v5083 = vld [vmem:[%s5065 + $0x88] sm:$0xff]
      %v5084 = vld [vmem:[%s5065 + $0x90] sm:$0xff]
      %v5085 = vld [vmem:[%s5065 + $0x98] sm:$0xff]
      %v5086 = vld [vmem:[%s5065 + $0xa0] sm:$0xff]
      %v5087 = vld [vmem:[%s5065 + $0xa8] sm:$0xff]
      %v5088 = vld [vmem:[%s5065 + $0xb0] sm:$0xff]
      %v5089 = vld [vmem:[%s5065 + $0xb8] sm:$0xff]
      %v5090 = vld [vmem:[%s5065 + $0xc0] sm:$0xff]
      %v5091 = vld [vmem:[%s5065 + $0xc8] sm:$0xff]
      %v5092 = vld [vmem:[%s5065 + $0xd0] sm:$0xff]
      %v5093 = vld [vmem:[%s5065 + $0xd8] sm:$0xff]
      %v5094 = vld [vmem:[%s5065 + $0xe0] sm:$0xff]
      %v5095 = vld [vmem:[%s5065 + $0xe8] sm:$0xff]
      %v5096 = vld [vmem:[%s5065 + $0xf0] sm:$0xff]
      %v5097 = vld [vmem:[%s5065 + $0xf8] sm:$0xff]
      %v5130 = vunpack.c.l.b16 %v5066
      %v5131 = vunpack.c.h.b16 %v5066
      %v5132 = vunpack.c.l.b16 %v5067
      %v5133 = vunpack.c.h.b16 %v5067
      %v5134 = vunpack.c.l.b16 %v5068
      %v5135 = vunpack.c.h.b16 %v5068
      %v5136 = vunpack.c.l.b16 %v5069
      %v5137 = vunpack.c.h.b16 %v5069
      %v5138 = vunpack.c.l.b16 %v5070
      %v5139 = vunpack.c.h.b16 %v5070
      %v5140 = vunpack.c.l.b16 %v5071
      %v5141 = vunpack.c.h.b16 %v5071
      %v5142 = vunpack.c.l.b16 %v5072
      %v5143 = vunpack.c.h.b16 %v5072
      %v5144 = vunpack.c.l.b16 %v5073
      %v5145 = vunpack.c.h.b16 %v5073
      %v5146 = vunpack.c.l.b16 %v5074
      %v5147 = vunpack.c.h.b16 %v5074
      %v5148 = vunpack.c.l.b16 %v5075
      %v5149 = vunpack.c.h.b16 %v5075
      %v5150 = vunpack.c.l.b16 %v5076
      %v5151 = vunpack.c.h.b16 %v5076
      %v5152 = vunpack.c.l.b16 %v5077
      %v5153 = vunpack.c.h.b16 %v5077
      %v5154 = vunpack.c.l.b16 %v5078
      %v5155 = vunpack.c.h.b16 %v5078
      %v5156 = vunpack.c.l.b16 %v5079
      %v5157 = vunpack.c.h.b16 %v5079
      %v5158 = vunpack.c.l.b16 %v5080
      %v5159 = vunpack.c.h.b16 %v5080
      %v5160 = vunpack.c.l.b16 %v5081
      %v5161 = vunpack.c.h.b16 %v5081
      %v5162 = vunpack.c.l.b16 %v5082
      %v5163 = vunpack.c.h.b16 %v5082
      %v5164 = vunpack.c.l.b16 %v5083
      %v5165 = vunpack.c.h.b16 %v5083
      %v5166 = vunpack.c.l.b16 %v5084
      %v5167 = vunpack.c.h.b16 %v5084
      %v5168 = vunpack.c.l.b16 %v5085
      %v5169 = vunpack.c.h.b16 %v5085
      %v5170 = vunpack.c.l.b16 %v5086
      %v5171 = vunpack.c.h.b16 %v5086
      %v5172 = vunpack.c.l.b16 %v5087
      %v5173 = vunpack.c.h.b16 %v5087
      %v5174 = vunpack.c.l.b16 %v5088
      %v5175 = vunpack.c.h.b16 %v5088
      %v5176 = vunpack.c.l.b16 %v5089
      %v5177 = vunpack.c.h.b16 %v5089
      %v5178 = vunpack.c.l.b16 %v5090
      %v5179 = vunpack.c.h.b16 %v5090
      %v5180 = vunpack.c.l.b16 %v5091
      %v5181 = vunpack.c.h.b16 %v5091
      %v5182 = vunpack.c.l.b16 %v5092
      %v5183 = vunpack.c.h.b16 %v5092
      %v5184 = vunpack.c.l.b16 %v5093
      %v5185 = vunpack.c.h.b16 %v5093
      %v5186 = vunpack.c.l.b16 %v5094
      %v5187 = vunpack.c.h.b16 %v5094
      %v5188 = vunpack.c.l.b16 %v5095
      %v5189 = vunpack.c.h.b16 %v5095
      %v5190 = vunpack.c.l.b16 %v5096
      %v5191 = vunpack.c.h.b16 %v5096
      %v5192 = vunpack.c.l.b16 %v5097
      %v5193 = vunpack.c.h.b16 %v5097
      %v5194 = vpack.c.b16 %v5132, %v5130
      %v5195 = vpack.c.b16 %v5133, %v5131
      %v5196 = vpack.c.b16 %v5136, %v5134
      %v5197 = vpack.c.b16 %v5137, %v5135
      %v5198 = vpack.c.b16 %v5140, %v5138
      %v5199 = vpack.c.b16 %v5141, %v5139
      %v5200 = vpack.c.b16 %v5144, %v5142
      %v5201 = vpack.c.b16 %v5145, %v5143
      %v5202 = vpack.c.b16 %v5148, %v5146
      %v5203 = vpack.c.b16 %v5149, %v5147
      %v5204 = vpack.c.b16 %v5152, %v5150
      %v5205 = vpack.c.b16 %v5153, %v5151
      %v5206 = vpack.c.b16 %v5156, %v5154
      %v5207 = vpack.c.b16 %v5157, %v5155
      %v5208 = vpack.c.b16 %v5160, %v5158
      %v5209 = vpack.c.b16 %v5161, %v5159
      %v5210 = vpack.c.b16 %v5164, %v5162
      %v5211 = vpack.c.b16 %v5165, %v5163
      %v5212 = vpack.c.b16 %v5168, %v5166
      %v5213 = vpack.c.b16 %v5169, %v5167
      %v5214 = vpack.c.b16 %v5172, %v5170
      %v5215 = vpack.c.b16 %v5173, %v5171
      %v5216 = vpack.c.b16 %v5176, %v5174
      %v5217 = vpack.c.b16 %v5177, %v5175
      %v5218 = vpack.c.b16 %v5180, %v5178
      %v5219 = vpack.c.b16 %v5181, %v5179
      %v5220 = vpack.c.b16 %v5184, %v5182
      %v5221 = vpack.c.b16 %v5185, %v5183
      %v5222 = vpack.c.b16 %v5188, %v5186
      %v5223 = vpack.c.b16 %v5189, %v5187
      %v5224 = vpack.c.b16 %v5192, %v5190
      %v5225 = vpack.c.b16 %v5193, %v5191
      %5258 = vmatprep.subr.bf16.mxu0 %v5195
      %5259 = vmatpush1.bf16.msra.mxu0 %v5194
      %5260 = vmatprep.subr.bf16.mxu0 %v5197
      %5261 = vmatpush1.bf16.msra.mxu0 %v5196
      %5262 = vmatprep.subr.bf16.mxu0 %v5199
      %5263 = vmatpush1.bf16.msra.mxu0 %v5198
      %5264 = vmatprep.subr.bf16.mxu0 %v5201
      %5265 = vmatpush1.bf16.msra.mxu0 %v5200
      %5266 = vmatprep.subr.bf16.mxu0 %v5203
      %5267 = vmatpush1.bf16.msra.mxu0 %v5202
      %5268 = vmatprep.subr.bf16.mxu0 %v5205
      %5269 = vmatpush1.bf16.msra.mxu0 %v5204
      %5270 = vmatprep.subr.bf16.mxu0 %v5207
      %5271 = vmatpush1.bf16.msra.mxu0 %v5206
      %5272 = vmatprep.subr.bf16.mxu0 %v5209
      %5273 = vmatpush1.bf16.msra.mxu0 %v5208
      %5274 = vmatprep.subr.bf16.mxu0 %v5211
      %5275 = vmatpush1.bf16.msra.mxu0 %v5210
      %5276 = vmatprep.subr.bf16.mxu0 %v5213
      %5277 = vmatpush1.bf16.msra.mxu0 %v5212
      %5278 = vmatprep.subr.bf16.mxu0 %v5215
      %5279 = vmatpush1.bf16.msra.mxu0 %v5214
      %5280 = vmatprep.subr.bf16.mxu0 %v5217
      %5281 = vmatpush1.bf16.msra.mxu0 %v5216
      %5282 = vmatprep.subr.bf16.mxu0 %v5219
      %5283 = vmatpush1.bf16.msra.mxu0 %v5218
      %5284 = vmatprep.subr.bf16.mxu0 %v5221
      %5285 = vmatpush1.bf16.msra.mxu0 %v5220
      %5286 = vmatprep.subr.bf16.mxu0 %v5223
      %5287 = vmatpush1.bf16.msra.mxu0 %v5222
      %5288 = vmatprep.subr.bf16.mxu0 %v5225
      %5289 = vmatpush1.bf16.msra.mxu0 %v5224
      %5290 = vmatprep.mubr.bf16.mxu0 %v5058
      %5291 = vmatmul.mubr.bf16.gmra.mrb[0].mxu0 %v5057
      %v5292 = vpop.f32.mrb[0].mxu0
      %v5293 = vadd.f32 0.0, %v5292
      %v5294 = vpop.f32.mrb[0].mxu0
      %v5295 = vadd.f32 0.0, %v5294
      %v5296 = vpop.f32.mrb[0].mxu0
      %v5297 = vadd.f32 0.0, %v5296
      %v5298 = vpop.f32.mrb[0].mxu0
      %v5299 = vadd.f32 0.0, %v5298
      %5300 = vmatprep.mubr.bf16.mxu0 %v5060
      %5301 = vmatmul.mubr.bf16.gmra.mrb[0].mxu0 %v5059
      %v5302 = vpop.f32.mrb[0].mxu0
      %v5303 = vadd.f32 0.0, %v5302
      %v5304 = vpop.f32.mrb[0].mxu0
      %v5305 = vadd.f32 0.0, %v5304
      %v5306 = vpop.f32.mrb[0].mxu0
      %v5307 = vadd.f32 0.0, %v5306
      %v5308 = vpop.f32.mrb[0].mxu0
      %v5309 = vadd.f32 0.0, %v5308
      %5310 = vmatprep.mubr.bf16.mxu0 %v5062
      %5311 = vmatmul.mubr.bf16.gmra.mrb[0].mxu0 %v5061
      %v5312 = vpop.f32.mrb[0].mxu0
      %v5313 = vadd.f32 0.0, %v5312
      %v5314 = vpop.f32.mrb[0].mxu0
      %v5315 = vadd.f32 0.0, %v5314
      %v5316 = vpop.f32.mrb[0].mxu0
      %v5317 = vadd.f32 0.0, %v5316
      %v5318 = vpop.f32.mrb[0].mxu0
      %v5319 = vadd.f32 0.0, %v5318
      %5320 = vmatprep.mubr.bf16.mxu0 %v5064
      %5321 = vmatmul.mubr.bf16.gmra.mrb[0].mxu0 %v5063
      %v5322 = vpop.f32.mrb[0].mxu0
      %v5323 = vadd.f32 0.0, %v5322
      %v5324 = vpop.f32.mrb[0].mxu0
      %v5325 = vadd.f32 0.0, %v5324
      %v5326 = vpop.f32.mrb[0].mxu0
      %v5327 = vadd.f32 0.0, %v5326
      %v5328 = vpop.f32.mrb[0].mxu0
      %v5329 = vadd.f32 0.0, %v5328
      %5330 = vdwg.mxu0
      %v5331 = vadd.f32 %v4891, %v5293
      %v5332 = vadd.f32 %v4893, %v5295
      %v5333 = vadd.f32 %v4895, %v5297
      %v5334 = vadd.f32 %v4897, %v5299
      %v5335 = vadd.f32 %v4901, %v5303
      %v5336 = vadd.f32 %v4903, %v5305
      %v5337 = vadd.f32 %v4905, %v5307
      %v5338 = vadd.f32 %v4907, %v5309
      %v5339 = vadd.f32 %v4911, %v5313
      %v5340 = vadd.f32 %v4913, %v5315
      %v5341 = vadd.f32 %v4915, %v5317
      %v5342 = vadd.f32 %v4917, %v5319
      %v5343 = vadd.f32 %v4921, %v5323
      %v5344 = vadd.f32 %v4923, %v5325
      %v5345 = vadd.f32 %v4925, %v5327
      %v5346 = vadd.f32 %v4927, %v5329
      %v5347 = vld [vmem:[%s627] sm:$0xff]
      %v5348 = vld [vmem:[%s627 + $0x8] sm:$0xff]
      %v5349 = vld [vmem:[%s627 + $0x20] sm:$0xff]
      %v5350 = vld [vmem:[%s627 + $0x28] sm:$0xff]
      %v5351 = vld [vmem:[%s627 + $0x40] sm:$0xff]
      %v5352 = vld [vmem:[%s627 + $0x48] sm:$0xff]
      %v5353 = vld [vmem:[%s627 + $0x60] sm:$0xff]
      %v5354 = vld [vmem:[%s627 + $0x68] sm:$0xff]
      %v5355 = vld [vmem:[%s627 + $0x80] sm:$0xff]
      %v5356 = vld [vmem:[%s627 + $0x88] sm:$0xff]
      %v5357 = vld [vmem:[%s627 + $0xa0] sm:$0xff]
      %v5358 = vld [vmem:[%s627 + $0xa8] sm:$0xff]
      %v5359 = vld [vmem:[%s627 + $0xc0] sm:$0xff]
      %v5360 = vld [vmem:[%s627 + $0xc8] sm:$0xff]
      %v5361 = vld [vmem:[%s627 + $0xe0] sm:$0xff]
      %v5362 = vld [vmem:[%s627 + $0xe8] sm:$0xff]
      %v5363 = vpack.c.bf16 %v5349, %v5347
      %v5364 = vpack.c.bf16 %v5350, %v5348
      %v5365 = vpack.c.bf16 %v5353, %v5351
      %v5366 = vpack.c.bf16 %v5354, %v5352
      %v5367 = vpack.c.bf16 %v5357, %v5355
      %v5368 = vpack.c.bf16 %v5358, %v5356
      %v5369 = vpack.c.bf16 %v5361, %v5359
      %v5370 = vpack.c.bf16 %v5362, %v5360
      %s5371 = scalar_lea.vmem %s5, 768
      %v5372 = vld [vmem:[%s5371] sm:$0xff]
      %v5373 = vld [vmem:[%s5371 + $0x8] sm:$0xff]
      %v5374 = vld [vmem:[%s5371 + $0x10] sm:$0xff]
      %v5375 = vld [vmem:[%s5371 + $0x18] sm:$0xff]
      %v5376 = vld [vmem:[%s5371 + $0x20] sm:$0xff]
      %v5377 = vld [vmem:[%s5371 + $0x28] sm:$0xff]
      %v5378 = vld [vmem:[%s5371 + $0x30] sm:$0xff]
      %v5379 = vld [vmem:[%s5371 + $0x38] sm:$0xff]
      %v5380 = vld [vmem:[%s5371 + $0x40] sm:$0xff]
      %v5381 = vld [vmem:[%s5371 + $0x48] sm:$0xff]
      %v5382 = vld [vmem:[%s5371 + $0x50] sm:$0xff]
      %v5383 = vld [vmem:[%s5371 + $0x58] sm:$0xff]
      %v5384 = vld [vmem:[%s5371 + $0x60] sm:$0xff]
      %v5385 = vld [vmem:[%s5371 + $0x68] sm:$0xff]
      %v5386 = vld [vmem:[%s5371 + $0x70] sm:$0xff]
      %v5387 = vld [vmem:[%s5371 + $0x78] sm:$0xff]
      %v5388 = vld [vmem:[%s5371 + $0x80] sm:$0xff]
      %v5389 = vld [vmem:[%s5371 + $0x88] sm:$0xff]
      %v5390 = vld [vmem:[%s5371 + $0x90] sm:$0xff]
      %v5391 = vld [vmem:[%s5371 + $0x98] sm:$0xff]
      %v5392 = vld [vmem:[%s5371 + $0xa0] sm:$0xff]
      %v5393 = vld [vmem:[%s5371 + $0xa8] sm:$0xff]
      %v5394 = vld [vmem:[%s5371 + $0xb0] sm:$0xff]
      %v5395 = vld [vmem:[%s5371 + $0xb8] sm:$0xff]
      %v5396 = vld [vmem:[%s5371 + $0xc0] sm:$0xff]
      %v5397 = vld [vmem:[%s5371 + $0xc8] sm:$0xff]
      %v5398 = vld [vmem:[%s5371 + $0xd0] sm:$0xff]
      %v5399 = vld [vmem:[%s5371 + $0xd8] sm:$0xff]
      %v5400 = vld [vmem:[%s5371 + $0xe0] sm:$0xff]
      %v5401 = vld [vmem:[%s5371 + $0xe8] sm:$0xff]
      %v5402 = vld [vmem:[%s5371 + $0xf0] sm:$0xff]
      %v5403 = vld [vmem:[%s5371 + $0xf8] sm:$0xff]
      %v5436 = vunpack.c.l.b16 %v5372
      %v5437 = vunpack.c.h.b16 %v5372
      %v5438 = vunpack.c.l.b16 %v5373
      %v5439 = vunpack.c.h.b16 %v5373
      %v5440 = vunpack.c.l.b16 %v5374
      %v5441 = vunpack.c.h.b16 %v5374
      %v5442 = vunpack.c.l.b16 %v5375
      %v5443 = vunpack.c.h.b16 %v5375
      %v5444 = vunpack.c.l.b16 %v5376
      %v5445 = vunpack.c.h.b16 %v5376
      %v5446 = vunpack.c.l.b16 %v5377
      %v5447 = vunpack.c.h.b16 %v5377
      %v5448 = vunpack.c.l.b16 %v5378
      %v5449 = vunpack.c.h.b16 %v5378
      %v5450 = vunpack.c.l.b16 %v5379
      %v5451 = vunpack.c.h.b16 %v5379
      %v5452 = vunpack.c.l.b16 %v5380
      %v5453 = vunpack.c.h.b16 %v5380
      %v5454 = vunpack.c.l.b16 %v5381
      %v5455 = vunpack.c.h.b16 %v5381
      %v5456 = vunpack.c.l.b16 %v5382
      %v5457 = vunpack.c.h.b16 %v5382
      %v5458 = vunpack.c.l.b16 %v5383
      %v5459 = vunpack.c.h.b16 %v5383
      %v5460 = vunpack.c.l.b16 %v5384
      %v5461 = vunpack.c.h.b16 %v5384
      %v5462 = vunpack.c.l.b16 %v5385
      %v5463 = vunpack.c.h.b16 %v5385
      %v5464 = vunpack.c.l.b16 %v5386
      %v5465 = vunpack.c.h.b16 %v5386
      %v5466 = vunpack.c.l.b16 %v5387
      %v5467 = vunpack.c.h.b16 %v5387
      %v5468 = vunpack.c.l.b16 %v5388
      %v5469 = vunpack.c.h.b16 %v5388
      %v5470 = vunpack.c.l.b16 %v5389
      %v5471 = vunpack.c.h.b16 %v5389
      %v5472 = vunpack.c.l.b16 %v5390
      %v5473 = vunpack.c.h.b16 %v5390
      %v5474 = vunpack.c.l.b16 %v5391
      %v5475 = vunpack.c.h.b16 %v5391
      %v5476 = vunpack.c.l.b16 %v5392
      %v5477 = vunpack.c.h.b16 %v5392
      %v5478 = vunpack.c.l.b16 %v5393
      %v5479 = vunpack.c.h.b16 %v5393
      %v5480 = vunpack.c.l.b16 %v5394
      %v5481 = vunpack.c.h.b16 %v5394
      %v5482 = vunpack.c.l.b16 %v5395
      %v5483 = vunpack.c.h.b16 %v5395
      %v5484 = vunpack.c.l.b16 %v5396
      %v5485 = vunpack.c.h.b16 %v5396
      %v5486 = vunpack.c.l.b16 %v5397
      %v5487 = vunpack.c.h.b16 %v5397
      %v5488 = vunpack.c.l.b16 %v5398
      %v5489 = vunpack.c.h.b16 %v5398
      %v5490 = vunpack.c.l.b16 %v5399
      %v5491 = vunpack.c.h.b16 %v5399
      %v5492 = vunpack.c.l.b16 %v5400
      %v5493 = vunpack.c.h.b16 %v5400
      %v5494 = vunpack.c.l.b16 %v5401
      %v5495 = vunpack.c.h.b16 %v5401
      %v5496 = vunpack.c.l.b16 %v5402
      %v5497 = vunpack.c.h.b16 %v5402
      %v5498 = vunpack.c.l.b16 %v5403
      %v5499 = vunpack.c.h.b16 %v5403
      %v5500 = vpack.c.b16 %v5438, %v5436
      %v5501 = vpack.c.b16 %v5439, %v5437
      %v5502 = vpack.c.b16 %v5442, %v5440
      %v5503 = vpack.c.b16 %v5443, %v5441
      %v5504 = vpack.c.b16 %v5446, %v5444
      %v5505 = vpack.c.b16 %v5447, %v5445
      %v5506 = vpack.c.b16 %v5450, %v5448
      %v5507 = vpack.c.b16 %v5451, %v5449
      %v5508 = vpack.c.b16 %v5454, %v5452
      %v5509 = vpack.c.b16 %v5455, %v5453
      %v5510 = vpack.c.b16 %v5458, %v5456
      %v5511 = vpack.c.b16 %v5459, %v5457
      %v5512 = vpack.c.b16 %v5462, %v5460
      %v5513 = vpack.c.b16 %v5463, %v5461
      %v5514 = vpack.c.b16 %v5466, %v5464
      %v5515 = vpack.c.b16 %v5467, %v5465
      %v5516 = vpack.c.b16 %v5470, %v5468
      %v5517 = vpack.c.b16 %v5471, %v5469
      %v5518 = vpack.c.b16 %v5474, %v5472
      %v5519 = vpack.c.b16 %v5475, %v5473
      %v5520 = vpack.c.b16 %v5478, %v5476
      %v5521 = vpack.c.b16 %v5479, %v5477
      %v5522 = vpack.c.b16 %v5482, %v5480
      %v5523 = vpack.c.b16 %v5483, %v5481
      %v5524 = vpack.c.b16 %v5486, %v5484
      %v5525 = vpack.c.b16 %v5487, %v5485
      %v5526 = vpack.c.b16 %v5490, %v5488
      %v5527 = vpack.c.b16 %v5491, %v5489
      %v5528 = vpack.c.b16 %v5494, %v5492
      %v5529 = vpack.c.b16 %v5495, %v5493
      %v5530 = vpack.c.b16 %v5498, %v5496
      %v5531 = vpack.c.b16 %v5499, %v5497
      %5564 = vmatprep.subr.bf16.mxu0 %v5501
      %5565 = vmatpush1.bf16.msra.mxu0 %v5500
      %5566 = vmatprep.subr.bf16.mxu0 %v5503
      %5567 = vmatpush1.bf16.msra.mxu0 %v5502
      %5568 = vmatprep.subr.bf16.mxu0 %v5505
      %5569 = vmatpush1.bf16.msra.mxu0 %v5504
      %5570 = vmatprep.subr.bf16.mxu0 %v5507
      %5571 = vmatpush1.bf16.msra.mxu0 %v5506
      %5572 = vmatprep.subr.bf16.mxu0 %v5509
      %5573 = vmatpush1.bf16.msra.mxu0 %v5508
      %5574 = vmatprep.subr.bf16.mxu0 %v5511
      %5575 = vmatpush1.bf16.msra.mxu0 %v5510
      %5576 = vmatprep.subr.bf16.mxu0 %v5513
      %5577 = vmatpush1.bf16.msra.mxu0 %v5512
      %5578 = vmatprep.subr.bf16.mxu0 %v5515
      %5579 = vmatpush1.bf16.msra.mxu0 %v5514
      %5580 = vmatprep.subr.bf16.mxu0 %v5517
      %5581 = vmatpush1.bf16.msra.mxu0 %v5516
      %5582 = vmatprep.subr.bf16.mxu0 %v5519
      %5583 = vmatpush1.bf16.msra.mxu0 %v5518
      %5584 = vmatprep.subr.bf16.mxu0 %v5521
      %5585 = vmatpush1.bf16.msra.mxu0 %v5520
      %5586 = vmatprep.subr.bf16.mxu0 %v5523
      %5587 = vmatpush1.bf16.msra.mxu0 %v5522
      %5588 = vmatprep.subr.bf16.mxu0 %v5525
      %5589 = vmatpush1.bf16.msra.mxu0 %v5524
      %5590 = vmatprep.subr.bf16.mxu0 %v5527
      %5591 = vmatpush1.bf16.msra.mxu0 %v5526
      %5592 = vmatprep.subr.bf16.mxu0 %v5529
      %5593 = vmatpush1.bf16.msra.mxu0 %v5528
      %5594 = vmatprep.subr.bf16.mxu0 %v5531
      %5595 = vmatpush1.bf16.msra.mxu0 %v5530
      %5596 = vmatprep.mubr.bf16.mxu0 %v5364
      %5597 = vmatmul.mubr.bf16.gmra.mrb[0].mxu0 %v5363
      %v5598 = vpop.f32.mrb[0].mxu0
      %v5599 = vadd.f32 0.0, %v5598
      %v5600 = vpop.f32.mrb[0].mxu0
      %v5601 = vadd.f32 0.0, %v5600
      %v5602 = vpop.f32.mrb[0].mxu0
      %v5603 = vadd.f32 0.0, %v5602
      %v5604 = vpop.f32.mrb[0].mxu0
      %v5605 = vadd.f32 0.0, %v5604
      %5606 = vmatprep.mubr.bf16.mxu0 %v5366
      %5607 = vmatmul.mubr.bf16.gmra.mrb[0].mxu0 %v5365
      %v5608 = vpop.f32.mrb[0].mxu0
      %v5609 = vadd.f32 0.0, %v5608
      %v5610 = vpop.f32.mrb[0].mxu0
      %v5611 = vadd.f32 0.0, %v5610
      %v5612 = vpop.f32.mrb[0].mxu0
      %v5613 = vadd.f32 0.0, %v5612
      %v5614 = vpop.f32.mrb[0].mxu0
      %v5615 = vadd.f32 0.0, %v5614
      %5616 = vmatprep.mubr.bf16.mxu0 %v5368
      %5617 = vmatmul.mubr.bf16.gmra.mrb[0].mxu0 %v5367
      %v5618 = vpop.f32.mrb[0].mxu0
      %v5619 = vadd.f32 0.0, %v5618
      %v5620 = vpop.f32.mrb[0].mxu0
      %v5621 = vadd.f32 0.0, %v5620
      %v5622 = vpop.f32.mrb[0].mxu0
      %v5623 = vadd.f32 0.0, %v5622
      %v5624 = vpop.f32.mrb[0].mxu0
      %v5625 = vadd.f32 0.0, %v5624
      %5626 = vmatprep.mubr.bf16.mxu0 %v5370
      %5627 = vmatmul.mubr.bf16.gmra.mrb[0].mxu0 %v5369
      %v5628 = vpop.f32.mrb[0].mxu0
      %v5629 = vadd.f32 0.0, %v5628
      %v5630 = vpop.f32.mrb[0].mxu0
      %v5631 = vadd.f32 0.0, %v5630
      %v5632 = vpop.f32.mrb[0].mxu0
      %v5633 = vadd.f32 0.0, %v5632
      %v5634 = vpop.f32.mrb[0].mxu0
      %v5635 = vadd.f32 0.0, %v5634
      %5636 = vdwg.mxu0
      %v5637 = vadd.f32 %v5331, %v5599
      %v5638 = vadd.f32 %v5332, %v5601
      %v5639 = vadd.f32 %v5333, %v5603
      %v5640 = vadd.f32 %v5334, %v5605
      %v5641 = vadd.f32 %v5335, %v5609
      %v5642 = vadd.f32 %v5336, %v5611
      %v5643 = vadd.f32 %v5337, %v5613
      %v5644 = vadd.f32 %v5338, %v5615
      %v5645 = vadd.f32 %v5339, %v5619
      %v5646 = vadd.f32 %v5340, %v5621
      %v5647 = vadd.f32 %v5341, %v5623
      %v5648 = vadd.f32 %v5342, %v5625
      %v5649 = vadd.f32 %v5343, %v5629
      %v5650 = vadd.f32 %v5344, %v5631
      %v5651 = vadd.f32 %v5345, %v5633
      %v5652 = vadd.f32 %v5346, %v5635
      %v5653 = vld [vmem:[%s627] sm:$0xfe]
      %v5654 = vld [vmem:[%s627 + $0x8] sm:$0xfe]
      %v5655 = vld [vmem:[%s627 + $0x10] sm:$0x1]
      %v5656 = vld [vmem:[%s627 + $0x18] sm:$0x1]
      %v5657 = vld [vmem:[%s627 + $0x20] sm:$0xfe]
      %v5658 = vld [vmem:[%s627 + $0x28] sm:$0xfe]
      %v5659 = vld [vmem:[%s627 + $0x30] sm:$0x1]
      %v5660 = vld [vmem:[%s627 + $0x38] sm:$0x1]
      %v5661 = vld [vmem:[%s627 + $0x40] sm:$0xfe]
      %v5662 = vld [vmem:[%s627 + $0x48] sm:$0xfe]
      %v5663 = vld [vmem:[%s627 + $0x50] sm:$0x1]
      %v5664 = vld [vmem:[%s627 + $0x58] sm:$0x1]
      %v5665 = vld [vmem:[%s627 + $0x60] sm:$0xfe]
      %v5666 = vld [vmem:[%s627 + $0x68] sm:$0xfe]
      %v5667 = vld [vmem:[%s627 + $0x70] sm:$0x1]
      %v5668 = vld [vmem:[%s627 + $0x78] sm:$0x1]
      %v5669 = vld [vmem:[%s627 + $0x80] sm:$0xfe]
      %v5670 = vld [vmem:[%s627 + $0x88] sm:$0xfe]
      %v5671 = vld [vmem:[%s627 + $0x90] sm:$0x1]
      %v5672 = vld [vmem:[%s627 + $0x98] sm:$0x1]
      %v5673 = vld [vmem:[%s627 + $0xa0] sm:$0xfe]
      %v5674 = vld [vmem:[%s627 + $0xa8] sm:$0xfe]
      %v5675 = vld [vmem:[%s627 + $0xb0] sm:$0x1]
      %v5676 = vld [vmem:[%s627 + $0xb8] sm:$0x1]
      %v5677 = vld [vmem:[%s627 + $0xc0] sm:$0xfe]
      %v5678 = vld [vmem:[%s627 + $0xc8] sm:$0xfe]
      %v5679 = vld [vmem:[%s627 + $0xd0] sm:$0x1]
      %v5680 = vld [vmem:[%s627 + $0xd8] sm:$0x1]
      %v5681 = vld [vmem:[%s627 + $0xe0] sm:$0xfe]
      %v5682 = vld [vmem:[%s627 + $0xe8] sm:$0xfe]
      %v5683 = vld [vmem:[%s627 + $0xf0] sm:$0x1]
      %v5684 = vld [vmem:[%s627 + $0xf8] sm:$0x1]
      %v5717 = vrot.slane %v5653, 1
      %v5718 = vrot.slane %v5655, 1
      %v5719 = vsel %vm780, %v5717, %v5718
      %v5720 = vrot.slane %v5654, 1
      %v5721 = vrot.slane %v5656, 1
      %v5722 = vsel %vm780, %v5720, %v5721
      %v5723 = vrot.slane %v5657, 1
      %v5724 = vrot.slane %v5659, 1
      %v5725 = vsel %vm780, %v5723, %v5724
      %v5726 = vrot.slane %v5658, 1
      %v5727 = vrot.slane %v5660, 1
      %v5728 = vsel %vm780, %v5726, %v5727
      %v5729 = vrot.slane %v5661, 1
      %v5730 = vrot.slane %v5663, 1
      %v5731 = vsel %vm780, %v5729, %v5730
      %v5732 = vrot.slane %v5662, 1
      %v5733 = vrot.slane %v5664, 1
      %v5734 = vsel %vm780, %v5732, %v5733
      %v5735 = vrot.slane %v5665, 1
      %v5736 = vrot.slane %v5667, 1
      %v5737 = vsel %vm780, %v5735, %v5736
      %v5738 = vrot.slane %v5666, 1
      %v5739 = vrot.slane %v5668, 1
      %v5740 = vsel %vm780, %v5738, %v5739
      %v5741 = vrot.slane %v5669, 1
      %v5742 = vrot.slane %v5671, 1
      %v5743 = vsel %vm780, %v5741, %v5742
      %v5744 = vrot.slane %v5670, 1
      %v5745 = vrot.slane %v5672, 1
      %v5746 = vsel %vm780, %v5744, %v5745
      %v5747 = vrot.slane %v5673, 1
      %v5748 = vrot.slane %v5675, 1
      %v5749 = vsel %vm780, %v5747, %v5748
      %v5750 = vrot.slane %v5674, 1
      %v5751 = vrot.slane %v5676, 1
      %v5752 = vsel %vm780, %v5750, %v5751
      %v5753 = vrot.slane %v5677, 1
      %v5754 = vrot.slane %v5679, 1
      %v5755 = vsel %vm780, %v5753, %v5754
      %v5756 = vrot.slane %v5678, 1
      %v5757 = vrot.slane %v5680, 1
      %v5758 = vsel %vm780, %v5756, %v5757
      %v5759 = vrot.slane %v5681, 1
      %v5760 = vrot.slane %v5683, 1
      %v5761 = vsel %vm780, %v5759, %v5760
      %v5762 = vrot.slane %v5682, 1
      %v5763 = vrot.slane %v5684, 1
      %v5764 = vsel %vm780, %v5762, %v5763
      %v5781 = vpack.c.bf16 %v5725, %v5719
      %v5782 = vpack.c.bf16 %v5728, %v5722
      %v5783 = vpack.c.bf16 %v5737, %v5731
      %v5784 = vpack.c.bf16 %v5740, %v5734
      %v5785 = vpack.c.bf16 %v5749, %v5743
      %v5786 = vpack.c.bf16 %v5752, %v5746
      %v5787 = vpack.c.bf16 %v5761, %v5755
      %v5788 = vpack.c.bf16 %v5764, %v5758
      %s5789 = scalar_lea.vmem %s5, 1024
      %v5790 = vld [vmem:[%s5789] sm:$0xff]
      %v5791 = vld [vmem:[%s5789 + $0x8] sm:$0xff]
      %v5792 = vld [vmem:[%s5789 + $0x10] sm:$0xff]
      %v5793 = vld [vmem:[%s5789 + $0x18] sm:$0xff]
      %v5794 = vld [vmem:[%s5789 + $0x20] sm:$0xff]
      %v5795 = vld [vmem:[%s5789 + $0x28] sm:$0xff]
      %v5796 = vld [vmem:[%s5789 + $0x30] sm:$0xff]
      %v5797 = vld [vmem:[%s5789 + $0x38] sm:$0xff]
      %v5798 = vld [vmem:[%s5789 + $0x40] sm:$0xff]
      %v5799 = vld [vmem:[%s5789 + $0x48] sm:$0xff]
      %v5800 = vld [vmem:[%s5789 + $0x50] sm:$0xff]
      %v5801 = vld [vmem:[%s5789 + $0x58] sm:$0xff]
      %v5802 = vld [vmem:[%s5789 + $0x60] sm:$0xff]
      %v5803 = vld [vmem:[%s5789 + $0x68] sm:$0xff]
      %v5804 = vld [vmem:[%s5789 + $0x70] sm:$0xff]
      %v5805 = vld [vmem:[%s5789 + $0x78] sm:$0xff]
      %v5806 = vld [vmem:[%s5789 + $0x80] sm:$0xff]
      %v5807 = vld [vmem:[%s5789 + $0x88] sm:$0xff]
      %v5808 = vld [vmem:[%s5789 + $0x90] sm:$0xff]
      %v5809 = vld [vmem:[%s5789 + $0x98] sm:$0xff]
      %v5810 = vld [vmem:[%s5789 + $0xa0] sm:$0xff]
      %v5811 = vld [vmem:[%s5789 + $0xa8] sm:$0xff]
      %v5812 = vld [vmem:[%s5789 + $0xb0] sm:$0xff]
      %v5813 = vld [vmem:[%s5789 + $0xb8] sm:$0xff]
      %v5814 = vld [vmem:[%s5789 + $0xc0] sm:$0xff]
      %v5815 = vld [vmem:[%s5789 + $0xc8] sm:$0xff]
      %v5816 = vld [vmem:[%s5789 + $0xd0] sm:$0xff]
      %v5817 = vld [vmem:[%s5789 + $0xd8] sm:$0xff]
      %v5818 = vld [vmem:[%s5789 + $0xe0] sm:$0xff]
      %v5819 = vld [vmem:[%s5789 + $0xe8] sm:$0xff]
      %v5820 = vld [vmem:[%s5789 + $0xf0] sm:$0xff]
      %v5821 = vld [vmem:[%s5789 + $0xf8] sm:$0xff]
      %v5854 = vunpack.c.l.b16 %v5790
      %v5855 = vunpack.c.h.b16 %v5790
      %v5856 = vunpack.c.l.b16 %v5791
      %v5857 = vunpack.c.h.b16 %v5791
      %v5858 = vunpack.c.l.b16 %v5792
      %v5859 = vunpack.c.h.b16 %v5792
      %v5860 = vunpack.c.l.b16 %v5793
      %v5861 = vunpack.c.h.b16 %v5793
      %v5862 = vunpack.c.l.b16 %v5794
      %v5863 = vunpack.c.h.b16 %v5794
      %v5864 = vunpack.c.l.b16 %v5795
      %v5865 = vunpack.c.h.b16 %v5795
      %v5866 = vunpack.c.l.b16 %v5796
      %v5867 = vunpack.c.h.b16 %v5796
      %v5868 = vunpack.c.l.b16 %v5797
      %v5869 = vunpack.c.h.b16 %v5797
      %v5870 = vunpack.c.l.b16 %v5798
      %v5871 = vunpack.c.h.b16 %v5798
      %v5872 = vunpack.c.l.b16 %v5799
      %v5873 = vunpack.c.h.b16 %v5799
      %v5874 = vunpack.c.l.b16 %v5800
      %v5875 = vunpack.c.h.b16 %v5800
      %v5876 = vunpack.c.l.b16 %v5801
      %v5877 = vunpack.c.h.b16 %v5801
      %v5878 = vunpack.c.l.b16 %v5802
      %v5879 = vunpack.c.h.b16 %v5802
      %v5880 = vunpack.c.l.b16 %v5803
      %v5881 = vunpack.c.h.b16 %v5803
      %v5882 = vunpack.c.l.b16 %v5804
      %v5883 = vunpack.c.h.b16 %v5804
      %v5884 = vunpack.c.l.b16 %v5805
      %v5885 = vunpack.c.h.b16 %v5805
      %v5886 = vunpack.c.l.b16 %v5806
      %v5887 = vunpack.c.h.b16 %v5806
      %v5888 = vunpack.c.l.b16 %v5807
      %v5889 = vunpack.c.h.b16 %v5807
      %v5890 = vunpack.c.l.b16 %v5808
      %v5891 = vunpack.c.h.b16 %v5808
      %v5892 = vunpack.c.l.b16 %v5809
      %v5893 = vunpack.c.h.b16 %v5809
      %v5894 = vunpack.c.l.b16 %v5810
      %v5895 = vunpack.c.h.b16 %v5810
      %v5896 = vunpack.c.l.b16 %v5811
      %v5897 = vunpack.c.h.b16 %v5811
      %v5898 = vunpack.c.l.b16 %v5812
      %v5899 = vunpack.c.h.b16 %v5812
      %v5900 = vunpack.c.l.b16 %v5813
      %v5901 = vunpack.c.h.b16 %v5813
      %v5902 = vunpack.c.l.b16 %v5814
      %v5903 = vunpack.c.h.b16 %v5814
      %v5904 = vunpack.c.l.b16 %v5815
      %v5905 = vunpack.c.h.b16 %v5815
      %v5906 = vunpack.c.l.b16 %v5816
      %v5907 = vunpack.c.h.b16 %v5816
      %v5908 = vunpack.c.l.b16 %v5817
      %v5909 = vunpack.c.h.b16 %v5817
      %v5910 = vunpack.c.l.b16 %v5818
      %v5911 = vunpack.c.h.b16 %v5818
      %v5912 = vunpack.c.l.b16 %v5819
      %v5913 = vunpack.c.h.b16 %v5819
      %v5914 = vunpack.c.l.b16 %v5820
      %v5915 = vunpack.c.h.b16 %v5820
      %v5916 = vunpack.c.l.b16 %v5821
      %v5917 = vunpack.c.h.b16 %v5821
      %v5918 = vpack.c.b16 %v5856, %v5854
      %v5919 = vpack.c.b16 %v5857, %v5855
      %v5920 = vpack.c.b16 %v5860, %v5858
      %v5921 = vpack.c.b16 %v5861, %v5859
      %v5922 = vpack.c.b16 %v5864, %v5862
      %v5923 = vpack.c.b16 %v5865, %v5863
      %v5924 = vpack.c.b16 %v5868, %v5866
      %v5925 = vpack.c.b16 %v5869, %v5867
      %v5926 = vpack.c.b16 %v5872, %v5870
      %v5927 = vpack.c.b16 %v5873, %v5871
      %v5928 = vpack.c.b16 %v5876, %v5874
      %v5929 = vpack.c.b16 %v5877, %v5875
      %v5930 = vpack.c.b16 %v5880, %v5878
      %v5931 = vpack.c.b16 %v5881, %v5879
      %v5932 = vpack.c.b16 %v5884, %v5882
      %v5933 = vpack.c.b16 %v5885, %v5883
      %v5934 = vpack.c.b16 %v5888, %v5886
      %v5935 = vpack.c.b16 %v5889, %v5887
      %v5936 = vpack.c.b16 %v5892, %v5890
      %v5937 = vpack.c.b16 %v5893, %v5891
      %v5938 = vpack.c.b16 %v5896, %v5894
      %v5939 = vpack.c.b16 %v5897, %v5895
      %v5940 = vpack.c.b16 %v5900, %v5898
      %v5941 = vpack.c.b16 %v5901, %v5899
      %v5942 = vpack.c.b16 %v5904, %v5902
      %v5943 = vpack.c.b16 %v5905, %v5903
      %v5944 = vpack.c.b16 %v5908, %v5906
      %v5945 = vpack.c.b16 %v5909, %v5907
      %v5946 = vpack.c.b16 %v5912, %v5910
      %v5947 = vpack.c.b16 %v5913, %v5911
      %v5948 = vpack.c.b16 %v5916, %v5914
      %v5949 = vpack.c.b16 %v5917, %v5915
      %5982 = vmatprep.subr.bf16.mxu0 %v5919
      %5983 = vmatpush1.bf16.msra.mxu0 %v5918
      %5984 = vmatprep.subr.bf16.mxu0 %v5921
      %5985 = vmatpush1.bf16.msra.mxu0 %v5920
      %5986 = vmatprep.subr.bf16.mxu0 %v5923
      %5987 = vmatpush1.bf16.msra.mxu0 %v5922
      %5988 = vmatprep.subr.bf16.mxu0 %v5925
      %5989 = vmatpush1.bf16.msra.mxu0 %v5924
      %5990 = vmatprep.subr.bf16.mxu0 %v5927
      %5991 = vmatpush1.bf16.msra.mxu0 %v5926
      %5992 = vmatprep.subr.bf16.mxu0 %v5929
      %5993 = vmatpush1.bf16.msra.mxu0 %v5928
      %5994 = vmatprep.subr.bf16.mxu0 %v5931
      %5995 = vmatpush1.bf16.msra.mxu0 %v5930
      %5996 = vmatprep.subr.bf16.mxu0 %v5933
      %5997 = vmatpush1.bf16.msra.mxu0 %v5932
      %5998 = vmatprep.subr.bf16.mxu0 %v5935
      %5999 = vmatpush1.bf16.msra.mxu0 %v5934
      %6000 = vmatprep.subr.bf16.mxu0 %v5937
      %6001 = vmatpush1.bf16.msra.mxu0 %v5936
      %6002 = vmatprep.subr.bf16.mxu0 %v5939
      %6003 = vmatpush1.bf16.msra.mxu0 %v5938
      %6004 = vmatprep.subr.bf16.mxu0 %v5941
      %6005 = vmatpush1.bf16.msra.mxu0 %v5940
      %6006 = vmatprep.subr.bf16.mxu0 %v5943
      %6007 = vmatpush1.bf16.msra.mxu0 %v5942
      %6008 = vmatprep.subr.bf16.mxu0 %v5945
      %6009 = vmatpush1.bf16.msra.mxu0 %v5944
      %6010 = vmatprep.subr.bf16.mxu0 %v5947
      %6011 = vmatpush1.bf16.msra.mxu0 %v5946
      %6012 = vmatprep.subr.bf16.mxu0 %v5949
      %6013 = vmatpush1.bf16.msra.mxu0 %v5948
      %6014 = vmatprep.mubr.bf16.mxu0 %v5782
      %6015 = vmatmul.mubr.bf16.gmra.mrb[0].mxu0 %v5781
      %v6016 = vpop.f32.mrb[0].mxu0
      %v6017 = vadd.f32 0.0, %v6016
      %v6018 = vpop.f32.mrb[0].mxu0
      %v6019 = vadd.f32 0.0, %v6018
      %v6020 = vpop.f32.mrb[0].mxu0
      %v6021 = vadd.f32 0.0, %v6020
      %v6022 = vpop.f32.mrb[0].mxu0
      %v6023 = vadd.f32 0.0, %v6022
      %6024 = vmatprep.mubr.bf16.mxu0 %v5784
      %6025 = vmatmul.mubr.bf16.gmra.mrb[0].mxu0 %v5783
      %v6026 = vpop.f32.mrb[0].mxu0
      %v6027 = vadd.f32 0.0, %v6026
      %v6028 = vpop.f32.mrb[0].mxu0
      %v6029 = vadd.f32 0.0, %v6028
      %v6030 = vpop.f32.mrb[0].mxu0
      %v6031 = vadd.f32 0.0, %v6030
      %v6032 = vpop.f32.mrb[0].mxu0
      %v6033 = vadd.f32 0.0, %v6032
      %6034 = vmatprep.mubr.bf16.mxu0 %v5786
      %6035 = vmatmul.mubr.bf16.gmra.mrb[0].mxu0 %v5785
      %v6036 = vpop.f32.mrb[0].mxu0
      %v6037 = vadd.f32 0.0, %v6036
      %v6038 = vpop.f32.mrb[0].mxu0
      %v6039 = vadd.f32 0.0, %v6038
      %v6040 = vpop.f32.mrb[0].mxu0
      %v6041 = vadd.f32 0.0, %v6040
      %v6042 = vpop.f32.mrb[0].mxu0
      %v6043 = vadd.f32 0.0, %v6042
      %6044 = vmatprep.mubr.bf16.mxu0 %v5788
      %6045 = vmatmul.mubr.bf16.gmra.mrb[0].mxu0 %v5787
      %v6046 = vpop.f32.mrb[0].mxu0
      %v6047 = vadd.f32 0.0, %v6046
      %v6048 = vpop.f32.mrb[0].mxu0
      %v6049 = vadd.f32 0.0, %v6048
      %v6050 = vpop.f32.mrb[0].mxu0
      %v6051 = vadd.f32 0.0, %v6050
      %v6052 = vpop.f32.mrb[0].mxu0
      %v6053 = vadd.f32 0.0, %v6052
      %6054 = vdwg.mxu0
      %v6055 = vadd.f32 %v5637, %v6017
      %v6056 = vadd.f32 %v5638, %v6019
      %v6057 = vadd.f32 %v5639, %v6021
      %v6058 = vadd.f32 %v5640, %v6023
      %v6059 = vadd.f32 %v5641, %v6027
      %v6060 = vadd.f32 %v5642, %v6029
      %v6061 = vadd.f32 %v5643, %v6031
      %v6062 = vadd.f32 %v5644, %v6033
      %v6063 = vadd.f32 %v5645, %v6037
      %v6064 = vadd.f32 %v5646, %v6039
      %v6065 = vadd.f32 %v5647, %v6041
      %v6066 = vadd.f32 %v5648, %v6043
      %v6067 = vadd.f32 %v5649, %v6047
      %v6068 = vadd.f32 %v5650, %v6049
      %v6069 = vadd.f32 %v5651, %v6051
      %v6070 = vadd.f32 %v5652, %v6053
      %v6071 = vld [vmem:[%s627] sm:$0xfc]
      %v6072 = vld [vmem:[%s627 + $0x8] sm:$0xfc]
      %v6073 = vld [vmem:[%s627 + $0x10] sm:$0x3]
      %v6074 = vld [vmem:[%s627 + $0x18] sm:$0x3]
      %v6075 = vld [vmem:[%s627 + $0x20] sm:$0xfc]
      %v6076 = vld [vmem:[%s627 + $0x28] sm:$0xfc]
      %v6077 = vld [vmem:[%s627 + $0x30] sm:$0x3]
      %v6078 = vld [vmem:[%s627 + $0x38] sm:$0x3]
      %v6079 = vld [vmem:[%s627 + $0x40] sm:$0xfc]
      %v6080 = vld [vmem:[%s627 + $0x48] sm:$0xfc]
      %v6081 = vld [vmem:[%s627 + $0x50] sm:$0x3]
      %v6082 = vld [vmem:[%s627 + $0x58] sm:$0x3]
      %v6083 = vld [vmem:[%s627 + $0x60] sm:$0xfc]
      %v6084 = vld [vmem:[%s627 + $0x68] sm:$0xfc]
      %v6085 = vld [vmem:[%s627 + $0x70] sm:$0x3]
      %v6086 = vld [vmem:[%s627 + $0x78] sm:$0x3]
      %v6087 = vld [vmem:[%s627 + $0x80] sm:$0xfc]
      %v6088 = vld [vmem:[%s627 + $0x88] sm:$0xfc]
      %v6089 = vld [vmem:[%s627 + $0x90] sm:$0x3]
      %v6090 = vld [vmem:[%s627 + $0x98] sm:$0x3]
      %v6091 = vld [vmem:[%s627 + $0xa0] sm:$0xfc]
      %v6092 = vld [vmem:[%s627 + $0xa8] sm:$0xfc]
      %v6093 = vld [vmem:[%s627 + $0xb0] sm:$0x3]
      %v6094 = vld [vmem:[%s627 + $0xb8] sm:$0x3]
      %v6095 = vld [vmem:[%s627 + $0xc0] sm:$0xfc]
      %v6096 = vld [vmem:[%s627 + $0xc8] sm:$0xfc]
      %v6097 = vld [vmem:[%s627 + $0xd0] sm:$0x3]
      %v6098 = vld [vmem:[%s627 + $0xd8] sm:$0x3]
      %v6099 = vld [vmem:[%s627 + $0xe0] sm:$0xfc]
      %v6100 = vld [vmem:[%s627 + $0xe8] sm:$0xfc]
      %v6101 = vld [vmem:[%s627 + $0xf0] sm:$0x3]
      %v6102 = vld [vmem:[%s627 + $0xf8] sm:$0x3]
      %v6135 = vrot.slane %v6071, 2
      %v6136 = vrot.slane %v6073, 2
      %v6137 = vsel %vm1416, %v6135, %v6136
      %v6138 = vrot.slane %v6072, 2
      %v6139 = vrot.slane %v6074, 2
      %v6140 = vsel %vm1416, %v6138, %v6139
      %v6141 = vrot.slane %v6075, 2
      %v6142 = vrot.slane %v6077, 2
      %v6143 = vsel %vm1416, %v6141, %v6142
      %v6144 = vrot.slane %v6076, 2
      %v6145 = vrot.slane %v6078, 2
      %v6146 = vsel %vm1416, %v6144, %v6145
      %v6147 = vrot.slane %v6079, 2
      %v6148 = vrot.slane %v6081, 2
      %v6149 = vsel %vm1416, %v6147, %v6148
      %v6150 = vrot.slane %v6080, 2
      %v6151 = vrot.slane %v6082, 2
      %v6152 = vsel %vm1416, %v6150, %v6151
      %v6153 = vrot.slane %v6083, 2
      %v6154 = vrot.slane %v6085, 2
      %v6155 = vsel %vm1416, %v6153, %v6154
      %v6156 = vrot.slane %v6084, 2
      %v6157 = vrot.slane %v6086, 2
      %v6158 = vsel %vm1416, %v6156, %v6157
      %v6159 = vrot.slane %v6087, 2
      %v6160 = vrot.slane %v6089, 2
      %v6161 = vsel %vm1416, %v6159, %v6160
      %v6162 = vrot.slane %v6088, 2
      %v6163 = vrot.slane %v6090, 2
      %v6164 = vsel %vm1416, %v6162, %v6163
      %v6165 = vrot.slane %v6091, 2
      %v6166 = vrot.slane %v6093, 2
      %v6167 = vsel %vm1416, %v6165, %v6166
      %v6168 = vrot.slane %v6092, 2
      %v6169 = vrot.slane %v6094, 2
      %v6170 = vsel %vm1416, %v6168, %v6169
      %v6171 = vrot.slane %v6095, 2
      %v6172 = vrot.slane %v6097, 2
      %v6173 = vsel %vm1416, %v6171, %v6172
      %v6174 = vrot.slane %v6096, 2
      %v6175 = vrot.slane %v6098, 2
      %v6176 = vsel %vm1416, %v6174, %v6175
      %v6177 = vrot.slane %v6099, 2
      %v6178 = vrot.slane %v6101, 2
      %v6179 = vsel %vm1416, %v6177, %v6178
      %v6180 = vrot.slane %v6100, 2
      %v6181 = vrot.slane %v6102, 2
      %v6182 = vsel %vm1416, %v6180, %v6181
      %v6199 = vpack.c.bf16 %v6143, %v6137
      %v6200 = vpack.c.bf16 %v6146, %v6140
      %v6201 = vpack.c.bf16 %v6155, %v6149
      %v6202 = vpack.c.bf16 %v6158, %v6152
      %v6203 = vpack.c.bf16 %v6167, %v6161
      %v6204 = vpack.c.bf16 %v6170, %v6164
      %v6205 = vpack.c.bf16 %v6179, %v6173
      %v6206 = vpack.c.bf16 %v6182, %v6176
      %s6207 = scalar_lea.vmem %s5, 1280
      %v6208 = vld [vmem:[%s6207] sm:$0xff]
      %v6209 = vld [vmem:[%s6207 + $0x8] sm:$0xff]
      %v6210 = vld [vmem:[%s6207 + $0x10] sm:$0xff]
      %v6211 = vld [vmem:[%s6207 + $0x18] sm:$0xff]
      %v6212 = vld [vmem:[%s6207 + $0x20] sm:$0xff]
      %v6213 = vld [vmem:[%s6207 + $0x28] sm:$0xff]
      %v6214 = vld [vmem:[%s6207 + $0x30] sm:$0xff]
      %v6215 = vld [vmem:[%s6207 + $0x38] sm:$0xff]
      %v6216 = vld [vmem:[%s6207 + $0x40] sm:$0xff]
      %v6217 = vld [vmem:[%s6207 + $0x48] sm:$0xff]
      %v6218 = vld [vmem:[%s6207 + $0x50] sm:$0xff]
      %v6219 = vld [vmem:[%s6207 + $0x58] sm:$0xff]
      %v6220 = vld [vmem:[%s6207 + $0x60] sm:$0xff]
      %v6221 = vld [vmem:[%s6207 + $0x68] sm:$0xff]
      %v6222 = vld [vmem:[%s6207 + $0x70] sm:$0xff]
      %v6223 = vld [vmem:[%s6207 + $0x78] sm:$0xff]
      %v6224 = vld [vmem:[%s6207 + $0x80] sm:$0xff]
      %v6225 = vld [vmem:[%s6207 + $0x88] sm:$0xff]
      %v6226 = vld [vmem:[%s6207 + $0x90] sm:$0xff]
      %v6227 = vld [vmem:[%s6207 + $0x98] sm:$0xff]
      %v6228 = vld [vmem:[%s6207 + $0xa0] sm:$0xff]
      %v6229 = vld [vmem:[%s6207 + $0xa8] sm:$0xff]
      %v6230 = vld [vmem:[%s6207 + $0xb0] sm:$0xff]
      %v6231 = vld [vmem:[%s6207 + $0xb8] sm:$0xff]
      %v6232 = vld [vmem:[%s6207 + $0xc0] sm:$0xff]
      %v6233 = vld [vmem:[%s6207 + $0xc8] sm:$0xff]
      %v6234 = vld [vmem:[%s6207 + $0xd0] sm:$0xff]
      %v6235 = vld [vmem:[%s6207 + $0xd8] sm:$0xff]
      %v6236 = vld [vmem:[%s6207 + $0xe0] sm:$0xff]
      %v6237 = vld [vmem:[%s6207 + $0xe8] sm:$0xff]
      %v6238 = vld [vmem:[%s6207 + $0xf0] sm:$0xff]
      %v6239 = vld [vmem:[%s6207 + $0xf8] sm:$0xff]
      %v6272 = vunpack.c.l.b16 %v6208
      %v6273 = vunpack.c.h.b16 %v6208
      %v6274 = vunpack.c.l.b16 %v6209
      %v6275 = vunpack.c.h.b16 %v6209
      %v6276 = vunpack.c.l.b16 %v6210
      %v6277 = vunpack.c.h.b16 %v6210
      %v6278 = vunpack.c.l.b16 %v6211
      %v6279 = vunpack.c.h.b16 %v6211
      %v6280 = vunpack.c.l.b16 %v6212
      %v6281 = vunpack.c.h.b16 %v6212
      %v6282 = vunpack.c.l.b16 %v6213
      %v6283 = vunpack.c.h.b16 %v6213
      %v6284 = vunpack.c.l.b16 %v6214
      %v6285 = vunpack.c.h.b16 %v6214
      %v6286 = vunpack.c.l.b16 %v6215
      %v6287 = vunpack.c.h.b16 %v6215
      %v6288 = vunpack.c.l.b16 %v6216
      %v6289 = vunpack.c.h.b16 %v6216
      %v6290 = vunpack.c.l.b16 %v6217
      %v6291 = vunpack.c.h.b16 %v6217
      %v6292 = vunpack.c.l.b16 %v6218
      %v6293 = vunpack.c.h.b16 %v6218
      %v6294 = vunpack.c.l.b16 %v6219
      %v6295 = vunpack.c.h.b16 %v6219
      %v6296 = vunpack.c.l.b16 %v6220
      %v6297 = vunpack.c.h.b16 %v6220
      %v6298 = vunpack.c.l.b16 %v6221
      %v6299 = vunpack.c.h.b16 %v6221
      %v6300 = vunpack.c.l.b16 %v6222
      %v6301 = vunpack.c.h.b16 %v6222
      %v6302 = vunpack.c.l.b16 %v6223
      %v6303 = vunpack.c.h.b16 %v6223
      %v6304 = vunpack.c.l.b16 %v6224
      %v6305 = vunpack.c.h.b16 %v6224
      %v6306 = vunpack.c.l.b16 %v6225
      %v6307 = vunpack.c.h.b16 %v6225
      %v6308 = vunpack.c.l.b16 %v6226
      %v6309 = vunpack.c.h.b16 %v6226
      %v6310 = vunpack.c.l.b16 %v6227
      %v6311 = vunpack.c.h.b16 %v6227
      %v6312 = vunpack.c.l.b16 %v6228
      %v6313 = vunpack.c.h.b16 %v6228
      %v6314 = vunpack.c.l.b16 %v6229
      %v6315 = vunpack.c.h.b16 %v6229
      %v6316 = vunpack.c.l.b16 %v6230
      %v6317 = vunpack.c.h.b16 %v6230
      %v6318 = vunpack.c.l.b16 %v6231
      %v6319 = vunpack.c.h.b16 %v6231
      %v6320 = vunpack.c.l.b16 %v6232
      %v6321 = vunpack.c.h.b16 %v6232
      %v6322 = vunpack.c.l.b16 %v6233
      %v6323 = vunpack.c.h.b16 %v6233
      %v6324 = vunpack.c.l.b16 %v6234
      %v6325 = vunpack.c.h.b16 %v6234
      %v6326 = vunpack.c.l.b16 %v6235
      %v6327 = vunpack.c.h.b16 %v6235
      %v6328 = vunpack.c.l.b16 %v6236
      %v6329 = vunpack.c.h.b16 %v6236
      %v6330 = vunpack.c.l.b16 %v6237
      %v6331 = vunpack.c.h.b16 %v6237
      %v6332 = vunpack.c.l.b16 %v6238
      %v6333 = vunpack.c.h.b16 %v6238
      %v6334 = vunpack.c.l.b16 %v6239
      %v6335 = vunpack.c.h.b16 %v6239
      %v6336 = vpack.c.b16 %v6274, %v6272
      %v6337 = vpack.c.b16 %v6275, %v6273
      %v6338 = vpack.c.b16 %v6278, %v6276
      %v6339 = vpack.c.b16 %v6279, %v6277
      %v6340 = vpack.c.b16 %v6282, %v6280
      %v6341 = vpack.c.b16 %v6283, %v6281
      %v6342 = vpack.c.b16 %v6286, %v6284
      %v6343 = vpack.c.b16 %v6287, %v6285
      %v6344 = vpack.c.b16 %v6290, %v6288
      %v6345 = vpack.c.b16 %v6291, %v6289
      %v6346 = vpack.c.b16 %v6294, %v6292
      %v6347 = vpack.c.b16 %v6295, %v6293
      %v6348 = vpack.c.b16 %v6298, %v6296
      %v6349 = vpack.c.b16 %v6299, %v6297
      %v6350 = vpack.c.b16 %v6302, %v6300
      %v6351 = vpack.c.b16 %v6303, %v6301
      %v6352 = vpack.c.b16 %v6306, %v6304
      %v6353 = vpack.c.b16 %v6307, %v6305
      %v6354 = vpack.c.b16 %v6310, %v6308
      %v6355 = vpack.c.b16 %v6311, %v6309
      %v6356 = vpack.c.b16 %v6314, %v6312
      %v6357 = vpack.c.b16 %v6315, %v6313
      %v6358 = vpack.c.b16 %v6318, %v6316
      %v6359 = vpack.c.b16 %v6319, %v6317
      %v6360 = vpack.c.b16 %v6322, %v6320
      %v6361 = vpack.c.b16 %v6323, %v6321
      %v6362 = vpack.c.b16 %v6326, %v6324
      %v6363 = vpack.c.b16 %v6327, %v6325
      %v6364 = vpack.c.b16 %v6330, %v6328
      %v6365 = vpack.c.b16 %v6331, %v6329
      %v6366 = vpack.c.b16 %v6334, %v6332
      %v6367 = vpack.c.b16 %v6335, %v6333
      %6400 = vmatprep.subr.bf16.mxu0 %v6337
      %6401 = vmatpush1.bf16.msra.mxu0 %v6336
      %6402 = vmatprep.subr.bf16.mxu0 %v6339
      %6403 = vmatpush1.bf16.msra.mxu0 %v6338
      %6404 = vmatprep.subr.bf16.mxu0 %v6341
      %6405 = vmatpush1.bf16.msra.mxu0 %v6340
      %6406 = vmatprep.subr.bf16.mxu0 %v6343
      %6407 = vmatpush1.bf16.msra.mxu0 %v6342
      %6408 = vmatprep.subr.bf16.mxu0 %v6345
      %6409 = vmatpush1.bf16.msra.mxu0 %v6344
      %6410 = vmatprep.subr.bf16.mxu0 %v6347
      %6411 = vmatpush1.bf16.msra.mxu0 %v6346
      %6412 = vmatprep.subr.bf16.mxu0 %v6349
      %6413 = vmatpush1.bf16.msra.mxu0 %v6348
      %6414 = vmatprep.subr.bf16.mxu0 %v6351
      %6415 = vmatpush1.bf16.msra.mxu0 %v6350
      %6416 = vmatprep.subr.bf16.mxu0 %v6353
      %6417 = vmatpush1.bf16.msra.mxu0 %v6352
      %6418 = vmatprep.subr.bf16.mxu0 %v6355
      %6419 = vmatpush1.bf16.msra.mxu0 %v6354
      %6420 = vmatprep.subr.bf16.mxu0 %v6357
      %6421 = vmatpush1.bf16.msra.mxu0 %v6356
      %6422 = vmatprep.subr.bf16.mxu0 %v6359
      %6423 = vmatpush1.bf16.msra.mxu0 %v6358
      %6424 = vmatprep.subr.bf16.mxu0 %v6361
      %6425 = vmatpush1.bf16.msra.mxu0 %v6360
      %6426 = vmatprep.subr.bf16.mxu0 %v6363
      %6427 = vmatpush1.bf16.msra.mxu0 %v6362
      %6428 = vmatprep.subr.bf16.mxu0 %v6365
      %6429 = vmatpush1.bf16.msra.mxu0 %v6364
      %6430 = vmatprep.subr.bf16.mxu0 %v6367
      %6431 = vmatpush1.bf16.msra.mxu0 %v6366
      %6432 = vmatprep.mubr.bf16.mxu0 %v6200
      %6433 = vmatmul.mubr.bf16.gmra.mrb[0].mxu0 %v6199
      %v6434 = vpop.f32.mrb[0].mxu0
      %v6435 = vadd.f32 0.0, %v6434
      %v6436 = vpop.f32.mrb[0].mxu0
      %v6437 = vadd.f32 0.0, %v6436
      %v6438 = vpop.f32.mrb[0].mxu0
      %v6439 = vadd.f32 0.0, %v6438
      %v6440 = vpop.f32.mrb[0].mxu0
      %v6441 = vadd.f32 0.0, %v6440
      %6442 = vmatprep.mubr.bf16.mxu0 %v6202
      %6443 = vmatmul.mubr.bf16.gmra.mrb[0].mxu0 %v6201
      %v6444 = vpop.f32.mrb[0].mxu0
      %v6445 = vadd.f32 0.0, %v6444
      %v6446 = vpop.f32.mrb[0].mxu0
      %v6447 = vadd.f32 0.0, %v6446
      %v6448 = vpop.f32.mrb[0].mxu0
      %v6449 = vadd.f32 0.0, %v6448
      %v6450 = vpop.f32.mrb[0].mxu0
      %v6451 = vadd.f32 0.0, %v6450
      %6452 = vmatprep.mubr.bf16.mxu0 %v6204
      %6453 = vmatmul.mubr.bf16.gmra.mrb[0].mxu0 %v6203
      %v6454 = vpop.f32.mrb[0].mxu0
      %v6455 = vadd.f32 0.0, %v6454
      %v6456 = vpop.f32.mrb[0].mxu0
      %v6457 = vadd.f32 0.0, %v6456
      %v6458 = vpop.f32.mrb[0].mxu0
      %v6459 = vadd.f32 0.0, %v6458
      %v6460 = vpop.f32.mrb[0].mxu0
      %v6461 = vadd.f32 0.0, %v6460
      %6462 = vmatprep.mubr.bf16.mxu0 %v6206
      %6463 = vmatmul.mubr.bf16.gmra.mrb[0].mxu0 %v6205
      %v6464 = vpop.f32.mrb[0].mxu0
      %v6465 = vadd.f32 0.0, %v6464
      %v6466 = vpop.f32.mrb[0].mxu0
      %v6467 = vadd.f32 0.0, %v6466
      %v6468 = vpop.f32.mrb[0].mxu0
      %v6469 = vadd.f32 0.0, %v6468
      %v6470 = vpop.f32.mrb[0].mxu0
      %v6471 = vadd.f32 0.0, %v6470
      %6472 = vdwg.mxu0
      %v6473 = vadd.f32 %v6055, %v6435
      %v6474 = vadd.f32 %v6056, %v6437
      %v6475 = vadd.f32 %v6057, %v6439
      %v6476 = vadd.f32 %v6058, %v6441
      %v6477 = vadd.f32 %v6059, %v6445
      %v6478 = vadd.f32 %v6060, %v6447
      %v6479 = vadd.f32 %v6061, %v6449
      %v6480 = vadd.f32 %v6062, %v6451
      %v6481 = vadd.f32 %v6063, %v6455
      %v6482 = vadd.f32 %v6064, %v6457
      %v6483 = vadd.f32 %v6065, %v6459
      %v6484 = vadd.f32 %v6066, %v6461
      %v6485 = vadd.f32 %v6067, %v6465
      %v6486 = vadd.f32 %v6068, %v6467
      %v6487 = vadd.f32 %v6069, %v6469
      %v6488 = vadd.f32 %v6070, %v6471
      %v6489 = vld [vmem:[%s2913] sm:$0xff]
      %v6490 = vld [vmem:[%s2913 + $0x8] sm:$0xff]
      %v6491 = vld [vmem:[%s2913 + $0x20] sm:$0xff]
      %v6492 = vld [vmem:[%s2913 + $0x28] sm:$0xff]
      %v6493 = vld [vmem:[%s2913 + $0x40] sm:$0xff]
      %v6494 = vld [vmem:[%s2913 + $0x48] sm:$0xff]
      %v6495 = vld [vmem:[%s2913 + $0x60] sm:$0xff]
      %v6496 = vld [vmem:[%s2913 + $0x68] sm:$0xff]
      %v6497 = vld [vmem:[%s2913 + $0x80] sm:$0xff]
      %v6498 = vld [vmem:[%s2913 + $0x88] sm:$0xff]
      %v6499 = vld [vmem:[%s2913 + $0xa0] sm:$0xff]
      %v6500 = vld [vmem:[%s2913 + $0xa8] sm:$0xff]
      %v6501 = vld [vmem:[%s2913 + $0xc0] sm:$0xff]
      %v6502 = vld [vmem:[%s2913 + $0xc8] sm:$0xff]
      %v6503 = vld [vmem:[%s2913 + $0xe0] sm:$0xff]
      %v6504 = vld [vmem:[%s2913 + $0xe8] sm:$0xff]
      %v6505 = vpack.c.bf16 %v6491, %v6489
      %v6506 = vpack.c.bf16 %v6492, %v6490
      %v6507 = vpack.c.bf16 %v6495, %v6493
      %v6508 = vpack.c.bf16 %v6496, %v6494
      %v6509 = vpack.c.bf16 %v6499, %v6497
      %v6510 = vpack.c.bf16 %v6500, %v6498
      %v6511 = vpack.c.bf16 %v6503, %v6501
      %v6512 = vpack.c.bf16 %v6504, %v6502
      %s6513 = scalar_lea.vmem %s5, 1536
      %v6514 = vld [vmem:[%s6513] sm:$0xff]
      %v6515 = vld [vmem:[%s6513 + $0x8] sm:$0xff]
      %v6516 = vld [vmem:[%s6513 + $0x10] sm:$0xff]
      %v6517 = vld [vmem:[%s6513 + $0x18] sm:$0xff]
      %v6518 = vld [vmem:[%s6513 + $0x20] sm:$0xff]
      %v6519 = vld [vmem:[%s6513 + $0x28] sm:$0xff]
      %v6520 = vld [vmem:[%s6513 + $0x30] sm:$0xff]
      %v6521 = vld [vmem:[%s6513 + $0x38] sm:$0xff]
      %v6522 = vld [vmem:[%s6513 + $0x40] sm:$0xff]
      %v6523 = vld [vmem:[%s6513 + $0x48] sm:$0xff]
      %v6524 = vld [vmem:[%s6513 + $0x50] sm:$0xff]
      %v6525 = vld [vmem:[%s6513 + $0x58] sm:$0xff]
      %v6526 = vld [vmem:[%s6513 + $0x60] sm:$0xff]
      %v6527 = vld [vmem:[%s6513 + $0x68] sm:$0xff]
      %v6528 = vld [vmem:[%s6513 + $0x70] sm:$0xff]
      %v6529 = vld [vmem:[%s6513 + $0x78] sm:$0xff]
      %v6530 = vld [vmem:[%s6513 + $0x80] sm:$0xff]
      %v6531 = vld [vmem:[%s6513 + $0x88] sm:$0xff]
      %v6532 = vld [vmem:[%s6513 + $0x90] sm:$0xff]
      %v6533 = vld [vmem:[%s6513 + $0x98] sm:$0xff]
      %v6534 = vld [vmem:[%s6513 + $0xa0] sm:$0xff]
      %v6535 = vld [vmem:[%s6513 + $0xa8] sm:$0xff]
      %v6536 = vld [vmem:[%s6513 + $0xb0] sm:$0xff]
      %v6537 = vld [vmem:[%s6513 + $0xb8] sm:$0xff]
      %v6538 = vld [vmem:[%s6513 + $0xc0] sm:$0xff]
      %v6539 = vld [vmem:[%s6513 + $0xc8] sm:$0xff]
      %v6540 = vld [vmem:[%s6513 + $0xd0] sm:$0xff]
      %v6541 = vld [vmem:[%s6513 + $0xd8] sm:$0xff]
      %v6542 = vld [vmem:[%s6513 + $0xe0] sm:$0xff]
      %v6543 = vld [vmem:[%s6513 + $0xe8] sm:$0xff]
      %v6544 = vld [vmem:[%s6513 + $0xf0] sm:$0xff]
      %v6545 = vld [vmem:[%s6513 + $0xf8] sm:$0xff]
      %v6578 = vunpack.c.l.b16 %v6514
      %v6579 = vunpack.c.h.b16 %v6514
      %v6580 = vunpack.c.l.b16 %v6515
      %v6581 = vunpack.c.h.b16 %v6515
      %v6582 = vunpack.c.l.b16 %v6516
      %v6583 = vunpack.c.h.b16 %v6516
      %v6584 = vunpack.c.l.b16 %v6517
      %v6585 = vunpack.c.h.b16 %v6517
      %v6586 = vunpack.c.l.b16 %v6518
      %v6587 = vunpack.c.h.b16 %v6518
      %v6588 = vunpack.c.l.b16 %v6519
      %v6589 = vunpack.c.h.b16 %v6519
      %v6590 = vunpack.c.l.b16 %v6520
      %v6591 = vunpack.c.h.b16 %v6520
      %v6592 = vunpack.c.l.b16 %v6521
      %v6593 = vunpack.c.h.b16 %v6521
      %v6594 = vunpack.c.l.b16 %v6522
      %v6595 = vunpack.c.h.b16 %v6522
      %v6596 = vunpack.c.l.b16 %v6523
      %v6597 = vunpack.c.h.b16 %v6523
      %v6598 = vunpack.c.l.b16 %v6524
      %v6599 = vunpack.c.h.b16 %v6524
      %v6600 = vunpack.c.l.b16 %v6525
      %v6601 = vunpack.c.h.b16 %v6525
      %v6602 = vunpack.c.l.b16 %v6526
      %v6603 = vunpack.c.h.b16 %v6526
      %v6604 = vunpack.c.l.b16 %v6527
      %v6605 = vunpack.c.h.b16 %v6527
      %v6606 = vunpack.c.l.b16 %v6528
      %v6607 = vunpack.c.h.b16 %v6528
      %v6608 = vunpack.c.l.b16 %v6529
      %v6609 = vunpack.c.h.b16 %v6529
      %v6610 = vunpack.c.l.b16 %v6530
      %v6611 = vunpack.c.h.b16 %v6530
      %v6612 = vunpack.c.l.b16 %v6531
      %v6613 = vunpack.c.h.b16 %v6531
      %v6614 = vunpack.c.l.b16 %v6532
      %v6615 = vunpack.c.h.b16 %v6532
      %v6616 = vunpack.c.l.b16 %v6533
      %v6617 = vunpack.c.h.b16 %v6533
      %v6618 = vunpack.c.l.b16 %v6534
      %v6619 = vunpack.c.h.b16 %v6534
      %v6620 = vunpack.c.l.b16 %v6535
      %v6621 = vunpack.c.h.b16 %v6535
      %v6622 = vunpack.c.l.b16 %v6536
      %v6623 = vunpack.c.h.b16 %v6536
      %v6624 = vunpack.c.l.b16 %v6537
      %v6625 = vunpack.c.h.b16 %v6537
      %v6626 = vunpack.c.l.b16 %v6538
      %v6627 = vunpack.c.h.b16 %v6538
      %v6628 = vunpack.c.l.b16 %v6539
      %v6629 = vunpack.c.h.b16 %v6539
      %v6630 = vunpack.c.l.b16 %v6540
      %v6631 = vunpack.c.h.b16 %v6540
      %v6632 = vunpack.c.l.b16 %v6541
      %v6633 = vunpack.c.h.b16 %v6541
      %v6634 = vunpack.c.l.b16 %v6542
      %v6635 = vunpack.c.h.b16 %v6542
      %v6636 = vunpack.c.l.b16 %v6543
      %v6637 = vunpack.c.h.b16 %v6543
      %v6638 = vunpack.c.l.b16 %v6544
      %v6639 = vunpack.c.h.b16 %v6544
      %v6640 = vunpack.c.l.b16 %v6545
      %v6641 = vunpack.c.h.b16 %v6545
      %v6642 = vpack.c.b16 %v6580, %v6578
      %v6643 = vpack.c.b16 %v6581, %v6579
      %v6644 = vpack.c.b16 %v6584, %v6582
      %v6645 = vpack.c.b16 %v6585, %v6583
      %v6646 = vpack.c.b16 %v6588, %v6586
      %v6647 = vpack.c.b16 %v6589, %v6587
      %v6648 = vpack.c.b16 %v6592, %v6590
      %v6649 = vpack.c.b16 %v6593, %v6591
      %v6650 = vpack.c.b16 %v6596, %v6594
      %v6651 = vpack.c.b16 %v6597, %v6595
      %v6652 = vpack.c.b16 %v6600, %v6598
      %v6653 = vpack.c.b16 %v6601, %v6599
      %v6654 = vpack.c.b16 %v6604, %v6602
      %v6655 = vpack.c.b16 %v6605, %v6603
      %v6656 = vpack.c.b16 %v6608, %v6606
      %v6657 = vpack.c.b16 %v6609, %v6607
      %v6658 = vpack.c.b16 %v6612, %v6610
      %v6659 = vpack.c.b16 %v6613, %v6611
      %v6660 = vpack.c.b16 %v6616, %v6614
      %v6661 = vpack.c.b16 %v6617, %v6615
      %v6662 = vpack.c.b16 %v6620, %v6618
      %v6663 = vpack.c.b16 %v6621, %v6619
      %v6664 = vpack.c.b16 %v6624, %v6622
      %v6665 = vpack.c.b16 %v6625, %v6623
      %v6666 = vpack.c.b16 %v6628, %v6626
      %v6667 = vpack.c.b16 %v6629, %v6627
      %v6668 = vpack.c.b16 %v6632, %v6630
      %v6669 = vpack.c.b16 %v6633, %v6631
      %v6670 = vpack.c.b16 %v6636, %v6634
      %v6671 = vpack.c.b16 %v6637, %v6635
      %v6672 = vpack.c.b16 %v6640, %v6638
      %v6673 = vpack.c.b16 %v6641, %v6639
      %6706 = vmatprep.subr.bf16.mxu0 %v6643
      %6707 = vmatpush1.bf16.msra.mxu0 %v6642
      %6708 = vmatprep.subr.bf16.mxu0 %v6645
      %6709 = vmatpush1.bf16.msra.mxu0 %v6644
      %6710 = vmatprep.subr.bf16.mxu0 %v6647
      %6711 = vmatpush1.bf16.msra.mxu0 %v6646
      %6712 = vmatprep.subr.bf16.mxu0 %v6649
      %6713 = vmatpush1.bf16.msra.mxu0 %v6648
      %6714 = vmatprep.subr.bf16.mxu0 %v6651
      %6715 = vmatpush1.bf16.msra.mxu0 %v6650
      %6716 = vmatprep.subr.bf16.mxu0 %v6653
      %6717 = vmatpush1.bf16.msra.mxu0 %v6652
      %6718 = vmatprep.subr.bf16.mxu0 %v6655
      %6719 = vmatpush1.bf16.msra.mxu0 %v6654
      %6720 = vmatprep.subr.bf16.mxu0 %v6657
      %6721 = vmatpush1.bf16.msra.mxu0 %v6656
      %6722 = vmatprep.subr.bf16.mxu0 %v6659
      %6723 = vmatpush1.bf16.msra.mxu0 %v6658
      %6724 = vmatprep.subr.bf16.mxu0 %v6661
      %6725 = vmatpush1.bf16.msra.mxu0 %v6660
      %6726 = vmatprep.subr.bf16.mxu0 %v6663
      %6727 = vmatpush1.bf16.msra.mxu0 %v6662
      %6728 = vmatprep.subr.bf16.mxu0 %v6665
      %6729 = vmatpush1.bf16.msra.mxu0 %v6664
      %6730 = vmatprep.subr.bf16.mxu0 %v6667
      %6731 = vmatpush1.bf16.msra.mxu0 %v6666
      %6732 = vmatprep.subr.bf16.mxu0 %v6669
      %6733 = vmatpush1.bf16.msra.mxu0 %v6668
      %6734 = vmatprep.subr.bf16.mxu0 %v6671
      %6735 = vmatpush1.bf16.msra.mxu0 %v6670
      %6736 = vmatprep.subr.bf16.mxu0 %v6673
      %6737 = vmatpush1.bf16.msra.mxu0 %v6672
      %6738 = vmatprep.mubr.bf16.mxu0 %v6506
      %6739 = vmatmul.mubr.bf16.gmra.mrb[0].mxu0 %v6505
      %v6740 = vpop.f32.mrb[0].mxu0
      %v6741 = vadd.f32 0.0, %v6740
      %v6742 = vpop.f32.mrb[0].mxu0
      %v6743 = vadd.f32 0.0, %v6742
      %v6744 = vpop.f32.mrb[0].mxu0
      %v6745 = vadd.f32 0.0, %v6744
      %v6746 = vpop.f32.mrb[0].mxu0
      %v6747 = vadd.f32 0.0, %v6746
      %6748 = vmatprep.mubr.bf16.mxu0 %v6508
      %6749 = vmatmul.mubr.bf16.gmra.mrb[0].mxu0 %v6507
      %v6750 = vpop.f32.mrb[0].mxu0
      %v6751 = vadd.f32 0.0, %v6750
      %v6752 = vpop.f32.mrb[0].mxu0
      %v6753 = vadd.f32 0.0, %v6752
      %v6754 = vpop.f32.mrb[0].mxu0
      %v6755 = vadd.f32 0.0, %v6754
      %v6756 = vpop.f32.mrb[0].mxu0
      %v6757 = vadd.f32 0.0, %v6756
      %6758 = vmatprep.mubr.bf16.mxu0 %v6510
      %6759 = vmatmul.mubr.bf16.gmra.mrb[0].mxu0 %v6509
      %v6760 = vpop.f32.mrb[0].mxu0
      %v6761 = vadd.f32 0.0, %v6760
      %v6762 = vpop.f32.mrb[0].mxu0
      %v6763 = vadd.f32 0.0, %v6762
      %v6764 = vpop.f32.mrb[0].mxu0
      %v6765 = vadd.f32 0.0, %v6764
      %v6766 = vpop.f32.mrb[0].mxu0
      %v6767 = vadd.f32 0.0, %v6766
      %6768 = vmatprep.mubr.bf16.mxu0 %v6512
      %6769 = vmatmul.mubr.bf16.gmra.mrb[0].mxu0 %v6511
      %v6770 = vpop.f32.mrb[0].mxu0
      %v6771 = vadd.f32 0.0, %v6770
      %v6772 = vpop.f32.mrb[0].mxu0
      %v6773 = vadd.f32 0.0, %v6772
      %v6774 = vpop.f32.mrb[0].mxu0
      %v6775 = vadd.f32 0.0, %v6774
      %v6776 = vpop.f32.mrb[0].mxu0
      %v6777 = vadd.f32 0.0, %v6776
      %6778 = vdwg.mxu0
      %v6779 = vadd.f32 %v6473, %v6741
      %v6780 = vadd.f32 %v6474, %v6743
      %v6781 = vadd.f32 %v6475, %v6745
      %v6782 = vadd.f32 %v6476, %v6747
      %v6783 = vadd.f32 %v6477, %v6751
      %v6784 = vadd.f32 %v6478, %v6753
      %v6785 = vadd.f32 %v6479, %v6755
      %v6786 = vadd.f32 %v6480, %v6757
      %v6787 = vadd.f32 %v6481, %v6761
      %v6788 = vadd.f32 %v6482, %v6763
      %v6789 = vadd.f32 %v6483, %v6765
      %v6790 = vadd.f32 %v6484, %v6767
      %v6791 = vadd.f32 %v6485, %v6771
      %v6792 = vadd.f32 %v6486, %v6773
      %v6793 = vadd.f32 %v6487, %v6775
      %v6794 = vadd.f32 %v6488, %v6777
      %v6795 = vld [vmem:[%s2913] sm:$0xfe]
      %v6796 = vld [vmem:[%s2913 + $0x8] sm:$0xfe]
      %v6797 = vld [vmem:[%s2913 + $0x10] sm:$0x1]
      %v6798 = vld [vmem:[%s2913 + $0x18] sm:$0x1]
      %v6799 = vld [vmem:[%s2913 + $0x20] sm:$0xfe]
      %v6800 = vld [vmem:[%s2913 + $0x28] sm:$0xfe]
      %v6801 = vld [vmem:[%s2913 + $0x30] sm:$0x1]
      %v6802 = vld [vmem:[%s2913 + $0x38] sm:$0x1]
      %v6803 = vld [vmem:[%s2913 + $0x40] sm:$0xfe]
      %v6804 = vld [vmem:[%s2913 + $0x48] sm:$0xfe]
      %v6805 = vld [vmem:[%s2913 + $0x50] sm:$0x1]
      %v6806 = vld [vmem:[%s2913 + $0x58] sm:$0x1]
      %v6807 = vld [vmem:[%s2913 + $0x60] sm:$0xfe]
      %v6808 = vld [vmem:[%s2913 + $0x68] sm:$0xfe]
      %v6809 = vld [vmem:[%s2913 + $0x70] sm:$0x1]
      %v6810 = vld [vmem:[%s2913 + $0x78] sm:$0x1]
      %v6811 = vld [vmem:[%s2913 + $0x80] sm:$0xfe]
      %v6812 = vld [vmem:[%s2913 + $0x88] sm:$0xfe]
      %v6813 = vld [vmem:[%s2913 + $0x90] sm:$0x1]
      %v6814 = vld [vmem:[%s2913 + $0x98] sm:$0x1]
      %v6815 = vld [vmem:[%s2913 + $0xa0] sm:$0xfe]
      %v6816 = vld [vmem:[%s2913 + $0xa8] sm:$0xfe]
      %v6817 = vld [vmem:[%s2913 + $0xb0] sm:$0x1]
      %v6818 = vld [vmem:[%s2913 + $0xb8] sm:$0x1]
      %v6819 = vld [vmem:[%s2913 + $0xc0] sm:$0xfe]
      %v6820 = vld [vmem:[%s2913 + $0xc8] sm:$0xfe]
      %v6821 = vld [vmem:[%s2913 + $0xd0] sm:$0x1]
      %v6822 = vld [vmem:[%s2913 + $0xd8] sm:$0x1]
      %v6823 = vld [vmem:[%s2913 + $0xe0] sm:$0xfe]
      %v6824 = vld [vmem:[%s2913 + $0xe8] sm:$0xfe]
      %v6825 = vld [vmem:[%s2913 + $0xf0] sm:$0x1]
      %v6826 = vld [vmem:[%s2913 + $0xf8] sm:$0x1]
      %v6859 = vrot.slane %v6795, 1
      %v6860 = vrot.slane %v6797, 1
      %v6861 = vsel %vm780, %v6859, %v6860
      %v6862 = vrot.slane %v6796, 1
      %v6863 = vrot.slane %v6798, 1
      %v6864 = vsel %vm780, %v6862, %v6863
      %v6865 = vrot.slane %v6799, 1
      %v6866 = vrot.slane %v6801, 1
      %v6867 = vsel %vm780, %v6865, %v6866
      %v6868 = vrot.slane %v6800, 1
      %v6869 = vrot.slane %v6802, 1
      %v6870 = vsel %vm780, %v6868, %v6869
      %v6871 = vrot.slane %v6803, 1
      %v6872 = vrot.slane %v6805, 1
      %v6873 = vsel %vm780, %v6871, %v6872
      %v6874 = vrot.slane %v6804, 1
      %v6875 = vrot.slane %v6806, 1
      %v6876 = vsel %vm780, %v6874, %v6875
      %v6877 = vrot.slane %v6807, 1
      %v6878 = vrot.slane %v6809, 1
      %v6879 = vsel %vm780, %v6877, %v6878
      %v6880 = vrot.slane %v6808, 1
      %v6881 = vrot.slane %v6810, 1
      %v6882 = vsel %vm780, %v6880, %v6881
      %v6883 = vrot.slane %v6811, 1
      %v6884 = vrot.slane %v6813, 1
      %v6885 = vsel %vm780, %v6883, %v6884
      %v6886 = vrot.slane %v6812, 1
      %v6887 = vrot.slane %v6814, 1
      %v6888 = vsel %vm780, %v6886, %v6887
      %v6889 = vrot.slane %v6815, 1
      %v6890 = vrot.slane %v6817, 1
      %v6891 = vsel %vm780, %v6889, %v6890
      %v6892 = vrot.slane %v6816, 1
      %v6893 = vrot.slane %v6818, 1
      %v6894 = vsel %vm780, %v6892, %v6893
      %v6895 = vrot.slane %v6819, 1
      %v6896 = vrot.slane %v6821, 1
      %v6897 = vsel %vm780, %v6895, %v6896
      %v6898 = vrot.slane %v6820, 1
      %v6899 = vrot.slane %v6822, 1
      %v6900 = vsel %vm780, %v6898, %v6899
      %v6901 = vrot.slane %v6823, 1
      %v6902 = vrot.slane %v6825, 1
      %v6903 = vsel %vm780, %v6901, %v6902
      %v6904 = vrot.slane %v6824, 1
      %v6905 = vrot.slane %v6826, 1
      %v6906 = vsel %vm780, %v6904, %v6905
      %v6923 = vpack.c.bf16 %v6867, %v6861
      %v6924 = vpack.c.bf16 %v6870, %v6864
      %v6925 = vpack.c.bf16 %v6879, %v6873
      %v6926 = vpack.c.bf16 %v6882, %v6876
      %v6927 = vpack.c.bf16 %v6891, %v6885
      %v6928 = vpack.c.bf16 %v6894, %v6888
      %v6929 = vpack.c.bf16 %v6903, %v6897
      %v6930 = vpack.c.bf16 %v6906, %v6900
      %s6931 = scalar_lea.vmem %s5, 1792
      %v6932 = vld [vmem:[%s6931] sm:$0xff]
      %v6933 = vld [vmem:[%s6931 + $0x8] sm:$0xff]
      %v6934 = vld [vmem:[%s6931 + $0x10] sm:$0xff]
      %v6935 = vld [vmem:[%s6931 + $0x18] sm:$0xff]
      %v6936 = vld [vmem:[%s6931 + $0x20] sm:$0xff]
      %v6937 = vld [vmem:[%s6931 + $0x28] sm:$0xff]
      %v6938 = vld [vmem:[%s6931 + $0x30] sm:$0xff]
      %v6939 = vld [vmem:[%s6931 + $0x38] sm:$0xff]
      %v6940 = vld [vmem:[%s6931 + $0x40] sm:$0xff]
      %v6941 = vld [vmem:[%s6931 + $0x48] sm:$0xff]
      %v6942 = vld [vmem:[%s6931 + $0x50] sm:$0xff]
      %v6943 = vld [vmem:[%s6931 + $0x58] sm:$0xff]
      %v6944 = vld [vmem:[%s6931 + $0x60] sm:$0xff]
      %v6945 = vld [vmem:[%s6931 + $0x68] sm:$0xff]
      %v6946 = vld [vmem:[%s6931 + $0x70] sm:$0xff]
      %v6947 = vld [vmem:[%s6931 + $0x78] sm:$0xff]
      %v6948 = vld [vmem:[%s6931 + $0x80] sm:$0xff]
      %v6949 = vld [vmem:[%s6931 + $0x88] sm:$0xff]
      %v6950 = vld [vmem:[%s6931 + $0x90] sm:$0xff]
      %v6951 = vld [vmem:[%s6931 + $0x98] sm:$0xff]
      %v6952 = vld [vmem:[%s6931 + $0xa0] sm:$0xff]
      %v6953 = vld [vmem:[%s6931 + $0xa8] sm:$0xff]
      %v6954 = vld [vmem:[%s6931 + $0xb0] sm:$0xff]
      %v6955 = vld [vmem:[%s6931 + $0xb8] sm:$0xff]
      %v6956 = vld [vmem:[%s6931 + $0xc0] sm:$0xff]
      %v6957 = vld [vmem:[%s6931 + $0xc8] sm:$0xff]
      %v6958 = vld [vmem:[%s6931 + $0xd0] sm:$0xff]
      %v6959 = vld [vmem:[%s6931 + $0xd8] sm:$0xff]
      %v6960 = vld [vmem:[%s6931 + $0xe0] sm:$0xff]
      %v6961 = vld [vmem:[%s6931 + $0xe8] sm:$0xff]
      %v6962 = vld [vmem:[%s6931 + $0xf0] sm:$0xff]
      %v6963 = vld [vmem:[%s6931 + $0xf8] sm:$0xff]
      %v6996 = vunpack.c.l.b16 %v6932
      %v6997 = vunpack.c.h.b16 %v6932
      %v6998 = vunpack.c.l.b16 %v6933
      %v6999 = vunpack.c.h.b16 %v6933
      %v7000 = vunpack.c.l.b16 %v6934
      %v7001 = vunpack.c.h.b16 %v6934
      %v7002 = vunpack.c.l.b16 %v6935
      %v7003 = vunpack.c.h.b16 %v6935
      %v7004 = vunpack.c.l.b16 %v6936
      %v7005 = vunpack.c.h.b16 %v6936
      %v7006 = vunpack.c.l.b16 %v6937
      %v7007 = vunpack.c.h.b16 %v6937
      %v7008 = vunpack.c.l.b16 %v6938
      %v7009 = vunpack.c.h.b16 %v6938
      %v7010 = vunpack.c.l.b16 %v6939
      %v7011 = vunpack.c.h.b16 %v6939
      %v7012 = vunpack.c.l.b16 %v6940
      %v7013 = vunpack.c.h.b16 %v6940
      %v7014 = vunpack.c.l.b16 %v6941
      %v7015 = vunpack.c.h.b16 %v6941
      %v7016 = vunpack.c.l.b16 %v6942
      %v7017 = vunpack.c.h.b16 %v6942
      %v7018 = vunpack.c.l.b16 %v6943
      %v7019 = vunpack.c.h.b16 %v6943
      %v7020 = vunpack.c.l.b16 %v6944
      %v7021 = vunpack.c.h.b16 %v6944
      %v7022 = vunpack.c.l.b16 %v6945
      %v7023 = vunpack.c.h.b16 %v6945
      %v7024 = vunpack.c.l.b16 %v6946
      %v7025 = vunpack.c.h.b16 %v6946
      %v7026 = vunpack.c.l.b16 %v6947
      %v7027 = vunpack.c.h.b16 %v6947
      %v7028 = vunpack.c.l.b16 %v6948
      %v7029 = vunpack.c.h.b16 %v6948
      %v7030 = vunpack.c.l.b16 %v6949
      %v7031 = vunpack.c.h.b16 %v6949
      %v7032 = vunpack.c.l.b16 %v6950
      %v7033 = vunpack.c.h.b16 %v6950
      %v7034 = vunpack.c.l.b16 %v6951
      %v7035 = vunpack.c.h.b16 %v6951
      %v7036 = vunpack.c.l.b16 %v6952
      %v7037 = vunpack.c.h.b16 %v6952
      %v7038 = vunpack.c.l.b16 %v6953
      %v7039 = vunpack.c.h.b16 %v6953
      %v7040 = vunpack.c.l.b16 %v6954
      %v7041 = vunpack.c.h.b16 %v6954
      %v7042 = vunpack.c.l.b16 %v6955
      %v7043 = vunpack.c.h.b16 %v6955
      %v7044 = vunpack.c.l.b16 %v6956
      %v7045 = vunpack.c.h.b16 %v6956
      %v7046 = vunpack.c.l.b16 %v6957
      %v7047 = vunpack.c.h.b16 %v6957
      %v7048 = vunpack.c.l.b16 %v6958
      %v7049 = vunpack.c.h.b16 %v6958
      %v7050 = vunpack.c.l.b16 %v6959
      %v7051 = vunpack.c.h.b16 %v6959
      %v7052 = vunpack.c.l.b16 %v6960
      %v7053 = vunpack.c.h.b16 %v6960
      %v7054 = vunpack.c.l.b16 %v6961
      %v7055 = vunpack.c.h.b16 %v6961
      %v7056 = vunpack.c.l.b16 %v6962
      %v7057 = vunpack.c.h.b16 %v6962
      %v7058 = vunpack.c.l.b16 %v6963
      %v7059 = vunpack.c.h.b16 %v6963
      %v7060 = vpack.c.b16 %v6998, %v6996
      %v7061 = vpack.c.b16 %v6999, %v6997
      %v7062 = vpack.c.b16 %v7002, %v7000
      %v7063 = vpack.c.b16 %v7003, %v7001
      %v7064 = vpack.c.b16 %v7006, %v7004
      %v7065 = vpack.c.b16 %v7007, %v7005
      %v7066 = vpack.c.b16 %v7010, %v7008
      %v7067 = vpack.c.b16 %v7011, %v7009
      %v7068 = vpack.c.b16 %v7014, %v7012
      %v7069 = vpack.c.b16 %v7015, %v7013
      %v7070 = vpack.c.b16 %v7018, %v7016
      %v7071 = vpack.c.b16 %v7019, %v7017
      %v7072 = vpack.c.b16 %v7022, %v7020
      %v7073 = vpack.c.b16 %v7023, %v7021
      %v7074 = vpack.c.b16 %v7026, %v7024
      %v7075 = vpack.c.b16 %v7027, %v7025
      %v7076 = vpack.c.b16 %v7030, %v7028
      %v7077 = vpack.c.b16 %v7031, %v7029
      %v7078 = vpack.c.b16 %v7034, %v7032
      %v7079 = vpack.c.b16 %v7035, %v7033
      %v7080 = vpack.c.b16 %v7038, %v7036
      %v7081 = vpack.c.b16 %v7039, %v7037
      %v7082 = vpack.c.b16 %v7042, %v7040
      %v7083 = vpack.c.b16 %v7043, %v7041
      %v7084 = vpack.c.b16 %v7046, %v7044
      %v7085 = vpack.c.b16 %v7047, %v7045
      %v7086 = vpack.c.b16 %v7050, %v7048
      %v7087 = vpack.c.b16 %v7051, %v7049
      %v7088 = vpack.c.b16 %v7054, %v7052
      %v7089 = vpack.c.b16 %v7055, %v7053
      %v7090 = vpack.c.b16 %v7058, %v7056
      %v7091 = vpack.c.b16 %v7059, %v7057
      %7124 = vmatprep.subr.bf16.mxu0 %v7061
      %7125 = vmatpush1.bf16.msra.mxu0 %v7060
      %7126 = vmatprep.subr.bf16.mxu0 %v7063
      %7127 = vmatpush1.bf16.msra.mxu0 %v7062
      %7128 = vmatprep.subr.bf16.mxu0 %v7065
      %7129 = vmatpush1.bf16.msra.mxu0 %v7064
      %7130 = vmatprep.subr.bf16.mxu0 %v7067
      %7131 = vmatpush1.bf16.msra.mxu0 %v7066
      %7132 = vmatprep.subr.bf16.mxu0 %v7069
      %7133 = vmatpush1.bf16.msra.mxu0 %v7068
      %7134 = vmatprep.subr.bf16.mxu0 %v7071
      %7135 = vmatpush1.bf16.msra.mxu0 %v7070
      %7136 = vmatprep.subr.bf16.mxu0 %v7073
      %7137 = vmatpush1.bf16.msra.mxu0 %v7072
      %7138 = vmatprep.subr.bf16.mxu0 %v7075
      %7139 = vmatpush1.bf16.msra.mxu0 %v7074
      %7140 = vmatprep.subr.bf16.mxu0 %v7077
      %7141 = vmatpush1.bf16.msra.mxu0 %v7076
      %7142 = vmatprep.subr.bf16.mxu0 %v7079
      %7143 = vmatpush1.bf16.msra.mxu0 %v7078
      %7144 = vmatprep.subr.bf16.mxu0 %v7081
      %7145 = vmatpush1.bf16.msra.mxu0 %v7080
      %7146 = vmatprep.subr.bf16.mxu0 %v7083
      %7147 = vmatpush1.bf16.msra.mxu0 %v7082
      %7148 = vmatprep.subr.bf16.mxu0 %v7085
      %7149 = vmatpush1.bf16.msra.mxu0 %v7084
      %7150 = vmatprep.subr.bf16.mxu0 %v7087
      %7151 = vmatpush1.bf16.msra.mxu0 %v7086
      %7152 = vmatprep.subr.bf16.mxu0 %v7089
      %7153 = vmatpush1.bf16.msra.mxu0 %v7088
      %7154 = vmatprep.subr.bf16.mxu0 %v7091
      %7155 = vmatpush1.bf16.msra.mxu0 %v7090
      %7156 = vmatprep.mubr.bf16.mxu0 %v6924
      %7157 = vmatmul.mubr.bf16.gmra.mrb[0].mxu0 %v6923
      %v7158 = vpop.f32.mrb[0].mxu0
      %v7159 = vadd.f32 0.0, %v7158
      %v7160 = vpop.f32.mrb[0].mxu0
      %v7161 = vadd.f32 0.0, %v7160
      %v7162 = vpop.f32.mrb[0].mxu0
      %v7163 = vadd.f32 0.0, %v7162
      %v7164 = vpop.f32.mrb[0].mxu0
      %v7165 = vadd.f32 0.0, %v7164
      %7166 = vmatprep.mubr.bf16.mxu0 %v6926
      %7167 = vmatmul.mubr.bf16.gmra.mrb[0].mxu0 %v6925
      %v7168 = vpop.f32.mrb[0].mxu0
      %v7169 = vadd.f32 0.0, %v7168
      %v7170 = vpop.f32.mrb[0].mxu0
      %v7171 = vadd.f32 0.0, %v7170
      %v7172 = vpop.f32.mrb[0].mxu0
      %v7173 = vadd.f32 0.0, %v7172
      %v7174 = vpop.f32.mrb[0].mxu0
      %v7175 = vadd.f32 0.0, %v7174
      %7176 = vmatprep.mubr.bf16.mxu0 %v6928
      %7177 = vmatmul.mubr.bf16.gmra.mrb[0].mxu0 %v6927
      %v7178 = vpop.f32.mrb[0].mxu0
      %v7179 = vadd.f32 0.0, %v7178
      %v7180 = vpop.f32.mrb[0].mxu0
      %v7181 = vadd.f32 0.0, %v7180
      %v7182 = vpop.f32.mrb[0].mxu0
      %v7183 = vadd.f32 0.0, %v7182
      %v7184 = vpop.f32.mrb[0].mxu0
      %v7185 = vadd.f32 0.0, %v7184
      %7186 = vmatprep.mubr.bf16.mxu0 %v6930
      %7187 = vmatmul.mubr.bf16.gmra.mrb[0].mxu0 %v6929
      %v7188 = vpop.f32.mrb[0].mxu0
      %v7189 = vadd.f32 0.0, %v7188
      %v7190 = vpop.f32.mrb[0].mxu0
      %v7191 = vadd.f32 0.0, %v7190
      %v7192 = vpop.f32.mrb[0].mxu0
      %v7193 = vadd.f32 0.0, %v7192
      %v7194 = vpop.f32.mrb[0].mxu0
      %v7195 = vadd.f32 0.0, %v7194
      %7196 = vdwg.mxu0
      %v7197 = vadd.f32 %v6779, %v7159
      %v7198 = vadd.f32 %v6780, %v7161
      %v7199 = vadd.f32 %v6781, %v7163
      %v7200 = vadd.f32 %v6782, %v7165
      %v7201 = vadd.f32 %v6783, %v7169
      %v7202 = vadd.f32 %v6784, %v7171
      %v7203 = vadd.f32 %v6785, %v7173
      %v7204 = vadd.f32 %v6786, %v7175
      %v7205 = vadd.f32 %v6787, %v7179
      %v7206 = vadd.f32 %v6788, %v7181
      %v7207 = vadd.f32 %v6789, %v7183
      %v7208 = vadd.f32 %v6790, %v7185
      %v7209 = vadd.f32 %v6791, %v7189
      %v7210 = vadd.f32 %v6792, %v7191
      %v7211 = vadd.f32 %v6793, %v7193
      %v7212 = vadd.f32 %v6794, %v7195
      %v7213 = vld [vmem:[%s2913] sm:$0xfc]
      %v7214 = vld [vmem:[%s2913 + $0x8] sm:$0xfc]
      %v7215 = vld [vmem:[%s2913 + $0x10] sm:$0x3]
      %v7216 = vld [vmem:[%s2913 + $0x18] sm:$0x3]
      %v7217 = vld [vmem:[%s2913 + $0x20] sm:$0xfc]
      %v7218 = vld [vmem:[%s2913 + $0x28] sm:$0xfc]
      %v7219 = vld [vmem:[%s2913 + $0x30] sm:$0x3]
      %v7220 = vld [vmem:[%s2913 + $0x38] sm:$0x3]
      %v7221 = vld [vmem:[%s2913 + $0x40] sm:$0xfc]
      %v7222 = vld [vmem:[%s2913 + $0x48] sm:$0xfc]
      %v7223 = vld [vmem:[%s2913 + $0x50] sm:$0x3]
      %v7224 = vld [vmem:[%s2913 + $0x58] sm:$0x3]
      %v7225 = vld [vmem:[%s2913 + $0x60] sm:$0xfc]
      %v7226 = vld [vmem:[%s2913 + $0x68] sm:$0xfc]
      %v7227 = vld [vmem:[%s2913 + $0x70] sm:$0x3]
      %v7228 = vld [vmem:[%s2913 + $0x78] sm:$0x3]
      %v7229 = vld [vmem:[%s2913 + $0x80] sm:$0xfc]
      %v7230 = vld [vmem:[%s2913 + $0x88] sm:$0xfc]
      %v7231 = vld [vmem:[%s2913 + $0x90] sm:$0x3]
      %v7232 = vld [vmem:[%s2913 + $0x98] sm:$0x3]
      %v7233 = vld [vmem:[%s2913 + $0xa0] sm:$0xfc]
      %v7234 = vld [vmem:[%s2913 + $0xa8] sm:$0xfc]
      %v7235 = vld [vmem:[%s2913 + $0xb0] sm:$0x3]
      %v7236 = vld [vmem:[%s2913 + $0xb8] sm:$0x3]
      %v7237 = vld [vmem:[%s2913 + $0xc0] sm:$0xfc]
      %v7238 = vld [vmem:[%s2913 + $0xc8] sm:$0xfc]
      %v7239 = vld [vmem:[%s2913 + $0xd0] sm:$0x3]
      %v7240 = vld [vmem:[%s2913 + $0xd8] sm:$0x3]
      %v7241 = vld [vmem:[%s2913 + $0xe0] sm:$0xfc]
      %v7242 = vld [vmem:[%s2913 + $0xe8] sm:$0xfc]
      %v7243 = vld [vmem:[%s2913 + $0xf0] sm:$0x3]
      %v7244 = vld [vmem:[%s2913 + $0xf8] sm:$0x3]
      %v7277 = vrot.slane %v7213, 2
      %v7278 = vrot.slane %v7215, 2
      %v7279 = vsel %vm1416, %v7277, %v7278
      %v7280 = vrot.slane %v7214, 2
      %v7281 = vrot.slane %v7216, 2
      %v7282 = vsel %vm1416, %v7280, %v7281
      %v7283 = vrot.slane %v7217, 2
      %v7284 = vrot.slane %v7219, 2
      %v7285 = vsel %vm1416, %v7283, %v7284
      %v7286 = vrot.slane %v7218, 2
      %v7287 = vrot.slane %v7220, 2
      %v7288 = vsel %vm1416, %v7286, %v7287
      %v7289 = vrot.slane %v7221, 2
      %v7290 = vrot.slane %v7223, 2
      %v7291 = vsel %vm1416, %v7289, %v7290
      %v7292 = vrot.slane %v7222, 2
      %v7293 = vrot.slane %v7224, 2
      %v7294 = vsel %vm1416, %v7292, %v7293
      %v7295 = vrot.slane %v7225, 2
      %v7296 = vrot.slane %v7227, 2
      %v7297 = vsel %vm1416, %v7295, %v7296
      %v7298 = vrot.slane %v7226, 2
      %v7299 = vrot.slane %v7228, 2
      %v7300 = vsel %vm1416, %v7298, %v7299
      %v7301 = vrot.slane %v7229, 2
      %v7302 = vrot.slane %v7231, 2
      %v7303 = vsel %vm1416, %v7301, %v7302
      %v7304 = vrot.slane %v7230, 2
      %v7305 = vrot.slane %v7232, 2
      %v7306 = vsel %vm1416, %v7304, %v7305
      %v7307 = vrot.slane %v7233, 2
      %v7308 = vrot.slane %v7235, 2
      %v7309 = vsel %vm1416, %v7307, %v7308
      %v7310 = vrot.slane %v7234, 2
      %v7311 = vrot.slane %v7236, 2
      %v7312 = vsel %vm1416, %v7310, %v7311
      %v7313 = vrot.slane %v7237, 2
      %v7314 = vrot.slane %v7239, 2
      %v7315 = vsel %vm1416, %v7313, %v7314
      %v7316 = vrot.slane %v7238, 2
      %v7317 = vrot.slane %v7240, 2
      %v7318 = vsel %vm1416, %v7316, %v7317
      %v7319 = vrot.slane %v7241, 2
      %v7320 = vrot.slane %v7243, 2
      %v7321 = vsel %vm1416, %v7319, %v7320
      %v7322 = vrot.slane %v7242, 2
      %v7323 = vrot.slane %v7244, 2
      %v7324 = vsel %vm1416, %v7322, %v7323
      %v7341 = vpack.c.bf16 %v7285, %v7279
      %v7342 = vpack.c.bf16 %v7288, %v7282
      %v7343 = vpack.c.bf16 %v7297, %v7291
      %v7344 = vpack.c.bf16 %v7300, %v7294
      %v7345 = vpack.c.bf16 %v7309, %v7303
      %v7346 = vpack.c.bf16 %v7312, %v7306
      %v7347 = vpack.c.bf16 %v7321, %v7315
      %v7348 = vpack.c.bf16 %v7324, %v7318
      %s7349 = scalar_lea.vmem %s5, 2048
      %v7350 = vld [vmem:[%s7349] sm:$0xff]
      %v7351 = vld [vmem:[%s7349 + $0x8] sm:$0xff]
      %v7352 = vld [vmem:[%s7349 + $0x10] sm:$0xff]
      %v7353 = vld [vmem:[%s7349 + $0x18] sm:$0xff]
      %v7354 = vld [vmem:[%s7349 + $0x20] sm:$0xff]
      %v7355 = vld [vmem:[%s7349 + $0x28] sm:$0xff]
      %v7356 = vld [vmem:[%s7349 + $0x30] sm:$0xff]
      %v7357 = vld [vmem:[%s7349 + $0x38] sm:$0xff]
      %v7358 = vld [vmem:[%s7349 + $0x40] sm:$0xff]
      %v7359 = vld [vmem:[%s7349 + $0x48] sm:$0xff]
      %v7360 = vld [vmem:[%s7349 + $0x50] sm:$0xff]
      %v7361 = vld [vmem:[%s7349 + $0x58] sm:$0xff]
      %v7362 = vld [vmem:[%s7349 + $0x60] sm:$0xff]
      %v7363 = vld [vmem:[%s7349 + $0x68] sm:$0xff]
      %v7364 = vld [vmem:[%s7349 + $0x70] sm:$0xff]
      %v7365 = vld [vmem:[%s7349 + $0x78] sm:$0xff]
      %v7366 = vld [vmem:[%s7349 + $0x80] sm:$0xff]
      %v7367 = vld [vmem:[%s7349 + $0x88] sm:$0xff]
      %v7368 = vld [vmem:[%s7349 + $0x90] sm:$0xff]
      %v7369 = vld [vmem:[%s7349 + $0x98] sm:$0xff]
      %v7370 = vld [vmem:[%s7349 + $0xa0] sm:$0xff]
      %v7371 = vld [vmem:[%s7349 + $0xa8] sm:$0xff]
      %v7372 = vld [vmem:[%s7349 + $0xb0] sm:$0xff]
      %v7373 = vld [vmem:[%s7349 + $0xb8] sm:$0xff]
      %v7374 = vld [vmem:[%s7349 + $0xc0] sm:$0xff]
      %v7375 = vld [vmem:[%s7349 + $0xc8] sm:$0xff]
      %v7376 = vld [vmem:[%s7349 + $0xd0] sm:$0xff]
      %v7377 = vld [vmem:[%s7349 + $0xd8] sm:$0xff]
      %v7378 = vld [vmem:[%s7349 + $0xe0] sm:$0xff]
      %v7379 = vld [vmem:[%s7349 + $0xe8] sm:$0xff]
      %v7380 = vld [vmem:[%s7349 + $0xf0] sm:$0xff]
      %v7381 = vld [vmem:[%s7349 + $0xf8] sm:$0xff]
      %v7414 = vunpack.c.l.b16 %v7350
      %v7415 = vunpack.c.h.b16 %v7350
      %v7416 = vunpack.c.l.b16 %v7351
      %v7417 = vunpack.c.h.b16 %v7351
      %v7418 = vunpack.c.l.b16 %v7352
      %v7419 = vunpack.c.h.b16 %v7352
      %v7420 = vunpack.c.l.b16 %v7353
      %v7421 = vunpack.c.h.b16 %v7353
      %v7422 = vunpack.c.l.b16 %v7354
      %v7423 = vunpack.c.h.b16 %v7354
      %v7424 = vunpack.c.l.b16 %v7355
      %v7425 = vunpack.c.h.b16 %v7355
      %v7426 = vunpack.c.l.b16 %v7356
      %v7427 = vunpack.c.h.b16 %v7356
      %v7428 = vunpack.c.l.b16 %v7357
      %v7429 = vunpack.c.h.b16 %v7357
      %v7430 = vunpack.c.l.b16 %v7358
      %v7431 = vunpack.c.h.b16 %v7358
      %v7432 = vunpack.c.l.b16 %v7359
      %v7433 = vunpack.c.h.b16 %v7359
      %v7434 = vunpack.c.l.b16 %v7360
      %v7435 = vunpack.c.h.b16 %v7360
      %v7436 = vunpack.c.l.b16 %v7361
      %v7437 = vunpack.c.h.b16 %v7361
      %v7438 = vunpack.c.l.b16 %v7362
      %v7439 = vunpack.c.h.b16 %v7362
      %v7440 = vunpack.c.l.b16 %v7363
      %v7441 = vunpack.c.h.b16 %v7363
      %v7442 = vunpack.c.l.b16 %v7364
      %v7443 = vunpack.c.h.b16 %v7364
      %v7444 = vunpack.c.l.b16 %v7365
      %v7445 = vunpack.c.h.b16 %v7365
      %v7446 = vunpack.c.l.b16 %v7366
      %v7447 = vunpack.c.h.b16 %v7366
      %v7448 = vunpack.c.l.b16 %v7367
      %v7449 = vunpack.c.h.b16 %v7367
      %v7450 = vunpack.c.l.b16 %v7368
      %v7451 = vunpack.c.h.b16 %v7368
      %v7452 = vunpack.c.l.b16 %v7369
      %v7453 = vunpack.c.h.b16 %v7369
      %v7454 = vunpack.c.l.b16 %v7370
      %v7455 = vunpack.c.h.b16 %v7370
      %v7456 = vunpack.c.l.b16 %v7371
      %v7457 = vunpack.c.h.b16 %v7371
      %v7458 = vunpack.c.l.b16 %v7372
      %v7459 = vunpack.c.h.b16 %v7372
      %v7460 = vunpack.c.l.b16 %v7373
      %v7461 = vunpack.c.h.b16 %v7373
      %v7462 = vunpack.c.l.b16 %v7374
      %v7463 = vunpack.c.h.b16 %v7374
      %v7464 = vunpack.c.l.b16 %v7375
      %v7465 = vunpack.c.h.b16 %v7375
      %v7466 = vunpack.c.l.b16 %v7376
      %v7467 = vunpack.c.h.b16 %v7376
      %v7468 = vunpack.c.l.b16 %v7377
      %v7469 = vunpack.c.h.b16 %v7377
      %v7470 = vunpack.c.l.b16 %v7378
      %v7471 = vunpack.c.h.b16 %v7378
      %v7472 = vunpack.c.l.b16 %v7379
      %v7473 = vunpack.c.h.b16 %v7379
      %v7474 = vunpack.c.l.b16 %v7380
      %v7475 = vunpack.c.h.b16 %v7380
      %v7476 = vunpack.c.l.b16 %v7381
      %v7477 = vunpack.c.h.b16 %v7381
      %v7478 = vpack.c.b16 %v7416, %v7414
      %v7479 = vpack.c.b16 %v7417, %v7415
      %v7480 = vpack.c.b16 %v7420, %v7418
      %v7481 = vpack.c.b16 %v7421, %v7419
      %v7482 = vpack.c.b16 %v7424, %v7422
      %v7483 = vpack.c.b16 %v7425, %v7423
      %v7484 = vpack.c.b16 %v7428, %v7426
      %v7485 = vpack.c.b16 %v7429, %v7427
      %v7486 = vpack.c.b16 %v7432, %v7430
      %v7487 = vpack.c.b16 %v7433, %v7431
      %v7488 = vpack.c.b16 %v7436, %v7434
      %v7489 = vpack.c.b16 %v7437, %v7435
      %v7490 = vpack.c.b16 %v7440, %v7438
      %v7491 = vpack.c.b16 %v7441, %v7439
      %v7492 = vpack.c.b16 %v7444, %v7442
      %v7493 = vpack.c.b16 %v7445, %v7443
      %v7494 = vpack.c.b16 %v7448, %v7446
      %v7495 = vpack.c.b16 %v7449, %v7447
      %v7496 = vpack.c.b16 %v7452, %v7450
      %v7497 = vpack.c.b16 %v7453, %v7451
      %v7498 = vpack.c.b16 %v7456, %v7454
      %v7499 = vpack.c.b16 %v7457, %v7455
      %v7500 = vpack.c.b16 %v7460, %v7458
      %v7501 = vpack.c.b16 %v7461, %v7459
      %v7502 = vpack.c.b16 %v7464, %v7462
      %v7503 = vpack.c.b16 %v7465, %v7463
      %v7504 = vpack.c.b16 %v7468, %v7466
      %v7505 = vpack.c.b16 %v7469, %v7467
      %v7506 = vpack.c.b16 %v7472, %v7470
      %v7507 = vpack.c.b16 %v7473, %v7471
      %v7508 = vpack.c.b16 %v7476, %v7474
      %v7509 = vpack.c.b16 %v7477, %v7475
      %7542 = vmatprep.subr.bf16.mxu0 %v7479
      %7543 = vmatpush1.bf16.msra.mxu0 %v7478
      %7544 = vmatprep.subr.bf16.mxu0 %v7481
      %7545 = vmatpush1.bf16.msra.mxu0 %v7480
      %7546 = vmatprep.subr.bf16.mxu0 %v7483
      %7547 = vmatpush1.bf16.msra.mxu0 %v7482
      %7548 = vmatprep.subr.bf16.mxu0 %v7485
      %7549 = vmatpush1.bf16.msra.mxu0 %v7484
      %7550 = vmatprep.subr.bf16.mxu0 %v7487
      %7551 = vmatpush1.bf16.msra.mxu0 %v7486
      %7552 = vmatprep.subr.bf16.mxu0 %v7489
      %7553 = vmatpush1.bf16.msra.mxu0 %v7488
      %7554 = vmatprep.subr.bf16.mxu0 %v7491
      %7555 = vmatpush1.bf16.msra.mxu0 %v7490
      %7556 = vmatprep.subr.bf16.mxu0 %v7493
      %7557 = vmatpush1.bf16.msra.mxu0 %v7492
      %7558 = vmatprep.subr.bf16.mxu0 %v7495
      %7559 = vmatpush1.bf16.msra.mxu0 %v7494
      %7560 = vmatprep.subr.bf16.mxu0 %v7497
      %7561 = vmatpush1.bf16.msra.mxu0 %v7496
      %7562 = vmatprep.subr.bf16.mxu0 %v7499
      %7563 = vmatpush1.bf16.msra.mxu0 %v7498
      %7564 = vmatprep.subr.bf16.mxu0 %v7501
      %7565 = vmatpush1.bf16.msra.mxu0 %v7500
      %7566 = vmatprep.subr.bf16.mxu0 %v7503
      %7567 = vmatpush1.bf16.msra.mxu0 %v7502
      %7568 = vmatprep.subr.bf16.mxu0 %v7505
      %7569 = vmatpush1.bf16.msra.mxu0 %v7504
      %7570 = vmatprep.subr.bf16.mxu0 %v7507
      %7571 = vmatpush1.bf16.msra.mxu0 %v7506
      %7572 = vmatprep.subr.bf16.mxu0 %v7509
      %7573 = vmatpush1.bf16.msra.mxu0 %v7508
      %7574 = vmatprep.mubr.bf16.mxu0 %v7342
      %7575 = vmatmul.mubr.bf16.gmra.mrb[0].mxu0 %v7341
      %v7576 = vpop.f32.mrb[0].mxu0
      %v7577 = vadd.f32 0.0, %v7576
      %v7578 = vpop.f32.mrb[0].mxu0
      %v7579 = vadd.f32 0.0, %v7578
      %v7580 = vpop.f32.mrb[0].mxu0
      %v7581 = vadd.f32 0.0, %v7580
      %v7582 = vpop.f32.mrb[0].mxu0
      %v7583 = vadd.f32 0.0, %v7582
      %7584 = vmatprep.mubr.bf16.mxu0 %v7344
      %7585 = vmatmul.mubr.bf16.gmra.mrb[0].mxu0 %v7343
      %v7586 = vpop.f32.mrb[0].mxu0
      %v7587 = vadd.f32 0.0, %v7586
      %v7588 = vpop.f32.mrb[0].mxu0
      %v7589 = vadd.f32 0.0, %v7588
      %v7590 = vpop.f32.mrb[0].mxu0
      %v7591 = vadd.f32 0.0, %v7590
      %v7592 = vpop.f32.mrb[0].mxu0
      %v7593 = vadd.f32 0.0, %v7592
      %7594 = vmatprep.mubr.bf16.mxu0 %v7346
      %7595 = vmatmul.mubr.bf16.gmra.mrb[0].mxu0 %v7345
      %v7596 = vpop.f32.mrb[0].mxu0
      %v7597 = vadd.f32 0.0, %v7596
      %v7598 = vpop.f32.mrb[0].mxu0
      %v7599 = vadd.f32 0.0, %v7598
      %v7600 = vpop.f32.mrb[0].mxu0
      %v7601 = vadd.f32 0.0, %v7600
      %v7602 = vpop.f32.mrb[0].mxu0
      %v7603 = vadd.f32 0.0, %v7602
      %7604 = vmatprep.mubr.bf16.mxu0 %v7348
      %7605 = vmatmul.mubr.bf16.gmra.mrb[0].mxu0 %v7347
      %v7606 = vpop.f32.mrb[0].mxu0
      %v7607 = vadd.f32 0.0, %v7606
      %v7608 = vpop.f32.mrb[0].mxu0
      %v7609 = vadd.f32 0.0, %v7608
      %v7610 = vpop.f32.mrb[0].mxu0
      %v7611 = vadd.f32 0.0, %v7610
      %v7612 = vpop.f32.mrb[0].mxu0
      %v7613 = vadd.f32 0.0, %v7612
      %7614 = vdwg.mxu0
      %v7615 = vadd.f32 %v7197, %v7577
      %v7616 = vadd.f32 %v7198, %v7579
      %v7617 = vadd.f32 %v7199, %v7581
      %v7618 = vadd.f32 %v7200, %v7583
      %v7619 = vadd.f32 %v7201, %v7587
      %v7620 = vadd.f32 %v7202, %v7589
      %v7621 = vadd.f32 %v7203, %v7591
      %v7622 = vadd.f32 %v7204, %v7593
      %v7623 = vadd.f32 %v7205, %v7597
      %v7624 = vadd.f32 %v7206, %v7599
      %v7625 = vadd.f32 %v7207, %v7601
      %v7626 = vadd.f32 %v7208, %v7603
      %v7627 = vadd.f32 %v7209, %v7607
      %v7628 = vadd.f32 %v7210, %v7609
      %v7629 = vadd.f32 %v7211, %v7611
      %v7630 = vadd.f32 %v7212, %v7613
      %v7631 = vld [vmem:[%s6] ss:$4 sm:$0x3]
      %v7633 = vlaneseq
      %v7634 = vshrl.u32 %v7633, 7
      %v7635 = vsub.s32 0, %v7634
      %v7636 = vrot.slane %v7631, %v7635
      %v7637 = vlaneseq
      %v7638 = vshrl.u32 %v7637, 7
      %v7639 = vsub.s32 1, %v7638
      %v7640 = vrot.slane %v7631, %v7639
      %v7643 = vadd.f32 %v7615, %v7636
      %v7644 = vadd.f32 %v7616, %v7640
      %v7645 = vadd.f32 %v7617, %v7636
      %v7646 = vadd.f32 %v7618, %v7640
      %v7647 = vadd.f32 %v7619, %v7636
      %v7648 = vadd.f32 %v7620, %v7640
      %v7649 = vadd.f32 %v7621, %v7636
      %v7650 = vadd.f32 %v7622, %v7640
      %v7651 = vadd.f32 %v7623, %v7636
      %v7652 = vadd.f32 %v7624, %v7640
      %v7653 = vadd.f32 %v7625, %v7636
      %v7654 = vadd.f32 %v7626, %v7640
      %v7655 = vadd.f32 %v7627, %v7636
      %v7656 = vadd.f32 %v7628, %v7640
      %v7657 = vadd.f32 %v7629, %v7636
      %v7658 = vadd.f32 %v7630, %v7640
      %v7659 = vld [vmem:[%s7] sm:$0xff]
      %v7660 = vld [vmem:[%s7 + $0x8] sm:$0xff]
      %v7661 = vld [vmem:[%s7 + $0x10] sm:$0xff]
      %v7662 = vld [vmem:[%s7 + $0x18] sm:$0xff]
      %v7663 = vld [vmem:[%s7 + $0x20] sm:$0xff]
      %v7664 = vld [vmem:[%s7 + $0x28] sm:$0xff]
      %v7665 = vld [vmem:[%s7 + $0x30] sm:$0xff]
      %v7666 = vld [vmem:[%s7 + $0x38] sm:$0xff]
      %v7667 = vld [vmem:[%s7 + $0x40] sm:$0xff]
      %v7668 = vld [vmem:[%s7 + $0x48] sm:$0xff]
      %v7669 = vld [vmem:[%s7 + $0x50] sm:$0xff]
      %v7670 = vld [vmem:[%s7 + $0x58] sm:$0xff]
      %v7671 = vld [vmem:[%s7 + $0x60] sm:$0xff]
      %v7672 = vld [vmem:[%s7 + $0x68] sm:$0xff]
      %v7673 = vld [vmem:[%s7 + $0x70] sm:$0xff]
      %v7674 = vld [vmem:[%s7 + $0x78] sm:$0xff]
      %v7675 = vld [vmem:[%s7 + $0x80] sm:$0xff]
      %v7676 = vld [vmem:[%s7 + $0x88] sm:$0xff]
      %v7677 = vld [vmem:[%s7 + $0x90] sm:$0xff]
      %v7678 = vld [vmem:[%s7 + $0x98] sm:$0xff]
      %v7679 = vld [vmem:[%s7 + $0xa0] sm:$0xff]
      %v7680 = vld [vmem:[%s7 + $0xa8] sm:$0xff]
      %v7681 = vld [vmem:[%s7 + $0xb0] sm:$0xff]
      %v7682 = vld [vmem:[%s7 + $0xb8] sm:$0xff]
      %v7683 = vld [vmem:[%s7 + $0xc0] sm:$0xff]
      %v7684 = vld [vmem:[%s7 + $0xc8] sm:$0xff]
      %v7685 = vld [vmem:[%s7 + $0xd0] sm:$0xff]
      %v7686 = vld [vmem:[%s7 + $0xd8] sm:$0xff]
      %v7687 = vld [vmem:[%s7 + $0xe0] sm:$0xff]
      %v7688 = vld [vmem:[%s7 + $0xe8] sm:$0xff]
      %v7689 = vld [vmem:[%s7 + $0xf0] sm:$0xff]
      %v7690 = vld [vmem:[%s7 + $0xf8] sm:$0xff]
      %v7691 = vld [vmem:[%s7 + $0x100] sm:$0xff]
      %v7692 = vld [vmem:[%s7 + $0x108] sm:$0xff]
      %v7693 = vld [vmem:[%s7 + $0x110] sm:$0xff]
      %v7694 = vld [vmem:[%s7 + $0x118] sm:$0xff]
      %vm7695 = vcmask 130048
      %v7697 = vsel %vm7695, %v7644, 0
      %v7700 = vsel %vm7695, %v7646, 0
      %v7703 = vsel %vm7695, %v7648, 0
      %v7706 = vsel %vm7695, %v7650, 0
      %v7709 = vsel %vm7695, %v7652, 0
      %v7712 = vsel %vm7695, %v7654, 0
      %v7715 = vsel %vm7695, %v7656, 0
      %v7718 = vsel %vm7695, %v7658, 0
      %7720 = vmatprep.subr.mxu0 %v7660
      %7721 = vmatpush1.msra.mxu0 %v7659
      %7722 = vmatprep.subr.mxu0 %v7662
      %7723 = vmatpush1.msra.mxu0 %v7661
      %7724 = vmatprep.subr.mxu0 %v7664
      %7725 = vmatpush1.msra.mxu0 %v7663
      %7726 = vmatprep.subr.mxu0 %v7666
      %7727 = vmatpush1.msra.mxu0 %v7665
      %7728 = vmatprep.subr.mxu0 %v7668
      %7729 = vmatpush1.msra.mxu0 %v7667
      %7730 = vmatprep.subr.mxu0 %v7670
      %7731 = vmatpush1.msra.mxu0 %v7669
      %7732 = vmatprep.subr.mxu0 %v7672
      %7733 = vmatpush1.msra.mxu0 %v7671
      %7734 = vmatprep.subr.mxu0 %v7674
      %7735 = vmatpush1.msra.mxu0 %v7673
      %7736 = vmatprep.subr.mxu0 %v7676
      %7737 = vmatpush1.msra.mxu0 %v7675
      %7738 = vmatprep.subr.mxu0 %v7678
      %7739 = vmatpush1.msra.mxu0 %v7677
      %7740 = vmatprep.subr.mxu0 %v7680
      %7741 = vmatpush1.msra.mxu0 %v7679
      %7742 = vmatprep.subr.mxu0 %v7682
      %7743 = vmatpush1.msra.mxu0 %v7681
      %7744 = vmatprep.subr.mxu0 %v7684
      %7745 = vmatpush1.msra.mxu0 %v7683
      %7746 = vmatprep.subr.mxu0 %v7686
      %7747 = vmatpush1.msra.mxu0 %v7685
      %7748 = vmatprep.subr.mxu0 %v7688
      %7749 = vmatpush1.msra.mxu0 %v7687
      %7750 = vmatprep.subr.mxu0 %v7690
      %7751 = vmatpush1.msra.mxu0 %v7689
      %7752 = vmatprep.subr.mxu0 %v7692
      %7753 = vmatpush1.msra.mxu0 %v7691
      %7754 = vmatprep.subr.mxu0 %v7694
      %7755 = vmatpush1.msra.mxu0 %v7693
      %7756 = vmatprep.subr.mxu0 0.0
      %7757 = vmatpush1.msra.mxu0 0.0
      %7758 = vmatprep.subr.mxu0 0.0
      %7759 = vmatpush1.msra.mxu0 0.0
      %7760 = vmatprep.subr.mxu0 0.0
      %7761 = vmatpush1.msra.mxu0 0.0
      %7762 = vmatprep.subr.mxu0 0.0
      %7763 = vmatpush1.msra.mxu0 0.0
      %7764 = vmatprep.subr.mxu0 0.0
      %7765 = vmatpush1.msra.mxu0 0.0
      %7766 = vmatprep.subr.mxu0 0.0
      %7767 = vmatpush1.msra.mxu0 0.0
      %7768 = vmatprep.subr.mxu0 0.0
      %7769 = vmatpush1.msra.mxu0 0.0
      %7770 = vmatprep.subr.mxu0 0.0
      %7771 = vmatpush1.msra.mxu0 0.0
      %7772 = vmatprep.subr.mxu0 0.0
      %7773 = vmatpush1.msra.mxu0 0.0
      %7774 = vmatprep.subr.mxu0 0.0
      %7775 = vmatpush1.msra.mxu0 0.0
      %7776 = vmatprep.subr.mxu0 0.0
      %7777 = vmatpush1.msra.mxu0 0.0
      %7778 = vmatprep.subr.mxu0 0.0
      %7779 = vmatpush1.msra.mxu0 0.0
      %7780 = vmatprep.subr.mxu0 0.0
      %7781 = vmatpush1.msra.mxu0 0.0
      %7782 = vmatprep.subr.mxu0 0.0
      %7783 = vmatpush1.msra.mxu0 0.0
      %7784 = vmatprep.mubr.f32.mxu0 %v7697
      %7785 = vmatmul.mubr.f32.gmra.mrb[0].mxu0 %v7643
      %v7786 = vpop.f32.mrb[0].mxu0
      %v7787 = vadd.f32 0.0, %v7786
      %v7788 = vpop.f32.mrb[0].mxu0
      %v7789 = vadd.f32 0.0, %v7788
      %7790 = vmatprep.mubr.f32.mxu0 %v7700
      %7791 = vmatmul.mubr.f32.gmra.mrb[0].mxu0 %v7645
      %v7792 = vpop.f32.mrb[0].mxu0
      %v7793 = vadd.f32 0.0, %v7792
      %v7794 = vpop.f32.mrb[0].mxu0
      %v7795 = vadd.f32 0.0, %v7794
      %7796 = vmatprep.mubr.f32.mxu0 %v7703
      %7797 = vmatmul.mubr.f32.gmra.mrb[0].mxu0 %v7647
      %v7798 = vpop.f32.mrb[0].mxu0
      %v7799 = vadd.f32 0.0, %v7798
      %v7800 = vpop.f32.mrb[0].mxu0
      %v7801 = vadd.f32 0.0, %v7800
      %7802 = vmatprep.mubr.f32.mxu0 %v7706
      %7803 = vmatmul.mubr.f32.gmra.mrb[0].mxu0 %v7649
      %v7804 = vpop.f32.mrb[0].mxu0
      %v7805 = vadd.f32 0.0, %v7804
      %v7806 = vpop.f32.mrb[0].mxu0
      %v7807 = vadd.f32 0.0, %v7806
      %7808 = vmatprep.mubr.f32.mxu0 %v7709
      %7809 = vmatmul.mubr.f32.gmra.mrb[0].mxu0 %v7651
      %v7810 = vpop.f32.mrb[0].mxu0
      %v7811 = vadd.f32 0.0, %v7810
      %v7812 = vpop.f32.mrb[0].mxu0
      %v7813 = vadd.f32 0.0, %v7812
      %7814 = vmatprep.mubr.f32.mxu0 %v7712
      %7815 = vmatmul.mubr.f32.gmra.mrb[0].mxu0 %v7653
      %v7816 = vpop.f32.mrb[0].mxu0
      %v7817 = vadd.f32 0.0, %v7816
      %v7818 = vpop.f32.mrb[0].mxu0
      %v7819 = vadd.f32 0.0, %v7818
      %7820 = vmatprep.mubr.f32.mxu0 %v7715
      %7821 = vmatmul.mubr.f32.gmra.mrb[0].mxu0 %v7655
      %v7822 = vpop.f32.mrb[0].mxu0
      %v7823 = vadd.f32 0.0, %v7822
      %v7824 = vpop.f32.mrb[0].mxu0
      %v7825 = vadd.f32 0.0, %v7824
      %7826 = vmatprep.mubr.f32.mxu0 %v7718
      %7827 = vmatmul.mubr.f32.gmra.mrb[0].mxu0 %v7657
      %v7828 = vpop.f32.mrb[0].mxu0
      %v7829 = vadd.f32 0.0, %v7828
      %v7830 = vpop.f32.mrb[0].mxu0
      %v7831 = vadd.f32 0.0, %v7830
      %7832 = vdwg.mxu0
      %v7833 = vsub.f32 %v7643, %v7787
      %v7834 = vsub.f32 %v7644, %v7789
      %v7835 = vsub.f32 %v7645, %v7793
      %v7836 = vsub.f32 %v7646, %v7795
      %v7837 = vsub.f32 %v7647, %v7799
      %v7838 = vsub.f32 %v7648, %v7801
      %v7839 = vsub.f32 %v7649, %v7805
      %v7840 = vsub.f32 %v7650, %v7807
      %v7841 = vsub.f32 %v7651, %v7811
      %v7842 = vsub.f32 %v7652, %v7813
      %v7843 = vsub.f32 %v7653, %v7817
      %v7844 = vsub.f32 %v7654, %v7819
      %v7845 = vsub.f32 %v7655, %v7823
      %v7846 = vsub.f32 %v7656, %v7825
      %v7847 = vsub.f32 %v7657, %v7829
      %v7848 = vsub.f32 %v7658, %v7831
      %v7849 = vmul.f32 %v7833, %v7833
      %v7850 = vmul.f32 %v7834, %v7834
      %v7851 = vmul.f32 %v7835, %v7835
      %v7852 = vmul.f32 %v7836, %v7836
      %v7853 = vmul.f32 %v7837, %v7837
      %v7854 = vmul.f32 %v7838, %v7838
      %v7855 = vmul.f32 %v7839, %v7839
      %v7856 = vmul.f32 %v7840, %v7840
      %v7857 = vmul.f32 %v7841, %v7841
      %v7858 = vmul.f32 %v7842, %v7842
      %v7859 = vmul.f32 %v7843, %v7843
      %v7860 = vmul.f32 %v7844, %v7844
      %v7861 = vmul.f32 %v7845, %v7845
      %v7862 = vmul.f32 %v7846, %v7846
      %v7863 = vmul.f32 %v7847, %v7847
      %v7864 = vmul.f32 %v7848, %v7848
      %v7866 = vsel %vm7695, %v7850, 0
      %v7869 = vsel %vm7695, %v7852, 0
      %v7872 = vsel %vm7695, %v7854, 0
      %v7875 = vsel %vm7695, %v7856, 0
      %v7878 = vsel %vm7695, %v7858, 0
      %v7881 = vsel %vm7695, %v7860, 0
      %v7884 = vsel %vm7695, %v7862, 0
      %v7887 = vsel %vm7695, %v7864, 0
      %7889 = vmatprep.subr.mxu0 %v7660
      %7890 = vmatpush1.msra.mxu0 %v7659
      %7891 = vmatprep.subr.mxu0 %v7662
      %7892 = vmatpush1.msra.mxu0 %v7661
      %7893 = vmatprep.subr.mxu0 %v7664
      %7894 = vmatpush1.msra.mxu0 %v7663
      %7895 = vmatprep.subr.mxu0 %v7666
      %7896 = vmatpush1.msra.mxu0 %v7665
      %7897 = vmatprep.subr.mxu0 %v7668
      %7898 = vmatpush1.msra.mxu0 %v7667
      %7899 = vmatprep.subr.mxu0 %v7670
      %7900 = vmatpush1.msra.mxu0 %v7669
      %7901 = vmatprep.subr.mxu0 %v7672
      %7902 = vmatpush1.msra.mxu0 %v7671
      %7903 = vmatprep.subr.mxu0 %v7674
      %7904 = vmatpush1.msra.mxu0 %v7673
      %7905 = vmatprep.subr.mxu0 %v7676
      %7906 = vmatpush1.msra.mxu0 %v7675
      %7907 = vmatprep.subr.mxu0 %v7678
      %7908 = vmatpush1.msra.mxu0 %v7677
      %7909 = vmatprep.subr.mxu0 %v7680
      %7910 = vmatpush1.msra.mxu0 %v7679
      %7911 = vmatprep.subr.mxu0 %v7682
      %7912 = vmatpush1.msra.mxu0 %v7681
      %7913 = vmatprep.subr.mxu0 %v7684
      %7914 = vmatpush1.msra.mxu0 %v7683
      %7915 = vmatprep.subr.mxu0 %v7686
      %7916 = vmatpush1.msra.mxu0 %v7685
      %7917 = vmatprep.subr.mxu0 %v7688
      %7918 = vmatpush1.msra.mxu0 %v7687
      %7919 = vmatprep.subr.mxu0 %v7690
      %7920 = vmatpush1.msra.mxu0 %v7689
      %7921 = vmatprep.subr.mxu0 %v7692
      %7922 = vmatpush1.msra.mxu0 %v7691
      %7923 = vmatprep.subr.mxu0 %v7694
      %7924 = vmatpush1.msra.mxu0 %v7693
      %7925 = vmatprep.subr.mxu0 0.0
      %7926 = vmatpush1.msra.mxu0 0.0
      %7927 = vmatprep.subr.mxu0 0.0
      %7928 = vmatpush1.msra.mxu0 0.0
      %7929 = vmatprep.subr.mxu0 0.0
      %7930 = vmatpush1.msra.mxu0 0.0
      %7931 = vmatprep.subr.mxu0 0.0
      %7932 = vmatpush1.msra.mxu0 0.0
      %7933 = vmatprep.subr.mxu0 0.0
      %7934 = vmatpush1.msra.mxu0 0.0
      %7935 = vmatprep.subr.mxu0 0.0
      %7936 = vmatpush1.msra.mxu0 0.0
      %7937 = vmatprep.subr.mxu0 0.0
      %7938 = vmatpush1.msra.mxu0 0.0
      %7939 = vmatprep.subr.mxu0 0.0
      %7940 = vmatpush1.msra.mxu0 0.0
      %7941 = vmatprep.subr.mxu0 0.0
      %7942 = vmatpush1.msra.mxu0 0.0
      %7943 = vmatprep.subr.mxu0 0.0
      %7944 = vmatpush1.msra.mxu0 0.0
      %7945 = vmatprep.subr.mxu0 0.0
      %7946 = vmatpush1.msra.mxu0 0.0
      %7947 = vmatprep.subr.mxu0 0.0
      %7948 = vmatpush1.msra.mxu0 0.0
      %7949 = vmatprep.subr.mxu0 0.0
      %7950 = vmatpush1.msra.mxu0 0.0
      %7951 = vmatprep.subr.mxu0 0.0
      %7952 = vmatpush1.msra.mxu0 0.0
      %7953 = vmatprep.mubr.f32.mxu0 %v7866
      %7954 = vmatmul.mubr.f32.gmra.mrb[0].mxu0 %v7849
      %v7955 = vpop.f32.mrb[0].mxu0
      %v7956 = vadd.f32 1e-05, %v7955
      %v7957 = vpop.f32.mrb[0].mxu0
      %v7958 = vadd.f32 1e-05, %v7957
      %7959 = vmatprep.mubr.f32.mxu0 %v7869
      %7960 = vmatmul.mubr.f32.gmra.mrb[0].mxu0 %v7851
      %v7961 = vpop.f32.mrb[0].mxu0
      %v7962 = vadd.f32 1e-05, %v7961
      %v7963 = vpop.f32.mrb[0].mxu0
      %v7964 = vadd.f32 1e-05, %v7963
      %7965 = vmatprep.mubr.f32.mxu0 %v7872
      %7966 = vmatmul.mubr.f32.gmra.mrb[0].mxu0 %v7853
      %v7967 = vpop.f32.mrb[0].mxu0
      %v7968 = vadd.f32 1e-05, %v7967
      %v7969 = vpop.f32.mrb[0].mxu0
      %v7970 = vadd.f32 1e-05, %v7969
      %7971 = vmatprep.mubr.f32.mxu0 %v7875
      %7972 = vmatmul.mubr.f32.gmra.mrb[0].mxu0 %v7855
      %v7973 = vpop.f32.mrb[0].mxu0
      %v7974 = vadd.f32 1e-05, %v7973
      %v7975 = vpop.f32.mrb[0].mxu0
      %v7976 = vadd.f32 1e-05, %v7975
      %7977 = vmatprep.mubr.f32.mxu0 %v7878
      %7978 = vmatmul.mubr.f32.gmra.mrb[0].mxu0 %v7857
      %v7979 = vpop.f32.mrb[0].mxu0
      %v7980 = vadd.f32 1e-05, %v7979
      %v7981 = vpop.f32.mrb[0].mxu0
      %v7982 = vadd.f32 1e-05, %v7981
      %7983 = vmatprep.mubr.f32.mxu0 %v7881
      %7984 = vmatmul.mubr.f32.gmra.mrb[0].mxu0 %v7859
      %v7985 = vpop.f32.mrb[0].mxu0
      %v7986 = vadd.f32 1e-05, %v7985
      %v7987 = vpop.f32.mrb[0].mxu0
      %v7988 = vadd.f32 1e-05, %v7987
      %7989 = vmatprep.mubr.f32.mxu0 %v7884
      %7990 = vmatmul.mubr.f32.gmra.mrb[0].mxu0 %v7861
      %v7991 = vpop.f32.mrb[0].mxu0
      %v7992 = vadd.f32 1e-05, %v7991
      %v7993 = vpop.f32.mrb[0].mxu0
      %v7994 = vadd.f32 1e-05, %v7993
      %7995 = vmatprep.mubr.f32.mxu0 %v7887
      %7996 = vmatmul.mubr.f32.gmra.mrb[0].mxu0 %v7863
      %v7997 = vpop.f32.mrb[0].mxu0
      %v7998 = vadd.f32 1e-05, %v7997
      %v7999 = vpop.f32.mrb[0].mxu0
      %v8000 = vadd.f32 1e-05, %v7999
      %8001 = vdwg.mxu0
      %v8002 = vrsqrt.pop %v7956
      %v8003 = vrsqrt.pop %v7958
      %v8004 = vrsqrt.pop %v7962
      %v8005 = vrsqrt.pop %v7964
      %v8006 = vrsqrt.pop %v7968
      %v8007 = vrsqrt.pop %v7970
      %v8008 = vrsqrt.pop %v7974
      %v8009 = vrsqrt.pop %v7976
      %v8010 = vrsqrt.pop %v7980
      %v8011 = vrsqrt.pop %v7982
      %v8012 = vrsqrt.pop %v7986
      %v8013 = vrsqrt.pop %v7988
      %v8014 = vrsqrt.pop %v7992
      %v8015 = vrsqrt.pop %v7994
      %v8016 = vrsqrt.pop %v7998
      %v8017 = vrsqrt.pop %v8000
      %v8018 = vmul.f32 %v7833, %v8002
      %v8019 = vmul.f32 %v7834, %v8003
      %v8020 = vmul.f32 %v7835, %v8004
      %v8021 = vmul.f32 %v7836, %v8005
      %v8022 = vmul.f32 %v7837, %v8006
      %v8023 = vmul.f32 %v7838, %v8007
      %v8024 = vmul.f32 %v7839, %v8008
      %v8025 = vmul.f32 %v7840, %v8009
      %v8026 = vmul.f32 %v7841, %v8010
      %v8027 = vmul.f32 %v7842, %v8011
      %v8028 = vmul.f32 %v7843, %v8012
      %v8029 = vmul.f32 %v7844, %v8013
      %v8030 = vmul.f32 %v7845, %v8014
      %v8031 = vmul.f32 %v7846, %v8015
      %v8032 = vmul.f32 %v7847, %v8016
      %v8033 = vmul.f32 %v7848, %v8017
      %s8034 = scalar_lea.vmem %s6, 1
      %v8035 = vld [vmem:[%s8034] ss:$4 sm:$0x3]
      %v8037 = vlaneseq
      %v8038 = vshrl.u32 %v8037, 7
      %v8039 = vsub.s32 0, %v8038
      %v8040 = vrot.slane %v8035, %v8039
      %v8041 = vlaneseq
      %v8042 = vshrl.u32 %v8041, 7
      %v8043 = vsub.s32 1, %v8042
      %v8044 = vrot.slane %v8035, %v8043
      %v8047 = vmul.f32 %v8018, %v8040
      %v8048 = vmul.f32 %v8019, %v8044
      %v8049 = vmul.f32 %v8020, %v8040
      %v8050 = vmul.f32 %v8021, %v8044
      %v8051 = vmul.f32 %v8022, %v8040
      %v8052 = vmul.f32 %v8023, %v8044
      %v8053 = vmul.f32 %v8024, %v8040
      %v8054 = vmul.f32 %v8025, %v8044
      %v8055 = vmul.f32 %v8026, %v8040
      %v8056 = vmul.f32 %v8027, %v8044
      %v8057 = vmul.f32 %v8028, %v8040
      %v8058 = vmul.f32 %v8029, %v8044
      %v8059 = vmul.f32 %v8030, %v8040
      %v8060 = vmul.f32 %v8031, %v8044
      %v8061 = vmul.f32 %v8032, %v8040
      %v8062 = vmul.f32 %v8033, %v8044
      %s8063 = scalar_lea.vmem %s6, 2
      %v8064 = vld [vmem:[%s8063] ss:$4 sm:$0x3]
      %v8066 = vlaneseq
      %v8067 = vshrl.u32 %v8066, 7
      %v8068 = vsub.s32 0, %v8067
      %v8069 = vrot.slane %v8064, %v8068
      %v8070 = vlaneseq
      %v8071 = vshrl.u32 %v8070, 7
      %v8072 = vsub.s32 1, %v8071
      %v8073 = vrot.slane %v8064, %v8072
      %v8076 = vadd.f32 %v8047, %v8069
      %v8077 = vadd.f32 %v8048, %v8073
      %v8078 = vadd.f32 %v8049, %v8069
      %v8079 = vadd.f32 %v8050, %v8073
      %v8080 = vadd.f32 %v8051, %v8069
      %v8081 = vadd.f32 %v8052, %v8073
      %v8082 = vadd.f32 %v8053, %v8069
      %v8083 = vadd.f32 %v8054, %v8073
      %v8084 = vadd.f32 %v8055, %v8069
      %v8085 = vadd.f32 %v8056, %v8073
      %v8086 = vadd.f32 %v8057, %v8069
      %v8087 = vadd.f32 %v8058, %v8073
      %v8088 = vadd.f32 %v8059, %v8069
      %v8089 = vadd.f32 %v8060, %v8073
      %v8090 = vadd.f32 %v8061, %v8069
      %v8091 = vadd.f32 %v8062, %v8073
      %8092 = vst [vmem:[%s305] sm:$0xff] %v8076
      %8093 = vst.msk [vmem:[%s305 + $0x8] sm:$0xff] %vm7695, %v8077
      %8094 = vst [vmem:[%s305 + $0x10] sm:$0xff] %v8078
      %8095 = vst.msk [vmem:[%s305 + $0x18] sm:$0xff] %vm7695, %v8079
      %8096 = vst [vmem:[%s305 + $0x20] sm:$0xff] %v8080
      %8097 = vst.msk [vmem:[%s305 + $0x28] sm:$0xff] %vm7695, %v8081
      %8098 = vst [vmem:[%s305 + $0x30] sm:$0xff] %v8082
      %8099 = vst.msk [vmem:[%s305 + $0x38] sm:$0xff] %vm7695, %v8083
      %8100 = vst [vmem:[%s305 + $0x40] sm:$0xff] %v8084
      %8101 = vst.msk [vmem:[%s305 + $0x48] sm:$0xff] %vm7695, %v8085
      %8102 = vst [vmem:[%s305 + $0x50] sm:$0xff] %v8086
      %8103 = vst.msk [vmem:[%s305 + $0x58] sm:$0xff] %vm7695, %v8087
      %8104 = vst [vmem:[%s305 + $0x60] sm:$0xff] %v8088
      %8105 = vst.msk [vmem:[%s305 + $0x68] sm:$0xff] %vm7695, %v8089
      %8106 = vst [vmem:[%s305 + $0x70] sm:$0xff] %v8090
      %8107 = vst.msk [vmem:[%s305 + $0x78] sm:$0xff] %vm7695, %v8091
      %p8108 = scmp.lt.s32.totalorder %s19, 1
      %s8109 = scalar_select %p8108, %s19, 1
      %s8110 = smul.addr %s8109, 16
      %s8111 = smul.addr %s8110, 8
      %s8112 = scalar_lea.vmem %s8, %s8111
      // Predicated region
      $region53: #{final_patch_expand_x4.1} parent=51 // pred_check
        %p8113 = pneg %p210
      $region54: #{final_patch_expand_x4.1} parent=51 // pred_check_branch
        %8115 = sbr.rel (%p8113) target = $region56
      $region55: #{final_patch_expand_x4.1} parent=51 // pred_region
        _
      $region56: #{final_patch_expand_x4.1} parent=51 // pred_fallthru
        _
    $region52: #{final_patch_expand_x4.1} parent=5 // pred_fallthru
      _
    %p8116 = scmp.le.s32.totalorder 2, %s14
    // Predicated region
    $region57: #{final_patch_expand_x4.1} parent=5 // pred_check
      %p8117 = pneg %p8116
    $region58: #{final_patch_expand_x4.1} parent=5 // pred_check_branch
      %8119 = sbr.rel (%p8117) target = $region60
    $region59: #{final_patch_expand_x4.1} parent=5 // pred_region
      %s8120 = ssub.s32 %s14, 2
      // Predicated region
      $region61: #{final_patch_expand_x4.1} parent=59 // pred_check
        %p8121 = pneg %p216
      $region62: #{final_patch_expand_x4.1} parent=59 // pred_check_branch
        %8123 = sbr.rel (%p8121) target = $region64
      $region63: #{final_patch_expand_x4.1} parent=59 // pred_region
        %p8124 = scmp.lt.s32.totalorder %s20, 1
        %s8125 = scalar_select %p8124, %s20, 1
        %s8126 = smul.addr %s8125, 16
        %s8127 = smul.addr %s8126, 8
        %s8128 = scalar_lea.vmem %s8, %s8127
      $region64: #{final_patch_expand_x4.1} parent=59 // pred_fallthru
        _
    $region60: #{final_patch_expand_x4.1} parent=5 // pred_fallthru
      _
  $region6: #{final_patch_expand_x4.1} parent=0 // loop_footer
    %s18 = sadd.s32 1, %s14
  $region7: #{final_patch_expand_x4.1} parent=0 // loop_footer_branch
    %13 = sbr.rel target = $region3
  $region8: #{final_patch_expand_x4.1} parent=0 // loop_exit
    _

</llo_original>
